<compile_context>
chip_gen: v7x
topology: tpu7x:2x2x1
jax: 0.10.0
libtpu: 0.0.40
codegen_flags: <defaults>
</compile_context>

<pallas_src>
import functools

import jax
import jax.numpy as jnp
from jax.experimental import pallas as pl
from jax.experimental.pallas import tpu as pltpu

# ----------------------------- configuration --------------------------------
B = 2                  # batch
C = 3                  # image channels
IMG = 16               # image H = W
PATCH = 8              # patch size -> 2x2 = 4 patches
N_PATCH = (IMG // PATCH) ** 2
N_VIS_TOK = N_PATCH + 1            # + cls token
CPP = C * PATCH * PATCH
VIS_WIDTH = 32         # vision_cfg.width
VIS_HEADS = 4
VIS_LAYERS = 2
VIS_MLP = 64
N_CAUSAL = 4           # vladapter_cfg.n_causal
D_MODEL = 32           # decoder.config.d_model
DEC_HEADS = 4
FFN = 64
VOCAB = 64
SEQ = 8                # text sequence length
DEC_T = N_CAUSAL + SEQ

F32 = jnp.float32
BF16 = jnp.bfloat16
NEG = -1e9


# --------------------------- in-kernel helpers --------------------------------


def _mm(a, b):
    # bf16 MXU inputs, f32 accumulation (single MXU pass on v5e/v6e/v7x).
    return jnp.dot(a.astype(BF16), b.astype(BF16), preferred_element_type=F32)


def _ln(x, g, b, eps):
    mu = jnp.mean(x, axis=-1, keepdims=True)
    xc = x - mu
    var = jnp.mean(xc * xc, axis=-1, keepdims=True)
    return xc * jax.lax.rsqrt(var + eps) * g + b


def _rms(x, g, eps):
    ms = jnp.mean(x * x, axis=-1, keepdims=True)
    return x * jax.lax.rsqrt(ms + eps) * g


def _softmax_rows(s):
    # bias add / max / exp stay in f32; divide goes to the EUP via reciprocal.
    s = s - jnp.max(s, axis=-1, keepdims=True)
    p = jnp.exp(s)
    return p * pl.reciprocal(jnp.sum(p, axis=-1, keepdims=True), approx=True)


def _tile_rows(a, n):
    return a if n == 1 else jnp.concatenate([a] * n, axis=0)


def _causal_block(t):
    row = jax.lax.broadcasted_iota(jnp.int32, (t, t), 0)
    col = jax.lax.broadcasted_iota(jnp.int32, (t, t), 1)
    return jnp.where(col <= row, 0.0, NEG).astype(F32)


def _block_bias(nb, tq, tk, diag_block):
    """Block-diagonal additive attention bias for a batch flattened into rows:
    queries of batch i only see keys of batch i (with `diag_block` inside)."""
    if nb == 1:
        return diag_block
    neg = jnp.full((tq, tk), NEG, F32)
    rows = []
    for i in range(nb):
        rows.append(jnp.concatenate(
            [diag_block if j == i else neg for j in range(nb)], axis=1))
    return jnp.concatenate(rows, axis=0)


def _mha(xq, xkv, wq, wk, wv, wo, bias, num_heads,
         bq=None, bk=None, bv=None, bo=None):
    """Multi-head attention with head-concatenated weights.

    wq/wk/wv: [D, H*hd] (1/sqrt(hd) already folded into wq); wo: [H*hd, D];
    biases optional ([1, H*hd] / [1, D]); bias: additive [Tq, Tk] or None.
    """
    d = wq.shape[-1]
    hd = d // num_heads
    q = _mm(xq, wq)
    k = _mm(xkv, wk)
    v = _mm(xkv, wv)
    if bq is not None:
        q = q + bq
    if bk is not None:
        k = k + bk
    if bv is not None:
        v = v + bv
    heads = []
    for h in range(num_heads):
        qh = q[:, h * hd:(h + 1) * hd].astype(BF16)
        kh = k[:, h * hd:(h + 1) * hd].astype(BF16)
        vh = v[:, h * hd:(h + 1) * hd]
        s = jax.lax.dot_general(qh, kh, (((1,), (1,)), ((), ())),
                                preferred_element_type=F32)
        if bias is not None:
            s = s + bias
        heads.append(_mm(_softmax_rows(s), vh))
    ctx = jnp.concatenate(heads, axis=-1)          # [Tq, H*hd]
    out = _mm(ctx, wo)
    if bo is not None:
        out = out + bo
    return out


# ------------------------------ fused kernel ----------------------------------


def _emu_kernel(*refs, names, nb, ln_eps):
    loss_ref = refs[-1]
    r = dict(zip(names, refs[:-1]))

    # ---------------- stage 1: EVA-ViT vision tower (VMEM resident) ----------
    pe = _mm(r["patches"][...], r["v_patch_w"][...]) + r["v_patch_b"][...]
    cls = r["v_cls"][...]
    x = jnp.concatenate(
        sum([[cls, pe[b * N_PATCH:(b + 1) * N_PATCH, :]] for b in range(nb)], []),
        axis=0)                                                   # [nb*Tv, D]
    x = x + _tile_rows(r["v_pos"][...], nb)

    vis_bias = _block_bias(nb, N_VIS_TOK, N_VIS_TOK,
                           jnp.zeros((N_VIS_TOK, N_VIS_TOK), F32))
    for l in range(VIS_LAYERS):
        hn = _ln(x, r["v_ln1_g"][l], r["v_ln1_b"][l], ln_eps)
        x = x + _mha(hn, hn, r["v_wq"][l], r["v_wk"][l], r["v_wv"][l],
                     r["v_wo"][l], vis_bias, VIS_HEADS,
                     bq=r["v_bq"][l], bk=r["v_bk"][l], bv=r["v_bv"][l],
                     bo=r["v_bo"][l])
        hn = _ln(x, r["v_ln2_g"][l], r["v_ln2_b"][l], ln_eps)
        hid = jax.nn.gelu(_mm(hn, r["v_fc1_w"][l]) + r["v_fc1_b"][l])
        x = x + _mm(hid, r["v_fc2_w"][l]) + r["v_fc2_b"][l]

    # ------------- stage 2: ln_visual + CausalFormer (VMEM resident) ---------
    # ln index: 0 = ln_visual (eps 1e-6), 1 = ln_q, 2 = ln_c, 3 = ln_f, 4 = ln_out
    kv = _ln(x, r["c_ln_g"][0], r["c_ln_b"][0], 1e-6)
    q = _tile_rows(r["c_queries"][...], nb)                       # [nb*Nc, D]
    self_bias = _block_bias(nb, N_CAUSAL, N_CAUSAL, _causal_block(N_CAUSAL))
    cross_bias = _block_bias(nb, N_CAUSAL, N_VIS_TOK,
                             jnp.zeros((N_CAUSAL, N_VIS_TOK), F32))

    hn = _ln(q, r["c_ln_g"][1], r["c_ln_b"][1], ln_eps)
    q = q + _mha(hn, hn, r["c_wq"][0], r["c_wk"][0], r["c_wv"][0],
                 r["c_wo"][0], self_bias, VIS_HEADS,
                 bq=r["c_bq"][0], bk=r["c_bk"][0], bv=r["c_bv"][0],
                 bo=r["c_bo"][0])
    hn = _ln(q, r["c_ln_g"][2], r["c_ln_b"][2], ln_eps)
    q = q + _mha(hn, kv, r["c_wq"][1], r["c_wk"][1], r["c_wv"][1],
                 r["c_wo"][1], cross_bias, VIS_HEADS,
                 bq=r["c_bq"][1], bk=r["c_bk"][1], bv=r["c_bv"][1],
                 bo=r["c_bo"][1])
    hn = _ln(q, r["c_ln_g"][3], r["c_ln_b"][3], ln_eps)
    hid = jax.nn.gelu(_mm(hn, r["c_fc1_w"][...]) + r["c_fc1_b"][...])
    q = q + _mm(hid, r["c_fc2_w"][...]) + r["c_fc2_b"][...]
    hn = _ln(q, r["c_ln_g"][4], r["c_ln_b"][4], ln_eps)
    img = _mm(hn, r["c_proj_w"][...]) + r["c_proj_b"][...]        # [nb*Nc, Dm]

    # ------ stage 3: token embed + LLaMA block + lm_head + masked xent -------
    # token embedding as one-hot x table matmul (only valid at toy vocab).
    onehot_tok = (jax.lax.broadcasted_iota(jnp.int32, (nb * SEQ, VOCAB), 1)
                  == r["tokens"][...]).astype(BF16)
    tok = _mm(onehot_tok, r["d_embed"][...])                      # [nb*S, Dm]

    x = jnp.concatenate(
        sum([[img[b * N_CAUSAL:(b + 1) * N_CAUSAL, :],
              tok[b * SEQ:(b + 1) * SEQ, :]] for b in range(nb)], []),
        axis=0)                                                   # [nb*T, Dm]

    km = r["key_mask"][...]                                       # [1, nb*T]
    dec_bias = (_block_bias(nb, DEC_T, DEC_T, _causal_block(DEC_T))
                + jnp.where(km > 0.5, 0.0, NEG).astype(F32))

    hn = _rms(x, r["d_norm_g"][0], 1e-6)                          # attn_norm
    x = x + _mha(hn, hn, r["d_wq"][...], r["d_wk"][...], r["d_wv"][...],
                 r["d_wo"][...], dec_bias, DEC_HEADS)
    hn = _rms(x, r["d_norm_g"][1], 1e-6)                          # ffn_norm
    gu = _mm(hn, r["d_w_gateup"][...])                            # [nb*T, 2*FFN]
    x = x + _mm(jax.nn.silu(gu[:, :FFN]) * gu[:, FFN:], r["d_w_down"][...])

    # final RMSNorm + lm_head on TEXT rows only (register concat, no scratch)
    txt = jnp.concatenate(
        [x[b * DEC_T + N_CAUSAL:(b + 1) * DEC_T, :] for b in range(nb)], axis=0)
    hn = _rms(txt, r["d_norm_g"][2], 1e-6)                        # final_norm
    logits = _mm(hn, r["d_lm_head_w"][...])                       # [nb*S, V]
    m = jnp.max(logits, axis=-1, keepdims=True)
    lse = jnp.log(jnp.sum(jnp.exp(logits - m), axis=-1, keepdims=True)) + m
    onehot_lab = (jax.lax.broadcasted_iota(jnp.int32, (nb * SEQ, VOCAB), 1)
                  == r["labels"][...]).astype(F32)
    nll = lse - jnp.sum(logits * onehot_lab, axis=-1, keepdims=True)
    msk = r["out_mask"][...]                                      # [nb*S, 1]
    # token-weighted mean over the whole batch (fully-masked batch -> 0)
    loss_ref[0, 0] = jnp.sum(nll * msk) / jnp.maximum(jnp.sum(msk), 1.0)


def _emu_fused(params, patches, key_mask, tokens, labels, out_mask):
    pv, pc, pd = params["visual"], params["cformer"], params["decoder"]
    ops = [
        ("patches", patches), ("key_mask", key_mask), ("tokens", tokens),
        ("labels", labels), ("out_mask", out_mask),
        # vision tower
        ("v_patch_w", pv["patch_w"]), ("v_patch_b", pv["patch_b"]),
        ("v_cls", pv["cls"]), ("v_pos", pv["pos"]),
        ("v_ln1_g", pv["ln1_g"]), ("v_ln1_b", pv["ln1_b"]),
        ("v_ln2_g", pv["ln2_g"]), ("v_ln2_b", pv["ln2_b"]),
        ("v_wq", pv["wq"]), ("v_wk", pv["wk"]), ("v_wv", pv["wv"]), ("v_wo", pv["wo"]),
        ("v_bq", pv["bq"]), ("v_bk", pv["bk"]), ("v_bv", pv["bv"]), ("v_bo", pv["bo"]),
        ("v_fc1_w", pv["fc1_w"]), ("v_fc1_b", pv["fc1_b"]),
        ("v_fc2_w", pv["fc2_w"]), ("v_fc2_b", pv["fc2_b"]),
        # ln_visual + CausalFormer (attn index 0 = self, 1 = cross)
        ("c_queries", pc["queries"]), ("c_ln_g", pc["ln_g"]), ("c_ln_b", pc["ln_b"]),
        ("c_wq", pc["wq"]), ("c_wk", pc["wk"]), ("c_wv", pc["wv"]), ("c_wo", pc["wo"]),
        ("c_bq", pc["bq"]), ("c_bk", pc["bk"]), ("c_bv", pc["bv"]), ("c_bo", pc["bo"]),
        ("c_fc1_w", pc["fc1_w"]), ("c_fc1_b", pc["fc1_b"]),
        ("c_fc2_w", pc["fc2_w"]), ("c_fc2_b", pc["fc2_b"]),
        ("c_proj_w", pc["proj_w"]), ("c_proj_b", pc["proj_b"]),
        # LLaMA decoder block + lm_head
        ("d_embed", pd["embed"]), ("d_norm_g", pd["norm_g"]),
        ("d_wq", pd["wq"]), ("d_wk", pd["wk"]), ("d_wv", pd["wv"]), ("d_wo", pd["wo"]),
        ("d_w_gateup", pd["w_gateup"]), ("d_w_down", pd["w_down"]),
        ("d_lm_head_w", pd["lm_head_w"]),
    ]
    names = tuple(n for n, _ in ops)
    arrays = [a for _, a in ops]
    nb = patches.shape[0] // N_PATCH
    loss = pl.pallas_call(
        functools.partial(_emu_kernel, names=names, nb=nb, ln_eps=1e-5),
        # single invocation (no grid): batch is flattened into sublanes, so the
        # whole forward is one launch and all intermediates stay in VMEM.
        in_specs=[pl.BlockSpec(memory_space=pltpu.MemorySpace.VMEM)] * len(arrays),
        out_specs=pl.BlockSpec(memory_space=pltpu.MemorySpace.SMEM),
        out_shape=jax.ShapeDtypeStruct((1, 1), F32),
    )(*arrays)
    return loss[0, 0]


# ------------------------------- parameters ----------------------------------


def _init(key, shape, scale=0.02):
    return scale * jax.random.normal(key, shape, dtype=F32)


def init_attn_stack(key, d, num_heads, lead=(), biases=True):
    """Head-concatenated attention weights (bf16): q/k/v/out are [*, D, D];
    the 1/sqrt(head_dim) score scale is folded into wq at init."""
    hd = d // num_heads
    scale = 1.0 / (hd ** 0.5)
    ks = jax.random.split(key, 4)
    p = dict(
        wq=(_init(ks[0], (*lead, d, d)) * scale).astype(BF16),
        wk=_init(ks[1], (*lead, d, d)).astype(BF16),
        wv=_init(ks[2], (*lead, d, d)).astype(BF16),
        wo=_init(ks[3], (*lead, d, d)).astype(BF16),
    )
    if biases:
        z = lambda s: jnp.zeros(s, F32)
        p.update(bq=z((*lead, 1, d)), bk=z((*lead, 1, d)),
                 bv=z((*lead, 1, d)), bo=z((*lead, 1, d)))
    return p


def init_params(key):
    ks = iter(jax.random.split(key, 32))
    nxt = lambda: next(ks)
    D, L = VIS_WIDTH, VIS_LAYERS
    z = lambda s: jnp.zeros(s, F32)
    one = lambda s: jnp.ones(s, F32)

    visual = dict(
        patch_w=_init(nxt(), (CPP, D)).astype(BF16), patch_b=z((1, D)),
        cls=_init(nxt(), (1, D)), pos=_init(nxt(), (N_VIS_TOK, D)),
        ln1_g=one((L, 1, D)), ln1_b=z((L, 1, D)),
        ln2_g=one((L, 1, D)), ln2_b=z((L, 1, D)),
        fc1_w=_init(nxt(), (L, D, VIS_MLP)).astype(BF16), fc1_b=z((L, 1, VIS_MLP)),
        fc2_w=_init(nxt(), (L, VIS_MLP, D)).astype(BF16), fc2_b=z((L, 1, D)),
        **init_attn_stack(nxt(), D, VIS_HEADS, lead=(L,)),
    )

    cformer = dict(
        queries=_init(nxt(), (N_CAUSAL, D)),
        # ln 0 = ln_visual (nn.init.constant_: weight=1.0, bias=0, eps=1e-6)
        # ln 1..4 = ln_q, ln_c, ln_f, ln_out
        ln_g=one((5, 1, D)), ln_b=z((5, 1, D)),
        fc1_w=_init(nxt(), (D, VIS_MLP)).astype(BF16), fc1_b=z((1, VIS_MLP)),
        fc2_w=_init(nxt(), (VIS_MLP, D)).astype(BF16), fc2_b=z((1, D)),
        proj_w=_init(nxt(), (D, D_MODEL)).astype(BF16), proj_b=z((1, D_MODEL)),
        **init_attn_stack(nxt(), D, VIS_HEADS, lead=(2,)),   # 0 = self, 1 = cross
    )

    decoder = dict(
        embed=_init(nxt(), (VOCAB, D_MODEL)).astype(BF16),
        norm_g=one((3, 1, D_MODEL)),       # 0=attn_norm, 1=ffn_norm, 2=final_norm
        w_gateup=_init(nxt(), (D_MODEL, 2 * FFN)).astype(BF16),   # [gate | up]
        w_down=_init(nxt(), (FFN, D_MODEL)).astype(BF16),
        lm_head_w=_init(nxt(), (D_MODEL, VOCAB)).astype(BF16),
        **init_attn_stack(nxt(), D_MODEL, DEC_HEADS, biases=False),  # LLaMA: no biases
    )
    return dict(visual=visual, cformer=cformer, decoder=decoder)


# ------------------------------- full forward --------------------------------


@jax.jit
def emu_forward(params, image, text_input, input_mask, text_output, output_mask):
    """loss = decoder(cformer(ln_visual(visual(image))), text, masks) — one kernel."""
    Bi = image.shape[0]
    gh, gw = IMG // PATCH, IMG // PATCH
    # conv patch-embed == matmul: extract non-overlapping patches (host glue)
    patches = (image.reshape(Bi, C, gh, PATCH, gw, PATCH)
                    .transpose(0, 2, 4, 1, 3, 5)
                    .reshape(Bi * N_PATCH, CPP))
    # decoder key-validity: image prefix always valid, text from input_mask
    key_mask = jnp.concatenate(
        [jnp.ones((Bi, N_CAUSAL), F32), input_mask.astype(F32)], axis=1
    ).reshape(1, Bi * DEC_T)
    tokens = text_input.astype(jnp.int32).reshape(Bi * SEQ, 1)
    labels = text_output.astype(jnp.int32).reshape(Bi * SEQ, 1)
    omask = output_mask.astype(F32).reshape(Bi * SEQ, 1)
    return _emu_fused(params, patches, key_mask, tokens, labels, omask)


# ---------------------------------- main --------------------------------------

if __name__ == "__main__":
    root = jax.random.PRNGKey(0)
    pkey, ikey, tkey = jax.random.split(root, 3)

    params = init_params(pkey)
    image = jax.random.normal(ikey, (B, C, IMG, IMG), dtype=F32)     # NCHW
    text_input = jax.random.randint(tkey, (B, SEQ), 0, VOCAB)
    text_output = jnp.roll(text_input, -1, axis=1)

    lengths = jnp.array([[SEQ], [SEQ - 2]], dtype=jnp.int32)         # simple padding
    pos = jnp.arange(SEQ)[None, :]
    input_mask = (pos < lengths).astype(jnp.int32)
    # exclude the wrap-around target at the last valid position (next-token loss)
    output_mask = (pos < (lengths - 1)).astype(jnp.int32)

    loss = emu_forward(params, image, text_input, input_mask, text_output, output_mask)
    loss = jax.block_until_ready(loss)
    assert jnp.isfinite(loss), f"loss is not finite: {loss}"
    print("KERNEL_OK")
</pallas_src>

<mosaic_0001>
module attributes {stable_mosaic.version = 11 : i64} {
  func.func @_emu_kernel(%arg0: memref<8x192xf32, #tpu.memory_space<vmem>>, %arg1: memref<1x24xf32, #tpu.memory_space<vmem>>, %arg2: memref<16x1xi32, #tpu.memory_space<vmem>>, %arg3: memref<16x1xi32, #tpu.memory_space<vmem>>, %arg4: memref<16x1xf32, #tpu.memory_space<vmem>>, %arg5: memref<192x32xbf16, #tpu.memory_space<vmem>>, %arg6: memref<1x32xf32, #tpu.memory_space<vmem>>, %arg7: memref<1x32xf32, #tpu.memory_space<vmem>>, %arg8: memref<5x32xf32, #tpu.memory_space<vmem>>, %arg9: memref<2x1x32xf32, #tpu.memory_space<vmem>>, %arg10: memref<2x1x32xf32, #tpu.memory_space<vmem>>, %arg11: memref<2x1x32xf32, #tpu.memory_space<vmem>>, %arg12: memref<2x1x32xf32, #tpu.memory_space<vmem>>, %arg13: memref<2x32x32xbf16, #tpu.memory_space<vmem>>, %arg14: memref<2x32x32xbf16, #tpu.memory_space<vmem>>, %arg15: memref<2x32x32xbf16, #tpu.memory_space<vmem>>, %arg16: memref<2x32x32xbf16, #tpu.memory_space<vmem>>, %arg17: memref<2x1x32xf32, #tpu.memory_space<vmem>>, %arg18: memref<2x1x32xf32, #tpu.memory_space<vmem>>, %arg19: memref<2x1x32xf32, #tpu.memory_space<vmem>>, %arg20: memref<2x1x32xf32, #tpu.memory_space<vmem>>, %arg21: memref<2x32x64xbf16, #tpu.memory_space<vmem>>, %arg22: memref<2x1x64xf32, #tpu.memory_space<vmem>>, %arg23: memref<2x64x32xbf16, #tpu.memory_space<vmem>>, %arg24: memref<2x1x32xf32, #tpu.memory_space<vmem>>, %arg25: memref<4x32xf32, #tpu.memory_space<vmem>>, %arg26: memref<5x1x32xf32, #tpu.memory_space<vmem>>, %arg27: memref<5x1x32xf32, #tpu.memory_space<vmem>>, %arg28: memref<2x32x32xbf16, #tpu.memory_space<vmem>>, %arg29: memref<2x32x32xbf16, #tpu.memory_space<vmem>>, %arg30: memref<2x32x32xbf16, #tpu.memory_space<vmem>>, %arg31: memref<2x32x32xbf16, #tpu.memory_space<vmem>>, %arg32: memref<2x1x32xf32, #tpu.memory_space<vmem>>, %arg33: memref<2x1x32xf32, #tpu.memory_space<vmem>>, %arg34: memref<2x1x32xf32, #tpu.memory_space<vmem>>, %arg35: memref<2x1x32xf32, #tpu.memory_space<vmem>>, %arg36: memref<32x64xbf16, #tpu.memory_space<vmem>>, %arg37: memref<1x64xf32, #tpu.memory_space<vmem>>, %arg38: memref<64x32xbf16, #tpu.memory_space<vmem>>, %arg39: memref<1x32xf32, #tpu.memory_space<vmem>>, %arg40: memref<32x32xbf16, #tpu.memory_space<vmem>>, %arg41: memref<1x32xf32, #tpu.memory_space<vmem>>, %arg42: memref<64x32xbf16, #tpu.memory_space<vmem>>, %arg43: memref<3x1x32xf32, #tpu.memory_space<vmem>>, %arg44: memref<32x32xbf16, #tpu.memory_space<vmem>>, %arg45: memref<32x32xbf16, #tpu.memory_space<vmem>>, %arg46: memref<32x32xbf16, #tpu.memory_space<vmem>>, %arg47: memref<32x32xbf16, #tpu.memory_space<vmem>>, %arg48: memref<32x128xbf16, #tpu.memory_space<vmem>>, %arg49: memref<64x32xbf16, #tpu.memory_space<vmem>>, %arg50: memref<32x64xbf16, #tpu.memory_space<vmem>>, %arg51: memref<1x1xf32, #tpu.memory_space<smem>>) attributes {dimension_semantics = [], scalar_prefetch = 0 : i64, scratch_operands = 0 : i64, tpu.core_type = #tpu.core_type<tc>} {
    %c0 = arith.constant 0 : index
    %c0_0 = arith.constant 0 : index
    %0 = vector.load %arg0[%c0, %c0_0] : memref<8x192xf32, #tpu.memory_space<vmem>>, vector<8x192xf32>
    %c0_1 = arith.constant 0 : index
    %c0_2 = arith.constant 0 : index
    %1 = vector.load %arg5[%c0_1, %c0_2] : memref<192x32xbf16, #tpu.memory_space<vmem>>, vector<192x32xbf16>
    %2 = arith.truncf %0 : vector<8x192xf32> to vector<8x192xbf16>
    %cst = arith.constant dense<0.000000e+00> : vector<8x32xf32>
    %3 = tpu.matmul %2, %1, %cst {dimension_numbers = #tpu.dot_dimension_numbers<[1], [0], [0], [1], [0, 0, 1, 1], [], []>} : vector<8x192xbf16>, vector<192x32xbf16>, vector<8x32xf32> -> vector<8x32xf32>
    %c0_3 = arith.constant 0 : index
    %c0_4 = arith.constant 0 : index
    %4 = vector.load %arg6[%c0_3, %c0_4] : memref<1x32xf32, #tpu.memory_space<vmem>>, vector<1x32xf32>
    %5 = vector.broadcast %4 : vector<1x32xf32> to vector<8x32xf32>
    %6 = arith.addf %3, %5 : vector<8x32xf32>
    %c0_5 = arith.constant 0 : index
    %c0_6 = arith.constant 0 : index
    %7 = vector.load %arg7[%c0_5, %c0_6] : memref<1x32xf32, #tpu.memory_space<vmem>>, vector<1x32xf32>
    %8 = vector.extract_strided_slice %6 {offsets = [0, 0], sizes = [4, 32], strides = [1, 1]} : vector<8x32xf32> to vector<4x32xf32>
    %9 = vector.extract_strided_slice %6 {offsets = [4, 0], sizes = [4, 32], strides = [1, 1]} : vector<8x32xf32> to vector<4x32xf32>
    %10 = tpu.concatenate %7, %8, %7, %9 in 0 : vector<1x32xf32>, vector<4x32xf32>, vector<1x32xf32>, vector<4x32xf32> -> vector<10x32xf32>
    %c0_7 = arith.constant 0 : index
    %c0_8 = arith.constant 0 : index
    %11 = vector.load %arg8[%c0_7, %c0_8] : memref<5x32xf32, #tpu.memory_space<vmem>>, vector<5x32xf32>
    %12 = tpu.concatenate %11, %11 in 0 : vector<5x32xf32>, vector<5x32xf32> -> vector<10x32xf32>
    %13 = arith.addf %10, %12 : vector<10x32xf32>
    %cst_9 = arith.constant 0.000000e+00 : f32
    %14 = vector.broadcast %cst_9 : f32 to vector<5x5xf32>
    %cst_10 = arith.constant -1.000000e+09 : f32
    %15 = vector.broadcast %cst_10 : f32 to vector<5x5xf32>
    %16 = tpu.concatenate %14, %15 in 1 : vector<5x5xf32>, vector<5x5xf32> -> vector<5x10xf32>
    %17 = tpu.concatenate %15, %14 in 1 : vector<5x5xf32>, vector<5x5xf32> -> vector<5x10xf32>
    %18 = tpu.concatenate %16, %17 in 0 : vector<5x10xf32>, vector<5x10xf32> -> vector<10x10xf32>
    %c0_11 = arith.constant 0 : index
    %c0_12 = arith.constant 0 : index
    %c0_13 = arith.constant 0 : index
    %19 = vector.load %arg9[%c0_11, %c0_12, %c0_13] : memref<2x1x32xf32, #tpu.memory_space<vmem>>, vector<1x1x32xf32>
    %20 = vector.shape_cast %19 : vector<1x1x32xf32> to vector<1x32xf32>
    %c0_14 = arith.constant 0 : index
    %c0_15 = arith.constant 0 : index
    %c0_16 = arith.constant 0 : index
    %21 = vector.load %arg10[%c0_14, %c0_15, %c0_16] : memref<2x1x32xf32, #tpu.memory_space<vmem>>, vector<1x1x32xf32>
    %22 = vector.shape_cast %21 : vector<1x1x32xf32> to vector<1x32xf32>
    %cst_17 = arith.constant dense<0.000000e+00> : vector<10xf32>
    %23 = vector.multi_reduction <add>, %13, %cst_17 [1] : vector<10x32xf32> to vector<10xf32>
    %24 = vector.shape_cast %23 : vector<10xf32> to vector<10x1xf32>
    %cst_18 = arith.constant 3.200000e+01 : f32
    %25 = vector.broadcast %cst_18 : f32 to vector<10x1xf32>
    %26 = arith.divf %24, %25 : vector<10x1xf32>
    %27 = vector.broadcast %26 : vector<10x1xf32> to vector<10x32xf32>
    %28 = arith.subf %13, %27 : vector<10x32xf32>
    %29 = arith.mulf %28, %28 : vector<10x32xf32>
    %cst_19 = arith.constant dense<0.000000e+00> : vector<10xf32>
    %30 = vector.multi_reduction <add>, %29, %cst_19 [1] : vector<10x32xf32> to vector<10xf32>
    %31 = vector.shape_cast %30 : vector<10xf32> to vector<10x1xf32>
    %cst_20 = arith.constant 3.200000e+01 : f32
    %32 = vector.broadcast %cst_20 : f32 to vector<10x1xf32>
    %33 = arith.divf %31, %32 : vector<10x1xf32>
    %cst_21 = arith.constant 9.99999974E-6 : f32
    %34 = vector.broadcast %cst_21 : f32 to vector<10x1xf32>
    %35 = arith.addf %33, %34 : vector<10x1xf32>
    %36 = math.rsqrt %35 : vector<10x1xf32>
    %37 = vector.broadcast %36 : vector<10x1xf32> to vector<10x32xf32>
    %38 = arith.mulf %28, %37 : vector<10x32xf32>
    %39 = vector.broadcast %20 : vector<1x32xf32> to vector<10x32xf32>
    %40 = arith.mulf %38, %39 : vector<10x32xf32>
    %41 = vector.broadcast %22 : vector<1x32xf32> to vector<10x32xf32>
    %42 = arith.addf %40, %41 : vector<10x32xf32>
    %c0_22 = arith.constant 0 : index
    %c0_23 = arith.constant 0 : index
    %c0_24 = arith.constant 0 : index
    %43 = vector.load %arg13[%c0_22, %c0_23, %c0_24] : memref<2x32x32xbf16, #tpu.memory_space<vmem>>, vector<1x32x32xbf16>
    %44 = vector.shape_cast %43 : vector<1x32x32xbf16> to vector<32x32xbf16>
    %c0_25 = arith.constant 0 : index
    %c0_26 = arith.constant 0 : index
    %c0_27 = arith.constant 0 : index
    %45 = vector.load %arg14[%c0_25, %c0_26, %c0_27] : memref<2x32x32xbf16, #tpu.memory_space<vmem>>, vector<1x32x32xbf16>
    %46 = vector.shape_cast %45 : vector<1x32x32xbf16> to vector<32x32xbf16>
    %c0_28 = arith.constant 0 : index
    %c0_29 = arith.constant 0 : index
    %c0_30 = arith.constant 0 : index
    %47 = vector.load %arg15[%c0_28, %c0_29, %c0_30] : memref<2x32x32xbf16, #tpu.memory_space<vmem>>, vector<1x32x32xbf16>
    %48 = vector.shape_cast %47 : vector<1x32x32xbf16> to vector<32x32xbf16>
    %c0_31 = arith.constant 0 : index
    %c0_32 = arith.constant 0 : index
    %c0_33 = arith.constant 0 : index
    %49 = vector.load %arg16[%c0_31, %c0_32, %c0_33] : memref<2x32x32xbf16, #tpu.memory_space<vmem>>, vector<1x32x32xbf16>
    %50 = vector.shape_cast %49 : vector<1x32x32xbf16> to vector<32x32xbf16>
    %c0_34 = arith.constant 0 : index
    %c0_35 = arith.constant 0 : index
    %c0_36 = arith.constant 0 : index
    %51 = vector.load %arg17[%c0_34, %c0_35, %c0_36] : memref<2x1x32xf32, #tpu.memory_space<vmem>>, vector<1x1x32xf32>
    %52 = vector.shape_cast %51 : vector<1x1x32xf32> to vector<1x32xf32>
    %c0_37 = arith.constant 0 : index
    %c0_38 = arith.constant 0 : index
    %c0_39 = arith.constant 0 : index
    %53 = vector.load %arg18[%c0_37, %c0_38, %c0_39] : memref<2x1x32xf32, #tpu.memory_space<vmem>>, vector<1x1x32xf32>
    %54 = vector.shape_cast %53 : vector<1x1x32xf32> to vector<1x32xf32>
    %c0_40 = arith.constant 0 : index
    %c0_41 = arith.constant 0 : index
    %c0_42 = arith.constant 0 : index
    %55 = vector.load %arg19[%c0_40, %c0_41, %c0_42] : memref<2x1x32xf32, #tpu.memory_space<vmem>>, vector<1x1x32xf32>
    %56 = vector.shape_cast %55 : vector<1x1x32xf32> to vector<1x32xf32>
    %c0_43 = arith.constant 0 : index
    %c0_44 = arith.constant 0 : index
    %c0_45 = arith.constant 0 : index
    %57 = vector.load %arg20[%c0_43, %c0_44, %c0_45] : memref<2x1x32xf32, #tpu.memory_space<vmem>>, vector<1x1x32xf32>
    %58 = vector.shape_cast %57 : vector<1x1x32xf32> to vector<1x32xf32>
    %59 = arith.truncf %42 : vector<10x32xf32> to vector<10x32xbf16>
    %cst_46 = arith.constant dense<0.000000e+00> : vector<10x32xf32>
    %60 = tpu.matmul %59, %44, %cst_46 {dimension_numbers = #tpu.dot_dimension_numbers<[1], [0], [0], [1], [0, 0, 1, 1], [], []>} : vector<10x32xbf16>, vector<32x32xbf16>, vector<10x32xf32> -> vector<10x32xf32>
    %61 = arith.truncf %42 : vector<10x32xf32> to vector<10x32xbf16>
    %cst_47 = arith.constant dense<0.000000e+00> : vector<10x32xf32>
    %62 = tpu.matmul %61, %46, %cst_47 {dimension_numbers = #tpu.dot_dimension_numbers<[1], [0], [0], [1], [0, 0, 1, 1], [], []>} : vector<10x32xbf16>, vector<32x32xbf16>, vector<10x32xf32> -> vector<10x32xf32>
    %63 = arith.truncf %42 : vector<10x32xf32> to vector<10x32xbf16>
    %cst_48 = arith.constant dense<0.000000e+00> : vector<10x32xf32>
    %64 = tpu.matmul %63, %48, %cst_48 {dimension_numbers = #tpu.dot_dimension_numbers<[1], [0], [0], [1], [0, 0, 1, 1], [], []>} : vector<10x32xbf16>, vector<32x32xbf16>, vector<10x32xf32> -> vector<10x32xf32>
    %65 = vector.broadcast %52 : vector<1x32xf32> to vector<10x32xf32>
    %66 = arith.addf %60, %65 : vector<10x32xf32>
    %67 = vector.broadcast %54 : vector<1x32xf32> to vector<10x32xf32>
    %68 = arith.addf %62, %67 : vector<10x32xf32>
    %69 = vector.broadcast %56 : vector<1x32xf32> to vector<10x32xf32>
    %70 = arith.addf %64, %69 : vector<10x32xf32>
    %71 = vector.extract_strided_slice %66 {offsets = [0, 0], sizes = [10, 8], strides = [1, 1]} : vector<10x32xf32> to vector<10x8xf32>
    %72 = arith.truncf %71 : vector<10x8xf32> to vector<10x8xbf16>
    %73 = vector.extract_strided_slice %68 {offsets = [0, 0], sizes = [10, 8], strides = [1, 1]} : vector<10x32xf32> to vector<10x8xf32>
    %74 = arith.truncf %73 : vector<10x8xf32> to vector<10x8xbf16>
    %75 = vector.extract_strided_slice %70 {offsets = [0, 0], sizes = [10, 8], strides = [1, 1]} : vector<10x32xf32> to vector<10x8xf32>
    %cst_49 = arith.constant dense<0.000000e+00> : vector<10x10xf32>
    %76 = tpu.matmul %72, %74, %cst_49 {dimension_numbers = #tpu.dot_dimension_numbers<[1], [1], [0], [0], [0, 0, 1, 0], [], []>} : vector<10x8xbf16>, vector<10x8xbf16>, vector<10x10xf32> -> vector<10x10xf32>
    %77 = arith.addf %76, %18 : vector<10x10xf32>
    %cst_50 = arith.constant dense<0xFF800000> : vector<10xf32>
    %78 = vector.multi_reduction <maximumf>, %77, %cst_50 [1] : vector<10x10xf32> to vector<10xf32>
    %79 = vector.shape_cast %78 : vector<10xf32> to vector<10x1xf32>
    %80 = vector.broadcast %79 : vector<10x1xf32> to vector<10x10xf32>
    %81 = arith.subf %77, %80 : vector<10x10xf32>
    %82 = math.exp %81 : vector<10x10xf32>
    %cst_51 = arith.constant dense<0.000000e+00> : vector<10xf32>
    %83 = vector.multi_reduction <add>, %82, %cst_51 [1] : vector<10x10xf32> to vector<10xf32>
    %84 = vector.shape_cast %83 : vector<10xf32> to vector<10x1xf32>
    %85 = tpu.reciprocal %84 {approx = true} : vector<10x1xf32> -> vector<10x1xf32>
    %86 = vector.broadcast %85 : vector<10x1xf32> to vector<10x10xf32>
    %87 = arith.mulf %82, %86 : vector<10x10xf32>
    %88 = arith.truncf %87 : vector<10x10xf32> to vector<10x10xbf16>
    %89 = arith.truncf %75 : vector<10x8xf32> to vector<10x8xbf16>
    %cst_52 = arith.constant dense<0.000000e+00> : vector<10x8xf32>
    %90 = tpu.matmul %88, %89, %cst_52 {dimension_numbers = #tpu.dot_dimension_numbers<[1], [0], [0], [1], [0, 0, 1, 1], [], []>} : vector<10x10xbf16>, vector<10x8xbf16>, vector<10x8xf32> -> vector<10x8xf32>
    %91 = vector.extract_strided_slice %66 {offsets = [0, 8], sizes = [10, 8], strides = [1, 1]} : vector<10x32xf32> to vector<10x8xf32>
    %92 = arith.truncf %91 : vector<10x8xf32> to vector<10x8xbf16>
    %93 = vector.extract_strided_slice %68 {offsets = [0, 8], sizes = [10, 8], strides = [1, 1]} : vector<10x32xf32> to vector<10x8xf32>
    %94 = arith.truncf %93 : vector<10x8xf32> to vector<10x8xbf16>
    %95 = vector.extract_strided_slice %70 {offsets = [0, 8], sizes = [10, 8], strides = [1, 1]} : vector<10x32xf32> to vector<10x8xf32>
    %cst_53 = arith.constant dense<0.000000e+00> : vector<10x10xf32>
    %96 = tpu.matmul %92, %94, %cst_53 {dimension_numbers = #tpu.dot_dimension_numbers<[1], [1], [0], [0], [0, 0, 1, 0], [], []>} : vector<10x8xbf16>, vector<10x8xbf16>, vector<10x10xf32> -> vector<10x10xf32>
    %97 = arith.addf %96, %18 : vector<10x10xf32>
    %cst_54 = arith.constant dense<0xFF800000> : vector<10xf32>
    %98 = vector.multi_reduction <maximumf>, %97, %cst_54 [1] : vector<10x10xf32> to vector<10xf32>
    %99 = vector.shape_cast %98 : vector<10xf32> to vector<10x1xf32>
    %100 = vector.broadcast %99 : vector<10x1xf32> to vector<10x10xf32>
    %101 = arith.subf %97, %100 : vector<10x10xf32>
    %102 = math.exp %101 : vector<10x10xf32>
    %cst_55 = arith.constant dense<0.000000e+00> : vector<10xf32>
    %103 = vector.multi_reduction <add>, %102, %cst_55 [1] : vector<10x10xf32> to vector<10xf32>
    %104 = vector.shape_cast %103 : vector<10xf32> to vector<10x1xf32>
    %105 = tpu.reciprocal %104 {approx = true} : vector<10x1xf32> -> vector<10x1xf32>
    %106 = vector.broadcast %105 : vector<10x1xf32> to vector<10x10xf32>
    %107 = arith.mulf %102, %106 : vector<10x10xf32>
    %108 = arith.truncf %107 : vector<10x10xf32> to vector<10x10xbf16>
    %109 = arith.truncf %95 : vector<10x8xf32> to vector<10x8xbf16>
    %cst_56 = arith.constant dense<0.000000e+00> : vector<10x8xf32>
    %110 = tpu.matmul %108, %109, %cst_56 {dimension_numbers = #tpu.dot_dimension_numbers<[1], [0], [0], [1], [0, 0, 1, 1], [], []>} : vector<10x10xbf16>, vector<10x8xbf16>, vector<10x8xf32> -> vector<10x8xf32>
    %111 = vector.extract_strided_slice %66 {offsets = [0, 16], sizes = [10, 8], strides = [1, 1]} : vector<10x32xf32> to vector<10x8xf32>
    %112 = arith.truncf %111 : vector<10x8xf32> to vector<10x8xbf16>
    %113 = vector.extract_strided_slice %68 {offsets = [0, 16], sizes = [10, 8], strides = [1, 1]} : vector<10x32xf32> to vector<10x8xf32>
    %114 = arith.truncf %113 : vector<10x8xf32> to vector<10x8xbf16>
    %115 = vector.extract_strided_slice %70 {offsets = [0, 16], sizes = [10, 8], strides = [1, 1]} : vector<10x32xf32> to vector<10x8xf32>
    %cst_57 = arith.constant dense<0.000000e+00> : vector<10x10xf32>
    %116 = tpu.matmul %112, %114, %cst_57 {dimension_numbers = #tpu.dot_dimension_numbers<[1], [1], [0], [0], [0, 0, 1, 0], [], []>} : vector<10x8xbf16>, vector<10x8xbf16>, vector<10x10xf32> -> vector<10x10xf32>
    %117 = arith.addf %116, %18 : vector<10x10xf32>
    %cst_58 = arith.constant dense<0xFF800000> : vector<10xf32>
    %118 = vector.multi_reduction <maximumf>, %117, %cst_58 [1] : vector<10x10xf32> to vector<10xf32>
    %119 = vector.shape_cast %118 : vector<10xf32> to vector<10x1xf32>
    %120 = vector.broadcast %119 : vector<10x1xf32> to vector<10x10xf32>
    %121 = arith.subf %117, %120 : vector<10x10xf32>
    %122 = math.exp %121 : vector<10x10xf32>
    %cst_59 = arith.constant dense<0.000000e+00> : vector<10xf32>
    %123 = vector.multi_reduction <add>, %122, %cst_59 [1] : vector<10x10xf32> to vector<10xf32>
    %124 = vector.shape_cast %123 : vector<10xf32> to vector<10x1xf32>
    %125 = tpu.reciprocal %124 {approx = true} : vector<10x1xf32> -> vector<10x1xf32>
    %126 = vector.broadcast %125 : vector<10x1xf32> to vector<10x10xf32>
    %127 = arith.mulf %122, %126 : vector<10x10xf32>
    %128 = arith.truncf %127 : vector<10x10xf32> to vector<10x10xbf16>
    %129 = arith.truncf %115 : vector<10x8xf32> to vector<10x8xbf16>
    %cst_60 = arith.constant dense<0.000000e+00> : vector<10x8xf32>
    %130 = tpu.matmul %128, %129, %cst_60 {dimension_numbers = #tpu.dot_dimension_numbers<[1], [0], [0], [1], [0, 0, 1, 1], [], []>} : vector<10x10xbf16>, vector<10x8xbf16>, vector<10x8xf32> -> vector<10x8xf32>
    %131 = vector.extract_strided_slice %66 {offsets = [0, 24], sizes = [10, 8], strides = [1, 1]} : vector<10x32xf32> to vector<10x8xf32>
    %132 = arith.truncf %131 : vector<10x8xf32> to vector<10x8xbf16>
    %133 = vector.extract_strided_slice %68 {offsets = [0, 24], sizes = [10, 8], strides = [1, 1]} : vector<10x32xf32> to vector<10x8xf32>
    %134 = arith.truncf %133 : vector<10x8xf32> to vector<10x8xbf16>
    %135 = vector.extract_strided_slice %70 {offsets = [0, 24], sizes = [10, 8], strides = [1, 1]} : vector<10x32xf32> to vector<10x8xf32>
    %cst_61 = arith.constant dense<0.000000e+00> : vector<10x10xf32>
    %136 = tpu.matmul %132, %134, %cst_61 {dimension_numbers = #tpu.dot_dimension_numbers<[1], [1], [0], [0], [0, 0, 1, 0], [], []>} : vector<10x8xbf16>, vector<10x8xbf16>, vector<10x10xf32> -> vector<10x10xf32>
    %137 = arith.addf %136, %18 : vector<10x10xf32>
    %cst_62 = arith.constant dense<0xFF800000> : vector<10xf32>
    %138 = vector.multi_reduction <maximumf>, %137, %cst_62 [1] : vector<10x10xf32> to vector<10xf32>
    %139 = vector.shape_cast %138 : vector<10xf32> to vector<10x1xf32>
    %140 = vector.broadcast %139 : vector<10x1xf32> to vector<10x10xf32>
    %141 = arith.subf %137, %140 : vector<10x10xf32>
    %142 = math.exp %141 : vector<10x10xf32>
    %cst_63 = arith.constant dense<0.000000e+00> : vector<10xf32>
    %143 = vector.multi_reduction <add>, %142, %cst_63 [1] : vector<10x10xf32> to vector<10xf32>
    %144 = vector.shape_cast %143 : vector<10xf32> to vector<10x1xf32>
    %145 = tpu.reciprocal %144 {approx = true} : vector<10x1xf32> -> vector<10x1xf32>
    %146 = vector.broadcast %145 : vector<10x1xf32> to vector<10x10xf32>
    %147 = arith.mulf %142, %146 : vector<10x10xf32>
    %148 = arith.truncf %147 : vector<10x10xf32> to vector<10x10xbf16>
    %149 = arith.truncf %135 : vector<10x8xf32> to vector<10x8xbf16>
    %cst_64 = arith.constant dense<0.000000e+00> : vector<10x8xf32>
    %150 = tpu.matmul %148, %149, %cst_64 {dimension_numbers = #tpu.dot_dimension_numbers<[1], [0], [0], [1], [0, 0, 1, 1], [], []>} : vector<10x10xbf16>, vector<10x8xbf16>, vector<10x8xf32> -> vector<10x8xf32>
    %151 = tpu.concatenate %90, %110, %130, %150 in 1 : vector<10x8xf32>, vector<10x8xf32>, vector<10x8xf32>, vector<10x8xf32> -> vector<10x32xf32>
    %152 = arith.truncf %151 : vector<10x32xf32> to vector<10x32xbf16>
    %cst_65 = arith.constant dense<0.000000e+00> : vector<10x32xf32>
    %153 = tpu.matmul %152, %50, %cst_65 {dimension_numbers = #tpu.dot_dimension_numbers<[1], [0], [0], [1], [0, 0, 1, 1], [], []>} : vector<10x32xbf16>, vector<32x32xbf16>, vector<10x32xf32> -> vector<10x32xf32>
    %154 = vector.broadcast %58 : vector<1x32xf32> to vector<10x32xf32>
    %155 = arith.addf %153, %154 : vector<10x32xf32>
    %156 = arith.addf %13, %155 : vector<10x32xf32>
    %c0_66 = arith.constant 0 : index
    %c0_67 = arith.constant 0 : index
    %c0_68 = arith.constant 0 : index
    %157 = vector.load %arg11[%c0_66, %c0_67, %c0_68] : memref<2x1x32xf32, #tpu.memory_space<vmem>>, vector<1x1x32xf32>
    %158 = vector.shape_cast %157 : vector<1x1x32xf32> to vector<1x32xf32>
    %c0_69 = arith.constant 0 : index
    %c0_70 = arith.constant 0 : index
    %c0_71 = arith.constant 0 : index
    %159 = vector.load %arg12[%c0_69, %c0_70, %c0_71] : memref<2x1x32xf32, #tpu.memory_space<vmem>>, vector<1x1x32xf32>
    %160 = vector.shape_cast %159 : vector<1x1x32xf32> to vector<1x32xf32>
    %cst_72 = arith.constant dense<0.000000e+00> : vector<10xf32>
    %161 = vector.multi_reduction <add>, %156, %cst_72 [1] : vector<10x32xf32> to vector<10xf32>
    %162 = vector.shape_cast %161 : vector<10xf32> to vector<10x1xf32>
    %cst_73 = arith.constant 3.200000e+01 : f32
    %163 = vector.broadcast %cst_73 : f32 to vector<10x1xf32>
    %164 = arith.divf %162, %163 : vector<10x1xf32>
    %165 = vector.broadcast %164 : vector<10x1xf32> to vector<10x32xf32>
    %166 = arith.subf %156, %165 : vector<10x32xf32>
    %167 = arith.mulf %166, %166 : vector<10x32xf32>
    %cst_74 = arith.constant dense<0.000000e+00> : vector<10xf32>
    %168 = vector.multi_reduction <add>, %167, %cst_74 [1] : vector<10x32xf32> to vector<10xf32>
    %169 = vector.shape_cast %168 : vector<10xf32> to vector<10x1xf32>
    %cst_75 = arith.constant 3.200000e+01 : f32
    %170 = vector.broadcast %cst_75 : f32 to vector<10x1xf32>
    %171 = arith.divf %169, %170 : vector<10x1xf32>
    %cst_76 = arith.constant 9.99999974E-6 : f32
    %172 = vector.broadcast %cst_76 : f32 to vector<10x1xf32>
    %173 = arith.addf %171, %172 : vector<10x1xf32>
    %174 = math.rsqrt %173 : vector<10x1xf32>
    %175 = vector.broadcast %174 : vector<10x1xf32> to vector<10x32xf32>
    %176 = arith.mulf %166, %175 : vector<10x32xf32>
    %177 = vector.broadcast %158 : vector<1x32xf32> to vector<10x32xf32>
    %178 = arith.mulf %176, %177 : vector<10x32xf32>
    %179 = vector.broadcast %160 : vector<1x32xf32> to vector<10x32xf32>
    %180 = arith.addf %178, %179 : vector<10x32xf32>
    %c0_77 = arith.constant 0 : index
    %c0_78 = arith.constant 0 : index
    %c0_79 = arith.constant 0 : index
    %181 = vector.load %arg21[%c0_77, %c0_78, %c0_79] : memref<2x32x64xbf16, #tpu.memory_space<vmem>>, vector<1x32x64xbf16>
    %182 = vector.shape_cast %181 : vector<1x32x64xbf16> to vector<32x64xbf16>
    %183 = arith.truncf %180 : vector<10x32xf32> to vector<10x32xbf16>
    %cst_80 = arith.constant dense<0.000000e+00> : vector<10x64xf32>
    %184 = tpu.matmul %183, %182, %cst_80 {dimension_numbers = #tpu.dot_dimension_numbers<[1], [0], [0], [1], [0, 0, 1, 1], [], []>} : vector<10x32xbf16>, vector<32x64xbf16>, vector<10x64xf32> -> vector<10x64xf32>
    %c0_81 = arith.constant 0 : index
    %c0_82 = arith.constant 0 : index
    %c0_83 = arith.constant 0 : index
    %185 = vector.load %arg22[%c0_81, %c0_82, %c0_83] : memref<2x1x64xf32, #tpu.memory_space<vmem>>, vector<1x1x64xf32>
    %186 = vector.shape_cast %185 : vector<1x1x64xf32> to vector<1x64xf32>
    %187 = vector.broadcast %186 : vector<1x64xf32> to vector<10x64xf32>
    %188 = arith.addf %184, %187 : vector<10x64xf32>
    %189 = arith.mulf %188, %188 : vector<10x64xf32>
    %190 = arith.mulf %188, %189 : vector<10x64xf32>
    %cst_84 = arith.constant 4.471500e-02 : f32
    %191 = vector.broadcast %cst_84 : f32 to vector<10x64xf32>
    %192 = arith.mulf %191, %190 : vector<10x64xf32>
    %193 = arith.addf %188, %192 : vector<10x64xf32>
    %cst_85 = arith.constant 0.797884583 : f32
    %194 = vector.broadcast %cst_85 : f32 to vector<10x64xf32>
    %195 = arith.mulf %194, %193 : vector<10x64xf32>
    %196 = math.tanh %195 : vector<10x64xf32>
    %cst_86 = arith.constant 1.000000e+00 : f32
    %197 = vector.broadcast %cst_86 : f32 to vector<10x64xf32>
    %198 = arith.addf %197, %196 : vector<10x64xf32>
    %cst_87 = arith.constant 5.000000e-01 : f32
    %199 = vector.broadcast %cst_87 : f32 to vector<10x64xf32>
    %200 = arith.mulf %199, %198 : vector<10x64xf32>
    %201 = arith.mulf %188, %200 : vector<10x64xf32>
    %c0_88 = arith.constant 0 : index
    %c0_89 = arith.constant 0 : index
    %c0_90 = arith.constant 0 : index
    %202 = vector.load %arg23[%c0_88, %c0_89, %c0_90] : memref<2x64x32xbf16, #tpu.memory_space<vmem>>, vector<1x64x32xbf16>
    %203 = vector.shape_cast %202 : vector<1x64x32xbf16> to vector<64x32xbf16>
    %204 = arith.truncf %201 : vector<10x64xf32> to vector<10x64xbf16>
    %cst_91 = arith.constant dense<0.000000e+00> : vector<10x32xf32>
    %205 = tpu.matmul %204, %203, %cst_91 {dimension_numbers = #tpu.dot_dimension_numbers<[1], [0], [0], [1], [0, 0, 1, 1], [], []>} : vector<10x64xbf16>, vector<64x32xbf16>, vector<10x32xf32> -> vector<10x32xf32>
    %206 = arith.addf %156, %205 : vector<10x32xf32>
    %c0_92 = arith.constant 0 : index
    %c0_93 = arith.constant 0 : index
    %c0_94 = arith.constant 0 : index
    %207 = vector.load %arg24[%c0_92, %c0_93, %c0_94] : memref<2x1x32xf32, #tpu.memory_space<vmem>>, vector<1x1x32xf32>
    %208 = vector.shape_cast %207 : vector<1x1x32xf32> to vector<1x32xf32>
    %209 = vector.broadcast %208 : vector<1x32xf32> to vector<10x32xf32>
    %210 = arith.addf %206, %209 : vector<10x32xf32>
    %c1 = arith.constant 1 : index
    %c0_95 = arith.constant 0 : index
    %c0_96 = arith.constant 0 : index
    %211 = vector.load %arg9[%c1, %c0_95, %c0_96] : memref<2x1x32xf32, #tpu.memory_space<vmem>>, vector<1x1x32xf32>
    %212 = vector.shape_cast %211 : vector<1x1x32xf32> to vector<1x32xf32>
    %c1_97 = arith.constant 1 : index
    %c0_98 = arith.constant 0 : index
    %c0_99 = arith.constant 0 : index
    %213 = vector.load %arg10[%c1_97, %c0_98, %c0_99] : memref<2x1x32xf32, #tpu.memory_space<vmem>>, vector<1x1x32xf32>
    %214 = vector.shape_cast %213 : vector<1x1x32xf32> to vector<1x32xf32>
    %cst_100 = arith.constant dense<0.000000e+00> : vector<10xf32>
    %215 = vector.multi_reduction <add>, %210, %cst_100 [1] : vector<10x32xf32> to vector<10xf32>
    %216 = vector.shape_cast %215 : vector<10xf32> to vector<10x1xf32>
    %cst_101 = arith.constant 3.200000e+01 : f32
    %217 = vector.broadcast %cst_101 : f32 to vector<10x1xf32>
    %218 = arith.divf %216, %217 : vector<10x1xf32>
    %219 = vector.broadcast %218 : vector<10x1xf32> to vector<10x32xf32>
    %220 = arith.subf %210, %219 : vector<10x32xf32>
    %221 = arith.mulf %220, %220 : vector<10x32xf32>
    %cst_102 = arith.constant dense<0.000000e+00> : vector<10xf32>
    %222 = vector.multi_reduction <add>, %221, %cst_102 [1] : vector<10x32xf32> to vector<10xf32>
    %223 = vector.shape_cast %222 : vector<10xf32> to vector<10x1xf32>
    %cst_103 = arith.constant 3.200000e+01 : f32
    %224 = vector.broadcast %cst_103 : f32 to vector<10x1xf32>
    %225 = arith.divf %223, %224 : vector<10x1xf32>
    %cst_104 = arith.constant 9.99999974E-6 : f32
    %226 = vector.broadcast %cst_104 : f32 to vector<10x1xf32>
    %227 = arith.addf %225, %226 : vector<10x1xf32>
    %228 = math.rsqrt %227 : vector<10x1xf32>
    %229 = vector.broadcast %228 : vector<10x1xf32> to vector<10x32xf32>
    %230 = arith.mulf %220, %229 : vector<10x32xf32>
    %231 = vector.broadcast %212 : vector<1x32xf32> to vector<10x32xf32>
    %232 = arith.mulf %230, %231 : vector<10x32xf32>
    %233 = vector.broadcast %214 : vector<1x32xf32> to vector<10x32xf32>
    %234 = arith.addf %232, %233 : vector<10x32xf32>
    %c1_105 = arith.constant 1 : index
    %c0_106 = arith.constant 0 : index
    %c0_107 = arith.constant 0 : index
    %235 = vector.load %arg13[%c1_105, %c0_106, %c0_107] : memref<2x32x32xbf16, #tpu.memory_space<vmem>>, vector<1x32x32xbf16>
    %236 = vector.shape_cast %235 : vector<1x32x32xbf16> to vector<32x32xbf16>
    %c1_108 = arith.constant 1 : index
    %c0_109 = arith.constant 0 : index
    %c0_110 = arith.constant 0 : index
    %237 = vector.load %arg14[%c1_108, %c0_109, %c0_110] : memref<2x32x32xbf16, #tpu.memory_space<vmem>>, vector<1x32x32xbf16>
    %238 = vector.shape_cast %237 : vector<1x32x32xbf16> to vector<32x32xbf16>
    %c1_111 = arith.constant 1 : index
    %c0_112 = arith.constant 0 : index
    %c0_113 = arith.constant 0 : index
    %239 = vector.load %arg15[%c1_111, %c0_112, %c0_113] : memref<2x32x32xbf16, #tpu.memory_space<vmem>>, vector<1x32x32xbf16>
    %240 = vector.shape_cast %239 : vector<1x32x32xbf16> to vector<32x32xbf16>
    %c1_114 = arith.constant 1 : index
    %c0_115 = arith.constant 0 : index
    %c0_116 = arith.constant 0 : index
    %241 = vector.load %arg16[%c1_114, %c0_115, %c0_116] : memref<2x32x32xbf16, #tpu.memory_space<vmem>>, vector<1x32x32xbf16>
    %242 = vector.shape_cast %241 : vector<1x32x32xbf16> to vector<32x32xbf16>
    %c1_117 = arith.constant 1 : index
    %c0_118 = arith.constant 0 : index
    %c0_119 = arith.constant 0 : index
    %243 = vector.load %arg17[%c1_117, %c0_118, %c0_119] : memref<2x1x32xf32, #tpu.memory_space<vmem>>, vector<1x1x32xf32>
    %244 = vector.shape_cast %243 : vector<1x1x32xf32> to vector<1x32xf32>
    %c1_120 = arith.constant 1 : index
    %c0_121 = arith.constant 0 : index
    %c0_122 = arith.constant 0 : index
    %245 = vector.load %arg18[%c1_120, %c0_121, %c0_122] : memref<2x1x32xf32, #tpu.memory_space<vmem>>, vector<1x1x32xf32>
    %246 = vector.shape_cast %245 : vector<1x1x32xf32> to vector<1x32xf32>
    %c1_123 = arith.constant 1 : index
    %c0_124 = arith.constant 0 : index
    %c0_125 = arith.constant 0 : index
    %247 = vector.load %arg19[%c1_123, %c0_124, %c0_125] : memref<2x1x32xf32, #tpu.memory_space<vmem>>, vector<1x1x32xf32>
    %248 = vector.shape_cast %247 : vector<1x1x32xf32> to vector<1x32xf32>
    %c1_126 = arith.constant 1 : index
    %c0_127 = arith.constant 0 : index
    %c0_128 = arith.constant 0 : index
    %249 = vector.load %arg20[%c1_126, %c0_127, %c0_128] : memref<2x1x32xf32, #tpu.memory_space<vmem>>, vector<1x1x32xf32>
    %250 = vector.shape_cast %249 : vector<1x1x32xf32> to vector<1x32xf32>
    %251 = arith.truncf %234 : vector<10x32xf32> to vector<10x32xbf16>
    %cst_129 = arith.constant dense<0.000000e+00> : vector<10x32xf32>
    %252 = tpu.matmul %251, %236, %cst_129 {dimension_numbers = #tpu.dot_dimension_numbers<[1], [0], [0], [1], [0, 0, 1, 1], [], []>} : vector<10x32xbf16>, vector<32x32xbf16>, vector<10x32xf32> -> vector<10x32xf32>
    %253 = arith.truncf %234 : vector<10x32xf32> to vector<10x32xbf16>
    %cst_130 = arith.constant dense<0.000000e+00> : vector<10x32xf32>
    %254 = tpu.matmul %253, %238, %cst_130 {dimension_numbers = #tpu.dot_dimension_numbers<[1], [0], [0], [1], [0, 0, 1, 1], [], []>} : vector<10x32xbf16>, vector<32x32xbf16>, vector<10x32xf32> -> vector<10x32xf32>
    %255 = arith.truncf %234 : vector<10x32xf32> to vector<10x32xbf16>
    %cst_131 = arith.constant dense<0.000000e+00> : vector<10x32xf32>
    %256 = tpu.matmul %255, %240, %cst_131 {dimension_numbers = #tpu.dot_dimension_numbers<[1], [0], [0], [1], [0, 0, 1, 1], [], []>} : vector<10x32xbf16>, vector<32x32xbf16>, vector<10x32xf32> -> vector<10x32xf32>
    %257 = vector.broadcast %244 : vector<1x32xf32> to vector<10x32xf32>
    %258 = arith.addf %252, %257 : vector<10x32xf32>
    %259 = vector.broadcast %246 : vector<1x32xf32> to vector<10x32xf32>
    %260 = arith.addf %254, %259 : vector<10x32xf32>
    %261 = vector.broadcast %248 : vector<1x32xf32> to vector<10x32xf32>
    %262 = arith.addf %256, %261 : vector<10x32xf32>
    %263 = vector.extract_strided_slice %258 {offsets = [0, 0], sizes = [10, 8], strides = [1, 1]} : vector<10x32xf32> to vector<10x8xf32>
    %264 = arith.truncf %263 : vector<10x8xf32> to vector<10x8xbf16>
    %265 = vector.extract_strided_slice %260 {offsets = [0, 0], sizes = [10, 8], strides = [1, 1]} : vector<10x32xf32> to vector<10x8xf32>
    %266 = arith.truncf %265 : vector<10x8xf32> to vector<10x8xbf16>
    %267 = vector.extract_strided_slice %262 {offsets = [0, 0], sizes = [10, 8], strides = [1, 1]} : vector<10x32xf32> to vector<10x8xf32>
    %cst_132 = arith.constant dense<0.000000e+00> : vector<10x10xf32>
    %268 = tpu.matmul %264, %266, %cst_132 {dimension_numbers = #tpu.dot_dimension_numbers<[1], [1], [0], [0], [0, 0, 1, 0], [], []>} : vector<10x8xbf16>, vector<10x8xbf16>, vector<10x10xf32> -> vector<10x10xf32>
    %269 = arith.addf %268, %18 : vector<10x10xf32>
    %cst_133 = arith.constant dense<0xFF800000> : vector<10xf32>
    %270 = vector.multi_reduction <maximumf>, %269, %cst_133 [1] : vector<10x10xf32> to vector<10xf32>
    %271 = vector.shape_cast %270 : vector<10xf32> to vector<10x1xf32>
    %272 = vector.broadcast %271 : vector<10x1xf32> to vector<10x10xf32>
    %273 = arith.subf %269, %272 : vector<10x10xf32>
    %274 = math.exp %273 : vector<10x10xf32>
    %cst_134 = arith.constant dense<0.000000e+00> : vector<10xf32>
    %275 = vector.multi_reduction <add>, %274, %cst_134 [1] : vector<10x10xf32> to vector<10xf32>
    %276 = vector.shape_cast %275 : vector<10xf32> to vector<10x1xf32>
    %277 = tpu.reciprocal %276 {approx = true} : vector<10x1xf32> -> vector<10x1xf32>
    %278 = vector.broadcast %277 : vector<10x1xf32> to vector<10x10xf32>
    %279 = arith.mulf %274, %278 : vector<10x10xf32>
    %280 = arith.truncf %279 : vector<10x10xf32> to vector<10x10xbf16>
    %281 = arith.truncf %267 : vector<10x8xf32> to vector<10x8xbf16>
    %cst_135 = arith.constant dense<0.000000e+00> : vector<10x8xf32>
    %282 = tpu.matmul %280, %281, %cst_135 {dimension_numbers = #tpu.dot_dimension_numbers<[1], [0], [0], [1], [0, 0, 1, 1], [], []>} : vector<10x10xbf16>, vector<10x8xbf16>, vector<10x8xf32> -> vector<10x8xf32>
    %283 = vector.extract_strided_slice %258 {offsets = [0, 8], sizes = [10, 8], strides = [1, 1]} : vector<10x32xf32> to vector<10x8xf32>
    %284 = arith.truncf %283 : vector<10x8xf32> to vector<10x8xbf16>
    %285 = vector.extract_strided_slice %260 {offsets = [0, 8], sizes = [10, 8], strides = [1, 1]} : vector<10x32xf32> to vector<10x8xf32>
    %286 = arith.truncf %285 : vector<10x8xf32> to vector<10x8xbf16>
    %287 = vector.extract_strided_slice %262 {offsets = [0, 8], sizes = [10, 8], strides = [1, 1]} : vector<10x32xf32> to vector<10x8xf32>
    %cst_136 = arith.constant dense<0.000000e+00> : vector<10x10xf32>
    %288 = tpu.matmul %284, %286, %cst_136 {dimension_numbers = #tpu.dot_dimension_numbers<[1], [1], [0], [0], [0, 0, 1, 0], [], []>} : vector<10x8xbf16>, vector<10x8xbf16>, vector<10x10xf32> -> vector<10x10xf32>
    %289 = arith.addf %288, %18 : vector<10x10xf32>
    %cst_137 = arith.constant dense<0xFF800000> : vector<10xf32>
    %290 = vector.multi_reduction <maximumf>, %289, %cst_137 [1] : vector<10x10xf32> to vector<10xf32>
    %291 = vector.shape_cast %290 : vector<10xf32> to vector<10x1xf32>
    %292 = vector.broadcast %291 : vector<10x1xf32> to vector<10x10xf32>
    %293 = arith.subf %289, %292 : vector<10x10xf32>
    %294 = math.exp %293 : vector<10x10xf32>
    %cst_138 = arith.constant dense<0.000000e+00> : vector<10xf32>
    %295 = vector.multi_reduction <add>, %294, %cst_138 [1] : vector<10x10xf32> to vector<10xf32>
    %296 = vector.shape_cast %295 : vector<10xf32> to vector<10x1xf32>
    %297 = tpu.reciprocal %296 {approx = true} : vector<10x1xf32> -> vector<10x1xf32>
    %298 = vector.broadcast %297 : vector<10x1xf32> to vector<10x10xf32>
    %299 = arith.mulf %294, %298 : vector<10x10xf32>
    %300 = arith.truncf %299 : vector<10x10xf32> to vector<10x10xbf16>
    %301 = arith.truncf %287 : vector<10x8xf32> to vector<10x8xbf16>
    %cst_139 = arith.constant dense<0.000000e+00> : vector<10x8xf32>
    %302 = tpu.matmul %300, %301, %cst_139 {dimension_numbers = #tpu.dot_dimension_numbers<[1], [0], [0], [1], [0, 0, 1, 1], [], []>} : vector<10x10xbf16>, vector<10x8xbf16>, vector<10x8xf32> -> vector<10x8xf32>
    %303 = vector.extract_strided_slice %258 {offsets = [0, 16], sizes = [10, 8], strides = [1, 1]} : vector<10x32xf32> to vector<10x8xf32>
    %304 = arith.truncf %303 : vector<10x8xf32> to vector<10x8xbf16>
    %305 = vector.extract_strided_slice %260 {offsets = [0, 16], sizes = [10, 8], strides = [1, 1]} : vector<10x32xf32> to vector<10x8xf32>
    %306 = arith.truncf %305 : vector<10x8xf32> to vector<10x8xbf16>
    %307 = vector.extract_strided_slice %262 {offsets = [0, 16], sizes = [10, 8], strides = [1, 1]} : vector<10x32xf32> to vector<10x8xf32>
    %cst_140 = arith.constant dense<0.000000e+00> : vector<10x10xf32>
    %308 = tpu.matmul %304, %306, %cst_140 {dimension_numbers = #tpu.dot_dimension_numbers<[1], [1], [0], [0], [0, 0, 1, 0], [], []>} : vector<10x8xbf16>, vector<10x8xbf16>, vector<10x10xf32> -> vector<10x10xf32>
    %309 = arith.addf %308, %18 : vector<10x10xf32>
    %cst_141 = arith.constant dense<0xFF800000> : vector<10xf32>
    %310 = vector.multi_reduction <maximumf>, %309, %cst_141 [1] : vector<10x10xf32> to vector<10xf32>
    %311 = vector.shape_cast %310 : vector<10xf32> to vector<10x1xf32>
    %312 = vector.broadcast %311 : vector<10x1xf32> to vector<10x10xf32>
    %313 = arith.subf %309, %312 : vector<10x10xf32>
    %314 = math.exp %313 : vector<10x10xf32>
    %cst_142 = arith.constant dense<0.000000e+00> : vector<10xf32>
    %315 = vector.multi_reduction <add>, %314, %cst_142 [1] : vector<10x10xf32> to vector<10xf32>
    %316 = vector.shape_cast %315 : vector<10xf32> to vector<10x1xf32>
    %317 = tpu.reciprocal %316 {approx = true} : vector<10x1xf32> -> vector<10x1xf32>
    %318 = vector.broadcast %317 : vector<10x1xf32> to vector<10x10xf32>
    %319 = arith.mulf %314, %318 : vector<10x10xf32>
    %320 = arith.truncf %319 : vector<10x10xf32> to vector<10x10xbf16>
    %321 = arith.truncf %307 : vector<10x8xf32> to vector<10x8xbf16>
    %cst_143 = arith.constant dense<0.000000e+00> : vector<10x8xf32>
    %322 = tpu.matmul %320, %321, %cst_143 {dimension_numbers = #tpu.dot_dimension_numbers<[1], [0], [0], [1], [0, 0, 1, 1], [], []>} : vector<10x10xbf16>, vector<10x8xbf16>, vector<10x8xf32> -> vector<10x8xf32>
    %323 = vector.extract_strided_slice %258 {offsets = [0, 24], sizes = [10, 8], strides = [1, 1]} : vector<10x32xf32> to vector<10x8xf32>
    %324 = arith.truncf %323 : vector<10x8xf32> to vector<10x8xbf16>
    %325 = vector.extract_strided_slice %260 {offsets = [0, 24], sizes = [10, 8], strides = [1, 1]} : vector<10x32xf32> to vector<10x8xf32>
    %326 = arith.truncf %325 : vector<10x8xf32> to vector<10x8xbf16>
    %327 = vector.extract_strided_slice %262 {offsets = [0, 24], sizes = [10, 8], strides = [1, 1]} : vector<10x32xf32> to vector<10x8xf32>
    %cst_144 = arith.constant dense<0.000000e+00> : vector<10x10xf32>
    %328 = tpu.matmul %324, %326, %cst_144 {dimension_numbers = #tpu.dot_dimension_numbers<[1], [1], [0], [0], [0, 0, 1, 0], [], []>} : vector<10x8xbf16>, vector<10x8xbf16>, vector<10x10xf32> -> vector<10x10xf32>
    %329 = arith.addf %328, %18 : vector<10x10xf32>
    %cst_145 = arith.constant dense<0xFF800000> : vector<10xf32>
    %330 = vector.multi_reduction <maximumf>, %329, %cst_145 [1] : vector<10x10xf32> to vector<10xf32>
    %331 = vector.shape_cast %330 : vector<10xf32> to vector<10x1xf32>
    %332 = vector.broadcast %331 : vector<10x1xf32> to vector<10x10xf32>
    %333 = arith.subf %329, %332 : vector<10x10xf32>
    %334 = math.exp %333 : vector<10x10xf32>
    %cst_146 = arith.constant dense<0.000000e+00> : vector<10xf32>
    %335 = vector.multi_reduction <add>, %334, %cst_146 [1] : vector<10x10xf32> to vector<10xf32>
    %336 = vector.shape_cast %335 : vector<10xf32> to vector<10x1xf32>
    %337 = tpu.reciprocal %336 {approx = true} : vector<10x1xf32> -> vector<10x1xf32>
    %338 = vector.broadcast %337 : vector<10x1xf32> to vector<10x10xf32>
    %339 = arith.mulf %334, %338 : vector<10x10xf32>
    %340 = arith.truncf %339 : vector<10x10xf32> to vector<10x10xbf16>
    %341 = arith.truncf %327 : vector<10x8xf32> to vector<10x8xbf16>
    %cst_147 = arith.constant dense<0.000000e+00> : vector<10x8xf32>
    %342 = tpu.matmul %340, %341, %cst_147 {dimension_numbers = #tpu.dot_dimension_numbers<[1], [0], [0], [1], [0, 0, 1, 1], [], []>} : vector<10x10xbf16>, vector<10x8xbf16>, vector<10x8xf32> -> vector<10x8xf32>
    %343 = tpu.concatenate %282, %302, %322, %342 in 1 : vector<10x8xf32>, vector<10x8xf32>, vector<10x8xf32>, vector<10x8xf32> -> vector<10x32xf32>
    %344 = arith.truncf %343 : vector<10x32xf32> to vector<10x32xbf16>
    %cst_148 = arith.constant dense<0.000000e+00> : vector<10x32xf32>
    %345 = tpu.matmul %344, %242, %cst_148 {dimension_numbers = #tpu.dot_dimension_numbers<[1], [0], [0], [1], [0, 0, 1, 1], [], []>} : vector<10x32xbf16>, vector<32x32xbf16>, vector<10x32xf32> -> vector<10x32xf32>
    %346 = vector.broadcast %250 : vector<1x32xf32> to vector<10x32xf32>
    %347 = arith.addf %345, %346 : vector<10x32xf32>
    %348 = arith.addf %210, %347 : vector<10x32xf32>
    %c1_149 = arith.constant 1 : index
    %c0_150 = arith.constant 0 : index
    %c0_151 = arith.constant 0 : index
    %349 = vector.load %arg11[%c1_149, %c0_150, %c0_151] : memref<2x1x32xf32, #tpu.memory_space<vmem>>, vector<1x1x32xf32>
    %350 = vector.shape_cast %349 : vector<1x1x32xf32> to vector<1x32xf32>
    %c1_152 = arith.constant 1 : index
    %c0_153 = arith.constant 0 : index
    %c0_154 = arith.constant 0 : index
    %351 = vector.load %arg12[%c1_152, %c0_153, %c0_154] : memref<2x1x32xf32, #tpu.memory_space<vmem>>, vector<1x1x32xf32>
    %352 = vector.shape_cast %351 : vector<1x1x32xf32> to vector<1x32xf32>
    %cst_155 = arith.constant dense<0.000000e+00> : vector<10xf32>
    %353 = vector.multi_reduction <add>, %348, %cst_155 [1] : vector<10x32xf32> to vector<10xf32>
    %354 = vector.shape_cast %353 : vector<10xf32> to vector<10x1xf32>
    %cst_156 = arith.constant 3.200000e+01 : f32
    %355 = vector.broadcast %cst_156 : f32 to vector<10x1xf32>
    %356 = arith.divf %354, %355 : vector<10x1xf32>
    %357 = vector.broadcast %356 : vector<10x1xf32> to vector<10x32xf32>
    %358 = arith.subf %348, %357 : vector<10x32xf32>
    %359 = arith.mulf %358, %358 : vector<10x32xf32>
    %cst_157 = arith.constant dense<0.000000e+00> : vector<10xf32>
    %360 = vector.multi_reduction <add>, %359, %cst_157 [1] : vector<10x32xf32> to vector<10xf32>
    %361 = vector.shape_cast %360 : vector<10xf32> to vector<10x1xf32>
    %cst_158 = arith.constant 3.200000e+01 : f32
    %362 = vector.broadcast %cst_158 : f32 to vector<10x1xf32>
    %363 = arith.divf %361, %362 : vector<10x1xf32>
    %cst_159 = arith.constant 9.99999974E-6 : f32
    %364 = vector.broadcast %cst_159 : f32 to vector<10x1xf32>
    %365 = arith.addf %363, %364 : vector<10x1xf32>
    %366 = math.rsqrt %365 : vector<10x1xf32>
    %367 = vector.broadcast %366 : vector<10x1xf32> to vector<10x32xf32>
    %368 = arith.mulf %358, %367 : vector<10x32xf32>
    %369 = vector.broadcast %350 : vector<1x32xf32> to vector<10x32xf32>
    %370 = arith.mulf %368, %369 : vector<10x32xf32>
    %371 = vector.broadcast %352 : vector<1x32xf32> to vector<10x32xf32>
    %372 = arith.addf %370, %371 : vector<10x32xf32>
    %c1_160 = arith.constant 1 : index
    %c0_161 = arith.constant 0 : index
    %c0_162 = arith.constant 0 : index
    %373 = vector.load %arg21[%c1_160, %c0_161, %c0_162] : memref<2x32x64xbf16, #tpu.memory_space<vmem>>, vector<1x32x64xbf16>
    %374 = vector.shape_cast %373 : vector<1x32x64xbf16> to vector<32x64xbf16>
    %375 = arith.truncf %372 : vector<10x32xf32> to vector<10x32xbf16>
    %cst_163 = arith.constant dense<0.000000e+00> : vector<10x64xf32>
    %376 = tpu.matmul %375, %374, %cst_163 {dimension_numbers = #tpu.dot_dimension_numbers<[1], [0], [0], [1], [0, 0, 1, 1], [], []>} : vector<10x32xbf16>, vector<32x64xbf16>, vector<10x64xf32> -> vector<10x64xf32>
    %c1_164 = arith.constant 1 : index
    %c0_165 = arith.constant 0 : index
    %c0_166 = arith.constant 0 : index
    %377 = vector.load %arg22[%c1_164, %c0_165, %c0_166] : memref<2x1x64xf32, #tpu.memory_space<vmem>>, vector<1x1x64xf32>
    %378 = vector.shape_cast %377 : vector<1x1x64xf32> to vector<1x64xf32>
    %379 = vector.broadcast %378 : vector<1x64xf32> to vector<10x64xf32>
    %380 = arith.addf %376, %379 : vector<10x64xf32>
    %381 = arith.mulf %380, %380 : vector<10x64xf32>
    %382 = arith.mulf %380, %381 : vector<10x64xf32>
    %cst_167 = arith.constant 4.471500e-02 : f32
    %383 = vector.broadcast %cst_167 : f32 to vector<10x64xf32>
    %384 = arith.mulf %383, %382 : vector<10x64xf32>
    %385 = arith.addf %380, %384 : vector<10x64xf32>
    %cst_168 = arith.constant 0.797884583 : f32
    %386 = vector.broadcast %cst_168 : f32 to vector<10x64xf32>
    %387 = arith.mulf %386, %385 : vector<10x64xf32>
    %388 = math.tanh %387 : vector<10x64xf32>
    %cst_169 = arith.constant 1.000000e+00 : f32
    %389 = vector.broadcast %cst_169 : f32 to vector<10x64xf32>
    %390 = arith.addf %389, %388 : vector<10x64xf32>
    %cst_170 = arith.constant 5.000000e-01 : f32
    %391 = vector.broadcast %cst_170 : f32 to vector<10x64xf32>
    %392 = arith.mulf %391, %390 : vector<10x64xf32>
    %393 = arith.mulf %380, %392 : vector<10x64xf32>
    %c1_171 = arith.constant 1 : index
    %c0_172 = arith.constant 0 : index
    %c0_173 = arith.constant 0 : index
    %394 = vector.load %arg23[%c1_171, %c0_172, %c0_173] : memref<2x64x32xbf16, #tpu.memory_space<vmem>>, vector<1x64x32xbf16>
    %395 = vector.shape_cast %394 : vector<1x64x32xbf16> to vector<64x32xbf16>
    %396 = arith.truncf %393 : vector<10x64xf32> to vector<10x64xbf16>
    %cst_174 = arith.constant dense<0.000000e+00> : vector<10x32xf32>
    %397 = tpu.matmul %396, %395, %cst_174 {dimension_numbers = #tpu.dot_dimension_numbers<[1], [0], [0], [1], [0, 0, 1, 1], [], []>} : vector<10x64xbf16>, vector<64x32xbf16>, vector<10x32xf32> -> vector<10x32xf32>
    %398 = arith.addf %348, %397 : vector<10x32xf32>
    %c1_175 = arith.constant 1 : index
    %c0_176 = arith.constant 0 : index
    %c0_177 = arith.constant 0 : index
    %399 = vector.load %arg24[%c1_175, %c0_176, %c0_177] : memref<2x1x32xf32, #tpu.memory_space<vmem>>, vector<1x1x32xf32>
    %400 = vector.shape_cast %399 : vector<1x1x32xf32> to vector<1x32xf32>
    %401 = vector.broadcast %400 : vector<1x32xf32> to vector<10x32xf32>
    %402 = arith.addf %398, %401 : vector<10x32xf32>
    %c0_178 = arith.constant 0 : index
    %c0_179 = arith.constant 0 : index
    %c0_180 = arith.constant 0 : index
    %403 = vector.load %arg26[%c0_178, %c0_179, %c0_180] : memref<5x1x32xf32, #tpu.memory_space<vmem>>, vector<1x1x32xf32>
    %404 = vector.shape_cast %403 : vector<1x1x32xf32> to vector<1x32xf32>
    %c0_181 = arith.constant 0 : index
    %c0_182 = arith.constant 0 : index
    %c0_183 = arith.constant 0 : index
    %405 = vector.load %arg27[%c0_181, %c0_182, %c0_183] : memref<5x1x32xf32, #tpu.memory_space<vmem>>, vector<1x1x32xf32>
    %406 = vector.shape_cast %405 : vector<1x1x32xf32> to vector<1x32xf32>
    %cst_184 = arith.constant dense<0.000000e+00> : vector<10xf32>
    %407 = vector.multi_reduction <add>, %402, %cst_184 [1] : vector<10x32xf32> to vector<10xf32>
    %408 = vector.shape_cast %407 : vector<10xf32> to vector<10x1xf32>
    %cst_185 = arith.constant 3.200000e+01 : f32
    %409 = vector.broadcast %cst_185 : f32 to vector<10x1xf32>
    %410 = arith.divf %408, %409 : vector<10x1xf32>
    %411 = vector.broadcast %410 : vector<10x1xf32> to vector<10x32xf32>
    %412 = arith.subf %402, %411 : vector<10x32xf32>
    %413 = arith.mulf %412, %412 : vector<10x32xf32>
    %cst_186 = arith.constant dense<0.000000e+00> : vector<10xf32>
    %414 = vector.multi_reduction <add>, %413, %cst_186 [1] : vector<10x32xf32> to vector<10xf32>
    %415 = vector.shape_cast %414 : vector<10xf32> to vector<10x1xf32>
    %cst_187 = arith.constant 3.200000e+01 : f32
    %416 = vector.broadcast %cst_187 : f32 to vector<10x1xf32>
    %417 = arith.divf %415, %416 : vector<10x1xf32>
    %cst_188 = arith.constant 9.99999997E-7 : f32
    %418 = vector.broadcast %cst_188 : f32 to vector<10x1xf32>
    %419 = arith.addf %417, %418 : vector<10x1xf32>
    %420 = math.rsqrt %419 : vector<10x1xf32>
    %421 = vector.broadcast %420 : vector<10x1xf32> to vector<10x32xf32>
    %422 = arith.mulf %412, %421 : vector<10x32xf32>
    %423 = vector.broadcast %404 : vector<1x32xf32> to vector<10x32xf32>
    %424 = arith.mulf %422, %423 : vector<10x32xf32>
    %425 = vector.broadcast %406 : vector<1x32xf32> to vector<10x32xf32>
    %426 = arith.addf %424, %425 : vector<10x32xf32>
    %c0_189 = arith.constant 0 : index
    %c0_190 = arith.constant 0 : index
    %427 = vector.load %arg25[%c0_189, %c0_190] : memref<4x32xf32, #tpu.memory_space<vmem>>, vector<4x32xf32>
    %428 = tpu.concatenate %427, %427 in 0 : vector<4x32xf32>, vector<4x32xf32> -> vector<8x32xf32>
    %429 = tpu.iota {dimensions = array<i32: 0>} : vector<4x4xi32>
    %430 = tpu.iota {dimensions = array<i32: 1>} : vector<4x4xi32>
    %431 = arith.cmpi sle, %430, %429 : vector<4x4xi32>
    %cst_191 = arith.constant 0.000000e+00 : f32
    %cst_192 = arith.constant -1.000000e+09 : f32
    %432 = vector.broadcast %cst_191 : f32 to vector<4x4xf32>
    %433 = vector.broadcast %cst_192 : f32 to vector<4x4xf32>
    %434 = arith.select %431, %432, %433 : vector<4x4xi1>, vector<4x4xf32>
    %cst_193 = arith.constant -1.000000e+09 : f32
    %435 = vector.broadcast %cst_193 : f32 to vector<4x4xf32>
    %436 = tpu.concatenate %434, %435 in 1 : vector<4x4xf32>, vector<4x4xf32> -> vector<4x8xf32>
    %437 = tpu.concatenate %435, %434 in 1 : vector<4x4xf32>, vector<4x4xf32> -> vector<4x8xf32>
    %438 = tpu.concatenate %436, %437 in 0 : vector<4x8xf32>, vector<4x8xf32> -> vector<8x8xf32>
    %cst_194 = arith.constant 0.000000e+00 : f32
    %439 = vector.broadcast %cst_194 : f32 to vector<4x5xf32>
    %cst_195 = arith.constant -1.000000e+09 : f32
    %440 = vector.broadcast %cst_195 : f32 to vector<4x5xf32>
    %441 = tpu.concatenate %439, %440 in 1 : vector<4x5xf32>, vector<4x5xf32> -> vector<4x10xf32>
    %442 = tpu.concatenate %440, %439 in 1 : vector<4x5xf32>, vector<4x5xf32> -> vector<4x10xf32>
    %443 = tpu.concatenate %441, %442 in 0 : vector<4x10xf32>, vector<4x10xf32> -> vector<8x10xf32>
    %c1_196 = arith.constant 1 : index
    %c0_197 = arith.constant 0 : index
    %c0_198 = arith.constant 0 : index
    %444 = vector.load %arg26[%c1_196, %c0_197, %c0_198] : memref<5x1x32xf32, #tpu.memory_space<vmem>>, vector<1x1x32xf32>
    %445 = vector.shape_cast %444 : vector<1x1x32xf32> to vector<1x32xf32>
    %c1_199 = arith.constant 1 : index
    %c0_200 = arith.constant 0 : index
    %c0_201 = arith.constant 0 : index
    %446 = vector.load %arg27[%c1_199, %c0_200, %c0_201] : memref<5x1x32xf32, #tpu.memory_space<vmem>>, vector<1x1x32xf32>
    %447 = vector.shape_cast %446 : vector<1x1x32xf32> to vector<1x32xf32>
    %cst_202 = arith.constant dense<0.000000e+00> : vector<8xf32>
    %448 = vector.multi_reduction <add>, %428, %cst_202 [1] : vector<8x32xf32> to vector<8xf32>
    %449 = vector.shape_cast %448 : vector<8xf32> to vector<8x1xf32>
    %cst_203 = arith.constant 3.200000e+01 : f32
    %450 = vector.broadcast %cst_203 : f32 to vector<8x1xf32>
    %451 = arith.divf %449, %450 : vector<8x1xf32>
    %452 = vector.broadcast %451 : vector<8x1xf32> to vector<8x32xf32>
    %453 = arith.subf %428, %452 : vector<8x32xf32>
    %454 = arith.mulf %453, %453 : vector<8x32xf32>
    %cst_204 = arith.constant dense<0.000000e+00> : vector<8xf32>
    %455 = vector.multi_reduction <add>, %454, %cst_204 [1] : vector<8x32xf32> to vector<8xf32>
    %456 = vector.shape_cast %455 : vector<8xf32> to vector<8x1xf32>
    %cst_205 = arith.constant 3.200000e+01 : f32
    %457 = vector.broadcast %cst_205 : f32 to vector<8x1xf32>
    %458 = arith.divf %456, %457 : vector<8x1xf32>
    %cst_206 = arith.constant 9.99999974E-6 : f32
    %459 = vector.broadcast %cst_206 : f32 to vector<8x1xf32>
    %460 = arith.addf %458, %459 : vector<8x1xf32>
    %461 = math.rsqrt %460 : vector<8x1xf32>
    %462 = vector.broadcast %461 : vector<8x1xf32> to vector<8x32xf32>
    %463 = arith.mulf %453, %462 : vector<8x32xf32>
    %464 = vector.broadcast %445 : vector<1x32xf32> to vector<8x32xf32>
    %465 = arith.mulf %463, %464 : vector<8x32xf32>
    %466 = vector.broadcast %447 : vector<1x32xf32> to vector<8x32xf32>
    %467 = arith.addf %465, %466 : vector<8x32xf32>
    %c0_207 = arith.constant 0 : index
    %c0_208 = arith.constant 0 : index
    %c0_209 = arith.constant 0 : index
    %468 = vector.load %arg28[%c0_207, %c0_208, %c0_209] : memref<2x32x32xbf16, #tpu.memory_space<vmem>>, vector<1x32x32xbf16>
    %469 = vector.shape_cast %468 : vector<1x32x32xbf16> to vector<32x32xbf16>
    %c0_210 = arith.constant 0 : index
    %c0_211 = arith.constant 0 : index
    %c0_212 = arith.constant 0 : index
    %470 = vector.load %arg29[%c0_210, %c0_211, %c0_212] : memref<2x32x32xbf16, #tpu.memory_space<vmem>>, vector<1x32x32xbf16>
    %471 = vector.shape_cast %470 : vector<1x32x32xbf16> to vector<32x32xbf16>
    %c0_213 = arith.constant 0 : index
    %c0_214 = arith.constant 0 : index
    %c0_215 = arith.constant 0 : index
    %472 = vector.load %arg30[%c0_213, %c0_214, %c0_215] : memref<2x32x32xbf16, #tpu.memory_space<vmem>>, vector<1x32x32xbf16>
    %473 = vector.shape_cast %472 : vector<1x32x32xbf16> to vector<32x32xbf16>
    %c0_216 = arith.constant 0 : index
    %c0_217 = arith.constant 0 : index
    %c0_218 = arith.constant 0 : index
    %474 = vector.load %arg31[%c0_216, %c0_217, %c0_218] : memref<2x32x32xbf16, #tpu.memory_space<vmem>>, vector<1x32x32xbf16>
    %475 = vector.shape_cast %474 : vector<1x32x32xbf16> to vector<32x32xbf16>
    %c0_219 = arith.constant 0 : index
    %c0_220 = arith.constant 0 : index
    %c0_221 = arith.constant 0 : index
    %476 = vector.load %arg32[%c0_219, %c0_220, %c0_221] : memref<2x1x32xf32, #tpu.memory_space<vmem>>, vector<1x1x32xf32>
    %477 = vector.shape_cast %476 : vector<1x1x32xf32> to vector<1x32xf32>
    %c0_222 = arith.constant 0 : index
    %c0_223 = arith.constant 0 : index
    %c0_224 = arith.constant 0 : index
    %478 = vector.load %arg33[%c0_222, %c0_223, %c0_224] : memref<2x1x32xf32, #tpu.memory_space<vmem>>, vector<1x1x32xf32>
    %479 = vector.shape_cast %478 : vector<1x1x32xf32> to vector<1x32xf32>
    %c0_225 = arith.constant 0 : index
    %c0_226 = arith.constant 0 : index
    %c0_227 = arith.constant 0 : index
    %480 = vector.load %arg34[%c0_225, %c0_226, %c0_227] : memref<2x1x32xf32, #tpu.memory_space<vmem>>, vector<1x1x32xf32>
    %481 = vector.shape_cast %480 : vector<1x1x32xf32> to vector<1x32xf32>
    %c0_228 = arith.constant 0 : index
    %c0_229 = arith.constant 0 : index
    %c0_230 = arith.constant 0 : index
    %482 = vector.load %arg35[%c0_228, %c0_229, %c0_230] : memref<2x1x32xf32, #tpu.memory_space<vmem>>, vector<1x1x32xf32>
    %483 = vector.shape_cast %482 : vector<1x1x32xf32> to vector<1x32xf32>
    %484 = arith.truncf %467 : vector<8x32xf32> to vector<8x32xbf16>
    %cst_231 = arith.constant dense<0.000000e+00> : vector<8x32xf32>
    %485 = tpu.matmul %484, %469, %cst_231 {dimension_numbers = #tpu.dot_dimension_numbers<[1], [0], [0], [1], [0, 0, 1, 1], [], []>} : vector<8x32xbf16>, vector<32x32xbf16>, vector<8x32xf32> -> vector<8x32xf32>
    %486 = arith.truncf %467 : vector<8x32xf32> to vector<8x32xbf16>
    %cst_232 = arith.constant dense<0.000000e+00> : vector<8x32xf32>
    %487 = tpu.matmul %486, %471, %cst_232 {dimension_numbers = #tpu.dot_dimension_numbers<[1], [0], [0], [1], [0, 0, 1, 1], [], []>} : vector<8x32xbf16>, vector<32x32xbf16>, vector<8x32xf32> -> vector<8x32xf32>
    %488 = arith.truncf %467 : vector<8x32xf32> to vector<8x32xbf16>
    %cst_233 = arith.constant dense<0.000000e+00> : vector<8x32xf32>
    %489 = tpu.matmul %488, %473, %cst_233 {dimension_numbers = #tpu.dot_dimension_numbers<[1], [0], [0], [1], [0, 0, 1, 1], [], []>} : vector<8x32xbf16>, vector<32x32xbf16>, vector<8x32xf32> -> vector<8x32xf32>
    %490 = vector.broadcast %477 : vector<1x32xf32> to vector<8x32xf32>
    %491 = arith.addf %485, %490 : vector<8x32xf32>
    %492 = vector.broadcast %479 : vector<1x32xf32> to vector<8x32xf32>
    %493 = arith.addf %487, %492 : vector<8x32xf32>
    %494 = vector.broadcast %481 : vector<1x32xf32> to vector<8x32xf32>
    %495 = arith.addf %489, %494 : vector<8x32xf32>
    %496 = vector.extract_strided_slice %491 {offsets = [0, 0], sizes = [8, 8], strides = [1, 1]} : vector<8x32xf32> to vector<8x8xf32>
    %497 = arith.truncf %496 : vector<8x8xf32> to vector<8x8xbf16>
    %498 = vector.extract_strided_slice %493 {offsets = [0, 0], sizes = [8, 8], strides = [1, 1]} : vector<8x32xf32> to vector<8x8xf32>
    %499 = arith.truncf %498 : vector<8x8xf32> to vector<8x8xbf16>
    %500 = vector.extract_strided_slice %495 {offsets = [0, 0], sizes = [8, 8], strides = [1, 1]} : vector<8x32xf32> to vector<8x8xf32>
    %cst_234 = arith.constant dense<0.000000e+00> : vector<8x8xf32>
    %501 = tpu.matmul %497, %499, %cst_234 {dimension_numbers = #tpu.dot_dimension_numbers<[1], [1], [0], [0], [0, 0, 1, 0], [], []>} : vector<8x8xbf16>, vector<8x8xbf16>, vector<8x8xf32> -> vector<8x8xf32>
    %502 = arith.addf %501, %438 : vector<8x8xf32>
    %cst_235 = arith.constant dense<0xFF800000> : vector<8xf32>
    %503 = vector.multi_reduction <maximumf>, %502, %cst_235 [1] : vector<8x8xf32> to vector<8xf32>
    %504 = vector.shape_cast %503 : vector<8xf32> to vector<8x1xf32>
    %505 = vector.broadcast %504 : vector<8x1xf32> to vector<8x8xf32>
    %506 = arith.subf %502, %505 : vector<8x8xf32>
    %507 = math.exp %506 : vector<8x8xf32>
    %cst_236 = arith.constant dense<0.000000e+00> : vector<8xf32>
    %508 = vector.multi_reduction <add>, %507, %cst_236 [1] : vector<8x8xf32> to vector<8xf32>
    %509 = vector.shape_cast %508 : vector<8xf32> to vector<8x1xf32>
    %510 = tpu.reciprocal %509 {approx = true} : vector<8x1xf32> -> vector<8x1xf32>
    %511 = vector.broadcast %510 : vector<8x1xf32> to vector<8x8xf32>
    %512 = arith.mulf %507, %511 : vector<8x8xf32>
    %513 = arith.truncf %512 : vector<8x8xf32> to vector<8x8xbf16>
    %514 = arith.truncf %500 : vector<8x8xf32> to vector<8x8xbf16>
    %cst_237 = arith.constant dense<0.000000e+00> : vector<8x8xf32>
    %515 = tpu.matmul %513, %514, %cst_237 {dimension_numbers = #tpu.dot_dimension_numbers<[1], [0], [0], [1], [0, 0, 1, 1], [], []>} : vector<8x8xbf16>, vector<8x8xbf16>, vector<8x8xf32> -> vector<8x8xf32>
    %516 = vector.extract_strided_slice %491 {offsets = [0, 8], sizes = [8, 8], strides = [1, 1]} : vector<8x32xf32> to vector<8x8xf32>
    %517 = arith.truncf %516 : vector<8x8xf32> to vector<8x8xbf16>
    %518 = vector.extract_strided_slice %493 {offsets = [0, 8], sizes = [8, 8], strides = [1, 1]} : vector<8x32xf32> to vector<8x8xf32>
    %519 = arith.truncf %518 : vector<8x8xf32> to vector<8x8xbf16>
    %520 = vector.extract_strided_slice %495 {offsets = [0, 8], sizes = [8, 8], strides = [1, 1]} : vector<8x32xf32> to vector<8x8xf32>
    %cst_238 = arith.constant dense<0.000000e+00> : vector<8x8xf32>
    %521 = tpu.matmul %517, %519, %cst_238 {dimension_numbers = #tpu.dot_dimension_numbers<[1], [1], [0], [0], [0, 0, 1, 0], [], []>} : vector<8x8xbf16>, vector<8x8xbf16>, vector<8x8xf32> -> vector<8x8xf32>
    %522 = arith.addf %521, %438 : vector<8x8xf32>
    %cst_239 = arith.constant dense<0xFF800000> : vector<8xf32>
    %523 = vector.multi_reduction <maximumf>, %522, %cst_239 [1] : vector<8x8xf32> to vector<8xf32>
    %524 = vector.shape_cast %523 : vector<8xf32> to vector<8x1xf32>
    %525 = vector.broadcast %524 : vector<8x1xf32> to vector<8x8xf32>
    %526 = arith.subf %522, %525 : vector<8x8xf32>
    %527 = math.exp %526 : vector<8x8xf32>
    %cst_240 = arith.constant dense<0.000000e+00> : vector<8xf32>
    %528 = vector.multi_reduction <add>, %527, %cst_240 [1] : vector<8x8xf32> to vector<8xf32>
    %529 = vector.shape_cast %528 : vector<8xf32> to vector<8x1xf32>
    %530 = tpu.reciprocal %529 {approx = true} : vector<8x1xf32> -> vector<8x1xf32>
    %531 = vector.broadcast %530 : vector<8x1xf32> to vector<8x8xf32>
    %532 = arith.mulf %527, %531 : vector<8x8xf32>
    %533 = arith.truncf %532 : vector<8x8xf32> to vector<8x8xbf16>
    %534 = arith.truncf %520 : vector<8x8xf32> to vector<8x8xbf16>
    %cst_241 = arith.constant dense<0.000000e+00> : vector<8x8xf32>
    %535 = tpu.matmul %533, %534, %cst_241 {dimension_numbers = #tpu.dot_dimension_numbers<[1], [0], [0], [1], [0, 0, 1, 1], [], []>} : vector<8x8xbf16>, vector<8x8xbf16>, vector<8x8xf32> -> vector<8x8xf32>
    %536 = vector.extract_strided_slice %491 {offsets = [0, 16], sizes = [8, 8], strides = [1, 1]} : vector<8x32xf32> to vector<8x8xf32>
    %537 = arith.truncf %536 : vector<8x8xf32> to vector<8x8xbf16>
    %538 = vector.extract_strided_slice %493 {offsets = [0, 16], sizes = [8, 8], strides = [1, 1]} : vector<8x32xf32> to vector<8x8xf32>
    %539 = arith.truncf %538 : vector<8x8xf32> to vector<8x8xbf16>
    %540 = vector.extract_strided_slice %495 {offsets = [0, 16], sizes = [8, 8], strides = [1, 1]} : vector<8x32xf32> to vector<8x8xf32>
    %cst_242 = arith.constant dense<0.000000e+00> : vector<8x8xf32>
    %541 = tpu.matmul %537, %539, %cst_242 {dimension_numbers = #tpu.dot_dimension_numbers<[1], [1], [0], [0], [0, 0, 1, 0], [], []>} : vector<8x8xbf16>, vector<8x8xbf16>, vector<8x8xf32> -> vector<8x8xf32>
    %542 = arith.addf %541, %438 : vector<8x8xf32>
    %cst_243 = arith.constant dense<0xFF800000> : vector<8xf32>
    %543 = vector.multi_reduction <maximumf>, %542, %cst_243 [1] : vector<8x8xf32> to vector<8xf32>
    %544 = vector.shape_cast %543 : vector<8xf32> to vector<8x1xf32>
    %545 = vector.broadcast %544 : vector<8x1xf32> to vector<8x8xf32>
    %546 = arith.subf %542, %545 : vector<8x8xf32>
    %547 = math.exp %546 : vector<8x8xf32>
    %cst_244 = arith.constant dense<0.000000e+00> : vector<8xf32>
    %548 = vector.multi_reduction <add>, %547, %cst_244 [1] : vector<8x8xf32> to vector<8xf32>
    %549 = vector.shape_cast %548 : vector<8xf32> to vector<8x1xf32>
    %550 = tpu.reciprocal %549 {approx = true} : vector<8x1xf32> -> vector<8x1xf32>
    %551 = vector.broadcast %550 : vector<8x1xf32> to vector<8x8xf32>
    %552 = arith.mulf %547, %551 : vector<8x8xf32>
    %553 = arith.truncf %552 : vector<8x8xf32> to vector<8x8xbf16>
    %554 = arith.truncf %540 : vector<8x8xf32> to vector<8x8xbf16>
    %cst_245 = arith.constant dense<0.000000e+00> : vector<8x8xf32>
    %555 = tpu.matmul %553, %554, %cst_245 {dimension_numbers = #tpu.dot_dimension_numbers<[1], [0], [0], [1], [0, 0, 1, 1], [], []>} : vector<8x8xbf16>, vector<8x8xbf16>, vector<8x8xf32> -> vector<8x8xf32>
    %556 = vector.extract_strided_slice %491 {offsets = [0, 24], sizes = [8, 8], strides = [1, 1]} : vector<8x32xf32> to vector<8x8xf32>
    %557 = arith.truncf %556 : vector<8x8xf32> to vector<8x8xbf16>
    %558 = vector.extract_strided_slice %493 {offsets = [0, 24], sizes = [8, 8], strides = [1, 1]} : vector<8x32xf32> to vector<8x8xf32>
    %559 = arith.truncf %558 : vector<8x8xf32> to vector<8x8xbf16>
    %560 = vector.extract_strided_slice %495 {offsets = [0, 24], sizes = [8, 8], strides = [1, 1]} : vector<8x32xf32> to vector<8x8xf32>
    %cst_246 = arith.constant dense<0.000000e+00> : vector<8x8xf32>
    %561 = tpu.matmul %557, %559, %cst_246 {dimension_numbers = #tpu.dot_dimension_numbers<[1], [1], [0], [0], [0, 0, 1, 0], [], []>} : vector<8x8xbf16>, vector<8x8xbf16>, vector<8x8xf32> -> vector<8x8xf32>
    %562 = arith.addf %561, %438 : vector<8x8xf32>
    %cst_247 = arith.constant dense<0xFF800000> : vector<8xf32>
    %563 = vector.multi_reduction <maximumf>, %562, %cst_247 [1] : vector<8x8xf32> to vector<8xf32>
    %564 = vector.shape_cast %563 : vector<8xf32> to vector<8x1xf32>
    %565 = vector.broadcast %564 : vector<8x1xf32> to vector<8x8xf32>
    %566 = arith.subf %562, %565 : vector<8x8xf32>
    %567 = math.exp %566 : vector<8x8xf32>
    %cst_248 = arith.constant dense<0.000000e+00> : vector<8xf32>
    %568 = vector.multi_reduction <add>, %567, %cst_248 [1] : vector<8x8xf32> to vector<8xf32>
    %569 = vector.shape_cast %568 : vector<8xf32> to vector<8x1xf32>
    %570 = tpu.reciprocal %569 {approx = true} : vector<8x1xf32> -> vector<8x1xf32>
    %571 = vector.broadcast %570 : vector<8x1xf32> to vector<8x8xf32>
    %572 = arith.mulf %567, %571 : vector<8x8xf32>
    %573 = arith.truncf %572 : vector<8x8xf32> to vector<8x8xbf16>
    %574 = arith.truncf %560 : vector<8x8xf32> to vector<8x8xbf16>
    %cst_249 = arith.constant dense<0.000000e+00> : vector<8x8xf32>
    %575 = tpu.matmul %573, %574, %cst_249 {dimension_numbers = #tpu.dot_dimension_numbers<[1], [0], [0], [1], [0, 0, 1, 1], [], []>} : vector<8x8xbf16>, vector<8x8xbf16>, vector<8x8xf32> -> vector<8x8xf32>
    %576 = tpu.concatenate %515, %535, %555, %575 in 1 : vector<8x8xf32>, vector<8x8xf32>, vector<8x8xf32>, vector<8x8xf32> -> vector<8x32xf32>
    %577 = arith.truncf %576 : vector<8x32xf32> to vector<8x32xbf16>
    %cst_250 = arith.constant dense<0.000000e+00> : vector<8x32xf32>
    %578 = tpu.matmul %577, %475, %cst_250 {dimension_numbers = #tpu.dot_dimension_numbers<[1], [0], [0], [1], [0, 0, 1, 1], [], []>} : vector<8x32xbf16>, vector<32x32xbf16>, vector<8x32xf32> -> vector<8x32xf32>
    %579 = vector.broadcast %483 : vector<1x32xf32> to vector<8x32xf32>
    %580 = arith.addf %578, %579 : vector<8x32xf32>
    %581 = arith.addf %428, %580 : vector<8x32xf32>
    %c2 = arith.constant 2 : index
    %c0_251 = arith.constant 0 : index
    %c0_252 = arith.constant 0 : index
    %582 = vector.load %arg26[%c2, %c0_251, %c0_252] : memref<5x1x32xf32, #tpu.memory_space<vmem>>, vector<1x1x32xf32>
    %583 = vector.shape_cast %582 : vector<1x1x32xf32> to vector<1x32xf32>
    %c2_253 = arith.constant 2 : index
    %c0_254 = arith.constant 0 : index
    %c0_255 = arith.constant 0 : index
    %584 = vector.load %arg27[%c2_253, %c0_254, %c0_255] : memref<5x1x32xf32, #tpu.memory_space<vmem>>, vector<1x1x32xf32>
    %585 = vector.shape_cast %584 : vector<1x1x32xf32> to vector<1x32xf32>
    %cst_256 = arith.constant dense<0.000000e+00> : vector<8xf32>
    %586 = vector.multi_reduction <add>, %581, %cst_256 [1] : vector<8x32xf32> to vector<8xf32>
    %587 = vector.shape_cast %586 : vector<8xf32> to vector<8x1xf32>
    %cst_257 = arith.constant 3.200000e+01 : f32
    %588 = vector.broadcast %cst_257 : f32 to vector<8x1xf32>
    %589 = arith.divf %587, %588 : vector<8x1xf32>
    %590 = vector.broadcast %589 : vector<8x1xf32> to vector<8x32xf32>
    %591 = arith.subf %581, %590 : vector<8x32xf32>
    %592 = arith.mulf %591, %591 : vector<8x32xf32>
    %cst_258 = arith.constant dense<0.000000e+00> : vector<8xf32>
    %593 = vector.multi_reduction <add>, %592, %cst_258 [1] : vector<8x32xf32> to vector<8xf32>
    %594 = vector.shape_cast %593 : vector<8xf32> to vector<8x1xf32>
    %cst_259 = arith.constant 3.200000e+01 : f32
    %595 = vector.broadcast %cst_259 : f32 to vector<8x1xf32>
    %596 = arith.divf %594, %595 : vector<8x1xf32>
    %cst_260 = arith.constant 9.99999974E-6 : f32
    %597 = vector.broadcast %cst_260 : f32 to vector<8x1xf32>
    %598 = arith.addf %596, %597 : vector<8x1xf32>
    %599 = math.rsqrt %598 : vector<8x1xf32>
    %600 = vector.broadcast %599 : vector<8x1xf32> to vector<8x32xf32>
    %601 = arith.mulf %591, %600 : vector<8x32xf32>
    %602 = vector.broadcast %583 : vector<1x32xf32> to vector<8x32xf32>
    %603 = arith.mulf %601, %602 : vector<8x32xf32>
    %604 = vector.broadcast %585 : vector<1x32xf32> to vector<8x32xf32>
    %605 = arith.addf %603, %604 : vector<8x32xf32>
    %c1_261 = arith.constant 1 : index
    %c0_262 = arith.constant 0 : index
    %c0_263 = arith.constant 0 : index
    %606 = vector.load %arg28[%c1_261, %c0_262, %c0_263] : memref<2x32x32xbf16, #tpu.memory_space<vmem>>, vector<1x32x32xbf16>
    %607 = vector.shape_cast %606 : vector<1x32x32xbf16> to vector<32x32xbf16>
    %c1_264 = arith.constant 1 : index
    %c0_265 = arith.constant 0 : index
    %c0_266 = arith.constant 0 : index
    %608 = vector.load %arg29[%c1_264, %c0_265, %c0_266] : memref<2x32x32xbf16, #tpu.memory_space<vmem>>, vector<1x32x32xbf16>
    %609 = vector.shape_cast %608 : vector<1x32x32xbf16> to vector<32x32xbf16>
    %c1_267 = arith.constant 1 : index
    %c0_268 = arith.constant 0 : index
    %c0_269 = arith.constant 0 : index
    %610 = vector.load %arg30[%c1_267, %c0_268, %c0_269] : memref<2x32x32xbf16, #tpu.memory_space<vmem>>, vector<1x32x32xbf16>
    %611 = vector.shape_cast %610 : vector<1x32x32xbf16> to vector<32x32xbf16>
    %c1_270 = arith.constant 1 : index
    %c0_271 = arith.constant 0 : index
    %c0_272 = arith.constant 0 : index
    %612 = vector.load %arg31[%c1_270, %c0_271, %c0_272] : memref<2x32x32xbf16, #tpu.memory_space<vmem>>, vector<1x32x32xbf16>
    %613 = vector.shape_cast %612 : vector<1x32x32xbf16> to vector<32x32xbf16>
    %c1_273 = arith.constant 1 : index
    %c0_274 = arith.constant 0 : index
    %c0_275 = arith.constant 0 : index
    %614 = vector.load %arg32[%c1_273, %c0_274, %c0_275] : memref<2x1x32xf32, #tpu.memory_space<vmem>>, vector<1x1x32xf32>
    %615 = vector.shape_cast %614 : vector<1x1x32xf32> to vector<1x32xf32>
    %c1_276 = arith.constant 1 : index
    %c0_277 = arith.constant 0 : index
    %c0_278 = arith.constant 0 : index
    %616 = vector.load %arg33[%c1_276, %c0_277, %c0_278] : memref<2x1x32xf32, #tpu.memory_space<vmem>>, vector<1x1x32xf32>
    %617 = vector.shape_cast %616 : vector<1x1x32xf32> to vector<1x32xf32>
    %c1_279 = arith.constant 1 : index
    %c0_280 = arith.constant 0 : index
    %c0_281 = arith.constant 0 : index
    %618 = vector.load %arg34[%c1_279, %c0_280, %c0_281] : memref<2x1x32xf32, #tpu.memory_space<vmem>>, vector<1x1x32xf32>
    %619 = vector.shape_cast %618 : vector<1x1x32xf32> to vector<1x32xf32>
    %c1_282 = arith.constant 1 : index
    %c0_283 = arith.constant 0 : index
    %c0_284 = arith.constant 0 : index
    %620 = vector.load %arg35[%c1_282, %c0_283, %c0_284] : memref<2x1x32xf32, #tpu.memory_space<vmem>>, vector<1x1x32xf32>
    %621 = vector.shape_cast %620 : vector<1x1x32xf32> to vector<1x32xf32>
    %622 = arith.truncf %605 : vector<8x32xf32> to vector<8x32xbf16>
    %cst_285 = arith.constant dense<0.000000e+00> : vector<8x32xf32>
    %623 = tpu.matmul %622, %607, %cst_285 {dimension_numbers = #tpu.dot_dimension_numbers<[1], [0], [0], [1], [0, 0, 1, 1], [], []>} : vector<8x32xbf16>, vector<32x32xbf16>, vector<8x32xf32> -> vector<8x32xf32>
    %624 = arith.truncf %426 : vector<10x32xf32> to vector<10x32xbf16>
    %cst_286 = arith.constant dense<0.000000e+00> : vector<10x32xf32>
    %625 = tpu.matmul %624, %609, %cst_286 {dimension_numbers = #tpu.dot_dimension_numbers<[1], [0], [0], [1], [0, 0, 1, 1], [], []>} : vector<10x32xbf16>, vector<32x32xbf16>, vector<10x32xf32> -> vector<10x32xf32>
    %626 = arith.truncf %426 : vector<10x32xf32> to vector<10x32xbf16>
    %cst_287 = arith.constant dense<0.000000e+00> : vector<10x32xf32>
    %627 = tpu.matmul %626, %611, %cst_287 {dimension_numbers = #tpu.dot_dimension_numbers<[1], [0], [0], [1], [0, 0, 1, 1], [], []>} : vector<10x32xbf16>, vector<32x32xbf16>, vector<10x32xf32> -> vector<10x32xf32>
    %628 = vector.broadcast %615 : vector<1x32xf32> to vector<8x32xf32>
    %629 = arith.addf %623, %628 : vector<8x32xf32>
    %630 = vector.broadcast %617 : vector<1x32xf32> to vector<10x32xf32>
    %631 = arith.addf %625, %630 : vector<10x32xf32>
    %632 = vector.broadcast %619 : vector<1x32xf32> to vector<10x32xf32>
    %633 = arith.addf %627, %632 : vector<10x32xf32>
    %634 = vector.extract_strided_slice %629 {offsets = [0, 0], sizes = [8, 8], strides = [1, 1]} : vector<8x32xf32> to vector<8x8xf32>
    %635 = arith.truncf %634 : vector<8x8xf32> to vector<8x8xbf16>
    %636 = vector.extract_strided_slice %631 {offsets = [0, 0], sizes = [10, 8], strides = [1, 1]} : vector<10x32xf32> to vector<10x8xf32>
    %637 = arith.truncf %636 : vector<10x8xf32> to vector<10x8xbf16>
    %638 = vector.extract_strided_slice %633 {offsets = [0, 0], sizes = [10, 8], strides = [1, 1]} : vector<10x32xf32> to vector<10x8xf32>
    %cst_288 = arith.constant dense<0.000000e+00> : vector<8x10xf32>
    %639 = tpu.matmul %635, %637, %cst_288 {dimension_numbers = #tpu.dot_dimension_numbers<[1], [1], [0], [0], [0, 0, 1, 0], [], []>} : vector<8x8xbf16>, vector<10x8xbf16>, vector<8x10xf32> -> vector<8x10xf32>
    %640 = arith.addf %639, %443 : vector<8x10xf32>
    %cst_289 = arith.constant dense<0xFF800000> : vector<8xf32>
    %641 = vector.multi_reduction <maximumf>, %640, %cst_289 [1] : vector<8x10xf32> to vector<8xf32>
    %642 = vector.shape_cast %641 : vector<8xf32> to vector<8x1xf32>
    %643 = vector.broadcast %642 : vector<8x1xf32> to vector<8x10xf32>
    %644 = arith.subf %640, %643 : vector<8x10xf32>
    %645 = math.exp %644 : vector<8x10xf32>
    %cst_290 = arith.constant dense<0.000000e+00> : vector<8xf32>
    %646 = vector.multi_reduction <add>, %645, %cst_290 [1] : vector<8x10xf32> to vector<8xf32>
    %647 = vector.shape_cast %646 : vector<8xf32> to vector<8x1xf32>
    %648 = tpu.reciprocal %647 {approx = true} : vector<8x1xf32> -> vector<8x1xf32>
    %649 = vector.broadcast %648 : vector<8x1xf32> to vector<8x10xf32>
    %650 = arith.mulf %645, %649 : vector<8x10xf32>
    %651 = arith.truncf %650 : vector<8x10xf32> to vector<8x10xbf16>
    %652 = arith.truncf %638 : vector<10x8xf32> to vector<10x8xbf16>
    %cst_291 = arith.constant dense<0.000000e+00> : vector<8x8xf32>
    %653 = tpu.matmul %651, %652, %cst_291 {dimension_numbers = #tpu.dot_dimension_numbers<[1], [0], [0], [1], [0, 0, 1, 1], [], []>} : vector<8x10xbf16>, vector<10x8xbf16>, vector<8x8xf32> -> vector<8x8xf32>
    %654 = vector.extract_strided_slice %629 {offsets = [0, 8], sizes = [8, 8], strides = [1, 1]} : vector<8x32xf32> to vector<8x8xf32>
    %655 = arith.truncf %654 : vector<8x8xf32> to vector<8x8xbf16>
    %656 = vector.extract_strided_slice %631 {offsets = [0, 8], sizes = [10, 8], strides = [1, 1]} : vector<10x32xf32> to vector<10x8xf32>
    %657 = arith.truncf %656 : vector<10x8xf32> to vector<10x8xbf16>
    %658 = vector.extract_strided_slice %633 {offsets = [0, 8], sizes = [10, 8], strides = [1, 1]} : vector<10x32xf32> to vector<10x8xf32>
    %cst_292 = arith.constant dense<0.000000e+00> : vector<8x10xf32>
    %659 = tpu.matmul %655, %657, %cst_292 {dimension_numbers = #tpu.dot_dimension_numbers<[1], [1], [0], [0], [0, 0, 1, 0], [], []>} : vector<8x8xbf16>, vector<10x8xbf16>, vector<8x10xf32> -> vector<8x10xf32>
    %660 = arith.addf %659, %443 : vector<8x10xf32>
    %cst_293 = arith.constant dense<0xFF800000> : vector<8xf32>
    %661 = vector.multi_reduction <maximumf>, %660, %cst_293 [1] : vector<8x10xf32> to vector<8xf32>
    %662 = vector.shape_cast %661 : vector<8xf32> to vector<8x1xf32>
    %663 = vector.broadcast %662 : vector<8x1xf32> to vector<8x10xf32>
    %664 = arith.subf %660, %663 : vector<8x10xf32>
    %665 = math.exp %664 : vector<8x10xf32>
    %cst_294 = arith.constant dense<0.000000e+00> : vector<8xf32>
    %666 = vector.multi_reduction <add>, %665, %cst_294 [1] : vector<8x10xf32> to vector<8xf32>
    %667 = vector.shape_cast %666 : vector<8xf32> to vector<8x1xf32>
    %668 = tpu.reciprocal %667 {approx = true} : vector<8x1xf32> -> vector<8x1xf32>
    %669 = vector.broadcast %668 : vector<8x1xf32> to vector<8x10xf32>
    %670 = arith.mulf %665, %669 : vector<8x10xf32>
    %671 = arith.truncf %670 : vector<8x10xf32> to vector<8x10xbf16>
    %672 = arith.truncf %658 : vector<10x8xf32> to vector<10x8xbf16>
    %cst_295 = arith.constant dense<0.000000e+00> : vector<8x8xf32>
    %673 = tpu.matmul %671, %672, %cst_295 {dimension_numbers = #tpu.dot_dimension_numbers<[1], [0], [0], [1], [0, 0, 1, 1], [], []>} : vector<8x10xbf16>, vector<10x8xbf16>, vector<8x8xf32> -> vector<8x8xf32>
    %674 = vector.extract_strided_slice %629 {offsets = [0, 16], sizes = [8, 8], strides = [1, 1]} : vector<8x32xf32> to vector<8x8xf32>
    %675 = arith.truncf %674 : vector<8x8xf32> to vector<8x8xbf16>
    %676 = vector.extract_strided_slice %631 {offsets = [0, 16], sizes = [10, 8], strides = [1, 1]} : vector<10x32xf32> to vector<10x8xf32>
    %677 = arith.truncf %676 : vector<10x8xf32> to vector<10x8xbf16>
    %678 = vector.extract_strided_slice %633 {offsets = [0, 16], sizes = [10, 8], strides = [1, 1]} : vector<10x32xf32> to vector<10x8xf32>
    %cst_296 = arith.constant dense<0.000000e+00> : vector<8x10xf32>
    %679 = tpu.matmul %675, %677, %cst_296 {dimension_numbers = #tpu.dot_dimension_numbers<[1], [1], [0], [0], [0, 0, 1, 0], [], []>} : vector<8x8xbf16>, vector<10x8xbf16>, vector<8x10xf32> -> vector<8x10xf32>
    %680 = arith.addf %679, %443 : vector<8x10xf32>
    %cst_297 = arith.constant dense<0xFF800000> : vector<8xf32>
    %681 = vector.multi_reduction <maximumf>, %680, %cst_297 [1] : vector<8x10xf32> to vector<8xf32>
    %682 = vector.shape_cast %681 : vector<8xf32> to vector<8x1xf32>
    %683 = vector.broadcast %682 : vector<8x1xf32> to vector<8x10xf32>
    %684 = arith.subf %680, %683 : vector<8x10xf32>
    %685 = math.exp %684 : vector<8x10xf32>
    %cst_298 = arith.constant dense<0.000000e+00> : vector<8xf32>
    %686 = vector.multi_reduction <add>, %685, %cst_298 [1] : vector<8x10xf32> to vector<8xf32>
    %687 = vector.shape_cast %686 : vector<8xf32> to vector<8x1xf32>
    %688 = tpu.reciprocal %687 {approx = true} : vector<8x1xf32> -> vector<8x1xf32>
    %689 = vector.broadcast %688 : vector<8x1xf32> to vector<8x10xf32>
    %690 = arith.mulf %685, %689 : vector<8x10xf32>
    %691 = arith.truncf %690 : vector<8x10xf32> to vector<8x10xbf16>
    %692 = arith.truncf %678 : vector<10x8xf32> to vector<10x8xbf16>
    %cst_299 = arith.constant dense<0.000000e+00> : vector<8x8xf32>
    %693 = tpu.matmul %691, %692, %cst_299 {dimension_numbers = #tpu.dot_dimension_numbers<[1], [0], [0], [1], [0, 0, 1, 1], [], []>} : vector<8x10xbf16>, vector<10x8xbf16>, vector<8x8xf32> -> vector<8x8xf32>
    %694 = vector.extract_strided_slice %629 {offsets = [0, 24], sizes = [8, 8], strides = [1, 1]} : vector<8x32xf32> to vector<8x8xf32>
    %695 = arith.truncf %694 : vector<8x8xf32> to vector<8x8xbf16>
    %696 = vector.extract_strided_slice %631 {offsets = [0, 24], sizes = [10, 8], strides = [1, 1]} : vector<10x32xf32> to vector<10x8xf32>
    %697 = arith.truncf %696 : vector<10x8xf32> to vector<10x8xbf16>
    %698 = vector.extract_strided_slice %633 {offsets = [0, 24], sizes = [10, 8], strides = [1, 1]} : vector<10x32xf32> to vector<10x8xf32>
    %cst_300 = arith.constant dense<0.000000e+00> : vector<8x10xf32>
    %699 = tpu.matmul %695, %697, %cst_300 {dimension_numbers = #tpu.dot_dimension_numbers<[1], [1], [0], [0], [0, 0, 1, 0], [], []>} : vector<8x8xbf16>, vector<10x8xbf16>, vector<8x10xf32> -> vector<8x10xf32>
    %700 = arith.addf %699, %443 : vector<8x10xf32>
    %cst_301 = arith.constant dense<0xFF800000> : vector<8xf32>
    %701 = vector.multi_reduction <maximumf>, %700, %cst_301 [1] : vector<8x10xf32> to vector<8xf32>
    %702 = vector.shape_cast %701 : vector<8xf32> to vector<8x1xf32>
    %703 = vector.broadcast %702 : vector<8x1xf32> to vector<8x10xf32>
    %704 = arith.subf %700, %703 : vector<8x10xf32>
    %705 = math.exp %704 : vector<8x10xf32>
    %cst_302 = arith.constant dense<0.000000e+00> : vector<8xf32>
    %706 = vector.multi_reduction <add>, %705, %cst_302 [1] : vector<8x10xf32> to vector<8xf32>
    %707 = vector.shape_cast %706 : vector<8xf32> to vector<8x1xf32>
    %708 = tpu.reciprocal %707 {approx = true} : vector<8x1xf32> -> vector<8x1xf32>
    %709 = vector.broadcast %708 : vector<8x1xf32> to vector<8x10xf32>
    %710 = arith.mulf %705, %709 : vector<8x10xf32>
    %711 = arith.truncf %710 : vector<8x10xf32> to vector<8x10xbf16>
    %712 = arith.truncf %698 : vector<10x8xf32> to vector<10x8xbf16>
    %cst_303 = arith.constant dense<0.000000e+00> : vector<8x8xf32>
    %713 = tpu.matmul %711, %712, %cst_303 {dimension_numbers = #tpu.dot_dimension_numbers<[1], [0], [0], [1], [0, 0, 1, 1], [], []>} : vector<8x10xbf16>, vector<10x8xbf16>, vector<8x8xf32> -> vector<8x8xf32>
    %714 = tpu.concatenate %653, %673, %693, %713 in 1 : vector<8x8xf32>, vector<8x8xf32>, vector<8x8xf32>, vector<8x8xf32> -> vector<8x32xf32>
    %715 = arith.truncf %714 : vector<8x32xf32> to vector<8x32xbf16>
    %cst_304 = arith.constant dense<0.000000e+00> : vector<8x32xf32>
    %716 = tpu.matmul %715, %613, %cst_304 {dimension_numbers = #tpu.dot_dimension_numbers<[1], [0], [0], [1], [0, 0, 1, 1], [], []>} : vector<8x32xbf16>, vector<32x32xbf16>, vector<8x32xf32> -> vector<8x32xf32>
    %717 = vector.broadcast %621 : vector<1x32xf32> to vector<8x32xf32>
    %718 = arith.addf %716, %717 : vector<8x32xf32>
    %719 = arith.addf %581, %718 : vector<8x32xf32>
    %c3 = arith.constant 3 : index
    %c0_305 = arith.constant 0 : index
    %c0_306 = arith.constant 0 : index
    %720 = vector.load %arg26[%c3, %c0_305, %c0_306] : memref<5x1x32xf32, #tpu.memory_space<vmem>>, vector<1x1x32xf32>
    %721 = vector.shape_cast %720 : vector<1x1x32xf32> to vector<1x32xf32>
    %c3_307 = arith.constant 3 : index
    %c0_308 = arith.constant 0 : index
    %c0_309 = arith.constant 0 : index
    %722 = vector.load %arg27[%c3_307, %c0_308, %c0_309] : memref<5x1x32xf32, #tpu.memory_space<vmem>>, vector<1x1x32xf32>
    %723 = vector.shape_cast %722 : vector<1x1x32xf32> to vector<1x32xf32>
    %cst_310 = arith.constant dense<0.000000e+00> : vector<8xf32>
    %724 = vector.multi_reduction <add>, %719, %cst_310 [1] : vector<8x32xf32> to vector<8xf32>
    %725 = vector.shape_cast %724 : vector<8xf32> to vector<8x1xf32>
    %cst_311 = arith.constant 3.200000e+01 : f32
    %726 = vector.broadcast %cst_311 : f32 to vector<8x1xf32>
    %727 = arith.divf %725, %726 : vector<8x1xf32>
    %728 = vector.broadcast %727 : vector<8x1xf32> to vector<8x32xf32>
    %729 = arith.subf %719, %728 : vector<8x32xf32>
    %730 = arith.mulf %729, %729 : vector<8x32xf32>
    %cst_312 = arith.constant dense<0.000000e+00> : vector<8xf32>
    %731 = vector.multi_reduction <add>, %730, %cst_312 [1] : vector<8x32xf32> to vector<8xf32>
    %732 = vector.shape_cast %731 : vector<8xf32> to vector<8x1xf32>
    %cst_313 = arith.constant 3.200000e+01 : f32
    %733 = vector.broadcast %cst_313 : f32 to vector<8x1xf32>
    %734 = arith.divf %732, %733 : vector<8x1xf32>
    %cst_314 = arith.constant 9.99999974E-6 : f32
    %735 = vector.broadcast %cst_314 : f32 to vector<8x1xf32>
    %736 = arith.addf %734, %735 : vector<8x1xf32>
    %737 = math.rsqrt %736 : vector<8x1xf32>
    %738 = vector.broadcast %737 : vector<8x1xf32> to vector<8x32xf32>
    %739 = arith.mulf %729, %738 : vector<8x32xf32>
    %740 = vector.broadcast %721 : vector<1x32xf32> to vector<8x32xf32>
    %741 = arith.mulf %739, %740 : vector<8x32xf32>
    %742 = vector.broadcast %723 : vector<1x32xf32> to vector<8x32xf32>
    %743 = arith.addf %741, %742 : vector<8x32xf32>
    %c0_315 = arith.constant 0 : index
    %c0_316 = arith.constant 0 : index
    %744 = vector.load %arg36[%c0_315, %c0_316] : memref<32x64xbf16, #tpu.memory_space<vmem>>, vector<32x64xbf16>
    %745 = arith.truncf %743 : vector<8x32xf32> to vector<8x32xbf16>
    %cst_317 = arith.constant dense<0.000000e+00> : vector<8x64xf32>
    %746 = tpu.matmul %745, %744, %cst_317 {dimension_numbers = #tpu.dot_dimension_numbers<[1], [0], [0], [1], [0, 0, 1, 1], [], []>} : vector<8x32xbf16>, vector<32x64xbf16>, vector<8x64xf32> -> vector<8x64xf32>
    %c0_318 = arith.constant 0 : index
    %c0_319 = arith.constant 0 : index
    %747 = vector.load %arg37[%c0_318, %c0_319] : memref<1x64xf32, #tpu.memory_space<vmem>>, vector<1x64xf32>
    %748 = vector.broadcast %747 : vector<1x64xf32> to vector<8x64xf32>
    %749 = arith.addf %746, %748 : vector<8x64xf32>
    %750 = arith.mulf %749, %749 : vector<8x64xf32>
    %751 = arith.mulf %749, %750 : vector<8x64xf32>
    %cst_320 = arith.constant 4.471500e-02 : f32
    %752 = vector.broadcast %cst_320 : f32 to vector<8x64xf32>
    %753 = arith.mulf %752, %751 : vector<8x64xf32>
    %754 = arith.addf %749, %753 : vector<8x64xf32>
    %cst_321 = arith.constant 0.797884583 : f32
    %755 = vector.broadcast %cst_321 : f32 to vector<8x64xf32>
    %756 = arith.mulf %755, %754 : vector<8x64xf32>
    %757 = math.tanh %756 : vector<8x64xf32>
    %cst_322 = arith.constant 1.000000e+00 : f32
    %758 = vector.broadcast %cst_322 : f32 to vector<8x64xf32>
    %759 = arith.addf %758, %757 : vector<8x64xf32>
    %cst_323 = arith.constant 5.000000e-01 : f32
    %760 = vector.broadcast %cst_323 : f32 to vector<8x64xf32>
    %761 = arith.mulf %760, %759 : vector<8x64xf32>
    %762 = arith.mulf %749, %761 : vector<8x64xf32>
    %c0_324 = arith.constant 0 : index
    %c0_325 = arith.constant 0 : index
    %763 = vector.load %arg38[%c0_324, %c0_325] : memref<64x32xbf16, #tpu.memory_space<vmem>>, vector<64x32xbf16>
    %764 = arith.truncf %762 : vector<8x64xf32> to vector<8x64xbf16>
    %cst_326 = arith.constant dense<0.000000e+00> : vector<8x32xf32>
    %765 = tpu.matmul %764, %763, %cst_326 {dimension_numbers = #tpu.dot_dimension_numbers<[1], [0], [0], [1], [0, 0, 1, 1], [], []>} : vector<8x64xbf16>, vector<64x32xbf16>, vector<8x32xf32> -> vector<8x32xf32>
    %766 = arith.addf %719, %765 : vector<8x32xf32>
    %c0_327 = arith.constant 0 : index
    %c0_328 = arith.constant 0 : index
    %767 = vector.load %arg39[%c0_327, %c0_328] : memref<1x32xf32, #tpu.memory_space<vmem>>, vector<1x32xf32>
    %768 = vector.broadcast %767 : vector<1x32xf32> to vector<8x32xf32>
    %769 = arith.addf %766, %768 : vector<8x32xf32>
    %c4 = arith.constant 4 : index
    %c0_329 = arith.constant 0 : index
    %c0_330 = arith.constant 0 : index
    %770 = vector.load %arg26[%c4, %c0_329, %c0_330] : memref<5x1x32xf32, #tpu.memory_space<vmem>>, vector<1x1x32xf32>
    %771 = vector.shape_cast %770 : vector<1x1x32xf32> to vector<1x32xf32>
    %c4_331 = arith.constant 4 : index
    %c0_332 = arith.constant 0 : index
    %c0_333 = arith.constant 0 : index
    %772 = vector.load %arg27[%c4_331, %c0_332, %c0_333] : memref<5x1x32xf32, #tpu.memory_space<vmem>>, vector<1x1x32xf32>
    %773 = vector.shape_cast %772 : vector<1x1x32xf32> to vector<1x32xf32>
    %cst_334 = arith.constant dense<0.000000e+00> : vector<8xf32>
    %774 = vector.multi_reduction <add>, %769, %cst_334 [1] : vector<8x32xf32> to vector<8xf32>
    %775 = vector.shape_cast %774 : vector<8xf32> to vector<8x1xf32>
    %cst_335 = arith.constant 3.200000e+01 : f32
    %776 = vector.broadcast %cst_335 : f32 to vector<8x1xf32>
    %777 = arith.divf %775, %776 : vector<8x1xf32>
    %778 = vector.broadcast %777 : vector<8x1xf32> to vector<8x32xf32>
    %779 = arith.subf %769, %778 : vector<8x32xf32>
    %780 = arith.mulf %779, %779 : vector<8x32xf32>
    %cst_336 = arith.constant dense<0.000000e+00> : vector<8xf32>
    %781 = vector.multi_reduction <add>, %780, %cst_336 [1] : vector<8x32xf32> to vector<8xf32>
    %782 = vector.shape_cast %781 : vector<8xf32> to vector<8x1xf32>
    %cst_337 = arith.constant 3.200000e+01 : f32
    %783 = vector.broadcast %cst_337 : f32 to vector<8x1xf32>
    %784 = arith.divf %782, %783 : vector<8x1xf32>
    %cst_338 = arith.constant 9.99999974E-6 : f32
    %785 = vector.broadcast %cst_338 : f32 to vector<8x1xf32>
    %786 = arith.addf %784, %785 : vector<8x1xf32>
    %787 = math.rsqrt %786 : vector<8x1xf32>
    %788 = vector.broadcast %787 : vector<8x1xf32> to vector<8x32xf32>
    %789 = arith.mulf %779, %788 : vector<8x32xf32>
    %790 = vector.broadcast %771 : vector<1x32xf32> to vector<8x32xf32>
    %791 = arith.mulf %789, %790 : vector<8x32xf32>
    %792 = vector.broadcast %773 : vector<1x32xf32> to vector<8x32xf32>
    %793 = arith.addf %791, %792 : vector<8x32xf32>
    %c0_339 = arith.constant 0 : index
    %c0_340 = arith.constant 0 : index
    %794 = vector.load %arg40[%c0_339, %c0_340] : memref<32x32xbf16, #tpu.memory_space<vmem>>, vector<32x32xbf16>
    %795 = arith.truncf %793 : vector<8x32xf32> to vector<8x32xbf16>
    %cst_341 = arith.constant dense<0.000000e+00> : vector<8x32xf32>
    %796 = tpu.matmul %795, %794, %cst_341 {dimension_numbers = #tpu.dot_dimension_numbers<[1], [0], [0], [1], [0, 0, 1, 1], [], []>} : vector<8x32xbf16>, vector<32x32xbf16>, vector<8x32xf32> -> vector<8x32xf32>
    %c0_342 = arith.constant 0 : index
    %c0_343 = arith.constant 0 : index
    %797 = vector.load %arg41[%c0_342, %c0_343] : memref<1x32xf32, #tpu.memory_space<vmem>>, vector<1x32xf32>
    %798 = vector.broadcast %797 : vector<1x32xf32> to vector<8x32xf32>
    %799 = arith.addf %796, %798 : vector<8x32xf32>
    %800 = tpu.iota {dimensions = array<i32: 1>} : vector<16x64xi32>
    %c0_344 = arith.constant 0 : index
    %c0_345 = arith.constant 0 : index
    %801 = vector.load %arg2[%c0_344, %c0_345] : memref<16x1xi32, #tpu.memory_space<vmem>>, vector<16x1xi32>
    %802 = vector.broadcast %801 : vector<16x1xi32> to vector<16x64xi32>
    %803 = arith.cmpi eq, %800, %802 : vector<16x64xi32>
    %804 = arith.extui %803 : vector<16x64xi1> to vector<16x64xi32>
    %805 = arith.sitofp %804 : vector<16x64xi32> to vector<16x64xf32>
    %806 = arith.truncf %805 : vector<16x64xf32> to vector<16x64xbf16>
    %c0_346 = arith.constant 0 : index
    %c0_347 = arith.constant 0 : index
    %807 = vector.load %arg42[%c0_346, %c0_347] : memref<64x32xbf16, #tpu.memory_space<vmem>>, vector<64x32xbf16>
    %cst_348 = arith.constant dense<0.000000e+00> : vector<16x32xf32>
    %808 = tpu.matmul %806, %807, %cst_348 {dimension_numbers = #tpu.dot_dimension_numbers<[1], [0], [0], [1], [0, 0, 1, 1], [], []>} : vector<16x64xbf16>, vector<64x32xbf16>, vector<16x32xf32> -> vector<16x32xf32>
    %809 = vector.extract_strided_slice %799 {offsets = [0, 0], sizes = [4, 32], strides = [1, 1]} : vector<8x32xf32> to vector<4x32xf32>
    %810 = vector.extract_strided_slice %808 {offsets = [0, 0], sizes = [8, 32], strides = [1, 1]} : vector<16x32xf32> to vector<8x32xf32>
    %811 = vector.extract_strided_slice %799 {offsets = [4, 0], sizes = [4, 32], strides = [1, 1]} : vector<8x32xf32> to vector<4x32xf32>
    %812 = vector.extract_strided_slice %808 {offsets = [8, 0], sizes = [8, 32], strides = [1, 1]} : vector<16x32xf32> to vector<8x32xf32>
    %813 = tpu.concatenate %809, %810, %811, %812 in 0 : vector<4x32xf32>, vector<8x32xf32>, vector<4x32xf32>, vector<8x32xf32> -> vector<24x32xf32>
    %c0_349 = arith.constant 0 : index
    %c0_350 = arith.constant 0 : index
    %814 = vector.load %arg1[%c0_349, %c0_350] : memref<1x24xf32, #tpu.memory_space<vmem>>, vector<1x24xf32>
    %815 = tpu.iota {dimensions = array<i32: 0>} : vector<12x12xi32>
    %816 = tpu.iota {dimensions = array<i32: 1>} : vector<12x12xi32>
    %817 = arith.cmpi sle, %816, %815 : vector<12x12xi32>
    %cst_351 = arith.constant 0.000000e+00 : f32
    %cst_352 = arith.constant -1.000000e+09 : f32
    %818 = vector.broadcast %cst_351 : f32 to vector<12x12xf32>
    %819 = vector.broadcast %cst_352 : f32 to vector<12x12xf32>
    %820 = arith.select %817, %818, %819 : vector<12x12xi1>, vector<12x12xf32>
    %cst_353 = arith.constant -1.000000e+09 : f32
    %821 = vector.broadcast %cst_353 : f32 to vector<12x12xf32>
    %822 = tpu.concatenate %820, %821 in 1 : vector<12x12xf32>, vector<12x12xf32> -> vector<12x24xf32>
    %823 = tpu.concatenate %821, %820 in 1 : vector<12x12xf32>, vector<12x12xf32> -> vector<12x24xf32>
    %824 = tpu.concatenate %822, %823 in 0 : vector<12x24xf32>, vector<12x24xf32> -> vector<24x24xf32>
    %cst_354 = arith.constant 5.000000e-01 : f32
    %825 = vector.broadcast %cst_354 : f32 to vector<1x24xf32>
    %826 = arith.cmpf ogt, %814, %825 : vector<1x24xf32>
    %cst_355 = arith.constant 0.000000e+00 : f32
    %cst_356 = arith.constant -1.000000e+09 : f32
    %827 = vector.broadcast %cst_355 : f32 to vector<1x24xf32>
    %828 = vector.broadcast %cst_356 : f32 to vector<1x24xf32>
    %829 = arith.select %826, %827, %828 : vector<1x24xi1>, vector<1x24xf32>
    %830 = vector.broadcast %829 : vector<1x24xf32> to vector<24x24xf32>
    %831 = arith.addf %824, %830 : vector<24x24xf32>
    %c0_357 = arith.constant 0 : index
    %c0_358 = arith.constant 0 : index
    %c0_359 = arith.constant 0 : index
    %832 = vector.load %arg43[%c0_357, %c0_358, %c0_359] : memref<3x1x32xf32, #tpu.memory_space<vmem>>, vector<1x1x32xf32>
    %833 = vector.shape_cast %832 : vector<1x1x32xf32> to vector<1x32xf32>
    %834 = arith.mulf %813, %813 : vector<24x32xf32>
    %cst_360 = arith.constant dense<0.000000e+00> : vector<24xf32>
    %835 = vector.multi_reduction <add>, %834, %cst_360 [1] : vector<24x32xf32> to vector<24xf32>
    %836 = vector.shape_cast %835 : vector<24xf32> to vector<24x1xf32>
    %cst_361 = arith.constant 3.200000e+01 : f32
    %837 = vector.broadcast %cst_361 : f32 to vector<24x1xf32>
    %838 = arith.divf %836, %837 : vector<24x1xf32>
    %cst_362 = arith.constant 9.99999997E-7 : f32
    %839 = vector.broadcast %cst_362 : f32 to vector<24x1xf32>
    %840 = arith.addf %838, %839 : vector<24x1xf32>
    %841 = math.rsqrt %840 : vector<24x1xf32>
    %842 = vector.broadcast %841 : vector<24x1xf32> to vector<24x32xf32>
    %843 = arith.mulf %813, %842 : vector<24x32xf32>
    %844 = vector.broadcast %833 : vector<1x32xf32> to vector<24x32xf32>
    %845 = arith.mulf %843, %844 : vector<24x32xf32>
    %c0_363 = arith.constant 0 : index
    %c0_364 = arith.constant 0 : index
    %846 = vector.load %arg44[%c0_363, %c0_364] : memref<32x32xbf16, #tpu.memory_space<vmem>>, vector<32x32xbf16>
    %c0_365 = arith.constant 0 : index
    %c0_366 = arith.constant 0 : index
    %847 = vector.load %arg45[%c0_365, %c0_366] : memref<32x32xbf16, #tpu.memory_space<vmem>>, vector<32x32xbf16>
    %c0_367 = arith.constant 0 : index
    %c0_368 = arith.constant 0 : index
    %848 = vector.load %arg46[%c0_367, %c0_368] : memref<32x32xbf16, #tpu.memory_space<vmem>>, vector<32x32xbf16>
    %c0_369 = arith.constant 0 : index
    %c0_370 = arith.constant 0 : index
    %849 = vector.load %arg47[%c0_369, %c0_370] : memref<32x32xbf16, #tpu.memory_space<vmem>>, vector<32x32xbf16>
    %850 = arith.truncf %845 : vector<24x32xf32> to vector<24x32xbf16>
    %cst_371 = arith.constant dense<0.000000e+00> : vector<24x32xf32>
    %851 = tpu.matmul %850, %846, %cst_371 {dimension_numbers = #tpu.dot_dimension_numbers<[1], [0], [0], [1], [0, 0, 1, 1], [], []>} : vector<24x32xbf16>, vector<32x32xbf16>, vector<24x32xf32> -> vector<24x32xf32>
    %852 = arith.truncf %845 : vector<24x32xf32> to vector<24x32xbf16>
    %cst_372 = arith.constant dense<0.000000e+00> : vector<24x32xf32>
    %853 = tpu.matmul %852, %847, %cst_372 {dimension_numbers = #tpu.dot_dimension_numbers<[1], [0], [0], [1], [0, 0, 1, 1], [], []>} : vector<24x32xbf16>, vector<32x32xbf16>, vector<24x32xf32> -> vector<24x32xf32>
    %854 = arith.truncf %845 : vector<24x32xf32> to vector<24x32xbf16>
    %cst_373 = arith.constant dense<0.000000e+00> : vector<24x32xf32>
    %855 = tpu.matmul %854, %848, %cst_373 {dimension_numbers = #tpu.dot_dimension_numbers<[1], [0], [0], [1], [0, 0, 1, 1], [], []>} : vector<24x32xbf16>, vector<32x32xbf16>, vector<24x32xf32> -> vector<24x32xf32>
    %856 = vector.extract_strided_slice %851 {offsets = [0, 0], sizes = [24, 8], strides = [1, 1]} : vector<24x32xf32> to vector<24x8xf32>
    %857 = arith.truncf %856 : vector<24x8xf32> to vector<24x8xbf16>
    %858 = vector.extract_strided_slice %853 {offsets = [0, 0], sizes = [24, 8], strides = [1, 1]} : vector<24x32xf32> to vector<24x8xf32>
    %859 = arith.truncf %858 : vector<24x8xf32> to vector<24x8xbf16>
    %860 = vector.extract_strided_slice %855 {offsets = [0, 0], sizes = [24, 8], strides = [1, 1]} : vector<24x32xf32> to vector<24x8xf32>
    %cst_374 = arith.constant dense<0.000000e+00> : vector<24x24xf32>
    %861 = tpu.matmul %857, %859, %cst_374 {dimension_numbers = #tpu.dot_dimension_numbers<[1], [1], [0], [0], [0, 0, 1, 0], [], []>} : vector<24x8xbf16>, vector<24x8xbf16>, vector<24x24xf32> -> vector<24x24xf32>
    %862 = arith.addf %861, %831 : vector<24x24xf32>
    %cst_375 = arith.constant dense<0xFF800000> : vector<24xf32>
    %863 = vector.multi_reduction <maximumf>, %862, %cst_375 [1] : vector<24x24xf32> to vector<24xf32>
    %864 = vector.shape_cast %863 : vector<24xf32> to vector<24x1xf32>
    %865 = vector.broadcast %864 : vector<24x1xf32> to vector<24x24xf32>
    %866 = arith.subf %862, %865 : vector<24x24xf32>
    %867 = math.exp %866 : vector<24x24xf32>
    %cst_376 = arith.constant dense<0.000000e+00> : vector<24xf32>
    %868 = vector.multi_reduction <add>, %867, %cst_376 [1] : vector<24x24xf32> to vector<24xf32>
    %869 = vector.shape_cast %868 : vector<24xf32> to vector<24x1xf32>
    %870 = tpu.reciprocal %869 {approx = true} : vector<24x1xf32> -> vector<24x1xf32>
    %871 = vector.broadcast %870 : vector<24x1xf32> to vector<24x24xf32>
    %872 = arith.mulf %867, %871 : vector<24x24xf32>
    %873 = arith.truncf %872 : vector<24x24xf32> to vector<24x24xbf16>
    %874 = arith.truncf %860 : vector<24x8xf32> to vector<24x8xbf16>
    %cst_377 = arith.constant dense<0.000000e+00> : vector<24x8xf32>
    %875 = tpu.matmul %873, %874, %cst_377 {dimension_numbers = #tpu.dot_dimension_numbers<[1], [0], [0], [1], [0, 0, 1, 1], [], []>} : vector<24x24xbf16>, vector<24x8xbf16>, vector<24x8xf32> -> vector<24x8xf32>
    %876 = vector.extract_strided_slice %851 {offsets = [0, 8], sizes = [24, 8], strides = [1, 1]} : vector<24x32xf32> to vector<24x8xf32>
    %877 = arith.truncf %876 : vector<24x8xf32> to vector<24x8xbf16>
    %878 = vector.extract_strided_slice %853 {offsets = [0, 8], sizes = [24, 8], strides = [1, 1]} : vector<24x32xf32> to vector<24x8xf32>
    %879 = arith.truncf %878 : vector<24x8xf32> to vector<24x8xbf16>
    %880 = vector.extract_strided_slice %855 {offsets = [0, 8], sizes = [24, 8], strides = [1, 1]} : vector<24x32xf32> to vector<24x8xf32>
    %cst_378 = arith.constant dense<0.000000e+00> : vector<24x24xf32>
    %881 = tpu.matmul %877, %879, %cst_378 {dimension_numbers = #tpu.dot_dimension_numbers<[1], [1], [0], [0], [0, 0, 1, 0], [], []>} : vector<24x8xbf16>, vector<24x8xbf16>, vector<24x24xf32> -> vector<24x24xf32>
    %882 = arith.addf %881, %831 : vector<24x24xf32>
    %cst_379 = arith.constant dense<0xFF800000> : vector<24xf32>
    %883 = vector.multi_reduction <maximumf>, %882, %cst_379 [1] : vector<24x24xf32> to vector<24xf32>
    %884 = vector.shape_cast %883 : vector<24xf32> to vector<24x1xf32>
    %885 = vector.broadcast %884 : vector<24x1xf32> to vector<24x24xf32>
    %886 = arith.subf %882, %885 : vector<24x24xf32>
    %887 = math.exp %886 : vector<24x24xf32>
    %cst_380 = arith.constant dense<0.000000e+00> : vector<24xf32>
    %888 = vector.multi_reduction <add>, %887, %cst_380 [1] : vector<24x24xf32> to vector<24xf32>
    %889 = vector.shape_cast %888 : vector<24xf32> to vector<24x1xf32>
    %890 = tpu.reciprocal %889 {approx = true} : vector<24x1xf32> -> vector<24x1xf32>
    %891 = vector.broadcast %890 : vector<24x1xf32> to vector<24x24xf32>
    %892 = arith.mulf %887, %891 : vector<24x24xf32>
    %893 = arith.truncf %892 : vector<24x24xf32> to vector<24x24xbf16>
    %894 = arith.truncf %880 : vector<24x8xf32> to vector<24x8xbf16>
    %cst_381 = arith.constant dense<0.000000e+00> : vector<24x8xf32>
    %895 = tpu.matmul %893, %894, %cst_381 {dimension_numbers = #tpu.dot_dimension_numbers<[1], [0], [0], [1], [0, 0, 1, 1], [], []>} : vector<24x24xbf16>, vector<24x8xbf16>, vector<24x8xf32> -> vector<24x8xf32>
    %896 = vector.extract_strided_slice %851 {offsets = [0, 16], sizes = [24, 8], strides = [1, 1]} : vector<24x32xf32> to vector<24x8xf32>
    %897 = arith.truncf %896 : vector<24x8xf32> to vector<24x8xbf16>
    %898 = vector.extract_strided_slice %853 {offsets = [0, 16], sizes = [24, 8], strides = [1, 1]} : vector<24x32xf32> to vector<24x8xf32>
    %899 = arith.truncf %898 : vector<24x8xf32> to vector<24x8xbf16>
    %900 = vector.extract_strided_slice %855 {offsets = [0, 16], sizes = [24, 8], strides = [1, 1]} : vector<24x32xf32> to vector<24x8xf32>
    %cst_382 = arith.constant dense<0.000000e+00> : vector<24x24xf32>
    %901 = tpu.matmul %897, %899, %cst_382 {dimension_numbers = #tpu.dot_dimension_numbers<[1], [1], [0], [0], [0, 0, 1, 0], [], []>} : vector<24x8xbf16>, vector<24x8xbf16>, vector<24x24xf32> -> vector<24x24xf32>
    %902 = arith.addf %901, %831 : vector<24x24xf32>
    %cst_383 = arith.constant dense<0xFF800000> : vector<24xf32>
    %903 = vector.multi_reduction <maximumf>, %902, %cst_383 [1] : vector<24x24xf32> to vector<24xf32>
    %904 = vector.shape_cast %903 : vector<24xf32> to vector<24x1xf32>
    %905 = vector.broadcast %904 : vector<24x1xf32> to vector<24x24xf32>
    %906 = arith.subf %902, %905 : vector<24x24xf32>
    %907 = math.exp %906 : vector<24x24xf32>
    %cst_384 = arith.constant dense<0.000000e+00> : vector<24xf32>
    %908 = vector.multi_reduction <add>, %907, %cst_384 [1] : vector<24x24xf32> to vector<24xf32>
    %909 = vector.shape_cast %908 : vector<24xf32> to vector<24x1xf32>
    %910 = tpu.reciprocal %909 {approx = true} : vector<24x1xf32> -> vector<24x1xf32>
    %911 = vector.broadcast %910 : vector<24x1xf32> to vector<24x24xf32>
    %912 = arith.mulf %907, %911 : vector<24x24xf32>
    %913 = arith.truncf %912 : vector<24x24xf32> to vector<24x24xbf16>
    %914 = arith.truncf %900 : vector<24x8xf32> to vector<24x8xbf16>
    %cst_385 = arith.constant dense<0.000000e+00> : vector<24x8xf32>
    %915 = tpu.matmul %913, %914, %cst_385 {dimension_numbers = #tpu.dot_dimension_numbers<[1], [0], [0], [1], [0, 0, 1, 1], [], []>} : vector<24x24xbf16>, vector<24x8xbf16>, vector<24x8xf32> -> vector<24x8xf32>
    %916 = vector.extract_strided_slice %851 {offsets = [0, 24], sizes = [24, 8], strides = [1, 1]} : vector<24x32xf32> to vector<24x8xf32>
    %917 = arith.truncf %916 : vector<24x8xf32> to vector<24x8xbf16>
    %918 = vector.extract_strided_slice %853 {offsets = [0, 24], sizes = [24, 8], strides = [1, 1]} : vector<24x32xf32> to vector<24x8xf32>
    %919 = arith.truncf %918 : vector<24x8xf32> to vector<24x8xbf16>
    %920 = vector.extract_strided_slice %855 {offsets = [0, 24], sizes = [24, 8], strides = [1, 1]} : vector<24x32xf32> to vector<24x8xf32>
    %cst_386 = arith.constant dense<0.000000e+00> : vector<24x24xf32>
    %921 = tpu.matmul %917, %919, %cst_386 {dimension_numbers = #tpu.dot_dimension_numbers<[1], [1], [0], [0], [0, 0, 1, 0], [], []>} : vector<24x8xbf16>, vector<24x8xbf16>, vector<24x24xf32> -> vector<24x24xf32>
    %922 = arith.addf %921, %831 : vector<24x24xf32>
    %cst_387 = arith.constant dense<0xFF800000> : vector<24xf32>
    %923 = vector.multi_reduction <maximumf>, %922, %cst_387 [1] : vector<24x24xf32> to vector<24xf32>
    %924 = vector.shape_cast %923 : vector<24xf32> to vector<24x1xf32>
    %925 = vector.broadcast %924 : vector<24x1xf32> to vector<24x24xf32>
    %926 = arith.subf %922, %925 : vector<24x24xf32>
    %927 = math.exp %926 : vector<24x24xf32>
    %cst_388 = arith.constant dense<0.000000e+00> : vector<24xf32>
    %928 = vector.multi_reduction <add>, %927, %cst_388 [1] : vector<24x24xf32> to vector<24xf32>
    %929 = vector.shape_cast %928 : vector<24xf32> to vector<24x1xf32>
    %930 = tpu.reciprocal %929 {approx = true} : vector<24x1xf32> -> vector<24x1xf32>
    %931 = vector.broadcast %930 : vector<24x1xf32> to vector<24x24xf32>
    %932 = arith.mulf %927, %931 : vector<24x24xf32>
    %933 = arith.truncf %932 : vector<24x24xf32> to vector<24x24xbf16>
    %934 = arith.truncf %920 : vector<24x8xf32> to vector<24x8xbf16>
    %cst_389 = arith.constant dense<0.000000e+00> : vector<24x8xf32>
    %935 = tpu.matmul %933, %934, %cst_389 {dimension_numbers = #tpu.dot_dimension_numbers<[1], [0], [0], [1], [0, 0, 1, 1], [], []>} : vector<24x24xbf16>, vector<24x8xbf16>, vector<24x8xf32> -> vector<24x8xf32>
    %936 = tpu.concatenate %875, %895, %915, %935 in 1 : vector<24x8xf32>, vector<24x8xf32>, vector<24x8xf32>, vector<24x8xf32> -> vector<24x32xf32>
    %937 = arith.truncf %936 : vector<24x32xf32> to vector<24x32xbf16>
    %cst_390 = arith.constant dense<0.000000e+00> : vector<24x32xf32>
    %938 = tpu.matmul %937, %849, %cst_390 {dimension_numbers = #tpu.dot_dimension_numbers<[1], [0], [0], [1], [0, 0, 1, 1], [], []>} : vector<24x32xbf16>, vector<32x32xbf16>, vector<24x32xf32> -> vector<24x32xf32>
    %939 = arith.addf %813, %938 : vector<24x32xf32>
    %c1_391 = arith.constant 1 : index
    %c0_392 = arith.constant 0 : index
    %c0_393 = arith.constant 0 : index
    %940 = vector.load %arg43[%c1_391, %c0_392, %c0_393] : memref<3x1x32xf32, #tpu.memory_space<vmem>>, vector<1x1x32xf32>
    %941 = vector.shape_cast %940 : vector<1x1x32xf32> to vector<1x32xf32>
    %942 = arith.mulf %939, %939 : vector<24x32xf32>
    %cst_394 = arith.constant dense<0.000000e+00> : vector<24xf32>
    %943 = vector.multi_reduction <add>, %942, %cst_394 [1] : vector<24x32xf32> to vector<24xf32>
    %944 = vector.shape_cast %943 : vector<24xf32> to vector<24x1xf32>
    %cst_395 = arith.constant 3.200000e+01 : f32
    %945 = vector.broadcast %cst_395 : f32 to vector<24x1xf32>
    %946 = arith.divf %944, %945 : vector<24x1xf32>
    %cst_396 = arith.constant 9.99999997E-7 : f32
    %947 = vector.broadcast %cst_396 : f32 to vector<24x1xf32>
    %948 = arith.addf %946, %947 : vector<24x1xf32>
    %949 = math.rsqrt %948 : vector<24x1xf32>
    %950 = vector.broadcast %949 : vector<24x1xf32> to vector<24x32xf32>
    %951 = arith.mulf %939, %950 : vector<24x32xf32>
    %952 = vector.broadcast %941 : vector<1x32xf32> to vector<24x32xf32>
    %953 = arith.mulf %951, %952 : vector<24x32xf32>
    %c0_397 = arith.constant 0 : index
    %c0_398 = arith.constant 0 : index
    %954 = vector.load %arg48[%c0_397, %c0_398] : memref<32x128xbf16, #tpu.memory_space<vmem>>, vector<32x128xbf16>
    %955 = arith.truncf %953 : vector<24x32xf32> to vector<24x32xbf16>
    %cst_399 = arith.constant dense<0.000000e+00> : vector<24x128xf32>
    %956 = tpu.matmul %955, %954, %cst_399 {dimension_numbers = #tpu.dot_dimension_numbers<[1], [0], [0], [1], [0, 0, 1, 1], [], []>} : vector<24x32xbf16>, vector<32x128xbf16>, vector<24x128xf32> -> vector<24x128xf32>
    %957 = vector.extract_strided_slice %956 {offsets = [0, 0], sizes = [24, 64], strides = [1, 1]} : vector<24x128xf32> to vector<24x64xf32>
    %958 = arith.negf %957 : vector<24x64xf32>
    %959 = math.exp %958 : vector<24x64xf32>
    %cst_400 = arith.constant 1.000000e+00 : f32
    %960 = vector.broadcast %cst_400 : f32 to vector<24x64xf32>
    %961 = arith.addf %960, %959 : vector<24x64xf32>
    %962 = arith.divf %960, %961 : vector<24x64xf32>
    %963 = arith.mulf %957, %962 : vector<24x64xf32>
    %964 = vector.extract_strided_slice %956 {offsets = [0, 64], sizes = [24, 64], strides = [1, 1]} : vector<24x128xf32> to vector<24x64xf32>
    %965 = arith.mulf %963, %964 : vector<24x64xf32>
    %c0_401 = arith.constant 0 : index
    %c0_402 = arith.constant 0 : index
    %966 = vector.load %arg49[%c0_401, %c0_402] : memref<64x32xbf16, #tpu.memory_space<vmem>>, vector<64x32xbf16>
    %967 = arith.truncf %965 : vector<24x64xf32> to vector<24x64xbf16>
    %cst_403 = arith.constant dense<0.000000e+00> : vector<24x32xf32>
    %968 = tpu.matmul %967, %966, %cst_403 {dimension_numbers = #tpu.dot_dimension_numbers<[1], [0], [0], [1], [0, 0, 1, 1], [], []>} : vector<24x64xbf16>, vector<64x32xbf16>, vector<24x32xf32> -> vector<24x32xf32>
    %969 = arith.addf %939, %968 : vector<24x32xf32>
    %970 = vector.extract_strided_slice %969 {offsets = [4, 0], sizes = [8, 32], strides = [1, 1]} : vector<24x32xf32> to vector<8x32xf32>
    %971 = vector.extract_strided_slice %969 {offsets = [16, 0], sizes = [8, 32], strides = [1, 1]} : vector<24x32xf32> to vector<8x32xf32>
    %972 = tpu.concatenate %970, %971 in 0 : vector<8x32xf32>, vector<8x32xf32> -> vector<16x32xf32>
    %c2_404 = arith.constant 2 : index
    %c0_405 = arith.constant 0 : index
    %c0_406 = arith.constant 0 : index
    %973 = vector.load %arg43[%c2_404, %c0_405, %c0_406] : memref<3x1x32xf32, #tpu.memory_space<vmem>>, vector<1x1x32xf32>
    %974 = vector.shape_cast %973 : vector<1x1x32xf32> to vector<1x32xf32>
    %975 = arith.mulf %972, %972 : vector<16x32xf32>
    %cst_407 = arith.constant dense<0.000000e+00> : vector<16xf32>
    %976 = vector.multi_reduction <add>, %975, %cst_407 [1] : vector<16x32xf32> to vector<16xf32>
    %977 = vector.shape_cast %976 : vector<16xf32> to vector<16x1xf32>
    %cst_408 = arith.constant 3.200000e+01 : f32
    %978 = vector.broadcast %cst_408 : f32 to vector<16x1xf32>
    %979 = arith.divf %977, %978 : vector<16x1xf32>
    %cst_409 = arith.constant 9.99999997E-7 : f32
    %980 = vector.broadcast %cst_409 : f32 to vector<16x1xf32>
    %981 = arith.addf %979, %980 : vector<16x1xf32>
    %982 = math.rsqrt %981 : vector<16x1xf32>
    %983 = vector.broadcast %982 : vector<16x1xf32> to vector<16x32xf32>
    %984 = arith.mulf %972, %983 : vector<16x32xf32>
    %985 = vector.broadcast %974 : vector<1x32xf32> to vector<16x32xf32>
    %986 = arith.mulf %984, %985 : vector<16x32xf32>
    %c0_410 = arith.constant 0 : index
    %c0_411 = arith.constant 0 : index
    %987 = vector.load %arg50[%c0_410, %c0_411] : memref<32x64xbf16, #tpu.memory_space<vmem>>, vector<32x64xbf16>
    %988 = arith.truncf %986 : vector<16x32xf32> to vector<16x32xbf16>
    %cst_412 = arith.constant dense<0.000000e+00> : vector<16x64xf32>
    %989 = tpu.matmul %988, %987, %cst_412 {dimension_numbers = #tpu.dot_dimension_numbers<[1], [0], [0], [1], [0, 0, 1, 1], [], []>} : vector<16x32xbf16>, vector<32x64xbf16>, vector<16x64xf32> -> vector<16x64xf32>
    %cst_413 = arith.constant dense<0xFF800000> : vector<16xf32>
    %990 = vector.multi_reduction <maximumf>, %989, %cst_413 [1] : vector<16x64xf32> to vector<16xf32>
    %991 = vector.shape_cast %990 : vector<16xf32> to vector<16x1xf32>
    %992 = vector.broadcast %991 : vector<16x1xf32> to vector<16x64xf32>
    %993 = arith.subf %989, %992 : vector<16x64xf32>
    %994 = math.exp %993 : vector<16x64xf32>
    %cst_414 = arith.constant dense<0.000000e+00> : vector<16xf32>
    %995 = vector.multi_reduction <add>, %994, %cst_414 [1] : vector<16x64xf32> to vector<16xf32>
    %996 = vector.shape_cast %995 : vector<16xf32> to vector<16x1xf32>
    %997 = math.log %996 : vector<16x1xf32>
    %998 = arith.addf %997, %991 : vector<16x1xf32>
    %999 = tpu.iota {dimensions = array<i32: 1>} : vector<16x64xi32>
    %c0_415 = arith.constant 0 : index
    %c0_416 = arith.constant 0 : index
    %1000 = vector.load %arg3[%c0_415, %c0_416] : memref<16x1xi32, #tpu.memory_space<vmem>>, vector<16x1xi32>
    %1001 = vector.broadcast %1000 : vector<16x1xi32> to vector<16x64xi32>
    %1002 = arith.cmpi eq, %999, %1001 : vector<16x64xi32>
    %1003 = arith.extui %1002 : vector<16x64xi1> to vector<16x64xi32>
    %1004 = arith.sitofp %1003 : vector<16x64xi32> to vector<16x64xf32>
    %1005 = arith.mulf %989, %1004 : vector<16x64xf32>
    %cst_417 = arith.constant dense<0.000000e+00> : vector<16xf32>
    %1006 = vector.multi_reduction <add>, %1005, %cst_417 [1] : vector<16x64xf32> to vector<16xf32>
    %1007 = vector.shape_cast %1006 : vector<16xf32> to vector<16x1xf32>
    %1008 = arith.subf %998, %1007 : vector<16x1xf32>
    %c0_418 = arith.constant 0 : index
    %c0_419 = arith.constant 0 : index
    %1009 = vector.load %arg4[%c0_418, %c0_419] : memref<16x1xf32, #tpu.memory_space<vmem>>, vector<16x1xf32>
    %1010 = arith.mulf %1008, %1009 : vector<16x1xf32>
    %1011 = vector.shape_cast %1010 : vector<16x1xf32> to vector<1x16x1xf32>
    %cst_420 = arith.constant dense<0.000000e+00> : vector<1xf32>
    %1012 = vector.multi_reduction <add>, %1011, %cst_420 [1, 2] : vector<1x16x1xf32> to vector<1xf32>
    %1013 = vector.shape_cast %1012 : vector<1xf32> to vector<1x1x1xf32>
    %1014 = vector.extract %1013[0, 0, 0] : f32 from vector<1x1x1xf32>
    %1015 = vector.shape_cast %1009 : vector<16x1xf32> to vector<1x16x1xf32>
    %cst_421 = arith.constant dense<0.000000e+00> : vector<1xf32>
    %1016 = vector.multi_reduction <add>, %1015, %cst_421 [1, 2] : vector<1x16x1xf32> to vector<1xf32>
    %1017 = vector.shape_cast %1016 : vector<1xf32> to vector<1x1x1xf32>
    %1018 = vector.extract %1017[0, 0, 0] : f32 from vector<1x1x1xf32>
    %cst_422 = arith.constant 1.000000e+00 : f32
    %1019 = arith.maximumf %1018, %cst_422 : f32
    %1020 = arith.divf %1014, %1019 : f32
    %c0_423 = arith.constant 0 : index
    %c0_424 = arith.constant 0 : index
    %1021 = memref.load %arg51[%c0_423, %c0_424] : memref<1x1xf32, #tpu.memory_space<smem>>
    memref.store %1020, %arg51[%c0_423, %c0_424] : memref<1x1xf32, #tpu.memory_space<smem>>
    return
  }
}

</mosaic_0001>

<llo_original>
// kernel: emu_forward.1
$region0: #{emu_forward.1}
  #allocation0 [shape = 'u32[]', space=smem, size = 0x4, offset = 0x4, fixed_abs, tag = 'smem constant byte address 0x4 - core index']
  #allocation1 [shape = 'u32[144,128]{1,0:T(1,128)}', space=vmem, size = 0x12000, scoped, tag = 'internal scratch']
  %s0 = inlined_call_operand.smem [shape: u32[52], index: -1, kind: input, shape index: {}]
  %s1 = sld [smem:[%s0]]
  %s2 = scalar_lea.smem %s0, 1
  %s3 = sld [smem:[%s2]]
  %s4 = scalar_lea.smem %s0, 2
  %s5 = sld [smem:[%s4]]
  %s6 = scalar_lea.smem %s0, 3
  %s7 = sld [smem:[%s6]]
  %s8 = scalar_lea.smem %s0, 4
  %s9 = sld [smem:[%s8]]
  %s10 = scalar_lea.smem %s0, 5
  %s11 = sld [smem:[%s10]]
  %s12 = scalar_lea.smem %s0, 6
  %s13 = sld [smem:[%s12]]
  %s14 = scalar_lea.smem %s0, 7
  %s15 = sld [smem:[%s14]]
  %s16 = scalar_lea.smem %s0, 8
  %s17 = sld [smem:[%s16]]
  %s18 = scalar_lea.smem %s0, 9
  %s19 = sld [smem:[%s18]]
  %s20 = scalar_lea.smem %s0, 10
  %s21 = sld [smem:[%s20]]
  %s22 = scalar_lea.smem %s0, 11
  %s23 = sld [smem:[%s22]]
  %s24 = scalar_lea.smem %s0, 12
  %s25 = sld [smem:[%s24]]
  %s26 = scalar_lea.smem %s0, 13
  %s27 = sld [smem:[%s26]]
  %s28 = scalar_lea.smem %s0, 14
  %s29 = sld [smem:[%s28]]
  %s30 = scalar_lea.smem %s0, 15
  %s31 = sld [smem:[%s30]]
  %s32 = scalar_lea.smem %s0, 16
  %s33 = sld [smem:[%s32]]
  %s34 = scalar_lea.smem %s0, 17
  %s35 = sld [smem:[%s34]]
  %s36 = scalar_lea.smem %s0, 18
  %s37 = sld [smem:[%s36]]
  %s38 = scalar_lea.smem %s0, 19
  %s39 = sld [smem:[%s38]]
  %s40 = scalar_lea.smem %s0, 20
  %s41 = sld [smem:[%s40]]
  %s42 = scalar_lea.smem %s0, 21
  %s43 = sld [smem:[%s42]]
  %s44 = scalar_lea.smem %s0, 22
  %s45 = sld [smem:[%s44]]
  %s46 = scalar_lea.smem %s0, 23
  %s47 = sld [smem:[%s46]]
  %s48 = scalar_lea.smem %s0, 24
  %s49 = sld [smem:[%s48]]
  %s50 = scalar_lea.smem %s0, 25
  %s51 = sld [smem:[%s50]]
  %s52 = scalar_lea.smem %s0, 26
  %s53 = sld [smem:[%s52]]
  %s54 = scalar_lea.smem %s0, 27
  %s55 = sld [smem:[%s54]]
  %s56 = scalar_lea.smem %s0, 28
  %s57 = sld [smem:[%s56]]
  %s58 = scalar_lea.smem %s0, 29
  %s59 = sld [smem:[%s58]]
  %s60 = scalar_lea.smem %s0, 30
  %s61 = sld [smem:[%s60]]
  %s62 = scalar_lea.smem %s0, 31
  %s63 = sld [smem:[%s62]]
  %s64 = scalar_lea.smem %s0, 32
  %s65 = sld [smem:[%s64]]
  %s66 = scalar_lea.smem %s0, 33
  %s67 = sld [smem:[%s66]]
  %s68 = scalar_lea.smem %s0, 34
  %s69 = sld [smem:[%s68]]
  %s70 = scalar_lea.smem %s0, 35
  %s71 = sld [smem:[%s70]]
  %s72 = scalar_lea.smem %s0, 36
  %s73 = sld [smem:[%s72]]
  %s74 = scalar_lea.smem %s0, 37
  %s75 = sld [smem:[%s74]]
  %s76 = scalar_lea.smem %s0, 38
  %s77 = sld [smem:[%s76]]
  %s78 = scalar_lea.smem %s0, 39
  %s79 = sld [smem:[%s78]]
  %s80 = scalar_lea.smem %s0, 40
  %s81 = sld [smem:[%s80]]
  %s82 = scalar_lea.smem %s0, 41
  %s83 = sld [smem:[%s82]]
  %s84 = scalar_lea.smem %s0, 42
  %s85 = sld [smem:[%s84]]
  %s86 = scalar_lea.smem %s0, 43
  %s87 = sld [smem:[%s86]]
  %s88 = scalar_lea.smem %s0, 44
  %s89 = sld [smem:[%s88]]
  %s90 = scalar_lea.smem %s0, 45
  %s91 = sld [smem:[%s90]]
  %s92 = scalar_lea.smem %s0, 46
  %s93 = sld [smem:[%s92]]
  %s94 = scalar_lea.smem %s0, 47
  %s95 = sld [smem:[%s94]]
  %s96 = scalar_lea.smem %s0, 48
  %s97 = sld [smem:[%s96]]
  %s98 = scalar_lea.smem %s0, 49
  %s99 = sld [smem:[%s98]]
  %s100 = scalar_lea.smem %s0, 50
  %s101 = sld [smem:[%s100]]
  %s102 = scalar_lea.smem %s0, 51
  %s103 = sld [smem:[%s102]]
  %s104 = sld [smem:[#allocation0]]
  $region234: #{emu_forward.1} parent=0
    _
  %s106 = ssub.s32 1, %s104
  %s107 = scalar_select 0, %s106, %s104
  $region1: #{emu_forward.1} parent=0
    #allocation2 [shape = 'u8[512]{0}', space=vmem, size = 0x400, scoped, tag = 'input window, operand 7, single buffered']
    #allocation3 [shape = 's32[1]{0}', space=sflag, size = 0x4, scoped, tag = 'scoped memory for emu_forward.1']
    #allocation4 [shape = 's32[1]{0}', space=sflag, size = 0x4, scoped, tag = 'scoped memory for emu_forward.1']
    #allocation5 [shape = 'u8[1024]{0}', space=vmem, size = 0x400, scoped, tag = 'input window, operand 35, single buffered']
    #allocation6 [shape = 's32[1]{0}', space=sflag, size = 0x4, scoped, tag = 'scoped memory for emu_forward.1']
    #allocation7 [shape = 'u8[512]{0}', space=vmem, size = 0x400, scoped, tag = 'input window, operand 37, single buffered']
    #allocation8 [shape = 'u8[512]{0}', space=vmem, size = 0x400, scoped, tag = 'input window, operand 39, single buffered']
    #allocation9 [shape = 's32[1]{0}', space=sflag, size = 0x4, scoped, tag = 'scoped memory for emu_forward.1']
    #allocation10 [shape = 'u8[512]{0}', space=vmem, size = 0x400, scoped, tag = 'input window, operand 41, single buffered']
    #allocation11 [shape = 'u8[512]{0}', space=smem, size = 0x200, scoped, tag = 'output window, operand 0, single buffered']
    %108 = vsyncpa [#allocation3], 0
    %109 = vsyncpa [#allocation6], 0
    %110 = vsyncpa [#allocation9], 0
    %111 = vsyncpa [#allocation4], 0
    // Predicated region
    $region2: #{emu_forward.1} parent=1 // pred_check
      _
    $region3: #{emu_forward.1} parent=1 // pred_check_branch
      %113 = sbr.rel (0) target = $region5
    $region4: #{emu_forward.1} parent=1 // pred_region
      _
    $region5: #{emu_forward.1} parent=1 // pred_fallthru
      _
    // Predicated region
    $region6: #{emu_forward.1} parent=1 // pred_check
      _
    $region7: #{emu_forward.1} parent=1 // pred_check_branch
      %115 = sbr.rel (0) target = $region9
    $region8: #{emu_forward.1} parent=1 // pred_region
      _
    $region9: #{emu_forward.1} parent=1 // pred_fallthru
      _
    // Predicated region
    $region10: #{emu_forward.1} parent=1 // pred_check
      _
    $region11: #{emu_forward.1} parent=1 // pred_check_branch
      %117 = sbr.rel (0) target = $region13
    $region12: #{emu_forward.1} parent=1 // pred_region
      _
    $region13: #{emu_forward.1} parent=1 // pred_fallthru
      _
    // Predicated region
    $region14: #{emu_forward.1} parent=1 // pred_check
      _
    $region15: #{emu_forward.1} parent=1 // pred_check_branch
      %119 = sbr.rel (0) target = $region17
    $region16: #{emu_forward.1} parent=1 // pred_region
      _
    $region17: #{emu_forward.1} parent=1 // pred_fallthru
      _
    // Predicated region
    $region18: #{emu_forward.1} parent=1 // pred_check
      _
    $region19: #{emu_forward.1} parent=1 // pred_check_branch
      %121 = sbr.rel (0) target = $region21
    $region20: #{emu_forward.1} parent=1 // pred_region
      _
    $region21: #{emu_forward.1} parent=1 // pred_fallthru
      _
    // Predicated region
    $region22: #{emu_forward.1} parent=1 // pred_check
      _
    $region23: #{emu_forward.1} parent=1 // pred_check_branch
      %123 = sbr.rel (0) target = $region25
    $region24: #{emu_forward.1} parent=1 // pred_region
      _
    $region25: #{emu_forward.1} parent=1 // pred_fallthru
      _
    // Predicated region
    $region26: #{emu_forward.1} parent=1 // pred_check
      _
    $region27: #{emu_forward.1} parent=1 // pred_check_branch
      %125 = sbr.rel (0) target = $region29
    $region28: #{emu_forward.1} parent=1 // pred_region
      _
    $region29: #{emu_forward.1} parent=1 // pred_fallthru
      _
    // Predicated region
    $region30: #{emu_forward.1} parent=1 // pred_check
      _
    $region31: #{emu_forward.1} parent=1 // pred_check_branch
      %127 = sbr.rel (0) target = $region33
    $region32: #{emu_forward.1} parent=1 // pred_region
      %s129 = ssub.s32 16, 16
      %130 = vsyncadd [#allocation3], %s129
      %s132 = sshll.u32 [#allocation2], 4
      %s133 = int_to_ptr.vmem [resolvable:$true] %s132
      %135 = dma.hbm_to_vmem [thread:$0]  %s15, 16, %s133, [#allocation3]
    $region33: #{emu_forward.1} parent=1 // pred_fallthru
      _
    // Predicated region
    $region34: #{emu_forward.1} parent=1 // pred_check
      _
    $region35: #{emu_forward.1} parent=1 // pred_check_branch
      %137 = sbr.rel (0) target = $region37
    $region36: #{emu_forward.1} parent=1 // pred_region
      _
    $region37: #{emu_forward.1} parent=1 // pred_fallthru
      _
    // Predicated region
    $region38: #{emu_forward.1} parent=1 // pred_check
      _
    $region39: #{emu_forward.1} parent=1 // pred_check_branch
      %139 = sbr.rel (0) target = $region41
    $region40: #{emu_forward.1} parent=1 // pred_region
      _
    $region41: #{emu_forward.1} parent=1 // pred_fallthru
      _
    // Predicated region
    $region42: #{emu_forward.1} parent=1 // pred_check
      _
    $region43: #{emu_forward.1} parent=1 // pred_check_branch
      %141 = sbr.rel (0) target = $region45
    $region44: #{emu_forward.1} parent=1 // pred_region
      _
    $region45: #{emu_forward.1} parent=1 // pred_fallthru
      _
    // Predicated region
    $region46: #{emu_forward.1} parent=1 // pred_check
      _
    $region47: #{emu_forward.1} parent=1 // pred_check_branch
      %143 = sbr.rel (0) target = $region49
    $region48: #{emu_forward.1} parent=1 // pred_region
      _
    $region49: #{emu_forward.1} parent=1 // pred_fallthru
      _
    // Predicated region
    $region50: #{emu_forward.1} parent=1 // pred_check
      _
    $region51: #{emu_forward.1} parent=1 // pred_check_branch
      %145 = sbr.rel (0) target = $region53
    $region52: #{emu_forward.1} parent=1 // pred_region
      _
    $region53: #{emu_forward.1} parent=1 // pred_fallthru
      _
    // Predicated region
    $region54: #{emu_forward.1} parent=1 // pred_check
      _
    $region55: #{emu_forward.1} parent=1 // pred_check_branch
      %147 = sbr.rel (0) target = $region57
    $region56: #{emu_forward.1} parent=1 // pred_region
      _
    $region57: #{emu_forward.1} parent=1 // pred_fallthru
      _
    // Predicated region
    $region58: #{emu_forward.1} parent=1 // pred_check
      _
    $region59: #{emu_forward.1} parent=1 // pred_check_branch
      %149 = sbr.rel (0) target = $region61
    $region60: #{emu_forward.1} parent=1 // pred_region
      _
    $region61: #{emu_forward.1} parent=1 // pred_fallthru
      _
    // Predicated region
    $region62: #{emu_forward.1} parent=1 // pred_check
      _
    $region63: #{emu_forward.1} parent=1 // pred_check_branch
      %151 = sbr.rel (0) target = $region65
    $region64: #{emu_forward.1} parent=1 // pred_region
      _
    $region65: #{emu_forward.1} parent=1 // pred_fallthru
      _
    // Predicated region
    $region66: #{emu_forward.1} parent=1 // pred_check
      _
    $region67: #{emu_forward.1} parent=1 // pred_check_branch
      %153 = sbr.rel (0) target = $region69
    $region68: #{emu_forward.1} parent=1 // pred_region
      _
    $region69: #{emu_forward.1} parent=1 // pred_fallthru
      _
    // Predicated region
    $region70: #{emu_forward.1} parent=1 // pred_check
      _
    $region71: #{emu_forward.1} parent=1 // pred_check_branch
      %155 = sbr.rel (0) target = $region73
    $region72: #{emu_forward.1} parent=1 // pred_region
      _
    $region73: #{emu_forward.1} parent=1 // pred_fallthru
      _
    // Predicated region
    $region74: #{emu_forward.1} parent=1 // pred_check
      _
    $region75: #{emu_forward.1} parent=1 // pred_check_branch
      %157 = sbr.rel (0) target = $region77
    $region76: #{emu_forward.1} parent=1 // pred_region
      _
    $region77: #{emu_forward.1} parent=1 // pred_fallthru
      _
    // Predicated region
    $region78: #{emu_forward.1} parent=1 // pred_check
      _
    $region79: #{emu_forward.1} parent=1 // pred_check_branch
      %159 = sbr.rel (0) target = $region81
    $region80: #{emu_forward.1} parent=1 // pred_region
      _
    $region81: #{emu_forward.1} parent=1 // pred_fallthru
      _
    // Predicated region
    $region82: #{emu_forward.1} parent=1 // pred_check
      _
    $region83: #{emu_forward.1} parent=1 // pred_check_branch
      %161 = sbr.rel (0) target = $region85
    $region84: #{emu_forward.1} parent=1 // pred_region
      _
    $region85: #{emu_forward.1} parent=1 // pred_fallthru
      _
    // Predicated region
    $region86: #{emu_forward.1} parent=1 // pred_check
      _
    $region87: #{emu_forward.1} parent=1 // pred_check_branch
      %163 = sbr.rel (0) target = $region89
    $region88: #{emu_forward.1} parent=1 // pred_region
      _
    $region89: #{emu_forward.1} parent=1 // pred_fallthru
      _
    // Predicated region
    $region90: #{emu_forward.1} parent=1 // pred_check
      _
    $region91: #{emu_forward.1} parent=1 // pred_check_branch
      %165 = sbr.rel (0) target = $region93
    $region92: #{emu_forward.1} parent=1 // pred_region
      _
    $region93: #{emu_forward.1} parent=1 // pred_fallthru
      _
    // Predicated region
    $region94: #{emu_forward.1} parent=1 // pred_check
      _
    $region95: #{emu_forward.1} parent=1 // pred_check_branch
      %167 = sbr.rel (0) target = $region97
    $region96: #{emu_forward.1} parent=1 // pred_region
      _
    $region97: #{emu_forward.1} parent=1 // pred_fallthru
      _
    // Predicated region
    $region98: #{emu_forward.1} parent=1 // pred_check
      _
    $region99: #{emu_forward.1} parent=1 // pred_check_branch
      %169 = sbr.rel (0) target = $region101
    $region100: #{emu_forward.1} parent=1 // pred_region
      _
    $region101: #{emu_forward.1} parent=1 // pred_fallthru
      _
    // Predicated region
    $region102: #{emu_forward.1} parent=1 // pred_check
      _
    $region103: #{emu_forward.1} parent=1 // pred_check_branch
      %171 = sbr.rel (0) target = $region105
    $region104: #{emu_forward.1} parent=1 // pred_region
      _
    $region105: #{emu_forward.1} parent=1 // pred_fallthru
      _
    // Predicated region
    $region106: #{emu_forward.1} parent=1 // pred_check
      _
    $region107: #{emu_forward.1} parent=1 // pred_check_branch
      %173 = sbr.rel (0) target = $region109
    $region108: #{emu_forward.1} parent=1 // pred_region
      _
    $region109: #{emu_forward.1} parent=1 // pred_fallthru
      _
    // Predicated region
    $region110: #{emu_forward.1} parent=1 // pred_check
      _
    $region111: #{emu_forward.1} parent=1 // pred_check_branch
      %175 = sbr.rel (0) target = $region113
    $region112: #{emu_forward.1} parent=1 // pred_region
      _
    $region113: #{emu_forward.1} parent=1 // pred_fallthru
      _
    // Predicated region
    $region114: #{emu_forward.1} parent=1 // pred_check
      _
    $region115: #{emu_forward.1} parent=1 // pred_check_branch
      %177 = sbr.rel (0) target = $region117
    $region116: #{emu_forward.1} parent=1 // pred_region
      _
    $region117: #{emu_forward.1} parent=1 // pred_fallthru
      _
    // Predicated region
    $region118: #{emu_forward.1} parent=1 // pred_check
      _
    $region119: #{emu_forward.1} parent=1 // pred_check_branch
      %179 = sbr.rel (0) target = $region121
    $region120: #{emu_forward.1} parent=1 // pred_region
      _
    $region121: #{emu_forward.1} parent=1 // pred_fallthru
      _
    // Predicated region
    $region122: #{emu_forward.1} parent=1 // pred_check
      _
    $region123: #{emu_forward.1} parent=1 // pred_check_branch
      %181 = sbr.rel (0) target = $region125
    $region124: #{emu_forward.1} parent=1 // pred_region
      _
    $region125: #{emu_forward.1} parent=1 // pred_fallthru
      _
    // Predicated region
    $region126: #{emu_forward.1} parent=1 // pred_check
      _
    $region127: #{emu_forward.1} parent=1 // pred_check_branch
      %183 = sbr.rel (0) target = $region129
    $region128: #{emu_forward.1} parent=1 // pred_region
      _
    $region129: #{emu_forward.1} parent=1 // pred_fallthru
      _
    // Predicated region
    $region130: #{emu_forward.1} parent=1 // pred_check
      _
    $region131: #{emu_forward.1} parent=1 // pred_check_branch
      %185 = sbr.rel (0) target = $region133
    $region132: #{emu_forward.1} parent=1 // pred_region
      _
    $region133: #{emu_forward.1} parent=1 // pred_fallthru
      _
    // Predicated region
    $region134: #{emu_forward.1} parent=1 // pred_check
      _
    $region135: #{emu_forward.1} parent=1 // pred_check_branch
      %187 = sbr.rel (0) target = $region137
    $region136: #{emu_forward.1} parent=1 // pred_region
      _
    $region137: #{emu_forward.1} parent=1 // pred_fallthru
      _
    // Predicated region
    $region138: #{emu_forward.1} parent=1 // pred_check
      _
    $region139: #{emu_forward.1} parent=1 // pred_check_branch
      %189 = sbr.rel (0) target = $region141
    $region140: #{emu_forward.1} parent=1 // pred_region
      _
    $region141: #{emu_forward.1} parent=1 // pred_fallthru
      _
    // Predicated region
    $region142: #{emu_forward.1} parent=1 // pred_check
      _
    $region143: #{emu_forward.1} parent=1 // pred_check_branch
      %191 = sbr.rel (0) target = $region145
    $region144: #{emu_forward.1} parent=1 // pred_region
      %s193 = ssub.s32 32, 32
      %194 = vsyncadd [#allocation6], %s193
      %s195 = sshll.u32 [#allocation5], 4
      %s196 = int_to_ptr.vmem [resolvable:$true] %s195
      %201 = dma.hbm_to_vmem [thread:$0]  %s71, 32, %s196, [#allocation6], 16, 16, 1
    $region145: #{emu_forward.1} parent=1 // pred_fallthru
      _
    // Predicated region
    $region146: #{emu_forward.1} parent=1 // pred_check
      _
    $region147: #{emu_forward.1} parent=1 // pred_check_branch
      %203 = sbr.rel (0) target = $region149
    $region148: #{emu_forward.1} parent=1 // pred_region
      _
    $region149: #{emu_forward.1} parent=1 // pred_fallthru
      _
    // Predicated region
    $region150: #{emu_forward.1} parent=1 // pred_check
      _
    $region151: #{emu_forward.1} parent=1 // pred_check_branch
      %205 = sbr.rel (0) target = $region153
    $region152: #{emu_forward.1} parent=1 // pred_region
      %s207 = ssub.s32 16, 16
      %208 = vsyncadd [#allocation6], %s207
      %s210 = sshll.u32 [#allocation7], 4
      %s211 = int_to_ptr.vmem [resolvable:$true] %s210
      %213 = dma.hbm_to_vmem [thread:$0]  %s75, 16, %s211, [#allocation6]
    $region153: #{emu_forward.1} parent=1 // pred_fallthru
      _
    // Predicated region
    $region154: #{emu_forward.1} parent=1 // pred_check
      _
    $region155: #{emu_forward.1} parent=1 // pred_check_branch
      %215 = sbr.rel (0) target = $region157
    $region156: #{emu_forward.1} parent=1 // pred_region
      _
    $region157: #{emu_forward.1} parent=1 // pred_fallthru
      _
    // Predicated region
    $region158: #{emu_forward.1} parent=1 // pred_check
      _
    $region159: #{emu_forward.1} parent=1 // pred_check_branch
      %217 = sbr.rel (0) target = $region161
    $region160: #{emu_forward.1} parent=1 // pred_region
      %s219 = ssub.s32 16, 16
      %220 = vsyncadd [#allocation9], %s219
      %s222 = sshll.u32 [#allocation8], 4
      %s223 = int_to_ptr.vmem [resolvable:$true] %s222
      %225 = dma.hbm_to_vmem [thread:$0]  %s79, 16, %s223, [#allocation9]
    $region161: #{emu_forward.1} parent=1 // pred_fallthru
      _
    // Predicated region
    $region162: #{emu_forward.1} parent=1 // pred_check
      _
    $region163: #{emu_forward.1} parent=1 // pred_check_branch
      %227 = sbr.rel (0) target = $region165
    $region164: #{emu_forward.1} parent=1 // pred_region
      _
    $region165: #{emu_forward.1} parent=1 // pred_fallthru
      _
    // Predicated region
    $region166: #{emu_forward.1} parent=1 // pred_check
      _
    $region167: #{emu_forward.1} parent=1 // pred_check_branch
      %229 = sbr.rel (0) target = $region169
    $region168: #{emu_forward.1} parent=1 // pred_region
      %s231 = ssub.s32 16, 16
      %232 = vsyncadd [#allocation9], %s231
      %s234 = sshll.u32 [#allocation10], 4
      %s235 = int_to_ptr.vmem [resolvable:$true] %s234
      %237 = dma.hbm_to_vmem [thread:$0]  %s83, 16, %s235, [#allocation9]
    $region169: #{emu_forward.1} parent=1 // pred_fallthru
      _
    // Predicated region
    $region170: #{emu_forward.1} parent=1 // pred_check
      _
    $region171: #{emu_forward.1} parent=1 // pred_check_branch
      %239 = sbr.rel (0) target = $region173
    $region172: #{emu_forward.1} parent=1 // pred_region
      _
    $region173: #{emu_forward.1} parent=1 // pred_fallthru
      _
    // Predicated region
    $region174: #{emu_forward.1} parent=1 // pred_check
      _
    $region175: #{emu_forward.1} parent=1 // pred_check_branch
      %241 = sbr.rel (0) target = $region177
    $region176: #{emu_forward.1} parent=1 // pred_region
      _
    $region177: #{emu_forward.1} parent=1 // pred_fallthru
      _
    // Predicated region
    $region178: #{emu_forward.1} parent=1 // pred_check
      _
    $region179: #{emu_forward.1} parent=1 // pred_check_branch
      %243 = sbr.rel (0) target = $region181
    $region180: #{emu_forward.1} parent=1 // pred_region
      _
    $region181: #{emu_forward.1} parent=1 // pred_fallthru
      _
    // Predicated region
    $region182: #{emu_forward.1} parent=1 // pred_check
      _
    $region183: #{emu_forward.1} parent=1 // pred_check_branch
      %245 = sbr.rel (0) target = $region185
    $region184: #{emu_forward.1} parent=1 // pred_region
      _
    $region185: #{emu_forward.1} parent=1 // pred_fallthru
      _
    // Predicated region
    $region186: #{emu_forward.1} parent=1 // pred_check
      _
    $region187: #{emu_forward.1} parent=1 // pred_check_branch
      %247 = sbr.rel (0) target = $region189
    $region188: #{emu_forward.1} parent=1 // pred_region
      _
    $region189: #{emu_forward.1} parent=1 // pred_fallthru
      _
    // Predicated region
    $region190: #{emu_forward.1} parent=1 // pred_check
      _
    $region191: #{emu_forward.1} parent=1 // pred_check_branch
      %249 = sbr.rel (0) target = $region193
    $region192: #{emu_forward.1} parent=1 // pred_region
      _
    $region193: #{emu_forward.1} parent=1 // pred_fallthru
      _
    // Predicated region
    $region194: #{emu_forward.1} parent=1 // pred_check
      _
    $region195: #{emu_forward.1} parent=1 // pred_check_branch
      %251 = sbr.rel (0) target = $region197
    $region196: #{emu_forward.1} parent=1 // pred_region
      _
    $region197: #{emu_forward.1} parent=1 // pred_fallthru
      _
    // Predicated region
    $region198: #{emu_forward.1} parent=1 // pred_check
      _
    $region199: #{emu_forward.1} parent=1 // pred_check_branch
      %253 = sbr.rel (0) target = $region201
    $region200: #{emu_forward.1} parent=1 // pred_region
      _
    $region201: #{emu_forward.1} parent=1 // pred_fallthru
      _
    // Predicated region
    $region202: #{emu_forward.1} parent=1 // pred_check
      _
    $region203: #{emu_forward.1} parent=1 // pred_check_branch
      %255 = sbr.rel (0) target = $region205
    $region204: #{emu_forward.1} parent=1 // pred_region
      _
    $region205: #{emu_forward.1} parent=1 // pred_fallthru
      _
    // Predicated region
    $region206: #{emu_forward.1} parent=1 // pred_check
      _
    $region207: #{emu_forward.1} parent=1 // pred_check_branch
      %257 = sbr.rel (0) target = $region209
    $region208: #{emu_forward.1} parent=1 // pred_region
      %258 = dma.done [#allocation3], 16
    $region209: #{emu_forward.1} parent=1 // pred_fallthru
      _
    // Predicated region
    $region210: #{emu_forward.1} parent=1 // pred_check
      _
    $region211: #{emu_forward.1} parent=1 // pred_check_branch
      %260 = sbr.rel (0) target = $region213
    $region212: #{emu_forward.1} parent=1 // pred_region
      %261 = dma.done [#allocation6], 32
    $region213: #{emu_forward.1} parent=1 // pred_fallthru
      _
    // Predicated region
    $region214: #{emu_forward.1} parent=1 // pred_check
      _
    $region215: #{emu_forward.1} parent=1 // pred_check_branch
      %263 = sbr.rel (0) target = $region217
    $region216: #{emu_forward.1} parent=1 // pred_region
      %264 = dma.done [#allocation6], 16
    $region217: #{emu_forward.1} parent=1 // pred_fallthru
      _
    // Predicated region
    $region218: #{emu_forward.1} parent=1 // pred_check
      _
    $region219: #{emu_forward.1} parent=1 // pred_check_branch
      %266 = sbr.rel (0) target = $region221
    $region220: #{emu_forward.1} parent=1 // pred_region
      %267 = dma.done [#allocation9], 16
    $region221: #{emu_forward.1} parent=1 // pred_fallthru
      _
    // Predicated region
    $region222: #{emu_forward.1} parent=1 // pred_check
      _
    $region223: #{emu_forward.1} parent=1 // pred_check_branch
      %269 = sbr.rel (0) target = $region225
    $region224: #{emu_forward.1} parent=1 // pred_region
      %270 = dma.done [#allocation9], 16
    $region225: #{emu_forward.1} parent=1 // pred_fallthru
      _
    %v272 = vld [vmem:[%s1] sm:$0xff]
    %v273 = vld [vmem:[%s1 + $0x8] sm:$0xff]
    %v274 = vld [vmem:[%s11] sm:$0xf]
    %v275 = vld [vmem:[%s11 + $0x4] sm:$0xf]
    %v276 = vld [vmem:[%s11 + $0x8] sm:$0xf]
    %v277 = vld [vmem:[%s11 + $0xc] sm:$0xf]
    %v278 = vld [vmem:[%s11 + $0x10] sm:$0xf]
    %v279 = vld [vmem:[%s11 + $0x14] sm:$0xf]
    %v280 = vld [vmem:[%s11 + $0x18] sm:$0xf]
    %v281 = vld [vmem:[%s11 + $0x1c] sm:$0xf]
    %v282 = vld [vmem:[%s11 + $0x20] sm:$0xf]
    %v283 = vld [vmem:[%s11 + $0x24] sm:$0xf]
    %v284 = vld [vmem:[%s11 + $0x28] sm:$0xf]
    %v285 = vld [vmem:[%s11 + $0x2c] sm:$0xf]
    %v286 = vld [vmem:[%s11 + $0x30] sm:$0xf]
    %v287 = vld [vmem:[%s11 + $0x34] sm:$0xf]
    %v288 = vld [vmem:[%s11 + $0x38] sm:$0xf]
    %v289 = vld [vmem:[%s11 + $0x3c] sm:$0xf]
    %v290 = vld [vmem:[%s11 + $0x40] sm:$0xf]
    %v291 = vld [vmem:[%s11 + $0x44] sm:$0xf]
    %v292 = vld [vmem:[%s11 + $0x48] sm:$0xf]
    %v293 = vld [vmem:[%s11 + $0x4c] sm:$0xf]
    %v294 = vld [vmem:[%s11 + $0x50] sm:$0xf]
    %v295 = vld [vmem:[%s11 + $0x54] sm:$0xf]
    %v296 = vld [vmem:[%s11 + $0x58] sm:$0xf]
    %v297 = vld [vmem:[%s11 + $0x5c] sm:$0xf]
    %v298 = vpack.c.bf16 %v272, %v272
    %v299 = vpack.c.bf16 %v273, %v273
    %v300 = vld [vmem:[%s13] sm:$0x1]
    %v302 = vlaneseq
    %v303 = vshrl.u32 %v302, 7
    %v304 = vsub.s32 0, %v303
    %v305 = vrot.slane %v300, %v304
    %v331 = vunpack.c.l.b16 %v274
    %v332 = vunpack.c.l.b16 %v275
    %v333 = vunpack.c.l.b16 %v276
    %v334 = vunpack.c.l.b16 %v277
    %v335 = vunpack.c.l.b16 %v278
    %v336 = vunpack.c.l.b16 %v279
    %v337 = vunpack.c.l.b16 %v280
    %v338 = vunpack.c.l.b16 %v281
    %v339 = vunpack.c.l.b16 %v282
    %v340 = vunpack.c.l.b16 %v283
    %v341 = vunpack.c.l.b16 %v284
    %v342 = vunpack.c.l.b16 %v285
    %v343 = vunpack.c.l.b16 %v286
    %v344 = vunpack.c.l.b16 %v287
    %v345 = vunpack.c.l.b16 %v288
    %v346 = vunpack.c.l.b16 %v289
    %v347 = vunpack.c.l.b16 %v290
    %v348 = vunpack.c.l.b16 %v291
    %v349 = vunpack.c.l.b16 %v292
    %v350 = vunpack.c.l.b16 %v293
    %v351 = vunpack.c.l.b16 %v294
    %v352 = vunpack.c.l.b16 %v295
    %v353 = vunpack.c.l.b16 %v296
    %v354 = vunpack.c.l.b16 %v297
    %v355 = vpack.c.b16 %v332, %v331
    %v356 = vpack.c.b16 %v334, %v333
    %v357 = vpack.c.b16 %v336, %v335
    %v358 = vpack.c.b16 %v338, %v337
    %v359 = vpack.c.b16 %v340, %v339
    %v360 = vpack.c.b16 %v342, %v341
    %v361 = vpack.c.b16 %v344, %v343
    %v362 = vpack.c.b16 %v346, %v345
    %v363 = vpack.c.b16 %v348, %v347
    %v364 = vpack.c.b16 %v350, %v349
    %v365 = vpack.c.b16 %v352, %v351
    %v366 = vpack.c.b16 %v354, %v353
    %vm379 = vcmask 523264
    %v381 = vsel %vm379, %v299, 0
    %383 = vmatprep.subr.bf16.mxu0 0
    %384 = vmatpush1.bf16.msra.mxu0 %v355
    %385 = vmatprep.subr.bf16.mxu0 0
    %386 = vmatpush1.bf16.msra.mxu0 %v356
    %387 = vmatprep.subr.bf16.mxu0 0
    %388 = vmatpush1.bf16.msra.mxu0 %v357
    %389 = vmatprep.subr.bf16.mxu0 0
    %390 = vmatpush1.bf16.msra.mxu0 %v358
    %391 = vmatprep.subr.bf16.mxu0 0
    %392 = vmatpush1.bf16.msra.mxu0 %v359
    %393 = vmatprep.subr.bf16.mxu0 0
    %394 = vmatpush1.bf16.msra.mxu0 %v360
    %395 = vmatprep.subr.bf16.mxu0 0
    %396 = vmatpush1.bf16.msra.mxu0 %v361
    %397 = vmatprep.subr.bf16.mxu0 0
    %398 = vmatpush1.bf16.msra.mxu0 %v362
    %399 = vmatprep.subr.bf16.mxu0 0
    %400 = vmatpush1.bf16.msra.mxu0 %v363
    %401 = vmatprep.subr.bf16.mxu0 0
    %402 = vmatpush1.bf16.msra.mxu0 %v364
    %403 = vmatprep.subr.bf16.mxu0 0
    %404 = vmatpush1.bf16.msra.mxu0 %v365
    %405 = vmatprep.subr.bf16.mxu0 0
    %406 = vmatpush1.bf16.msra.mxu0 %v366
    %407 = vmatprep.subr.bf16.mxu0 0
    %408 = vmatpush1.bf16.msra.mxu0 0
    %409 = vmatprep.subr.bf16.mxu0 0
    %410 = vmatpush1.bf16.msra.mxu0 0
    %411 = vmatprep.subr.bf16.mxu0 0
    %412 = vmatpush1.bf16.msra.mxu0 0
    %413 = vmatprep.subr.bf16.mxu0 0
    %414 = vmatpush1.bf16.msra.mxu0 0
    %415 = vmatprep.mubr.bf16.mxu0 %v381
    %416 = vmatmul.mubr.bf16.gmra.mrb[0].mxu0 %v298
    %v417 = vpop.f32.mrb[0].mxu0
    %v418 = vadd.f32 %v305, %v417
    %v419 = vpop.f32.mrb[0].mxu0
    %v420 = vpop.f32.mrb[0].mxu0
    %v421 = vpop.f32.mrb[0].mxu0
    %422 = vdwg.mxu0
    %v423 = vld [vmem:[#allocation2] sm:$0x1]
    %v425 = vrot.slane %v418, 7
    %v428 = vlaneseq
    %v429 = vshrl.u32 %v428, 7
    %v430 = vsub.s32 0, %v429
    %v431 = vrot.slane %v423, %v430
    %v433 = vrot.slane %v418, 6
    %vm435 = vcmask 1040384
    %v436 = vsel %vm435, %v423, %v425
    %vm437 = vcmask 1044480
    %v438 = vsel %vm437, %v436, %v431
    %vm439 = vcmask 1045504
    %v440 = vsel %vm439, %v438, %v433
    %v441 = vld [vmem:[%s17] sm:$0x1f]
    %v443 = vrot.slane %v441, 3
    %v445 = vsel %vm437, %v441, %v443
    %v446 = vadd.f32 %v440, %v445
    %v447 = vadd.f32 %v433, %v443
    %vm448 = vcmask 39936
    %v449 = vsel %vm448, 0.0, -1e+09
    %v450 = vsel %vm448, -1e+09, 0.0
    %v452 = vrot.slane %v450, 3
    %v454 = vsel %vm437, %v449, %v452
    %v455 = vld [vmem:[%s19] sm:$0x1]
    %v456 = vld [vmem:[%s21] sm:$0x1]
    %vm457 = vcmask 261120
    %v458 = vsel %vm457, %v446, 0.0
    %459 = vadd.xlane.f32.xlu0 %v458
    %v460 = vpop.xlane.xlu0 %459
    %vm461 = vcmask 254976
    %v462 = vsel %vm461, %v447, 0.0
    %463 = vadd.xlane.f32.xlu0 %v462
    %v464 = vpop.xlane.xlu0 %463
    %v465 = vrcp.pop 32.0
    %v466 = vmul.f32 %v460, %v465
    %v467 = vmul.f32 %v464, %v465
    %v468 = vsub.f32 %v446, %v466
    %v469 = vsub.f32 %v447, %v467
    %v470 = vmul.f32 %v468, %v468
    %v471 = vmul.f32 %v469, %v469
    %v472 = vsel %vm457, %v470, 0.0
    %473 = vadd.xlane.f32.xlu0 %v472
    %v474 = vpop.xlane.xlu0 %473
    %v475 = vsel %vm461, %v471, 0.0
    %476 = vadd.xlane.f32.xlu0 %v475
    %v477 = vpop.xlane.xlu0 %476
    %v478 = vmul.f32 %v474, %v465
    %v479 = vmul.f32 %v477, %v465
    %v480 = vadd.f32 %v478, 1e-05
    %v481 = vadd.f32 %v479, 1e-05
    %v482 = vrsqrt.pop %v480
    %v483 = vrsqrt.pop %v481
    %v484 = vmul.f32 %v468, %v482
    %v485 = vmul.f32 %v469, %v483
    %v487 = vlaneseq
    %v488 = vshrl.u32 %v487, 7
    %v489 = vsub.s32 0, %v488
    %v490 = vrot.slane %v455, %v489
    %v492 = vmul.f32 %v484, %v490
    %v493 = vmul.f32 %v485, %v490
    %v495 = vlaneseq
    %v496 = vshrl.u32 %v495, 7
    %v497 = vsub.s32 0, %v496
    %v498 = vrot.slane %v456, %v497
    %v500 = vadd.f32 %v492, %v498
    %v501 = vadd.f32 %v493, %v498
    %v502 = vld [vmem:[%s27] sm:$0xf]
    %v503 = vld [vmem:[%s27 + $0x4] sm:$0xf]
    %v504 = vld [vmem:[%s27 + $0x8] sm:$0xf]
    %v505 = vld [vmem:[%s27 + $0xc] sm:$0xf]
    %v506 = vld [vmem:[%s29] sm:$0xf]
    %v507 = vld [vmem:[%s29 + $0x4] sm:$0xf]
    %v508 = vld [vmem:[%s29 + $0x8] sm:$0xf]
    %v509 = vld [vmem:[%s29 + $0xc] sm:$0xf]
    %v510 = vld [vmem:[%s31] sm:$0xf]
    %v511 = vld [vmem:[%s31 + $0x4] sm:$0xf]
    %v512 = vld [vmem:[%s31 + $0x8] sm:$0xf]
    %v513 = vld [vmem:[%s31 + $0xc] sm:$0xf]
    %v514 = vld [vmem:[%s33] sm:$0xf]
    %v515 = vld [vmem:[%s33 + $0x4] sm:$0xf]
    %v516 = vld [vmem:[%s33 + $0x8] sm:$0xf]
    %v517 = vld [vmem:[%s33 + $0xc] sm:$0xf]
    %v518 = vld [vmem:[%s35] sm:$0x1]
    %v519 = vld [vmem:[%s37] sm:$0x1]
    %v520 = vld [vmem:[%s39] sm:$0x1]
    %v521 = vld [vmem:[%s41] sm:$0x1]
    %v522 = vpack.c.bf16 %v501, %v500
    %v524 = vlaneseq
    %v525 = vshrl.u32 %v524, 7
    %v526 = vsub.s32 0, %v525
    %v527 = vrot.slane %v518, %v526
    %v533 = vunpack.c.l.b16 %v502
    %v534 = vunpack.c.l.b16 %v503
    %v535 = vunpack.c.l.b16 %v504
    %v536 = vunpack.c.l.b16 %v505
    %v537 = vpack.c.b16 %v534, %v533
    %v538 = vpack.c.b16 %v536, %v535
    %v542 = vsel %vm457, %v522, 0
    %544 = vmatprep.subr.bf16.mxu0 0
    %545 = vmatpush1.bf16.msra.mxu0 %v537
    %546 = vmatprep.subr.bf16.mxu0 0
    %547 = vmatpush1.bf16.msra.mxu0 %v538
    %548 = vmatprep.subr.bf16.mxu0 0
    %549 = vmatpush1.bf16.msra.mxu0 0
    %550 = vmatprep.subr.bf16.mxu0 0
    %551 = vmatpush1.bf16.msra.mxu0 0
    %552 = vmatprep.subr.bf16.mxu0 0
    %553 = vmatpush1.bf16.msra.mxu0 0
    %554 = vmatprep.subr.bf16.mxu0 0
    %555 = vmatpush1.bf16.msra.mxu0 0
    %556 = vmatprep.subr.bf16.mxu0 0
    %557 = vmatpush1.bf16.msra.mxu0 0
    %558 = vmatprep.subr.bf16.mxu0 0
    %559 = vmatpush1.bf16.msra.mxu0 0
    %560 = vmatprep.subr.bf16.mxu0 0
    %561 = vmatpush1.bf16.msra.mxu0 0
    %562 = vmatprep.subr.bf16.mxu0 0
    %563 = vmatpush1.bf16.msra.mxu0 0
    %564 = vmatprep.subr.bf16.mxu0 0
    %565 = vmatpush1.bf16.msra.mxu0 0
    %566 = vmatprep.subr.bf16.mxu0 0
    %567 = vmatpush1.bf16.msra.mxu0 0
    %568 = vmatprep.subr.bf16.mxu0 0
    %569 = vmatpush1.bf16.msra.mxu0 0
    %570 = vmatprep.subr.bf16.mxu0 0
    %571 = vmatpush1.bf16.msra.mxu0 0
    %572 = vmatprep.subr.bf16.mxu0 0
    %573 = vmatpush1.bf16.msra.mxu0 0
    %574 = vmatprep.subr.bf16.mxu0 0
    %575 = vmatpush1.bf16.msra.mxu0 0
    %576 = vmatprep.mubr.bf16.mxu0 0
    %577 = vmatmul.mubr.bf16.gmra.mrb[0].mxu0 %v542
    %v578 = vpop.f32.mrb[0].mxu0
    %v579 = vadd.f32 %v527, %v578
    %v580 = vpop.f32.mrb[0].mxu0
    %v581 = vpop.f32.mrb[0].mxu0
    %v582 = vadd.f32 %v527, %v581
    %v583 = vpop.f32.mrb[0].mxu0
    %584 = vdwg.mxu0
    %v586 = vlaneseq
    %v587 = vshrl.u32 %v586, 7
    %v588 = vsub.s32 0, %v587
    %v589 = vrot.slane %v519, %v588
    %v595 = vunpack.c.l.b16 %v506
    %v596 = vunpack.c.l.b16 %v507
    %v597 = vunpack.c.l.b16 %v508
    %v598 = vunpack.c.l.b16 %v509
    %v599 = vpack.c.b16 %v596, %v595
    %v600 = vpack.c.b16 %v598, %v597
    %603 = vmatprep.subr.bf16.mxu0 0
    %604 = vmatpush1.bf16.msra.mxu0 %v599
    %605 = vmatprep.subr.bf16.mxu0 0
    %606 = vmatpush1.bf16.msra.mxu0 %v600
    %607 = vmatprep.subr.bf16.mxu0 0
    %608 = vmatpush1.bf16.msra.mxu0 0
    %609 = vmatprep.subr.bf16.mxu0 0
    %610 = vmatpush1.bf16.msra.mxu0 0
    %611 = vmatprep.subr.bf16.mxu0 0
    %612 = vmatpush1.bf16.msra.mxu0 0
    %613 = vmatprep.subr.bf16.mxu0 0
    %614 = vmatpush1.bf16.msra.mxu0 0
    %615 = vmatprep.subr.bf16.mxu0 0
    %616 = vmatpush1.bf16.msra.mxu0 0
    %617 = vmatprep.subr.bf16.mxu0 0
    %618 = vmatpush1.bf16.msra.mxu0 0
    %619 = vmatprep.subr.bf16.mxu0 0
    %620 = vmatpush1.bf16.msra.mxu0 0
    %621 = vmatprep.subr.bf16.mxu0 0
    %622 = vmatpush1.bf16.msra.mxu0 0
    %623 = vmatprep.subr.bf16.mxu0 0
    %624 = vmatpush1.bf16.msra.mxu0 0
    %625 = vmatprep.subr.bf16.mxu0 0
    %626 = vmatpush1.bf16.msra.mxu0 0
    %627 = vmatprep.subr.bf16.mxu0 0
    %628 = vmatpush1.bf16.msra.mxu0 0
    %629 = vmatprep.subr.bf16.mxu0 0
    %630 = vmatpush1.bf16.msra.mxu0 0
    %631 = vmatprep.subr.bf16.mxu0 0
    %632 = vmatpush1.bf16.msra.mxu0 0
    %633 = vmatprep.subr.bf16.mxu0 0
    %634 = vmatpush1.bf16.msra.mxu0 0
    %635 = vmatprep.mubr.bf16.mxu0 0
    %636 = vmatmul.mubr.bf16.gmra.mrb[0].mxu0 %v542
    %v637 = vpop.f32.mrb[0].mxu0
    %v638 = vadd.f32 %v589, %v637
    %v639 = vpop.f32.mrb[0].mxu0
    %v640 = vpop.f32.mrb[0].mxu0
    %v641 = vadd.f32 %v589, %v640
    %v642 = vpop.f32.mrb[0].mxu0
    %643 = vdwg.mxu0
    %v645 = vlaneseq
    %v646 = vshrl.u32 %v645, 7
    %v647 = vsub.s32 0, %v646
    %v648 = vrot.slane %v520, %v647
    %v654 = vunpack.c.l.b16 %v510
    %v655 = vunpack.c.l.b16 %v511
    %v656 = vunpack.c.l.b16 %v512
    %v657 = vunpack.c.l.b16 %v513
    %v658 = vpack.c.b16 %v655, %v654
    %v659 = vpack.c.b16 %v657, %v656
    %662 = vmatprep.subr.bf16.mxu0 0
    %663 = vmatpush1.bf16.msra.mxu0 %v658
    %664 = vmatprep.subr.bf16.mxu0 0
    %665 = vmatpush1.bf16.msra.mxu0 %v659
    %666 = vmatprep.subr.bf16.mxu0 0
    %667 = vmatpush1.bf16.msra.mxu0 0
    %668 = vmatprep.subr.bf16.mxu0 0
    %669 = vmatpush1.bf16.msra.mxu0 0
    %670 = vmatprep.subr.bf16.mxu0 0
    %671 = vmatpush1.bf16.msra.mxu0 0
    %672 = vmatprep.subr.bf16.mxu0 0
    %673 = vmatpush1.bf16.msra.mxu0 0
    %674 = vmatprep.subr.bf16.mxu0 0
    %675 = vmatpush1.bf16.msra.mxu0 0
    %676 = vmatprep.subr.bf16.mxu0 0
    %677 = vmatpush1.bf16.msra.mxu0 0
    %678 = vmatprep.subr.bf16.mxu0 0
    %679 = vmatpush1.bf16.msra.mxu0 0
    %680 = vmatprep.subr.bf16.mxu0 0
    %681 = vmatpush1.bf16.msra.mxu0 0
    %682 = vmatprep.subr.bf16.mxu0 0
    %683 = vmatpush1.bf16.msra.mxu0 0
    %684 = vmatprep.subr.bf16.mxu0 0
    %685 = vmatpush1.bf16.msra.mxu0 0
    %686 = vmatprep.subr.bf16.mxu0 0
    %687 = vmatpush1.bf16.msra.mxu0 0
    %688 = vmatprep.subr.bf16.mxu0 0
    %689 = vmatpush1.bf16.msra.mxu0 0
    %690 = vmatprep.subr.bf16.mxu0 0
    %691 = vmatpush1.bf16.msra.mxu0 0
    %692 = vmatprep.subr.bf16.mxu0 0
    %693 = vmatpush1.bf16.msra.mxu0 0
    %694 = vmatprep.mubr.bf16.mxu0 0
    %695 = vmatmul.mubr.bf16.gmra.mrb[0].mxu0 %v542
    %v696 = vpop.f32.mrb[0].mxu0
    %v697 = vadd.f32 %v648, %v696
    %v698 = vpop.f32.mrb[0].mxu0
    %v699 = vpop.f32.mrb[0].mxu0
    %v700 = vadd.f32 %v648, %v699
    %v701 = vpop.f32.mrb[0].mxu0
    %702 = vdwg.mxu0
    %v703 = vpack.c.bf16 %v582, %v579
    %v704 = vpack.c.bf16 %v641, %v638
    %vm705 = vcmask 64512
    %v707 = vsel %vm705, %v703, 0
    %v710 = vsel %vm705, %v704, 0
    %712 = vmatprep.subr.bf16.mxu0 0
    %713 = vmatpush1.bf16.xpose.msra.mxu0 %v710
    %714 = vmatprep.subr.bf16.mxu0 0
    %715 = vmatpush1.bf16.xpose.msra.mxu0 0
    %716 = vmatprep.subr.bf16.mxu0 0
    %717 = vmatpush1.bf16.xpose.msra.mxu0 0
    %718 = vmatprep.subr.bf16.mxu0 0
    %719 = vmatpush1.bf16.xpose.msra.mxu0 0
    %720 = vmatprep.subr.bf16.mxu0 0
    %721 = vmatpush1.bf16.xpose.msra.mxu0 0
    %722 = vmatprep.subr.bf16.mxu0 0
    %723 = vmatpush1.bf16.xpose.msra.mxu0 0
    %724 = vmatprep.subr.bf16.mxu0 0
    %725 = vmatpush1.bf16.xpose.msra.mxu0 0
    %726 = vmatprep.subr.bf16.mxu0 0
    %727 = vmatpush1.bf16.xpose.msra.mxu0 0
    %728 = vmatprep.subr.bf16.mxu0 0
    %729 = vmatpush1.bf16.xpose.msra.mxu0 0
    %730 = vmatprep.subr.bf16.mxu0 0
    %731 = vmatpush1.bf16.xpose.msra.mxu0 0
    %732 = vmatprep.subr.bf16.mxu0 0
    %733 = vmatpush1.bf16.xpose.msra.mxu0 0
    %734 = vmatprep.subr.bf16.mxu0 0
    %735 = vmatpush1.bf16.xpose.msra.mxu0 0
    %736 = vmatprep.subr.bf16.mxu0 0
    %737 = vmatpush1.bf16.xpose.msra.mxu0 0
    %738 = vmatprep.subr.bf16.mxu0 0
    %739 = vmatpush1.bf16.xpose.msra.mxu0 0
    %740 = vmatprep.subr.bf16.mxu0 0
    %741 = vmatpush1.bf16.xpose.msra.mxu0 0
    %742 = vmatprep.subr.bf16.mxu0 0
    %743 = vmatpush1.bf16.xpose.msra.mxu0 0
    %744 = vmatprep.mubr.bf16.mxu0 0
    %745 = vmatmul.mubr.bf16.gmra.mrb[0].mxu0 %v707
    %v746 = vpop.f32.mrb[0].mxu0
    %v747 = vadd.f32 %v454, %v746
    %v748 = vpop.f32.mrb[0].mxu0
    %v749 = vpop.f32.mrb[0].mxu0
    %v750 = vadd.f32 %v452, %v749
    %v751 = vpop.f32.mrb[0].mxu0
    %752 = vdwg.mxu0
    %vm753 = vcmask 80896
    %v754 = vsel %vm753, %v747, -inf
    %755 = vmax.xlane.f32.xlu0 %v754
    %v756 = vpop.xlane.xlu0 %755
    %vm757 = vcmask 74752
    %v758 = vsel %vm757, %v750, -inf
    %759 = vmax.xlane.f32.xlu0 %v758
    %v760 = vpop.xlane.xlu0 %759
    %v761 = vsub.f32 %v747, %v756
    %v762 = vsub.f32 %v750, %v760
    %v763 = vmul.f32 %v761, 1.442695
    %v764 = vpow.pop %v763
    %v765 = vmul.f32 %v762, 1.442695
    %v766 = vpow.pop %v765
    %v767 = vsel %vm753, %v764, 0.0
    %768 = vadd.xlane.f32.xlu0 %v767
    %v769 = vpop.xlane.xlu0 %768
    %v770 = vsel %vm757, %v766, 0.0
    %771 = vadd.xlane.f32.xlu0 %v770
    %v772 = vpop.xlane.xlu0 %771
    %v773 = vrcp.pop %v769
    %v774 = vrcp.pop %v772
    %v775 = vmul.f32 %v764, %v773
    %v776 = vmul.f32 %v766, %v774
    %v777 = vpack.c.bf16 %v776, %v775
    %v778 = vpack.c.bf16 %v700, %v697
    %v780 = vsel %vm753, %v777, 0
    %v783 = vsel %vm437, %v778, 0
    %785 = vmatprep.subr.bf16.mxu0 0
    %786 = vmatpush1.bf16.msra.mxu0 %v783
    %787 = vmatprep.subr.bf16.mxu0 0
    %788 = vmatpush1.bf16.msra.mxu0 0
    %789 = vmatprep.subr.bf16.mxu0 0
    %790 = vmatpush1.bf16.msra.mxu0 0
    %791 = vmatprep.subr.bf16.mxu0 0
    %792 = vmatpush1.bf16.msra.mxu0 0
    %793 = vmatprep.subr.bf16.mxu0 0
    %794 = vmatpush1.bf16.msra.mxu0 0
    %795 = vmatprep.subr.bf16.mxu0 0
    %796 = vmatpush1.bf16.msra.mxu0 0
    %797 = vmatprep.subr.bf16.mxu0 0
    %798 = vmatpush1.bf16.msra.mxu0 0
    %799 = vmatprep.subr.bf16.mxu0 0
    %800 = vmatpush1.bf16.msra.mxu0 0
    %801 = vmatprep.subr.bf16.mxu0 0
    %802 = vmatpush1.bf16.msra.mxu0 0
    %803 = vmatprep.subr.bf16.mxu0 0
    %804 = vmatpush1.bf16.msra.mxu0 0
    %805 = vmatprep.subr.bf16.mxu0 0
    %806 = vmatpush1.bf16.msra.mxu0 0
    %807 = vmatprep.subr.bf16.mxu0 0
    %808 = vmatpush1.bf16.msra.mxu0 0
    %809 = vmatprep.subr.bf16.mxu0 0
    %810 = vmatpush1.bf16.msra.mxu0 0
    %811 = vmatprep.subr.bf16.mxu0 0
    %812 = vmatpush1.bf16.msra.mxu0 0
    %813 = vmatprep.subr.bf16.mxu0 0
    %814 = vmatpush1.bf16.msra.mxu0 0
    %815 = vmatprep.subr.bf16.mxu0 0
    %816 = vmatpush1.bf16.msra.mxu0 0
    %817 = vmatprep.mubr.bf16.mxu0 0
    %818 = vmatmul.mubr.bf16.gmra.mrb[0].mxu0 %v780
    %v819 = vpop.f32.mrb[0].mxu0
    %v820 = vadd.f32 0.0, %v819
    %v821 = vpop.f32.mrb[0].mxu0
    %v822 = vpop.f32.mrb[0].mxu0
    %v823 = vadd.f32 0.0, %v822
    %v824 = vpop.f32.mrb[0].mxu0
    %825 = vdwg.mxu0
    %827 = vrot.lane.b32.xlu0 %v703, 120
    %v828 = vpop.permute.xlu0 %827
    %830 = vrot.lane.b32.xlu0 %v704, 120
    %v831 = vpop.permute.xlu0 %830
    %v833 = vsel %vm705, %v828, 0
    %v836 = vsel %vm705, %v831, 0
    %838 = vmatprep.subr.bf16.mxu0 0
    %839 = vmatpush1.bf16.xpose.msra.mxu0 %v836
    %840 = vmatprep.subr.bf16.mxu0 0
    %841 = vmatpush1.bf16.xpose.msra.mxu0 0
    %842 = vmatprep.subr.bf16.mxu0 0
    %843 = vmatpush1.bf16.xpose.msra.mxu0 0
    %844 = vmatprep.subr.bf16.mxu0 0
    %845 = vmatpush1.bf16.xpose.msra.mxu0 0
    %846 = vmatprep.subr.bf16.mxu0 0
    %847 = vmatpush1.bf16.xpose.msra.mxu0 0
    %848 = vmatprep.subr.bf16.mxu0 0
    %849 = vmatpush1.bf16.xpose.msra.mxu0 0
    %850 = vmatprep.subr.bf16.mxu0 0
    %851 = vmatpush1.bf16.xpose.msra.mxu0 0
    %852 = vmatprep.subr.bf16.mxu0 0
    %853 = vmatpush1.bf16.xpose.msra.mxu0 0
    %854 = vmatprep.subr.bf16.mxu0 0
    %855 = vmatpush1.bf16.xpose.msra.mxu0 0
    %856 = vmatprep.subr.bf16.mxu0 0
    %857 = vmatpush1.bf16.xpose.msra.mxu0 0
    %858 = vmatprep.subr.bf16.mxu0 0
    %859 = vmatpush1.bf16.xpose.msra.mxu0 0
    %860 = vmatprep.subr.bf16.mxu0 0
    %861 = vmatpush1.bf16.xpose.msra.mxu0 0
    %862 = vmatprep.subr.bf16.mxu0 0
    %863 = vmatpush1.bf16.xpose.msra.mxu0 0
    %864 = vmatprep.subr.bf16.mxu0 0
    %865 = vmatpush1.bf16.xpose.msra.mxu0 0
    %866 = vmatprep.subr.bf16.mxu0 0
    %867 = vmatpush1.bf16.xpose.msra.mxu0 0
    %868 = vmatprep.subr.bf16.mxu0 0
    %869 = vmatpush1.bf16.xpose.msra.mxu0 0
    %870 = vmatprep.mubr.bf16.mxu0 0
    %871 = vmatmul.mubr.bf16.gmra.mrb[0].mxu0 %v833
    %v872 = vpop.f32.mrb[0].mxu0
    %v873 = vadd.f32 %v454, %v872
    %v874 = vpop.f32.mrb[0].mxu0
    %v875 = vpop.f32.mrb[0].mxu0
    %v876 = vadd.f32 %v452, %v875
    %v877 = vpop.f32.mrb[0].mxu0
    %878 = vdwg.mxu0
    %v879 = vsel %vm753, %v873, -inf
    %880 = vmax.xlane.f32.xlu0 %v879
    %v881 = vpop.xlane.xlu0 %880
    %v882 = vsel %vm757, %v876, -inf
    %883 = vmax.xlane.f32.xlu0 %v882
    %v884 = vpop.xlane.xlu0 %883
    %v885 = vsub.f32 %v873, %v881
    %v886 = vsub.f32 %v876, %v884
    %v887 = vmul.f32 %v885, 1.442695
    %v888 = vpow.pop %v887
    %v889 = vmul.f32 %v886, 1.442695
    %v890 = vpow.pop %v889
    %v891 = vsel %vm753, %v888, 0.0
    %892 = vadd.xlane.f32.xlu0 %v891
    %v893 = vpop.xlane.xlu0 %892
    %v894 = vsel %vm757, %v890, 0.0
    %895 = vadd.xlane.f32.xlu0 %v894
    %v896 = vpop.xlane.xlu0 %895
    %v897 = vrcp.pop %v893
    %v898 = vrcp.pop %v896
    %v899 = vmul.f32 %v888, %v897
    %v900 = vmul.f32 %v890, %v898
    %v901 = vpack.c.bf16 %v900, %v899
    %903 = vrot.lane.b32.xlu0 %v778, 120
    %v904 = vpop.permute.xlu0 %903
    %v906 = vsel %vm753, %v901, 0
    %v909 = vsel %vm437, %v904, 0
    %911 = vmatprep.subr.bf16.mxu0 0
    %912 = vmatpush1.bf16.msra.mxu0 %v909
    %913 = vmatprep.subr.bf16.mxu0 0
    %914 = vmatpush1.bf16.msra.mxu0 0
    %915 = vmatprep.subr.bf16.mxu0 0
    %916 = vmatpush1.bf16.msra.mxu0 0
    %917 = vmatprep.subr.bf16.mxu0 0
    %918 = vmatpush1.bf16.msra.mxu0 0
    %919 = vmatprep.subr.bf16.mxu0 0
    %920 = vmatpush1.bf16.msra.mxu0 0
    %921 = vmatprep.subr.bf16.mxu0 0
    %922 = vmatpush1.bf16.msra.mxu0 0
    %923 = vmatprep.subr.bf16.mxu0 0
    %924 = vmatpush1.bf16.msra.mxu0 0
    %925 = vmatprep.subr.bf16.mxu0 0
    %926 = vmatpush1.bf16.msra.mxu0 0
    %927 = vmatprep.subr.bf16.mxu0 0
    %928 = vmatpush1.bf16.msra.mxu0 0
    %929 = vmatprep.subr.bf16.mxu0 0
    %930 = vmatpush1.bf16.msra.mxu0 0
    %931 = vmatprep.subr.bf16.mxu0 0
    %932 = vmatpush1.bf16.msra.mxu0 0
    %933 = vmatprep.subr.bf16.mxu0 0
    %934 = vmatpush1.bf16.msra.mxu0 0
    %935 = vmatprep.subr.bf16.mxu0 0
    %936 = vmatpush1.bf16.msra.mxu0 0
    %937 = vmatprep.subr.bf16.mxu0 0
    %938 = vmatpush1.bf16.msra.mxu0 0
    %939 = vmatprep.subr.bf16.mxu0 0
    %940 = vmatpush1.bf16.msra.mxu0 0
    %941 = vmatprep.subr.bf16.mxu0 0
    %942 = vmatpush1.bf16.msra.mxu0 0
    %943 = vmatprep.mubr.bf16.mxu0 0
    %944 = vmatmul.mubr.bf16.gmra.mrb[0].mxu0 %v906
    %v945 = vpop.f32.mrb[0].mxu0
    %v946 = vadd.f32 0.0, %v945
    %v947 = vpop.f32.mrb[0].mxu0
    %v948 = vpop.f32.mrb[0].mxu0
    %v949 = vadd.f32 0.0, %v948
    %v950 = vpop.f32.mrb[0].mxu0
    %951 = vdwg.mxu0
    %952 = vrot.lane.b32.xlu0 %v703, 112
    %v953 = vpop.permute.xlu0 %952
    %954 = vrot.lane.b32.xlu0 %v704, 112
    %v955 = vpop.permute.xlu0 %954
    %v957 = vsel %vm705, %v953, 0
    %v960 = vsel %vm705, %v955, 0
    %962 = vmatprep.subr.bf16.mxu0 0
    %963 = vmatpush1.bf16.xpose.msra.mxu0 %v960
    %964 = vmatprep.subr.bf16.mxu0 0
    %965 = vmatpush1.bf16.xpose.msra.mxu0 0
    %966 = vmatprep.subr.bf16.mxu0 0
    %967 = vmatpush1.bf16.xpose.msra.mxu0 0
    %968 = vmatprep.subr.bf16.mxu0 0
    %969 = vmatpush1.bf16.xpose.msra.mxu0 0
    %970 = vmatprep.subr.bf16.mxu0 0
    %971 = vmatpush1.bf16.xpose.msra.mxu0 0
    %972 = vmatprep.subr.bf16.mxu0 0
    %973 = vmatpush1.bf16.xpose.msra.mxu0 0
    %974 = vmatprep.subr.bf16.mxu0 0
    %975 = vmatpush1.bf16.xpose.msra.mxu0 0
    %976 = vmatprep.subr.bf16.mxu0 0
    %977 = vmatpush1.bf16.xpose.msra.mxu0 0
    %978 = vmatprep.subr.bf16.mxu0 0
    %979 = vmatpush1.bf16.xpose.msra.mxu0 0
    %980 = vmatprep.subr.bf16.mxu0 0
    %981 = vmatpush1.bf16.xpose.msra.mxu0 0
    %982 = vmatprep.subr.bf16.mxu0 0
    %983 = vmatpush1.bf16.xpose.msra.mxu0 0
    %984 = vmatprep.subr.bf16.mxu0 0
    %985 = vmatpush1.bf16.xpose.msra.mxu0 0
    %986 = vmatprep.subr.bf16.mxu0 0
    %987 = vmatpush1.bf16.xpose.msra.mxu0 0
    %988 = vmatprep.subr.bf16.mxu0 0
    %989 = vmatpush1.bf16.xpose.msra.mxu0 0
    %990 = vmatprep.subr.bf16.mxu0 0
    %991 = vmatpush1.bf16.xpose.msra.mxu0 0
    %992 = vmatprep.subr.bf16.mxu0 0
    %993 = vmatpush1.bf16.xpose.msra.mxu0 0
    %994 = vmatprep.mubr.bf16.mxu0 0
    %995 = vmatmul.mubr.bf16.gmra.mrb[0].mxu0 %v957
    %v996 = vpop.f32.mrb[0].mxu0
    %v997 = vadd.f32 %v454, %v996
    %v998 = vpop.f32.mrb[0].mxu0
    %v999 = vpop.f32.mrb[0].mxu0
    %v1000 = vadd.f32 %v452, %v999
    %v1001 = vpop.f32.mrb[0].mxu0
    %1002 = vdwg.mxu0
    %v1003 = vsel %vm753, %v997, -inf
    %1004 = vmax.xlane.f32.xlu0 %v1003
    %v1005 = vpop.xlane.xlu0 %1004
    %v1006 = vsel %vm757, %v1000, -inf
    %1007 = vmax.xlane.f32.xlu0 %v1006
    %v1008 = vpop.xlane.xlu0 %1007
    %v1009 = vsub.f32 %v997, %v1005
    %v1010 = vsub.f32 %v1000, %v1008
    %v1011 = vmul.f32 %v1009, 1.442695
    %v1012 = vpow.pop %v1011
    %v1013 = vmul.f32 %v1010, 1.442695
    %v1014 = vpow.pop %v1013
    %v1015 = vsel %vm753, %v1012, 0.0
    %1016 = vadd.xlane.f32.xlu0 %v1015
    %v1017 = vpop.xlane.xlu0 %1016
    %v1018 = vsel %vm757, %v1014, 0.0
    %1019 = vadd.xlane.f32.xlu0 %v1018
    %v1020 = vpop.xlane.xlu0 %1019
    %v1021 = vrcp.pop %v1017
    %v1022 = vrcp.pop %v1020
    %v1023 = vmul.f32 %v1012, %v1021
    %v1024 = vmul.f32 %v1014, %v1022
    %v1025 = vpack.c.bf16 %v1024, %v1023
    %1026 = vrot.lane.b32.xlu0 %v778, 112
    %v1027 = vpop.permute.xlu0 %1026
    %v1029 = vsel %vm753, %v1025, 0
    %v1032 = vsel %vm437, %v1027, 0
    %1034 = vmatprep.subr.bf16.mxu0 0
    %1035 = vmatpush1.bf16.msra.mxu0 %v1032
    %1036 = vmatprep.subr.bf16.mxu0 0
    %1037 = vmatpush1.bf16.msra.mxu0 0
    %1038 = vmatprep.subr.bf16.mxu0 0
    %1039 = vmatpush1.bf16.msra.mxu0 0
    %1040 = vmatprep.subr.bf16.mxu0 0
    %1041 = vmatpush1.bf16.msra.mxu0 0
    %1042 = vmatprep.subr.bf16.mxu0 0
    %1043 = vmatpush1.bf16.msra.mxu0 0
    %1044 = vmatprep.subr.bf16.mxu0 0
    %1045 = vmatpush1.bf16.msra.mxu0 0
    %1046 = vmatprep.subr.bf16.mxu0 0
    %1047 = vmatpush1.bf16.msra.mxu0 0
    %1048 = vmatprep.subr.bf16.mxu0 0
    %1049 = vmatpush1.bf16.msra.mxu0 0
    %1050 = vmatprep.subr.bf16.mxu0 0
    %1051 = vmatpush1.bf16.msra.mxu0 0
    %1052 = vmatprep.subr.bf16.mxu0 0
    %1053 = vmatpush1.bf16.msra.mxu0 0
    %1054 = vmatprep.subr.bf16.mxu0 0
    %1055 = vmatpush1.bf16.msra.mxu0 0
    %1056 = vmatprep.subr.bf16.mxu0 0
    %1057 = vmatpush1.bf16.msra.mxu0 0
    %1058 = vmatprep.subr.bf16.mxu0 0
    %1059 = vmatpush1.bf16.msra.mxu0 0
    %1060 = vmatprep.subr.bf16.mxu0 0
    %1061 = vmatpush1.bf16.msra.mxu0 0
    %1062 = vmatprep.subr.bf16.mxu0 0
    %1063 = vmatpush1.bf16.msra.mxu0 0
    %1064 = vmatprep.subr.bf16.mxu0 0
    %1065 = vmatpush1.bf16.msra.mxu0 0
    %1066 = vmatprep.mubr.bf16.mxu0 0
    %1067 = vmatmul.mubr.bf16.gmra.mrb[0].mxu0 %v1029
    %v1068 = vpop.f32.mrb[0].mxu0
    %v1069 = vadd.f32 0.0, %v1068
    %v1070 = vpop.f32.mrb[0].mxu0
    %v1071 = vpop.f32.mrb[0].mxu0
    %v1072 = vadd.f32 0.0, %v1071
    %v1073 = vpop.f32.mrb[0].mxu0
    %1074 = vdwg.mxu0
    %1075 = vrot.lane.b32.xlu0 %v703, 104
    %v1076 = vpop.permute.xlu0 %1075
    %1077 = vrot.lane.b32.xlu0 %v704, 104
    %v1078 = vpop.permute.xlu0 %1077
    %v1080 = vsel %vm705, %v1076, 0
    %v1083 = vsel %vm705, %v1078, 0
    %1085 = vmatprep.subr.bf16.mxu0 0
    %1086 = vmatpush1.bf16.xpose.msra.mxu0 %v1083
    %1087 = vmatprep.subr.bf16.mxu0 0
    %1088 = vmatpush1.bf16.xpose.msra.mxu0 0
    %1089 = vmatprep.subr.bf16.mxu0 0
    %1090 = vmatpush1.bf16.xpose.msra.mxu0 0
    %1091 = vmatprep.subr.bf16.mxu0 0
    %1092 = vmatpush1.bf16.xpose.msra.mxu0 0
    %1093 = vmatprep.subr.bf16.mxu0 0
    %1094 = vmatpush1.bf16.xpose.msra.mxu0 0
    %1095 = vmatprep.subr.bf16.mxu0 0
    %1096 = vmatpush1.bf16.xpose.msra.mxu0 0
    %1097 = vmatprep.subr.bf16.mxu0 0
    %1098 = vmatpush1.bf16.xpose.msra.mxu0 0
    %1099 = vmatprep.subr.bf16.mxu0 0
    %1100 = vmatpush1.bf16.xpose.msra.mxu0 0
    %1101 = vmatprep.subr.bf16.mxu0 0
    %1102 = vmatpush1.bf16.xpose.msra.mxu0 0
    %1103 = vmatprep.subr.bf16.mxu0 0
    %1104 = vmatpush1.bf16.xpose.msra.mxu0 0
    %1105 = vmatprep.subr.bf16.mxu0 0
    %1106 = vmatpush1.bf16.xpose.msra.mxu0 0
    %1107 = vmatprep.subr.bf16.mxu0 0
    %1108 = vmatpush1.bf16.xpose.msra.mxu0 0
    %1109 = vmatprep.subr.bf16.mxu0 0
    %1110 = vmatpush1.bf16.xpose.msra.mxu0 0
    %1111 = vmatprep.subr.bf16.mxu0 0
    %1112 = vmatpush1.bf16.xpose.msra.mxu0 0
    %1113 = vmatprep.subr.bf16.mxu0 0
    %1114 = vmatpush1.bf16.xpose.msra.mxu0 0
    %1115 = vmatprep.subr.bf16.mxu0 0
    %1116 = vmatpush1.bf16.xpose.msra.mxu0 0
    %1117 = vmatprep.mubr.bf16.mxu0 0
    %1118 = vmatmul.mubr.bf16.gmra.mrb[0].mxu0 %v1080
    %v1119 = vpop.f32.mrb[0].mxu0
    %v1120 = vadd.f32 %v454, %v1119
    %v1121 = vpop.f32.mrb[0].mxu0
    %v1122 = vpop.f32.mrb[0].mxu0
    %v1123 = vadd.f32 %v452, %v1122
    %v1124 = vpop.f32.mrb[0].mxu0
    %1125 = vdwg.mxu0
    %v1126 = vsel %vm753, %v1120, -inf
    %1127 = vmax.xlane.f32.xlu0 %v1126
    %v1128 = vpop.xlane.xlu0 %1127
    %v1129 = vsel %vm757, %v1123, -inf
    %1130 = vmax.xlane.f32.xlu0 %v1129
    %v1131 = vpop.xlane.xlu0 %1130
    %v1132 = vsub.f32 %v1120, %v1128
    %v1133 = vsub.f32 %v1123, %v1131
    %v1134 = vmul.f32 %v1132, 1.442695
    %v1135 = vpow.pop %v1134
    %v1136 = vmul.f32 %v1133, 1.442695
    %v1137 = vpow.pop %v1136
    %v1138 = vsel %vm753, %v1135, 0.0
    %1139 = vadd.xlane.f32.xlu0 %v1138
    %v1140 = vpop.xlane.xlu0 %1139
    %v1141 = vsel %vm757, %v1137, 0.0
    %1142 = vadd.xlane.f32.xlu0 %v1141
    %v1143 = vpop.xlane.xlu0 %1142
    %v1144 = vrcp.pop %v1140
    %v1145 = vrcp.pop %v1143
    %v1146 = vmul.f32 %v1135, %v1144
    %v1147 = vmul.f32 %v1137, %v1145
    %v1148 = vpack.c.bf16 %v1147, %v1146
    %1149 = vrot.lane.b32.xlu0 %v778, 104
    %v1150 = vpop.permute.xlu0 %1149
    %v1152 = vsel %vm753, %v1148, 0
    %v1155 = vsel %vm437, %v1150, 0
    %1157 = vmatprep.subr.bf16.mxu0 0
    %1158 = vmatpush1.bf16.msra.mxu0 %v1155
    %1159 = vmatprep.subr.bf16.mxu0 0
    %1160 = vmatpush1.bf16.msra.mxu0 0
    %1161 = vmatprep.subr.bf16.mxu0 0
    %1162 = vmatpush1.bf16.msra.mxu0 0
    %1163 = vmatprep.subr.bf16.mxu0 0
    %1164 = vmatpush1.bf16.msra.mxu0 0
    %1165 = vmatprep.subr.bf16.mxu0 0
    %1166 = vmatpush1.bf16.msra.mxu0 0
    %1167 = vmatprep.subr.bf16.mxu0 0
    %1168 = vmatpush1.bf16.msra.mxu0 0
    %1169 = vmatprep.subr.bf16.mxu0 0
    %1170 = vmatpush1.bf16.msra.mxu0 0
    %1171 = vmatprep.subr.bf16.mxu0 0
    %1172 = vmatpush1.bf16.msra.mxu0 0
    %1173 = vmatprep.subr.bf16.mxu0 0
    %1174 = vmatpush1.bf16.msra.mxu0 0
    %1175 = vmatprep.subr.bf16.mxu0 0
    %1176 = vmatpush1.bf16.msra.mxu0 0
    %1177 = vmatprep.subr.bf16.mxu0 0
    %1178 = vmatpush1.bf16.msra.mxu0 0
    %1179 = vmatprep.subr.bf16.mxu0 0
    %1180 = vmatpush1.bf16.msra.mxu0 0
    %1181 = vmatprep.subr.bf16.mxu0 0
    %1182 = vmatpush1.bf16.msra.mxu0 0
    %1183 = vmatprep.subr.bf16.mxu0 0
    %1184 = vmatpush1.bf16.msra.mxu0 0
    %1185 = vmatprep.subr.bf16.mxu0 0
    %1186 = vmatpush1.bf16.msra.mxu0 0
    %1187 = vmatprep.subr.bf16.mxu0 0
    %1188 = vmatpush1.bf16.msra.mxu0 0
    %1189 = vmatprep.mubr.bf16.mxu0 0
    %1190 = vmatmul.mubr.bf16.gmra.mrb[0].mxu0 %v1152
    %v1191 = vpop.f32.mrb[0].mxu0
    %v1192 = vadd.f32 0.0, %v1191
    %v1193 = vpop.f32.mrb[0].mxu0
    %v1194 = vpop.f32.mrb[0].mxu0
    %v1195 = vadd.f32 0.0, %v1194
    %v1196 = vpop.f32.mrb[0].mxu0
    %1197 = vdwg.mxu0
    %1200 = vrot.lane.b32.xlu0 %v946, 8
    %v1201 = vpop.permute.xlu0 %1200
    %1202 = vrot.lane.b32.xlu0 %v949, 8
    %v1203 = vpop.permute.xlu0 %1202
    %1208 = vrot.lane.b32.xlu0 %v1069, 16
    %v1209 = vpop.permute.xlu0 %1208
    %1210 = vrot.lane.b32.xlu0 %v1072, 16
    %v1211 = vpop.permute.xlu0 %1210
    %1216 = vrot.lane.b32.xlu0 %v1192, 24
    %v1217 = vpop.permute.xlu0 %1216
    %1218 = vrot.lane.b32.xlu0 %v1195, 24
    %v1219 = vpop.permute.xlu0 %1218
    %v1222 = vsel %vm705, %v820, %v1201
    %v1223 = vsel %vm705, %v823, %v1203
    %vm1224 = vcmask 130048
    %v1225 = vsel %vm1224, %v1222, %v1209
    %v1226 = vsel %vm1224, %v1223, %v1211
    %vm1227 = vcmask 195584
    %v1228 = vsel %vm1227, %v1225, %v1217
    %v1229 = vsel %vm1227, %v1226, %v1219
    %v1230 = vpack.c.bf16 %v1229, %v1228
    %v1232 = vlaneseq
    %v1233 = vshrl.u32 %v1232, 7
    %v1234 = vsub.s32 0, %v1233
    %v1235 = vrot.slane %v521, %v1234
    %v1241 = vunpack.c.l.b16 %v514
    %v1242 = vunpack.c.l.b16 %v515
    %v1243 = vunpack.c.l.b16 %v516
    %v1244 = vunpack.c.l.b16 %v517
    %v1245 = vpack.c.b16 %v1242, %v1241
    %v1246 = vpack.c.b16 %v1244, %v1243
    %v1250 = vsel %vm457, %v1230, 0
    %1252 = vmatprep.subr.bf16.mxu0 0
    %1253 = vmatpush1.bf16.msra.mxu0 %v1245
    %1254 = vmatprep.subr.bf16.mxu0 0
    %1255 = vmatpush1.bf16.msra.mxu0 %v1246
    %1256 = vmatprep.subr.bf16.mxu0 0
    %1257 = vmatpush1.bf16.msra.mxu0 0
    %1258 = vmatprep.subr.bf16.mxu0 0
    %1259 = vmatpush1.bf16.msra.mxu0 0
    %1260 = vmatprep.subr.bf16.mxu0 0
    %1261 = vmatpush1.bf16.msra.mxu0 0
    %1262 = vmatprep.subr.bf16.mxu0 0
    %1263 = vmatpush1.bf16.msra.mxu0 0
    %1264 = vmatprep.subr.bf16.mxu0 0
    %1265 = vmatpush1.bf16.msra.mxu0 0
    %1266 = vmatprep.subr.bf16.mxu0 0
    %1267 = vmatpush1.bf16.msra.mxu0 0
    %1268 = vmatprep.subr.bf16.mxu0 0
    %1269 = vmatpush1.bf16.msra.mxu0 0
    %1270 = vmatprep.subr.bf16.mxu0 0
    %1271 = vmatpush1.bf16.msra.mxu0 0
    %1272 = vmatprep.subr.bf16.mxu0 0
    %1273 = vmatpush1.bf16.msra.mxu0 0
    %1274 = vmatprep.subr.bf16.mxu0 0
    %1275 = vmatpush1.bf16.msra.mxu0 0
    %1276 = vmatprep.subr.bf16.mxu0 0
    %1277 = vmatpush1.bf16.msra.mxu0 0
    %1278 = vmatprep.subr.bf16.mxu0 0
    %1279 = vmatpush1.bf16.msra.mxu0 0
    %1280 = vmatprep.subr.bf16.mxu0 0
    %1281 = vmatpush1.bf16.msra.mxu0 0
    %1282 = vmatprep.subr.bf16.mxu0 0
    %1283 = vmatpush1.bf16.msra.mxu0 0
    %1284 = vmatprep.mubr.bf16.mxu0 0
    %1285 = vmatmul.mubr.bf16.gmra.mrb[0].mxu0 %v1250
    %v1286 = vpop.f32.mrb[0].mxu0
    %v1287 = vadd.f32 %v1235, %v1286
    %v1288 = vpop.f32.mrb[0].mxu0
    %v1289 = vpop.f32.mrb[0].mxu0
    %v1290 = vadd.f32 %v1235, %v1289
    %v1291 = vpop.f32.mrb[0].mxu0
    %1292 = vdwg.mxu0
    %v1293 = vadd.f32 %v446, %v1287
    %v1294 = vadd.f32 %v447, %v1290
    %v1295 = vld [vmem:[%s23] sm:$0x1]
    %v1296 = vld [vmem:[%s25] sm:$0x1]
    %v1297 = vsel %vm457, %v1293, 0.0
    %1298 = vadd.xlane.f32.xlu0 %v1297
    %v1299 = vpop.xlane.xlu0 %1298
    %v1300 = vsel %vm461, %v1294, 0.0
    %1301 = vadd.xlane.f32.xlu0 %v1300
    %v1302 = vpop.xlane.xlu0 %1301
    %v1303 = vmul.f32 %v1299, %v465
    %v1304 = vmul.f32 %v1302, %v465
    %v1305 = vsub.f32 %v1293, %v1303
    %v1306 = vsub.f32 %v1294, %v1304
    %v1307 = vmul.f32 %v1305, %v1305
    %v1308 = vmul.f32 %v1306, %v1306
    %v1309 = vsel %vm457, %v1307, 0.0
    %1310 = vadd.xlane.f32.xlu0 %v1309
    %v1311 = vpop.xlane.xlu0 %1310
    %v1312 = vsel %vm461, %v1308, 0.0
    %1313 = vadd.xlane.f32.xlu0 %v1312
    %v1314 = vpop.xlane.xlu0 %1313
    %v1315 = vmul.f32 %v1311, %v465
    %v1316 = vmul.f32 %v1314, %v465
    %v1317 = vadd.f32 %v1315, 1e-05
    %v1318 = vadd.f32 %v1316, 1e-05
    %v1319 = vrsqrt.pop %v1317
    %v1320 = vrsqrt.pop %v1318
    %v1321 = vmul.f32 %v1305, %v1319
    %v1322 = vmul.f32 %v1306, %v1320
    %v1324 = vlaneseq
    %v1325 = vshrl.u32 %v1324, 7
    %v1326 = vsub.s32 0, %v1325
    %v1327 = vrot.slane %v1295, %v1326
    %v1329 = vmul.f32 %v1321, %v1327
    %v1330 = vmul.f32 %v1322, %v1327
    %v1332 = vlaneseq
    %v1333 = vshrl.u32 %v1332, 7
    %v1334 = vsub.s32 0, %v1333
    %v1335 = vrot.slane %v1296, %v1334
    %v1337 = vadd.f32 %v1329, %v1335
    %v1338 = vadd.f32 %v1330, %v1335
    %v1339 = vld [vmem:[%s43] sm:$0xf]
    %v1340 = vld [vmem:[%s43 + $0x4] sm:$0xf]
    %v1341 = vld [vmem:[%s43 + $0x8] sm:$0xf]
    %v1342 = vld [vmem:[%s43 + $0xc] sm:$0xf]
    %v1343 = vpack.c.bf16 %v1338, %v1337
    %v1344 = vld [vmem:[%s45] sm:$0x1]
    %v1346 = vlaneseq
    %v1347 = vshrl.u32 %v1346, 7
    %v1348 = vsub.s32 0, %v1347
    %v1349 = vrot.slane %v1344, %v1348
    %v1355 = vunpack.c.l.b16 %v1339
    %v1356 = vunpack.c.l.b16 %v1340
    %v1357 = vunpack.c.l.b16 %v1341
    %v1358 = vunpack.c.l.b16 %v1342
    %v1359 = vpack.c.b16 %v1356, %v1355
    %v1360 = vpack.c.b16 %v1358, %v1357
    %v1364 = vsel %vm457, %v1343, 0
    %1366 = vmatprep.subr.bf16.mxu0 0
    %1367 = vmatpush1.bf16.msra.mxu0 %v1359
    %1368 = vmatprep.subr.bf16.mxu0 0
    %1369 = vmatpush1.bf16.msra.mxu0 %v1360
    %1370 = vmatprep.subr.bf16.mxu0 0
    %1371 = vmatpush1.bf16.msra.mxu0 0
    %1372 = vmatprep.subr.bf16.mxu0 0
    %1373 = vmatpush1.bf16.msra.mxu0 0
    %1374 = vmatprep.subr.bf16.mxu0 0
    %1375 = vmatpush1.bf16.msra.mxu0 0
    %1376 = vmatprep.subr.bf16.mxu0 0
    %1377 = vmatpush1.bf16.msra.mxu0 0
    %1378 = vmatprep.subr.bf16.mxu0 0
    %1379 = vmatpush1.bf16.msra.mxu0 0
    %1380 = vmatprep.subr.bf16.mxu0 0
    %1381 = vmatpush1.bf16.msra.mxu0 0
    %1382 = vmatprep.subr.bf16.mxu0 0
    %1383 = vmatpush1.bf16.msra.mxu0 0
    %1384 = vmatprep.subr.bf16.mxu0 0
    %1385 = vmatpush1.bf16.msra.mxu0 0
    %1386 = vmatprep.subr.bf16.mxu0 0
    %1387 = vmatpush1.bf16.msra.mxu0 0
    %1388 = vmatprep.subr.bf16.mxu0 0
    %1389 = vmatpush1.bf16.msra.mxu0 0
    %1390 = vmatprep.subr.bf16.mxu0 0
    %1391 = vmatpush1.bf16.msra.mxu0 0
    %1392 = vmatprep.subr.bf16.mxu0 0
    %1393 = vmatpush1.bf16.msra.mxu0 0
    %1394 = vmatprep.subr.bf16.mxu0 0
    %1395 = vmatpush1.bf16.msra.mxu0 0
    %1396 = vmatprep.subr.bf16.mxu0 0
    %1397 = vmatpush1.bf16.msra.mxu0 0
    %1398 = vmatprep.mubr.bf16.mxu0 0
    %1399 = vmatmul.mubr.bf16.gmra.mrb[0].mxu0 %v1364
    %v1400 = vpop.f32.mrb[0].mxu0
    %v1401 = vadd.f32 %v1349, %v1400
    %v1402 = vpop.f32.mrb[0].mxu0
    %v1403 = vpop.f32.mrb[0].mxu0
    %v1404 = vadd.f32 %v1349, %v1403
    %v1405 = vpop.f32.mrb[0].mxu0
    %1406 = vdwg.mxu0
    %v1407 = vmul.f32 %v1401, %v1401
    %v1408 = vmul.f32 %v1404, %v1404
    %v1409 = vmul.f32 %v1401, %v1407
    %v1410 = vmul.f32 %v1404, %v1408
    %v1411 = vmul.f32 %v1409, 0.044715
    %v1412 = vmul.f32 %v1410, 0.044715
    %v1413 = vadd.f32 %v1401, %v1411
    %v1414 = vadd.f32 %v1404, %v1412
    %v1415 = vmul.f32 %v1413, 0.7978846
    %v1416 = vmul.f32 %v1414, 0.7978846
    %v1417 = vtanh.pop %v1415
    %v1418 = vtanh.pop %v1416
    %v1419 = vadd.f32 %v1417, 1.0
    %v1420 = vadd.f32 %v1418, 1.0
    %v1421 = vmul.f32 %v1419, 0.5
    %v1422 = vmul.f32 %v1420, 0.5
    %v1423 = vmul.f32 %v1401, %v1421
    %v1424 = vmul.f32 %v1404, %v1422
    %v1425 = vld [vmem:[%s47] sm:$0xf]
    %v1426 = vld [vmem:[%s47 + $0x4] sm:$0xf]
    %v1427 = vld [vmem:[%s47 + $0x8] sm:$0xf]
    %v1428 = vld [vmem:[%s47 + $0xc] sm:$0xf]
    %v1429 = vld [vmem:[%s47 + $0x10] sm:$0xf]
    %v1430 = vld [vmem:[%s47 + $0x14] sm:$0xf]
    %v1431 = vld [vmem:[%s47 + $0x18] sm:$0xf]
    %v1432 = vld [vmem:[%s47 + $0x1c] sm:$0xf]
    %v1433 = vpack.c.bf16 %v1424, %v1423
    %v1442 = vunpack.c.l.b16 %v1425
    %v1443 = vunpack.c.l.b16 %v1426
    %v1444 = vunpack.c.l.b16 %v1427
    %v1445 = vunpack.c.l.b16 %v1428
    %v1446 = vunpack.c.l.b16 %v1429
    %v1447 = vunpack.c.l.b16 %v1430
    %v1448 = vunpack.c.l.b16 %v1431
    %v1449 = vunpack.c.l.b16 %v1432
    %v1450 = vpack.c.b16 %v1443, %v1442
    %v1451 = vpack.c.b16 %v1445, %v1444
    %v1452 = vpack.c.b16 %v1447, %v1446
    %v1453 = vpack.c.b16 %v1449, %v1448
    %v1459 = vsel %vm379, %v1433, 0
    %1461 = vmatprep.subr.bf16.mxu0 0
    %1462 = vmatpush1.bf16.msra.mxu0 %v1450
    %1463 = vmatprep.subr.bf16.mxu0 0
    %1464 = vmatpush1.bf16.msra.mxu0 %v1451
    %1465 = vmatprep.subr.bf16.mxu0 0
    %1466 = vmatpush1.bf16.msra.mxu0 %v1452
    %1467 = vmatprep.subr.bf16.mxu0 0
    %1468 = vmatpush1.bf16.msra.mxu0 %v1453
    %1469 = vmatprep.subr.bf16.mxu0 0
    %1470 = vmatpush1.bf16.msra.mxu0 0
    %1471 = vmatprep.subr.bf16.mxu0 0
    %1472 = vmatpush1.bf16.msra.mxu0 0
    %1473 = vmatprep.subr.bf16.mxu0 0
    %1474 = vmatpush1.bf16.msra.mxu0 0
    %1475 = vmatprep.subr.bf16.mxu0 0
    %1476 = vmatpush1.bf16.msra.mxu0 0
    %1477 = vmatprep.subr.bf16.mxu0 0
    %1478 = vmatpush1.bf16.msra.mxu0 0
    %1479 = vmatprep.subr.bf16.mxu0 0
    %1480 = vmatpush1.bf16.msra.mxu0 0
    %1481 = vmatprep.subr.bf16.mxu0 0
    %1482 = vmatpush1.bf16.msra.mxu0 0
    %1483 = vmatprep.subr.bf16.mxu0 0
    %1484 = vmatpush1.bf16.msra.mxu0 0
    %1485 = vmatprep.subr.bf16.mxu0 0
    %1486 = vmatpush1.bf16.msra.mxu0 0
    %1487 = vmatprep.subr.bf16.mxu0 0
    %1488 = vmatpush1.bf16.msra.mxu0 0
    %1489 = vmatprep.subr.bf16.mxu0 0
    %1490 = vmatpush1.bf16.msra.mxu0 0
    %1491 = vmatprep.subr.bf16.mxu0 0
    %1492 = vmatpush1.bf16.msra.mxu0 0
    %1493 = vmatprep.mubr.bf16.mxu0 0
    %1494 = vmatmul.mubr.bf16.gmra.mrb[0].mxu0 %v1459
    %v1495 = vpop.f32.mrb[0].mxu0
    %v1496 = vadd.f32 0.0, %v1495
    %v1497 = vpop.f32.mrb[0].mxu0
    %v1498 = vpop.f32.mrb[0].mxu0
    %v1499 = vadd.f32 0.0, %v1498
    %v1500 = vpop.f32.mrb[0].mxu0
    %1501 = vdwg.mxu0
    %v1502 = vadd.f32 %v1293, %v1496
    %v1503 = vadd.f32 %v1294, %v1499
    %v1504 = vld [vmem:[%s49] sm:$0x1]
    %v1506 = vlaneseq
    %v1507 = vshrl.u32 %v1506, 7
    %v1508 = vsub.s32 0, %v1507
    %v1509 = vrot.slane %v1504, %v1508
    %v1511 = vadd.f32 %v1502, %v1509
    %v1512 = vadd.f32 %v1503, %v1509
    %s1513 = scalar_lea.vmem %s19, 1
    %v1514 = vld [vmem:[%s1513] sm:$0x1]
    %s1515 = scalar_lea.vmem %s21, 1
    %v1516 = vld [vmem:[%s1515] sm:$0x1]
    %v1517 = vsel %vm457, %v1511, 0.0
    %1518 = vadd.xlane.f32.xlu0 %v1517
    %v1519 = vpop.xlane.xlu0 %1518
    %v1520 = vsel %vm461, %v1512, 0.0
    %1521 = vadd.xlane.f32.xlu0 %v1520
    %v1522 = vpop.xlane.xlu0 %1521
    %v1523 = vmul.f32 %v1519, %v465
    %v1524 = vmul.f32 %v1522, %v465
    %v1525 = vsub.f32 %v1511, %v1523
    %v1526 = vsub.f32 %v1512, %v1524
    %v1527 = vmul.f32 %v1525, %v1525
    %v1528 = vmul.f32 %v1526, %v1526
    %v1529 = vsel %vm457, %v1527, 0.0
    %1530 = vadd.xlane.f32.xlu0 %v1529
    %v1531 = vpop.xlane.xlu0 %1530
    %v1532 = vsel %vm461, %v1528, 0.0
    %1533 = vadd.xlane.f32.xlu0 %v1532
    %v1534 = vpop.xlane.xlu0 %1533
    %v1535 = vmul.f32 %v1531, %v465
    %v1536 = vmul.f32 %v1534, %v465
    %v1537 = vadd.f32 %v1535, 1e-05
    %v1538 = vadd.f32 %v1536, 1e-05
    %v1539 = vrsqrt.pop %v1537
    %v1540 = vrsqrt.pop %v1538
    %v1541 = vmul.f32 %v1525, %v1539
    %v1542 = vmul.f32 %v1526, %v1540
    %v1544 = vlaneseq
    %v1545 = vshrl.u32 %v1544, 7
    %v1546 = vsub.s32 0, %v1545
    %v1547 = vrot.slane %v1514, %v1546
    %v1549 = vmul.f32 %v1541, %v1547
    %v1550 = vmul.f32 %v1542, %v1547
    %v1552 = vlaneseq
    %v1553 = vshrl.u32 %v1552, 7
    %v1554 = vsub.s32 0, %v1553
    %v1555 = vrot.slane %v1516, %v1554
    %v1557 = vadd.f32 %v1549, %v1555
    %v1558 = vadd.f32 %v1550, %v1555
    %s1559 = scalar_lea.vmem %s27, 16
    %v1560 = vld [vmem:[%s1559] sm:$0xf]
    %v1561 = vld [vmem:[%s1559 + $0x4] sm:$0xf]
    %v1562 = vld [vmem:[%s1559 + $0x8] sm:$0xf]
    %v1563 = vld [vmem:[%s1559 + $0xc] sm:$0xf]
    %s1564 = scalar_lea.vmem %s29, 16
    %v1565 = vld [vmem:[%s1564] sm:$0xf]
    %v1566 = vld [vmem:[%s1564 + $0x4] sm:$0xf]
    %v1567 = vld [vmem:[%s1564 + $0x8] sm:$0xf]
    %v1568 = vld [vmem:[%s1564 + $0xc] sm:$0xf]
    %s1569 = scalar_lea.vmem %s31, 16
    %v1570 = vld [vmem:[%s1569] sm:$0xf]
    %v1571 = vld [vmem:[%s1569 + $0x4] sm:$0xf]
    %v1572 = vld [vmem:[%s1569 + $0x8] sm:$0xf]
    %v1573 = vld [vmem:[%s1569 + $0xc] sm:$0xf]
    %s1574 = scalar_lea.vmem %s33, 16
    %v1575 = vld [vmem:[%s1574] sm:$0xf]
    %v1576 = vld [vmem:[%s1574 + $0x4] sm:$0xf]
    %v1577 = vld [vmem:[%s1574 + $0x8] sm:$0xf]
    %v1578 = vld [vmem:[%s1574 + $0xc] sm:$0xf]
    %s1579 = scalar_lea.vmem %s35, 1
    %v1580 = vld [vmem:[%s1579] sm:$0x1]
    %s1581 = scalar_lea.vmem %s37, 1
    %v1582 = vld [vmem:[%s1581] sm:$0x1]
    %s1583 = scalar_lea.vmem %s39, 1
    %v1584 = vld [vmem:[%s1583] sm:$0x1]
    %s1585 = scalar_lea.vmem %s41, 1
    %v1586 = vld [vmem:[%s1585] sm:$0x1]
    %v1587 = vpack.c.bf16 %v1558, %v1557
    %v1589 = vlaneseq
    %v1590 = vshrl.u32 %v1589, 7
    %v1591 = vsub.s32 0, %v1590
    %v1592 = vrot.slane %v1580, %v1591
    %v1598 = vunpack.c.l.b16 %v1560
    %v1599 = vunpack.c.l.b16 %v1561
    %v1600 = vunpack.c.l.b16 %v1562
    %v1601 = vunpack.c.l.b16 %v1563
    %v1602 = vpack.c.b16 %v1599, %v1598
    %v1603 = vpack.c.b16 %v1601, %v1600
    %v1607 = vsel %vm457, %v1587, 0
    %1609 = vmatprep.subr.bf16.mxu0 0
    %1610 = vmatpush1.bf16.msra.mxu0 %v1602
    %1611 = vmatprep.subr.bf16.mxu0 0
    %1612 = vmatpush1.bf16.msra.mxu0 %v1603
    %1613 = vmatprep.subr.bf16.mxu0 0
    %1614 = vmatpush1.bf16.msra.mxu0 0
    %1615 = vmatprep.subr.bf16.mxu0 0
    %1616 = vmatpush1.bf16.msra.mxu0 0
    %1617 = vmatprep.subr.bf16.mxu0 0
    %1618 = vmatpush1.bf16.msra.mxu0 0
    %1619 = vmatprep.subr.bf16.mxu0 0
    %1620 = vmatpush1.bf16.msra.mxu0 0
    %1621 = vmatprep.subr.bf16.mxu0 0
    %1622 = vmatpush1.bf16.msra.mxu0 0
    %1623 = vmatprep.subr.bf16.mxu0 0
    %1624 = vmatpush1.bf16.msra.mxu0 0
    %1625 = vmatprep.subr.bf16.mxu0 0
    %1626 = vmatpush1.bf16.msra.mxu0 0
    %1627 = vmatprep.subr.bf16.mxu0 0
    %1628 = vmatpush1.bf16.msra.mxu0 0
    %1629 = vmatprep.subr.bf16.mxu0 0
    %1630 = vmatpush1.bf16.msra.mxu0 0
    %1631 = vmatprep.subr.bf16.mxu0 0
    %1632 = vmatpush1.bf16.msra.mxu0 0
    %1633 = vmatprep.subr.bf16.mxu0 0
    %1634 = vmatpush1.bf16.msra.mxu0 0
    %1635 = vmatprep.subr.bf16.mxu0 0
    %1636 = vmatpush1.bf16.msra.mxu0 0
    %1637 = vmatprep.subr.bf16.mxu0 0
    %1638 = vmatpush1.bf16.msra.mxu0 0
    %1639 = vmatprep.subr.bf16.mxu0 0
    %1640 = vmatpush1.bf16.msra.mxu0 0
    %1641 = vmatprep.mubr.bf16.mxu0 0
    %1642 = vmatmul.mubr.bf16.gmra.mrb[0].mxu0 %v1607
    %v1643 = vpop.f32.mrb[0].mxu0
    %v1644 = vadd.f32 %v1592, %v1643
    %v1645 = vpop.f32.mrb[0].mxu0
    %v1646 = vpop.f32.mrb[0].mxu0
    %v1647 = vadd.f32 %v1592, %v1646
    %v1648 = vpop.f32.mrb[0].mxu0
    %1649 = vdwg.mxu0
    %v1651 = vlaneseq
    %v1652 = vshrl.u32 %v1651, 7
    %v1653 = vsub.s32 0, %v1652
    %v1654 = vrot.slane %v1582, %v1653
    %v1660 = vunpack.c.l.b16 %v1565
    %v1661 = vunpack.c.l.b16 %v1566
    %v1662 = vunpack.c.l.b16 %v1567
    %v1663 = vunpack.c.l.b16 %v1568
    %v1664 = vpack.c.b16 %v1661, %v1660
    %v1665 = vpack.c.b16 %v1663, %v1662
    %1668 = vmatprep.subr.bf16.mxu0 0
    %1669 = vmatpush1.bf16.msra.mxu0 %v1664
    %1670 = vmatprep.subr.bf16.mxu0 0
    %1671 = vmatpush1.bf16.msra.mxu0 %v1665
    %1672 = vmatprep.subr.bf16.mxu0 0
    %1673 = vmatpush1.bf16.msra.mxu0 0
    %1674 = vmatprep.subr.bf16.mxu0 0
    %1675 = vmatpush1.bf16.msra.mxu0 0
    %1676 = vmatprep.subr.bf16.mxu0 0
    %1677 = vmatpush1.bf16.msra.mxu0 0
    %1678 = vmatprep.subr.bf16.mxu0 0
    %1679 = vmatpush1.bf16.msra.mxu0 0
    %1680 = vmatprep.subr.bf16.mxu0 0
    %1681 = vmatpush1.bf16.msra.mxu0 0
    %1682 = vmatprep.subr.bf16.mxu0 0
    %1683 = vmatpush1.bf16.msra.mxu0 0
    %1684 = vmatprep.subr.bf16.mxu0 0
    %1685 = vmatpush1.bf16.msra.mxu0 0
    %1686 = vmatprep.subr.bf16.mxu0 0
    %1687 = vmatpush1.bf16.msra.mxu0 0
    %1688 = vmatprep.subr.bf16.mxu0 0
    %1689 = vmatpush1.bf16.msra.mxu0 0
    %1690 = vmatprep.subr.bf16.mxu0 0
    %1691 = vmatpush1.bf16.msra.mxu0 0
    %1692 = vmatprep.subr.bf16.mxu0 0
    %1693 = vmatpush1.bf16.msra.mxu0 0
    %1694 = vmatprep.subr.bf16.mxu0 0
    %1695 = vmatpush1.bf16.msra.mxu0 0
    %1696 = vmatprep.subr.bf16.mxu0 0
    %1697 = vmatpush1.bf16.msra.mxu0 0
    %1698 = vmatprep.subr.bf16.mxu0 0
    %1699 = vmatpush1.bf16.msra.mxu0 0
    %1700 = vmatprep.mubr.bf16.mxu0 0
    %1701 = vmatmul.mubr.bf16.gmra.mrb[0].mxu0 %v1607
    %v1702 = vpop.f32.mrb[0].mxu0
    %v1703 = vadd.f32 %v1654, %v1702
    %v1704 = vpop.f32.mrb[0].mxu0
    %v1705 = vpop.f32.mrb[0].mxu0
    %v1706 = vadd.f32 %v1654, %v1705
    %v1707 = vpop.f32.mrb[0].mxu0
    %1708 = vdwg.mxu0
    %v1710 = vlaneseq
    %v1711 = vshrl.u32 %v1710, 7
    %v1712 = vsub.s32 0, %v1711
    %v1713 = vrot.slane %v1584, %v1712
    %v1719 = vunpack.c.l.b16 %v1570
    %v1720 = vunpack.c.l.b16 %v1571
    %v1721 = vunpack.c.l.b16 %v1572
    %v1722 = vunpack.c.l.b16 %v1573
    %v1723 = vpack.c.b16 %v1720, %v1719
    %v1724 = vpack.c.b16 %v1722, %v1721
    %1727 = vmatprep.subr.bf16.mxu0 0
    %1728 = vmatpush1.bf16.msra.mxu0 %v1723
    %1729 = vmatprep.subr.bf16.mxu0 0
    %1730 = vmatpush1.bf16.msra.mxu0 %v1724
    %1731 = vmatprep.subr.bf16.mxu0 0
    %1732 = vmatpush1.bf16.msra.mxu0 0
    %1733 = vmatprep.subr.bf16.mxu0 0
    %1734 = vmatpush1.bf16.msra.mxu0 0
    %1735 = vmatprep.subr.bf16.mxu0 0
    %1736 = vmatpush1.bf16.msra.mxu0 0
    %1737 = vmatprep.subr.bf16.mxu0 0
    %1738 = vmatpush1.bf16.msra.mxu0 0
    %1739 = vmatprep.subr.bf16.mxu0 0
    %1740 = vmatpush1.bf16.msra.mxu0 0
    %1741 = vmatprep.subr.bf16.mxu0 0
    %1742 = vmatpush1.bf16.msra.mxu0 0
    %1743 = vmatprep.subr.bf16.mxu0 0
    %1744 = vmatpush1.bf16.msra.mxu0 0
    %1745 = vmatprep.subr.bf16.mxu0 0
    %1746 = vmatpush1.bf16.msra.mxu0 0
    %1747 = vmatprep.subr.bf16.mxu0 0
    %1748 = vmatpush1.bf16.msra.mxu0 0
    %1749 = vmatprep.subr.bf16.mxu0 0
    %1750 = vmatpush1.bf16.msra.mxu0 0
    %1751 = vmatprep.subr.bf16.mxu0 0
    %1752 = vmatpush1.bf16.msra.mxu0 0
    %1753 = vmatprep.subr.bf16.mxu0 0
    %1754 = vmatpush1.bf16.msra.mxu0 0
    %1755 = vmatprep.subr.bf16.mxu0 0
    %1756 = vmatpush1.bf16.msra.mxu0 0
    %1757 = vmatprep.subr.bf16.mxu0 0
    %1758 = vmatpush1.bf16.msra.mxu0 0
    %1759 = vmatprep.mubr.bf16.mxu0 0
    %1760 = vmatmul.mubr.bf16.gmra.mrb[0].mxu0 %v1607
    %v1761 = vpop.f32.mrb[0].mxu0
    %v1762 = vadd.f32 %v1713, %v1761
    %v1763 = vpop.f32.mrb[0].mxu0
    %v1764 = vpop.f32.mrb[0].mxu0
    %v1765 = vadd.f32 %v1713, %v1764
    %v1766 = vpop.f32.mrb[0].mxu0
    %1767 = vdwg.mxu0
    %v1768 = vpack.c.bf16 %v1647, %v1644
    %v1769 = vpack.c.bf16 %v1706, %v1703
    %v1771 = vsel %vm705, %v1768, 0
    %v1774 = vsel %vm705, %v1769, 0
    %1776 = vmatprep.subr.bf16.mxu0 0
    %1777 = vmatpush1.bf16.xpose.msra.mxu0 %v1774
    %1778 = vmatprep.subr.bf16.mxu0 0
    %1779 = vmatpush1.bf16.xpose.msra.mxu0 0
    %1780 = vmatprep.subr.bf16.mxu0 0
    %1781 = vmatpush1.bf16.xpose.msra.mxu0 0
    %1782 = vmatprep.subr.bf16.mxu0 0
    %1783 = vmatpush1.bf16.xpose.msra.mxu0 0
    %1784 = vmatprep.subr.bf16.mxu0 0
    %1785 = vmatpush1.bf16.xpose.msra.mxu0 0
    %1786 = vmatprep.subr.bf16.mxu0 0
    %1787 = vmatpush1.bf16.xpose.msra.mxu0 0
    %1788 = vmatprep.subr.bf16.mxu0 0
    %1789 = vmatpush1.bf16.xpose.msra.mxu0 0
    %1790 = vmatprep.subr.bf16.mxu0 0
    %1791 = vmatpush1.bf16.xpose.msra.mxu0 0
    %1792 = vmatprep.subr.bf16.mxu0 0
    %1793 = vmatpush1.bf16.xpose.msra.mxu0 0
    %1794 = vmatprep.subr.bf16.mxu0 0
    %1795 = vmatpush1.bf16.xpose.msra.mxu0 0
    %1796 = vmatprep.subr.bf16.mxu0 0
    %1797 = vmatpush1.bf16.xpose.msra.mxu0 0
    %1798 = vmatprep.subr.bf16.mxu0 0
    %1799 = vmatpush1.bf16.xpose.msra.mxu0 0
    %1800 = vmatprep.subr.bf16.mxu0 0
    %1801 = vmatpush1.bf16.xpose.msra.mxu0 0
    %1802 = vmatprep.subr.bf16.mxu0 0
    %1803 = vmatpush1.bf16.xpose.msra.mxu0 0
    %1804 = vmatprep.subr.bf16.mxu0 0
    %1805 = vmatpush1.bf16.xpose.msra.mxu0 0
    %1806 = vmatprep.subr.bf16.mxu0 0
    %1807 = vmatpush1.bf16.xpose.msra.mxu0 0
    %1808 = vmatprep.mubr.bf16.mxu0 0
    %1809 = vmatmul.mubr.bf16.gmra.mrb[0].mxu0 %v1771
    %v1810 = vpop.f32.mrb[0].mxu0
    %v1811 = vadd.f32 %v454, %v1810
    %v1812 = vpop.f32.mrb[0].mxu0
    %v1813 = vpop.f32.mrb[0].mxu0
    %v1814 = vadd.f32 %v452, %v1813
    %v1815 = vpop.f32.mrb[0].mxu0
    %1816 = vdwg.mxu0
    %v1817 = vsel %vm753, %v1811, -inf
    %1818 = vmax.xlane.f32.xlu0 %v1817
    %v1819 = vpop.xlane.xlu0 %1818
    %v1820 = vsel %vm757, %v1814, -inf
    %1821 = vmax.xlane.f32.xlu0 %v1820
    %v1822 = vpop.xlane.xlu0 %1821
    %v1823 = vsub.f32 %v1811, %v1819
    %v1824 = vsub.f32 %v1814, %v1822
    %v1825 = vmul.f32 %v1823, 1.442695
    %v1826 = vpow.pop %v1825
    %v1827 = vmul.f32 %v1824, 1.442695
    %v1828 = vpow.pop %v1827
    %v1829 = vsel %vm753, %v1826, 0.0
    %1830 = vadd.xlane.f32.xlu0 %v1829
    %v1831 = vpop.xlane.xlu0 %1830
    %v1832 = vsel %vm757, %v1828, 0.0
    %1833 = vadd.xlane.f32.xlu0 %v1832
    %v1834 = vpop.xlane.xlu0 %1833
    %v1835 = vrcp.pop %v1831
    %v1836 = vrcp.pop %v1834
    %v1837 = vmul.f32 %v1826, %v1835
    %v1838 = vmul.f32 %v1828, %v1836
    %v1839 = vpack.c.bf16 %v1838, %v1837
    %v1840 = vpack.c.bf16 %v1765, %v1762
    %v1842 = vsel %vm753, %v1839, 0
    %v1845 = vsel %vm437, %v1840, 0
    %1847 = vmatprep.subr.bf16.mxu0 0
    %1848 = vmatpush1.bf16.msra.mxu0 %v1845
    %1849 = vmatprep.subr.bf16.mxu0 0
    %1850 = vmatpush1.bf16.msra.mxu0 0
    %1851 = vmatprep.subr.bf16.mxu0 0
    %1852 = vmatpush1.bf16.msra.mxu0 0
    %1853 = vmatprep.subr.bf16.mxu0 0
    %1854 = vmatpush1.bf16.msra.mxu0 0
    %1855 = vmatprep.subr.bf16.mxu0 0
    %1856 = vmatpush1.bf16.msra.mxu0 0
    %1857 = vmatprep.subr.bf16.mxu0 0
    %1858 = vmatpush1.bf16.msra.mxu0 0
    %1859 = vmatprep.subr.bf16.mxu0 0
    %1860 = vmatpush1.bf16.msra.mxu0 0
    %1861 = vmatprep.subr.bf16.mxu0 0
    %1862 = vmatpush1.bf16.msra.mxu0 0
    %1863 = vmatprep.subr.bf16.mxu0 0
    %1864 = vmatpush1.bf16.msra.mxu0 0
    %1865 = vmatprep.subr.bf16.mxu0 0
    %1866 = vmatpush1.bf16.msra.mxu0 0
    %1867 = vmatprep.subr.bf16.mxu0 0
    %1868 = vmatpush1.bf16.msra.mxu0 0
    %1869 = vmatprep.subr.bf16.mxu0 0
    %1870 = vmatpush1.bf16.msra.mxu0 0
    %1871 = vmatprep.subr.bf16.mxu0 0
    %1872 = vmatpush1.bf16.msra.mxu0 0
    %1873 = vmatprep.subr.bf16.mxu0 0
    %1874 = vmatpush1.bf16.msra.mxu0 0
    %1875 = vmatprep.subr.bf16.mxu0 0
    %1876 = vmatpush1.bf16.msra.mxu0 0
    %1877 = vmatprep.subr.bf16.mxu0 0
    %1878 = vmatpush1.bf16.msra.mxu0 0
    %1879 = vmatprep.mubr.bf16.mxu0 0
    %1880 = vmatmul.mubr.bf16.gmra.mrb[0].mxu0 %v1842
    %v1881 = vpop.f32.mrb[0].mxu0
    %v1882 = vadd.f32 0.0, %v1881
    %v1883 = vpop.f32.mrb[0].mxu0
    %v1884 = vpop.f32.mrb[0].mxu0
    %v1885 = vadd.f32 0.0, %v1884
    %v1886 = vpop.f32.mrb[0].mxu0
    %1887 = vdwg.mxu0
    %1889 = vrot.lane.b32.xlu0 %v1768, 120
    %v1890 = vpop.permute.xlu0 %1889
    %1892 = vrot.lane.b32.xlu0 %v1769, 120
    %v1893 = vpop.permute.xlu0 %1892
    %v1895 = vsel %vm705, %v1890, 0
    %v1898 = vsel %vm705, %v1893, 0
    %1900 = vmatprep.subr.bf16.mxu0 0
    %1901 = vmatpush1.bf16.xpose.msra.mxu0 %v1898
    %1902 = vmatprep.subr.bf16.mxu0 0
    %1903 = vmatpush1.bf16.xpose.msra.mxu0 0
    %1904 = vmatprep.subr.bf16.mxu0 0
    %1905 = vmatpush1.bf16.xpose.msra.mxu0 0
    %1906 = vmatprep.subr.bf16.mxu0 0
    %1907 = vmatpush1.bf16.xpose.msra.mxu0 0
    %1908 = vmatprep.subr.bf16.mxu0 0
    %1909 = vmatpush1.bf16.xpose.msra.mxu0 0
    %1910 = vmatprep.subr.bf16.mxu0 0
    %1911 = vmatpush1.bf16.xpose.msra.mxu0 0
    %1912 = vmatprep.subr.bf16.mxu0 0
    %1913 = vmatpush1.bf16.xpose.msra.mxu0 0
    %1914 = vmatprep.subr.bf16.mxu0 0
    %1915 = vmatpush1.bf16.xpose.msra.mxu0 0
    %1916 = vmatprep.subr.bf16.mxu0 0
    %1917 = vmatpush1.bf16.xpose.msra.mxu0 0
    %1918 = vmatprep.subr.bf16.mxu0 0
    %1919 = vmatpush1.bf16.xpose.msra.mxu0 0
    %1920 = vmatprep.subr.bf16.mxu0 0
    %1921 = vmatpush1.bf16.xpose.msra.mxu0 0
    %1922 = vmatprep.subr.bf16.mxu0 0
    %1923 = vmatpush1.bf16.xpose.msra.mxu0 0
    %1924 = vmatprep.subr.bf16.mxu0 0
    %1925 = vmatpush1.bf16.xpose.msra.mxu0 0
    %1926 = vmatprep.subr.bf16.mxu0 0
    %1927 = vmatpush1.bf16.xpose.msra.mxu0 0
    %1928 = vmatprep.subr.bf16.mxu0 0
    %1929 = vmatpush1.bf16.xpose.msra.mxu0 0
    %1930 = vmatprep.subr.bf16.mxu0 0
    %1931 = vmatpush1.bf16.xpose.msra.mxu0 0
    %1932 = vmatprep.mubr.bf16.mxu0 0
    %1933 = vmatmul.mubr.bf16.gmra.mrb[0].mxu0 %v1895
    %v1934 = vpop.f32.mrb[0].mxu0
    %v1935 = vadd.f32 %v454, %v1934
    %v1936 = vpop.f32.mrb[0].mxu0
    %v1937 = vpop.f32.mrb[0].mxu0
    %v1938 = vadd.f32 %v452, %v1937
    %v1939 = vpop.f32.mrb[0].mxu0
    %1940 = vdwg.mxu0
    %v1941 = vsel %vm753, %v1935, -inf
    %1942 = vmax.xlane.f32.xlu0 %v1941
    %v1943 = vpop.xlane.xlu0 %1942
    %v1944 = vsel %vm757, %v1938, -inf
    %1945 = vmax.xlane.f32.xlu0 %v1944
    %v1946 = vpop.xlane.xlu0 %1945
    %v1947 = vsub.f32 %v1935, %v1943
    %v1948 = vsub.f32 %v1938, %v1946
    %v1949 = vmul.f32 %v1947, 1.442695
    %v1950 = vpow.pop %v1949
    %v1951 = vmul.f32 %v1948, 1.442695
    %v1952 = vpow.pop %v1951
    %v1953 = vsel %vm753, %v1950, 0.0
    %1954 = vadd.xlane.f32.xlu0 %v1953
    %v1955 = vpop.xlane.xlu0 %1954
    %v1956 = vsel %vm757, %v1952, 0.0
    %1957 = vadd.xlane.f32.xlu0 %v1956
    %v1958 = vpop.xlane.xlu0 %1957
    %v1959 = vrcp.pop %v1955
    %v1960 = vrcp.pop %v1958
    %v1961 = vmul.f32 %v1950, %v1959
    %v1962 = vmul.f32 %v1952, %v1960
    %v1963 = vpack.c.bf16 %v1962, %v1961
    %1965 = vrot.lane.b32.xlu0 %v1840, 120
    %v1966 = vpop.permute.xlu0 %1965
    %v1968 = vsel %vm753, %v1963, 0
    %v1971 = vsel %vm437, %v1966, 0
    %1973 = vmatprep.subr.bf16.mxu0 0
    %1974 = vmatpush1.bf16.msra.mxu0 %v1971
    %1975 = vmatprep.subr.bf16.mxu0 0
    %1976 = vmatpush1.bf16.msra.mxu0 0
    %1977 = vmatprep.subr.bf16.mxu0 0
    %1978 = vmatpush1.bf16.msra.mxu0 0
    %1979 = vmatprep.subr.bf16.mxu0 0
    %1980 = vmatpush1.bf16.msra.mxu0 0
    %1981 = vmatprep.subr.bf16.mxu0 0
    %1982 = vmatpush1.bf16.msra.mxu0 0
    %1983 = vmatprep.subr.bf16.mxu0 0
    %1984 = vmatpush1.bf16.msra.mxu0 0
    %1985 = vmatprep.subr.bf16.mxu0 0
    %1986 = vmatpush1.bf16.msra.mxu0 0
    %1987 = vmatprep.subr.bf16.mxu0 0
    %1988 = vmatpush1.bf16.msra.mxu0 0
    %1989 = vmatprep.subr.bf16.mxu0 0
    %1990 = vmatpush1.bf16.msra.mxu0 0
    %1991 = vmatprep.subr.bf16.mxu0 0
    %1992 = vmatpush1.bf16.msra.mxu0 0
    %1993 = vmatprep.subr.bf16.mxu0 0
    %1994 = vmatpush1.bf16.msra.mxu0 0
    %1995 = vmatprep.subr.bf16.mxu0 0
    %1996 = vmatpush1.bf16.msra.mxu0 0
    %1997 = vmatprep.subr.bf16.mxu0 0
    %1998 = vmatpush1.bf16.msra.mxu0 0
    %1999 = vmatprep.subr.bf16.mxu0 0
    %2000 = vmatpush1.bf16.msra.mxu0 0
    %2001 = vmatprep.subr.bf16.mxu0 0
    %2002 = vmatpush1.bf16.msra.mxu0 0
    %2003 = vmatprep.subr.bf16.mxu0 0
    %2004 = vmatpush1.bf16.msra.mxu0 0
    %2005 = vmatprep.mubr.bf16.mxu0 0
    %2006 = vmatmul.mubr.bf16.gmra.mrb[0].mxu0 %v1968
    %v2007 = vpop.f32.mrb[0].mxu0
    %v2008 = vadd.f32 0.0, %v2007
    %v2009 = vpop.f32.mrb[0].mxu0
    %v2010 = vpop.f32.mrb[0].mxu0
    %v2011 = vadd.f32 0.0, %v2010
    %v2012 = vpop.f32.mrb[0].mxu0
    %2013 = vdwg.mxu0
    %2014 = vrot.lane.b32.xlu0 %v1768, 112
    %v2015 = vpop.permute.xlu0 %2014
    %2016 = vrot.lane.b32.xlu0 %v1769, 112
    %v2017 = vpop.permute.xlu0 %2016
    %v2019 = vsel %vm705, %v2015, 0
    %v2022 = vsel %vm705, %v2017, 0
    %2024 = vmatprep.subr.bf16.mxu0 0
    %2025 = vmatpush1.bf16.xpose.msra.mxu0 %v2022
    %2026 = vmatprep.subr.bf16.mxu0 0
    %2027 = vmatpush1.bf16.xpose.msra.mxu0 0
    %2028 = vmatprep.subr.bf16.mxu0 0
    %2029 = vmatpush1.bf16.xpose.msra.mxu0 0
    %2030 = vmatprep.subr.bf16.mxu0 0
    %2031 = vmatpush1.bf16.xpose.msra.mxu0 0
    %2032 = vmatprep.subr.bf16.mxu0 0
    %2033 = vmatpush1.bf16.xpose.msra.mxu0 0
    %2034 = vmatprep.subr.bf16.mxu0 0
    %2035 = vmatpush1.bf16.xpose.msra.mxu0 0
    %2036 = vmatprep.subr.bf16.mxu0 0
    %2037 = vmatpush1.bf16.xpose.msra.mxu0 0
    %2038 = vmatprep.subr.bf16.mxu0 0
    %2039 = vmatpush1.bf16.xpose.msra.mxu0 0
    %2040 = vmatprep.subr.bf16.mxu0 0
    %2041 = vmatpush1.bf16.xpose.msra.mxu0 0
    %2042 = vmatprep.subr.bf16.mxu0 0
    %2043 = vmatpush1.bf16.xpose.msra.mxu0 0
    %2044 = vmatprep.subr.bf16.mxu0 0
    %2045 = vmatpush1.bf16.xpose.msra.mxu0 0
    %2046 = vmatprep.subr.bf16.mxu0 0
    %2047 = vmatpush1.bf16.xpose.msra.mxu0 0
    %2048 = vmatprep.subr.bf16.mxu0 0
    %2049 = vmatpush1.bf16.xpose.msra.mxu0 0
    %2050 = vmatprep.subr.bf16.mxu0 0
    %2051 = vmatpush1.bf16.xpose.msra.mxu0 0
    %2052 = vmatprep.subr.bf16.mxu0 0
    %2053 = vmatpush1.bf16.xpose.msra.mxu0 0
    %2054 = vmatprep.subr.bf16.mxu0 0
    %2055 = vmatpush1.bf16.xpose.msra.mxu0 0
    %2056 = vmatprep.mubr.bf16.mxu0 0
    %2057 = vmatmul.mubr.bf16.gmra.mrb[0].mxu0 %v2019
    %v2058 = vpop.f32.mrb[0].mxu0
    %v2059 = vadd.f32 %v454, %v2058
    %v2060 = vpop.f32.mrb[0].mxu0
    %v2061 = vpop.f32.mrb[0].mxu0
    %v2062 = vadd.f32 %v452, %v2061
    %v2063 = vpop.f32.mrb[0].mxu0
    %2064 = vdwg.mxu0
    %v2065 = vsel %vm753, %v2059, -inf
    %2066 = vmax.xlane.f32.xlu0 %v2065
    %v2067 = vpop.xlane.xlu0 %2066
    %v2068 = vsel %vm757, %v2062, -inf
    %2069 = vmax.xlane.f32.xlu0 %v2068
    %v2070 = vpop.xlane.xlu0 %2069
    %v2071 = vsub.f32 %v2059, %v2067
    %v2072 = vsub.f32 %v2062, %v2070
    %v2073 = vmul.f32 %v2071, 1.442695
    %v2074 = vpow.pop %v2073
    %v2075 = vmul.f32 %v2072, 1.442695
    %v2076 = vpow.pop %v2075
    %v2077 = vsel %vm753, %v2074, 0.0
    %2078 = vadd.xlane.f32.xlu0 %v2077
    %v2079 = vpop.xlane.xlu0 %2078
    %v2080 = vsel %vm757, %v2076, 0.0
    %2081 = vadd.xlane.f32.xlu0 %v2080
    %v2082 = vpop.xlane.xlu0 %2081
    %v2083 = vrcp.pop %v2079
    %v2084 = vrcp.pop %v2082
    %v2085 = vmul.f32 %v2074, %v2083
    %v2086 = vmul.f32 %v2076, %v2084
    %v2087 = vpack.c.bf16 %v2086, %v2085
    %2088 = vrot.lane.b32.xlu0 %v1840, 112
    %v2089 = vpop.permute.xlu0 %2088
    %v2091 = vsel %vm753, %v2087, 0
    %v2094 = vsel %vm437, %v2089, 0
    %2096 = vmatprep.subr.bf16.mxu0 0
    %2097 = vmatpush1.bf16.msra.mxu0 %v2094
    %2098 = vmatprep.subr.bf16.mxu0 0
    %2099 = vmatpush1.bf16.msra.mxu0 0
    %2100 = vmatprep.subr.bf16.mxu0 0
    %2101 = vmatpush1.bf16.msra.mxu0 0
    %2102 = vmatprep.subr.bf16.mxu0 0
    %2103 = vmatpush1.bf16.msra.mxu0 0
    %2104 = vmatprep.subr.bf16.mxu0 0
    %2105 = vmatpush1.bf16.msra.mxu0 0
    %2106 = vmatprep.subr.bf16.mxu0 0
    %2107 = vmatpush1.bf16.msra.mxu0 0
    %2108 = vmatprep.subr.bf16.mxu0 0
    %2109 = vmatpush1.bf16.msra.mxu0 0
    %2110 = vmatprep.subr.bf16.mxu0 0
    %2111 = vmatpush1.bf16.msra.mxu0 0
    %2112 = vmatprep.subr.bf16.mxu0 0
    %2113 = vmatpush1.bf16.msra.mxu0 0
    %2114 = vmatprep.subr.bf16.mxu0 0
    %2115 = vmatpush1.bf16.msra.mxu0 0
    %2116 = vmatprep.subr.bf16.mxu0 0
    %2117 = vmatpush1.bf16.msra.mxu0 0
    %2118 = vmatprep.subr.bf16.mxu0 0
    %2119 = vmatpush1.bf16.msra.mxu0 0
    %2120 = vmatprep.subr.bf16.mxu0 0
    %2121 = vmatpush1.bf16.msra.mxu0 0
    %2122 = vmatprep.subr.bf16.mxu0 0
    %2123 = vmatpush1.bf16.msra.mxu0 0
    %2124 = vmatprep.subr.bf16.mxu0 0
    %2125 = vmatpush1.bf16.msra.mxu0 0
    %2126 = vmatprep.subr.bf16.mxu0 0
    %2127 = vmatpush1.bf16.msra.mxu0 0
    %2128 = vmatprep.mubr.bf16.mxu0 0
    %2129 = vmatmul.mubr.bf16.gmra.mrb[0].mxu0 %v2091
    %v2130 = vpop.f32.mrb[0].mxu0
    %v2131 = vadd.f32 0.0, %v2130
    %v2132 = vpop.f32.mrb[0].mxu0
    %v2133 = vpop.f32.mrb[0].mxu0
    %v2134 = vadd.f32 0.0, %v2133
    %v2135 = vpop.f32.mrb[0].mxu0
    %2136 = vdwg.mxu0
    %2137 = vrot.lane.b32.xlu0 %v1768, 104
    %v2138 = vpop.permute.xlu0 %2137
    %2139 = vrot.lane.b32.xlu0 %v1769, 104
    %v2140 = vpop.permute.xlu0 %2139
    %v2142 = vsel %vm705, %v2138, 0
    %v2145 = vsel %vm705, %v2140, 0
    %2147 = vmatprep.subr.bf16.mxu0 0
    %2148 = vmatpush1.bf16.xpose.msra.mxu0 %v2145
    %2149 = vmatprep.subr.bf16.mxu0 0
    %2150 = vmatpush1.bf16.xpose.msra.mxu0 0
    %2151 = vmatprep.subr.bf16.mxu0 0
    %2152 = vmatpush1.bf16.xpose.msra.mxu0 0
    %2153 = vmatprep.subr.bf16.mxu0 0
    %2154 = vmatpush1.bf16.xpose.msra.mxu0 0
    %2155 = vmatprep.subr.bf16.mxu0 0
    %2156 = vmatpush1.bf16.xpose.msra.mxu0 0
    %2157 = vmatprep.subr.bf16.mxu0 0
    %2158 = vmatpush1.bf16.xpose.msra.mxu0 0
    %2159 = vmatprep.subr.bf16.mxu0 0
    %2160 = vmatpush1.bf16.xpose.msra.mxu0 0
    %2161 = vmatprep.subr.bf16.mxu0 0
    %2162 = vmatpush1.bf16.xpose.msra.mxu0 0
    %2163 = vmatprep.subr.bf16.mxu0 0
    %2164 = vmatpush1.bf16.xpose.msra.mxu0 0
    %2165 = vmatprep.subr.bf16.mxu0 0
    %2166 = vmatpush1.bf16.xpose.msra.mxu0 0
    %2167 = vmatprep.subr.bf16.mxu0 0
    %2168 = vmatpush1.bf16.xpose.msra.mxu0 0
    %2169 = vmatprep.subr.bf16.mxu0 0
    %2170 = vmatpush1.bf16.xpose.msra.mxu0 0
    %2171 = vmatprep.subr.bf16.mxu0 0
    %2172 = vmatpush1.bf16.xpose.msra.mxu0 0
    %2173 = vmatprep.subr.bf16.mxu0 0
    %2174 = vmatpush1.bf16.xpose.msra.mxu0 0
    %2175 = vmatprep.subr.bf16.mxu0 0
    %2176 = vmatpush1.bf16.xpose.msra.mxu0 0
    %2177 = vmatprep.subr.bf16.mxu0 0
    %2178 = vmatpush1.bf16.xpose.msra.mxu0 0
    %2179 = vmatprep.mubr.bf16.mxu0 0
    %2180 = vmatmul.mubr.bf16.gmra.mrb[0].mxu0 %v2142
    %v2181 = vpop.f32.mrb[0].mxu0
    %v2182 = vadd.f32 %v454, %v2181
    %v2183 = vpop.f32.mrb[0].mxu0
    %v2184 = vpop.f32.mrb[0].mxu0
    %v2185 = vadd.f32 %v452, %v2184
    %v2186 = vpop.f32.mrb[0].mxu0
    %2187 = vdwg.mxu0
    %v2188 = vsel %vm753, %v2182, -inf
    %2189 = vmax.xlane.f32.xlu0 %v2188
    %v2190 = vpop.xlane.xlu0 %2189
    %v2191 = vsel %vm757, %v2185, -inf
    %2192 = vmax.xlane.f32.xlu0 %v2191
    %v2193 = vpop.xlane.xlu0 %2192
    %v2194 = vsub.f32 %v2182, %v2190
    %v2195 = vsub.f32 %v2185, %v2193
    %v2196 = vmul.f32 %v2194, 1.442695
    %v2197 = vpow.pop %v2196
    %v2198 = vmul.f32 %v2195, 1.442695
    %v2199 = vpow.pop %v2198
    %v2200 = vsel %vm753, %v2197, 0.0
    %2201 = vadd.xlane.f32.xlu0 %v2200
    %v2202 = vpop.xlane.xlu0 %2201
    %v2203 = vsel %vm757, %v2199, 0.0
    %2204 = vadd.xlane.f32.xlu0 %v2203
    %v2205 = vpop.xlane.xlu0 %2204
    %v2206 = vrcp.pop %v2202
    %v2207 = vrcp.pop %v2205
    %v2208 = vmul.f32 %v2197, %v2206
    %v2209 = vmul.f32 %v2199, %v2207
    %v2210 = vpack.c.bf16 %v2209, %v2208
    %2211 = vrot.lane.b32.xlu0 %v1840, 104
    %v2212 = vpop.permute.xlu0 %2211
    %v2214 = vsel %vm753, %v2210, 0
    %v2217 = vsel %vm437, %v2212, 0
    %2219 = vmatprep.subr.bf16.mxu0 0
    %2220 = vmatpush1.bf16.msra.mxu0 %v2217
    %2221 = vmatprep.subr.bf16.mxu0 0
    %2222 = vmatpush1.bf16.msra.mxu0 0
    %2223 = vmatprep.subr.bf16.mxu0 0
    %2224 = vmatpush1.bf16.msra.mxu0 0
    %2225 = vmatprep.subr.bf16.mxu0 0
    %2226 = vmatpush1.bf16.msra.mxu0 0
    %2227 = vmatprep.subr.bf16.mxu0 0
    %2228 = vmatpush1.bf16.msra.mxu0 0
    %2229 = vmatprep.subr.bf16.mxu0 0
    %2230 = vmatpush1.bf16.msra.mxu0 0
    %2231 = vmatprep.subr.bf16.mxu0 0
    %2232 = vmatpush1.bf16.msra.mxu0 0
    %2233 = vmatprep.subr.bf16.mxu0 0
    %2234 = vmatpush1.bf16.msra.mxu0 0
    %2235 = vmatprep.subr.bf16.mxu0 0
    %2236 = vmatpush1.bf16.msra.mxu0 0
    %2237 = vmatprep.subr.bf16.mxu0 0
    %2238 = vmatpush1.bf16.msra.mxu0 0
    %2239 = vmatprep.subr.bf16.mxu0 0
    %2240 = vmatpush1.bf16.msra.mxu0 0
    %2241 = vmatprep.subr.bf16.mxu0 0
    %2242 = vmatpush1.bf16.msra.mxu0 0
    %2243 = vmatprep.subr.bf16.mxu0 0
    %2244 = vmatpush1.bf16.msra.mxu0 0
    %2245 = vmatprep.subr.bf16.mxu0 0
    %2246 = vmatpush1.bf16.msra.mxu0 0
    %2247 = vmatprep.subr.bf16.mxu0 0
    %2248 = vmatpush1.bf16.msra.mxu0 0
    %2249 = vmatprep.subr.bf16.mxu0 0
    %2250 = vmatpush1.bf16.msra.mxu0 0
    %2251 = vmatprep.mubr.bf16.mxu0 0
    %2252 = vmatmul.mubr.bf16.gmra.mrb[0].mxu0 %v2214
    %v2253 = vpop.f32.mrb[0].mxu0
    %v2254 = vadd.f32 0.0, %v2253
    %v2255 = vpop.f32.mrb[0].mxu0
    %v2256 = vpop.f32.mrb[0].mxu0
    %v2257 = vadd.f32 0.0, %v2256
    %v2258 = vpop.f32.mrb[0].mxu0
    %2259 = vdwg.mxu0
    %2262 = vrot.lane.b32.xlu0 %v2008, 8
    %v2263 = vpop.permute.xlu0 %2262
    %2264 = vrot.lane.b32.xlu0 %v2011, 8
    %v2265 = vpop.permute.xlu0 %2264
    %2270 = vrot.lane.b32.xlu0 %v2131, 16
    %v2271 = vpop.permute.xlu0 %2270
    %2272 = vrot.lane.b32.xlu0 %v2134, 16
    %v2273 = vpop.permute.xlu0 %2272
    %2278 = vrot.lane.b32.xlu0 %v2254, 24
    %v2279 = vpop.permute.xlu0 %2278
    %2280 = vrot.lane.b32.xlu0 %v2257, 24
    %v2281 = vpop.permute.xlu0 %2280
    %v2284 = vsel %vm705, %v1882, %v2263
    %v2285 = vsel %vm705, %v1885, %v2265
    %v2286 = vsel %vm1224, %v2284, %v2271
    %v2287 = vsel %vm1224, %v2285, %v2273
    %v2288 = vsel %vm1227, %v2286, %v2279
    %v2289 = vsel %vm1227, %v2287, %v2281
    %v2290 = vpack.c.bf16 %v2289, %v2288
    %v2292 = vlaneseq
    %v2293 = vshrl.u32 %v2292, 7
    %v2294 = vsub.s32 0, %v2293
    %v2295 = vrot.slane %v1586, %v2294
    %v2301 = vunpack.c.l.b16 %v1575
    %v2302 = vunpack.c.l.b16 %v1576
    %v2303 = vunpack.c.l.b16 %v1577
    %v2304 = vunpack.c.l.b16 %v1578
    %v2305 = vpack.c.b16 %v2302, %v2301
    %v2306 = vpack.c.b16 %v2304, %v2303
    %v2310 = vsel %vm457, %v2290, 0
    %2312 = vmatprep.subr.bf16.mxu0 0
    %2313 = vmatpush1.bf16.msra.mxu0 %v2305
    %2314 = vmatprep.subr.bf16.mxu0 0
    %2315 = vmatpush1.bf16.msra.mxu0 %v2306
    %2316 = vmatprep.subr.bf16.mxu0 0
    %2317 = vmatpush1.bf16.msra.mxu0 0
    %2318 = vmatprep.subr.bf16.mxu0 0
    %2319 = vmatpush1.bf16.msra.mxu0 0
    %2320 = vmatprep.subr.bf16.mxu0 0
    %2321 = vmatpush1.bf16.msra.mxu0 0
    %2322 = vmatprep.subr.bf16.mxu0 0
    %2323 = vmatpush1.bf16.msra.mxu0 0
    %2324 = vmatprep.subr.bf16.mxu0 0
    %2325 = vmatpush1.bf16.msra.mxu0 0
    %2326 = vmatprep.subr.bf16.mxu0 0
    %2327 = vmatpush1.bf16.msra.mxu0 0
    %2328 = vmatprep.subr.bf16.mxu0 0
    %2329 = vmatpush1.bf16.msra.mxu0 0
    %2330 = vmatprep.subr.bf16.mxu0 0
    %2331 = vmatpush1.bf16.msra.mxu0 0
    %2332 = vmatprep.subr.bf16.mxu0 0
    %2333 = vmatpush1.bf16.msra.mxu0 0
    %2334 = vmatprep.subr.bf16.mxu0 0
    %2335 = vmatpush1.bf16.msra.mxu0 0
    %2336 = vmatprep.subr.bf16.mxu0 0
    %2337 = vmatpush1.bf16.msra.mxu0 0
    %2338 = vmatprep.subr.bf16.mxu0 0
    %2339 = vmatpush1.bf16.msra.mxu0 0
    %2340 = vmatprep.subr.bf16.mxu0 0
    %2341 = vmatpush1.bf16.msra.mxu0 0
    %2342 = vmatprep.subr.bf16.mxu0 0
    %2343 = vmatpush1.bf16.msra.mxu0 0
    %2344 = vmatprep.mubr.bf16.mxu0 0
    %2345 = vmatmul.mubr.bf16.gmra.mrb[0].mxu0 %v2310
    %v2346 = vpop.f32.mrb[0].mxu0
    %v2347 = vadd.f32 %v2295, %v2346
    %v2348 = vpop.f32.mrb[0].mxu0
    %v2349 = vpop.f32.mrb[0].mxu0
    %v2350 = vadd.f32 %v2295, %v2349
    %v2351 = vpop.f32.mrb[0].mxu0
    %2352 = vdwg.mxu0
    %v2353 = vadd.f32 %v1511, %v2347
    %v2354 = vadd.f32 %v1512, %v2350
    %s2355 = scalar_lea.vmem %s23, 1
    %v2356 = vld [vmem:[%s2355] sm:$0x1]
    %s2357 = scalar_lea.vmem %s25, 1
    %v2358 = vld [vmem:[%s2357] sm:$0x1]
    %v2359 = vsel %vm457, %v2353, 0.0
    %2360 = vadd.xlane.f32.xlu0 %v2359
    %v2361 = vpop.xlane.xlu0 %2360
    %v2362 = vsel %vm461, %v2354, 0.0
    %2363 = vadd.xlane.f32.xlu0 %v2362
    %v2364 = vpop.xlane.xlu0 %2363
    %v2365 = vmul.f32 %v2361, %v465
    %v2366 = vmul.f32 %v2364, %v465
    %v2367 = vsub.f32 %v2353, %v2365
    %v2368 = vsub.f32 %v2354, %v2366
    %v2369 = vmul.f32 %v2367, %v2367
    %v2370 = vmul.f32 %v2368, %v2368
    %v2371 = vsel %vm457, %v2369, 0.0
    %2372 = vadd.xlane.f32.xlu0 %v2371
    %v2373 = vpop.xlane.xlu0 %2372
    %v2374 = vsel %vm461, %v2370, 0.0
    %2375 = vadd.xlane.f32.xlu0 %v2374
    %v2376 = vpop.xlane.xlu0 %2375
    %v2377 = vmul.f32 %v2373, %v465
    %v2378 = vmul.f32 %v2376, %v465
    %v2379 = vadd.f32 %v2377, 1e-05
    %v2380 = vadd.f32 %v2378, 1e-05
    %v2381 = vrsqrt.pop %v2379
    %v2382 = vrsqrt.pop %v2380
    %v2383 = vmul.f32 %v2367, %v2381
    %v2384 = vmul.f32 %v2368, %v2382
    %v2386 = vlaneseq
    %v2387 = vshrl.u32 %v2386, 7
    %v2388 = vsub.s32 0, %v2387
    %v2389 = vrot.slane %v2356, %v2388
    %v2391 = vmul.f32 %v2383, %v2389
    %v2392 = vmul.f32 %v2384, %v2389
    %v2394 = vlaneseq
    %v2395 = vshrl.u32 %v2394, 7
    %v2396 = vsub.s32 0, %v2395
    %v2397 = vrot.slane %v2358, %v2396
    %v2399 = vadd.f32 %v2391, %v2397
    %v2400 = vadd.f32 %v2392, %v2397
    %s2401 = scalar_lea.vmem %s43, 16
    %v2402 = vld [vmem:[%s2401] sm:$0xf]
    %v2403 = vld [vmem:[%s2401 + $0x4] sm:$0xf]
    %v2404 = vld [vmem:[%s2401 + $0x8] sm:$0xf]
    %v2405 = vld [vmem:[%s2401 + $0xc] sm:$0xf]
    %v2406 = vpack.c.bf16 %v2400, %v2399
    %s2407 = scalar_lea.vmem %s45, 1
    %v2408 = vld [vmem:[%s2407] sm:$0x1]
    %v2410 = vlaneseq
    %v2411 = vshrl.u32 %v2410, 7
    %v2412 = vsub.s32 0, %v2411
    %v2413 = vrot.slane %v2408, %v2412
    %v2419 = vunpack.c.l.b16 %v2402
    %v2420 = vunpack.c.l.b16 %v2403
    %v2421 = vunpack.c.l.b16 %v2404
    %v2422 = vunpack.c.l.b16 %v2405
    %v2423 = vpack.c.b16 %v2420, %v2419
    %v2424 = vpack.c.b16 %v2422, %v2421
    %v2428 = vsel %vm457, %v2406, 0
    %2430 = vmatprep.subr.bf16.mxu0 0
    %2431 = vmatpush1.bf16.msra.mxu0 %v2423
    %2432 = vmatprep.subr.bf16.mxu0 0
    %2433 = vmatpush1.bf16.msra.mxu0 %v2424
    %2434 = vmatprep.subr.bf16.mxu0 0
    %2435 = vmatpush1.bf16.msra.mxu0 0
    %2436 = vmatprep.subr.bf16.mxu0 0
    %2437 = vmatpush1.bf16.msra.mxu0 0
    %2438 = vmatprep.subr.bf16.mxu0 0
    %2439 = vmatpush1.bf16.msra.mxu0 0
    %2440 = vmatprep.subr.bf16.mxu0 0
    %2441 = vmatpush1.bf16.msra.mxu0 0
    %2442 = vmatprep.subr.bf16.mxu0 0
    %2443 = vmatpush1.bf16.msra.mxu0 0
    %2444 = vmatprep.subr.bf16.mxu0 0
    %2445 = vmatpush1.bf16.msra.mxu0 0
    %2446 = vmatprep.subr.bf16.mxu0 0
    %2447 = vmatpush1.bf16.msra.mxu0 0
    %2448 = vmatprep.subr.bf16.mxu0 0
    %2449 = vmatpush1.bf16.msra.mxu0 0
    %2450 = vmatprep.subr.bf16.mxu0 0
    %2451 = vmatpush1.bf16.msra.mxu0 0
    %2452 = vmatprep.subr.bf16.mxu0 0
    %2453 = vmatpush1.bf16.msra.mxu0 0
    %2454 = vmatprep.subr.bf16.mxu0 0
    %2455 = vmatpush1.bf16.msra.mxu0 0
    %2456 = vmatprep.subr.bf16.mxu0 0
    %2457 = vmatpush1.bf16.msra.mxu0 0
    %2458 = vmatprep.subr.bf16.mxu0 0
    %2459 = vmatpush1.bf16.msra.mxu0 0
    %2460 = vmatprep.subr.bf16.mxu0 0
    %2461 = vmatpush1.bf16.msra.mxu0 0
    %2462 = vmatprep.mubr.bf16.mxu0 0
    %2463 = vmatmul.mubr.bf16.gmra.mrb[0].mxu0 %v2428
    %v2464 = vpop.f32.mrb[0].mxu0
    %v2465 = vadd.f32 %v2413, %v2464
    %v2466 = vpop.f32.mrb[0].mxu0
    %v2467 = vpop.f32.mrb[0].mxu0
    %v2468 = vadd.f32 %v2413, %v2467
    %v2469 = vpop.f32.mrb[0].mxu0
    %2470 = vdwg.mxu0
    %v2471 = vmul.f32 %v2465, %v2465
    %v2472 = vmul.f32 %v2468, %v2468
    %v2473 = vmul.f32 %v2465, %v2471
    %v2474 = vmul.f32 %v2468, %v2472
    %v2475 = vmul.f32 %v2473, 0.044715
    %v2476 = vmul.f32 %v2474, 0.044715
    %v2477 = vadd.f32 %v2465, %v2475
    %v2478 = vadd.f32 %v2468, %v2476
    %v2479 = vmul.f32 %v2477, 0.7978846
    %v2480 = vmul.f32 %v2478, 0.7978846
    %v2481 = vtanh.pop %v2479
    %v2482 = vtanh.pop %v2480
    %v2483 = vadd.f32 %v2481, 1.0
    %v2484 = vadd.f32 %v2482, 1.0
    %v2485 = vmul.f32 %v2483, 0.5
    %v2486 = vmul.f32 %v2484, 0.5
    %v2487 = vmul.f32 %v2465, %v2485
    %v2488 = vmul.f32 %v2468, %v2486
    %s2489 = scalar_lea.vmem %s47, 32
    %v2490 = vld [vmem:[%s2489] sm:$0xf]
    %v2491 = vld [vmem:[%s2489 + $0x4] sm:$0xf]
    %v2492 = vld [vmem:[%s2489 + $0x8] sm:$0xf]
    %v2493 = vld [vmem:[%s2489 + $0xc] sm:$0xf]
    %v2494 = vld [vmem:[%s2489 + $0x10] sm:$0xf]
    %v2495 = vld [vmem:[%s2489 + $0x14] sm:$0xf]
    %v2496 = vld [vmem:[%s2489 + $0x18] sm:$0xf]
    %v2497 = vld [vmem:[%s2489 + $0x1c] sm:$0xf]
    %v2498 = vpack.c.bf16 %v2488, %v2487
    %v2507 = vunpack.c.l.b16 %v2490
    %v2508 = vunpack.c.l.b16 %v2491
    %v2509 = vunpack.c.l.b16 %v2492
    %v2510 = vunpack.c.l.b16 %v2493
    %v2511 = vunpack.c.l.b16 %v2494
    %v2512 = vunpack.c.l.b16 %v2495
    %v2513 = vunpack.c.l.b16 %v2496
    %v2514 = vunpack.c.l.b16 %v2497
    %v2515 = vpack.c.b16 %v2508, %v2507
    %v2516 = vpack.c.b16 %v2510, %v2509
    %v2517 = vpack.c.b16 %v2512, %v2511
    %v2518 = vpack.c.b16 %v2514, %v2513
    %v2524 = vsel %vm379, %v2498, 0
    %2526 = vmatprep.subr.bf16.mxu0 0
    %2527 = vmatpush1.bf16.msra.mxu0 %v2515
    %2528 = vmatprep.subr.bf16.mxu0 0
    %2529 = vmatpush1.bf16.msra.mxu0 %v2516
    %2530 = vmatprep.subr.bf16.mxu0 0
    %2531 = vmatpush1.bf16.msra.mxu0 %v2517
    %2532 = vmatprep.subr.bf16.mxu0 0
    %2533 = vmatpush1.bf16.msra.mxu0 %v2518
    %2534 = vmatprep.subr.bf16.mxu0 0
    %2535 = vmatpush1.bf16.msra.mxu0 0
    %2536 = vmatprep.subr.bf16.mxu0 0
    %2537 = vmatpush1.bf16.msra.mxu0 0
    %2538 = vmatprep.subr.bf16.mxu0 0
    %2539 = vmatpush1.bf16.msra.mxu0 0
    %2540 = vmatprep.subr.bf16.mxu0 0
    %2541 = vmatpush1.bf16.msra.mxu0 0
    %2542 = vmatprep.subr.bf16.mxu0 0
    %2543 = vmatpush1.bf16.msra.mxu0 0
    %2544 = vmatprep.subr.bf16.mxu0 0
    %2545 = vmatpush1.bf16.msra.mxu0 0
    %2546 = vmatprep.subr.bf16.mxu0 0
    %2547 = vmatpush1.bf16.msra.mxu0 0
    %2548 = vmatprep.subr.bf16.mxu0 0
    %2549 = vmatpush1.bf16.msra.mxu0 0
    %2550 = vmatprep.subr.bf16.mxu0 0
    %2551 = vmatpush1.bf16.msra.mxu0 0
    %2552 = vmatprep.subr.bf16.mxu0 0
    %2553 = vmatpush1.bf16.msra.mxu0 0
    %2554 = vmatprep.subr.bf16.mxu0 0
    %2555 = vmatpush1.bf16.msra.mxu0 0
    %2556 = vmatprep.subr.bf16.mxu0 0
    %2557 = vmatpush1.bf16.msra.mxu0 0
    %2558 = vmatprep.mubr.bf16.mxu0 0
    %2559 = vmatmul.mubr.bf16.gmra.mrb[0].mxu0 %v2524
    %v2560 = vpop.f32.mrb[0].mxu0
    %v2561 = vadd.f32 0.0, %v2560
    %v2562 = vpop.f32.mrb[0].mxu0
    %v2563 = vpop.f32.mrb[0].mxu0
    %v2564 = vadd.f32 0.0, %v2563
    %v2565 = vpop.f32.mrb[0].mxu0
    %2566 = vdwg.mxu0
    %v2567 = vadd.f32 %v2353, %v2561
    %v2568 = vadd.f32 %v2354, %v2564
    %s2569 = scalar_lea.vmem %s49, 1
    %v2570 = vld [vmem:[%s2569] sm:$0x1]
    %v2572 = vlaneseq
    %v2573 = vshrl.u32 %v2572, 7
    %v2574 = vsub.s32 0, %v2573
    %v2575 = vrot.slane %v2570, %v2574
    %v2577 = vadd.f32 %v2567, %v2575
    %v2578 = vadd.f32 %v2568, %v2575
    %v2579 = vld [vmem:[%s53] sm:$0x1]
    %v2580 = vld [vmem:[%s55] sm:$0x1]
    %v2581 = vsel %vm457, %v2577, 0.0
    %2582 = vadd.xlane.f32.xlu0 %v2581
    %v2583 = vpop.xlane.xlu0 %2582
    %v2584 = vsel %vm461, %v2578, 0.0
    %2585 = vadd.xlane.f32.xlu0 %v2584
    %v2586 = vpop.xlane.xlu0 %2585
    %v2587 = vmul.f32 %v2583, %v465
    %v2588 = vmul.f32 %v2586, %v465
    %v2589 = vsub.f32 %v2577, %v2587
    %v2590 = vsub.f32 %v2578, %v2588
    %v2591 = vmul.f32 %v2589, %v2589
    %v2592 = vmul.f32 %v2590, %v2590
    %v2593 = vsel %vm457, %v2591, 0.0
    %2594 = vadd.xlane.f32.xlu0 %v2593
    %v2595 = vpop.xlane.xlu0 %2594
    %v2596 = vsel %vm461, %v2592, 0.0
    %2597 = vadd.xlane.f32.xlu0 %v2596
    %v2598 = vpop.xlane.xlu0 %2597
    %v2599 = vmul.f32 %v2595, %v465
    %v2600 = vmul.f32 %v2598, %v465
    %v2601 = vadd.f32 %v2599, 1e-06
    %v2602 = vadd.f32 %v2600, 1e-06
    %v2603 = vrsqrt.pop %v2601
    %v2604 = vrsqrt.pop %v2602
    %v2605 = vmul.f32 %v2589, %v2603
    %v2606 = vmul.f32 %v2590, %v2604
    %v2608 = vlaneseq
    %v2609 = vshrl.u32 %v2608, 7
    %v2610 = vsub.s32 0, %v2609
    %v2611 = vrot.slane %v2579, %v2610
    %v2613 = vmul.f32 %v2605, %v2611
    %v2614 = vmul.f32 %v2606, %v2611
    %v2616 = vlaneseq
    %v2617 = vshrl.u32 %v2616, 7
    %v2618 = vsub.s32 0, %v2617
    %v2619 = vrot.slane %v2580, %v2618
    %v2621 = vadd.f32 %v2613, %v2619
    %v2622 = vadd.f32 %v2614, %v2619
    %v2623 = vld [vmem:[%s51] sm:$0xf]
    %v2625 = vrot.slane %v2623, 4
    %vm2627 = vcmask 1043456
    %v2628 = vsel %vm2627, %v2623, %v2625
    %v2629 = vlaneseq
    %v2630 = vshrl.u32 %v2629, 7
    %v2631 = vlaneseq
    %v2632 = vand.u32 %v2631, 127
    %vm2633 = vcmp.le.s32.totalorder %v2632, %v2630
    %v2634 = vsel %vm2633, 0.0, -1e+09
    %vm2635 = vcmask 31744
    %v2636 = vsel %vm2635, %v2634, -1e+09
    %2638 = vrot.lane.b32.xlu0 %v2634, 4
    %v2639 = vpop.permute.xlu0 %2638
    %v2641 = vsel %vm2635, -1e+09, %v2639
    %v2643 = vrot.slane %v2641, 4
    %v2645 = vsel %vm2627, %v2636, %v2643
    %v2646 = vrot.slane %v450, 4
    %v2648 = vsel %vm2627, %v449, %v2646
    %s2649 = scalar_lea.vmem %s53, 1
    %v2650 = vld [vmem:[%s2649] sm:$0x1]
    %s2651 = scalar_lea.vmem %s55, 1
    %v2652 = vld [vmem:[%s2651] sm:$0x1]
    %v2653 = vsel %vm457, %v2628, 0.0
    %2654 = vadd.xlane.f32.xlu0 %v2653
    %v2655 = vpop.xlane.xlu0 %2654
    %v2656 = vmul.f32 %v2655, %v465
    %v2657 = vsub.f32 %v2628, %v2656
    %v2658 = vmul.f32 %v2657, %v2657
    %v2659 = vsel %vm457, %v2658, 0.0
    %2660 = vadd.xlane.f32.xlu0 %v2659
    %v2661 = vpop.xlane.xlu0 %2660
    %v2662 = vmul.f32 %v2661, %v465
    %v2663 = vadd.f32 %v2662, 1e-05
    %v2664 = vrsqrt.pop %v2663
    %v2665 = vmul.f32 %v2657, %v2664
    %v2667 = vlaneseq
    %v2668 = vshrl.u32 %v2667, 7
    %v2669 = vsub.s32 0, %v2668
    %v2670 = vrot.slane %v2650, %v2669
    %v2672 = vmul.f32 %v2665, %v2670
    %v2674 = vlaneseq
    %v2675 = vshrl.u32 %v2674, 7
    %v2676 = vsub.s32 0, %v2675
    %v2677 = vrot.slane %v2652, %v2676
    %v2679 = vadd.f32 %v2672, %v2677
    %v2680 = vld [vmem:[%s57] sm:$0xf]
    %v2681 = vld [vmem:[%s57 + $0x4] sm:$0xf]
    %v2682 = vld [vmem:[%s57 + $0x8] sm:$0xf]
    %v2683 = vld [vmem:[%s57 + $0xc] sm:$0xf]
    %v2684 = vld [vmem:[%s59] sm:$0xf]
    %v2685 = vld [vmem:[%s59 + $0x4] sm:$0xf]
    %v2686 = vld [vmem:[%s59 + $0x8] sm:$0xf]
    %v2687 = vld [vmem:[%s59 + $0xc] sm:$0xf]
    %v2688 = vld [vmem:[%s61] sm:$0xf]
    %v2689 = vld [vmem:[%s61 + $0x4] sm:$0xf]
    %v2690 = vld [vmem:[%s61 + $0x8] sm:$0xf]
    %v2691 = vld [vmem:[%s61 + $0xc] sm:$0xf]
    %v2692 = vld [vmem:[%s63] sm:$0xf]
    %v2693 = vld [vmem:[%s63 + $0x4] sm:$0xf]
    %v2694 = vld [vmem:[%s63 + $0x8] sm:$0xf]
    %v2695 = vld [vmem:[%s63 + $0xc] sm:$0xf]
    %v2696 = vld [vmem:[%s65] sm:$0x1]
    %v2697 = vld [vmem:[%s67] sm:$0x1]
    %v2698 = vld [vmem:[%s69] sm:$0x1]
    %v2699 = vld [vmem:[#allocation5] sm:$0x1]
    %v2700 = vpack.c.bf16 %v2679, %v2679
    %v2702 = vlaneseq
    %v2703 = vshrl.u32 %v2702, 7
    %v2704 = vsub.s32 0, %v2703
    %v2705 = vrot.slane %v2696, %v2704
    %v2711 = vunpack.c.l.b16 %v2680
    %v2712 = vunpack.c.l.b16 %v2681
    %v2713 = vunpack.c.l.b16 %v2682
    %v2714 = vunpack.c.l.b16 %v2683
    %v2715 = vpack.c.b16 %v2712, %v2711
    %v2716 = vpack.c.b16 %v2714, %v2713
    %v2720 = vsel %vm457, %v2700, 0
    %2722 = vmatprep.subr.bf16.mxu0 0
    %2723 = vmatpush1.bf16.msra.mxu0 %v2715
    %2724 = vmatprep.subr.bf16.mxu0 0
    %2725 = vmatpush1.bf16.msra.mxu0 %v2716
    %2726 = vmatprep.subr.bf16.mxu0 0
    %2727 = vmatpush1.bf16.msra.mxu0 0
    %2728 = vmatprep.subr.bf16.mxu0 0
    %2729 = vmatpush1.bf16.msra.mxu0 0
    %2730 = vmatprep.subr.bf16.mxu0 0
    %2731 = vmatpush1.bf16.msra.mxu0 0
    %2732 = vmatprep.subr.bf16.mxu0 0
    %2733 = vmatpush1.bf16.msra.mxu0 0
    %2734 = vmatprep.subr.bf16.mxu0 0
    %2735 = vmatpush1.bf16.msra.mxu0 0
    %2736 = vmatprep.subr.bf16.mxu0 0
    %2737 = vmatpush1.bf16.msra.mxu0 0
    %2738 = vmatprep.subr.bf16.mxu0 0
    %2739 = vmatpush1.bf16.msra.mxu0 0
    %2740 = vmatprep.subr.bf16.mxu0 0
    %2741 = vmatpush1.bf16.msra.mxu0 0
    %2742 = vmatprep.subr.bf16.mxu0 0
    %2743 = vmatpush1.bf16.msra.mxu0 0
    %2744 = vmatprep.subr.bf16.mxu0 0
    %2745 = vmatpush1.bf16.msra.mxu0 0
    %2746 = vmatprep.subr.bf16.mxu0 0
    %2747 = vmatpush1.bf16.msra.mxu0 0
    %2748 = vmatprep.subr.bf16.mxu0 0
    %2749 = vmatpush1.bf16.msra.mxu0 0
    %2750 = vmatprep.subr.bf16.mxu0 0
    %2751 = vmatpush1.bf16.msra.mxu0 0
    %2752 = vmatprep.subr.bf16.mxu0 0
    %2753 = vmatpush1.bf16.msra.mxu0 0
    %2754 = vmatprep.mubr.bf16.mxu0 0
    %2755 = vmatmul.mubr.bf16.gmra.mrb[0].mxu0 %v2720
    %v2756 = vpop.f32.mrb[0].mxu0
    %v2757 = vadd.f32 %v2705, %v2756
    %v2758 = vpop.f32.mrb[0].mxu0
    %v2759 = vpop.f32.mrb[0].mxu0
    %v2760 = vpop.f32.mrb[0].mxu0
    %2761 = vdwg.mxu0
    %v2763 = vlaneseq
    %v2764 = vshrl.u32 %v2763, 7
    %v2765 = vsub.s32 0, %v2764
    %v2766 = vrot.slane %v2697, %v2765
    %v2772 = vunpack.c.l.b16 %v2684
    %v2773 = vunpack.c.l.b16 %v2685
    %v2774 = vunpack.c.l.b16 %v2686
    %v2775 = vunpack.c.l.b16 %v2687
    %v2776 = vpack.c.b16 %v2773, %v2772
    %v2777 = vpack.c.b16 %v2775, %v2774
    %2780 = vmatprep.subr.bf16.mxu0 0
    %2781 = vmatpush1.bf16.msra.mxu0 %v2776
    %2782 = vmatprep.subr.bf16.mxu0 0
    %2783 = vmatpush1.bf16.msra.mxu0 %v2777
    %2784 = vmatprep.subr.bf16.mxu0 0
    %2785 = vmatpush1.bf16.msra.mxu0 0
    %2786 = vmatprep.subr.bf16.mxu0 0
    %2787 = vmatpush1.bf16.msra.mxu0 0
    %2788 = vmatprep.subr.bf16.mxu0 0
    %2789 = vmatpush1.bf16.msra.mxu0 0
    %2790 = vmatprep.subr.bf16.mxu0 0
    %2791 = vmatpush1.bf16.msra.mxu0 0
    %2792 = vmatprep.subr.bf16.mxu0 0
    %2793 = vmatpush1.bf16.msra.mxu0 0
    %2794 = vmatprep.subr.bf16.mxu0 0
    %2795 = vmatpush1.bf16.msra.mxu0 0
    %2796 = vmatprep.subr.bf16.mxu0 0
    %2797 = vmatpush1.bf16.msra.mxu0 0
    %2798 = vmatprep.subr.bf16.mxu0 0
    %2799 = vmatpush1.bf16.msra.mxu0 0
    %2800 = vmatprep.subr.bf16.mxu0 0
    %2801 = vmatpush1.bf16.msra.mxu0 0
    %2802 = vmatprep.subr.bf16.mxu0 0
    %2803 = vmatpush1.bf16.msra.mxu0 0
    %2804 = vmatprep.subr.bf16.mxu0 0
    %2805 = vmatpush1.bf16.msra.mxu0 0
    %2806 = vmatprep.subr.bf16.mxu0 0
    %2807 = vmatpush1.bf16.msra.mxu0 0
    %2808 = vmatprep.subr.bf16.mxu0 0
    %2809 = vmatpush1.bf16.msra.mxu0 0
    %2810 = vmatprep.subr.bf16.mxu0 0
    %2811 = vmatpush1.bf16.msra.mxu0 0
    %2812 = vmatprep.mubr.bf16.mxu0 0
    %2813 = vmatmul.mubr.bf16.gmra.mrb[0].mxu0 %v2720
    %v2814 = vpop.f32.mrb[0].mxu0
    %v2815 = vadd.f32 %v2766, %v2814
    %v2816 = vpop.f32.mrb[0].mxu0
    %v2817 = vpop.f32.mrb[0].mxu0
    %v2818 = vpop.f32.mrb[0].mxu0
    %2819 = vdwg.mxu0
    %v2821 = vlaneseq
    %v2822 = vshrl.u32 %v2821, 7
    %v2823 = vsub.s32 0, %v2822
    %v2824 = vrot.slane %v2698, %v2823
    %v2830 = vunpack.c.l.b16 %v2688
    %v2831 = vunpack.c.l.b16 %v2689
    %v2832 = vunpack.c.l.b16 %v2690
    %v2833 = vunpack.c.l.b16 %v2691
    %v2834 = vpack.c.b16 %v2831, %v2830
    %v2835 = vpack.c.b16 %v2833, %v2832
    %2838 = vmatprep.subr.bf16.mxu0 0
    %2839 = vmatpush1.bf16.msra.mxu0 %v2834
    %2840 = vmatprep.subr.bf16.mxu0 0
    %2841 = vmatpush1.bf16.msra.mxu0 %v2835
    %2842 = vmatprep.subr.bf16.mxu0 0
    %2843 = vmatpush1.bf16.msra.mxu0 0
    %2844 = vmatprep.subr.bf16.mxu0 0
    %2845 = vmatpush1.bf16.msra.mxu0 0
    %2846 = vmatprep.subr.bf16.mxu0 0
    %2847 = vmatpush1.bf16.msra.mxu0 0
    %2848 = vmatprep.subr.bf16.mxu0 0
    %2849 = vmatpush1.bf16.msra.mxu0 0
    %2850 = vmatprep.subr.bf16.mxu0 0
    %2851 = vmatpush1.bf16.msra.mxu0 0
    %2852 = vmatprep.subr.bf16.mxu0 0
    %2853 = vmatpush1.bf16.msra.mxu0 0
    %2854 = vmatprep.subr.bf16.mxu0 0
    %2855 = vmatpush1.bf16.msra.mxu0 0
    %2856 = vmatprep.subr.bf16.mxu0 0
    %2857 = vmatpush1.bf16.msra.mxu0 0
    %2858 = vmatprep.subr.bf16.mxu0 0
    %2859 = vmatpush1.bf16.msra.mxu0 0
    %2860 = vmatprep.subr.bf16.mxu0 0
    %2861 = vmatpush1.bf16.msra.mxu0 0
    %2862 = vmatprep.subr.bf16.mxu0 0
    %2863 = vmatpush1.bf16.msra.mxu0 0
    %2864 = vmatprep.subr.bf16.mxu0 0
    %2865 = vmatpush1.bf16.msra.mxu0 0
    %2866 = vmatprep.subr.bf16.mxu0 0
    %2867 = vmatpush1.bf16.msra.mxu0 0
    %2868 = vmatprep.subr.bf16.mxu0 0
    %2869 = vmatpush1.bf16.msra.mxu0 0
    %2870 = vmatprep.mubr.bf16.mxu0 0
    %2871 = vmatmul.mubr.bf16.gmra.mrb[0].mxu0 %v2720
    %v2872 = vpop.f32.mrb[0].mxu0
    %v2873 = vadd.f32 %v2824, %v2872
    %v2874 = vpop.f32.mrb[0].mxu0
    %v2875 = vpop.f32.mrb[0].mxu0
    %v2876 = vpop.f32.mrb[0].mxu0
    %2877 = vdwg.mxu0
    %v2878 = vpack.c.bf16 %v2757, %v2757
    %v2879 = vpack.c.bf16 %v2815, %v2815
    %v2881 = vsel %vm705, %v2878, 0
    %v2884 = vsel %vm705, %v2879, 0
    %2886 = vmatprep.subr.bf16.mxu0 0
    %2887 = vmatpush1.bf16.xpose.msra.mxu0 %v2884
    %2888 = vmatprep.subr.bf16.mxu0 0
    %2889 = vmatpush1.bf16.xpose.msra.mxu0 0
    %2890 = vmatprep.subr.bf16.mxu0 0
    %2891 = vmatpush1.bf16.xpose.msra.mxu0 0
    %2892 = vmatprep.subr.bf16.mxu0 0
    %2893 = vmatpush1.bf16.xpose.msra.mxu0 0
    %2894 = vmatprep.subr.bf16.mxu0 0
    %2895 = vmatpush1.bf16.xpose.msra.mxu0 0
    %2896 = vmatprep.subr.bf16.mxu0 0
    %2897 = vmatpush1.bf16.xpose.msra.mxu0 0
    %2898 = vmatprep.subr.bf16.mxu0 0
    %2899 = vmatpush1.bf16.xpose.msra.mxu0 0
    %2900 = vmatprep.subr.bf16.mxu0 0
    %2901 = vmatpush1.bf16.xpose.msra.mxu0 0
    %2902 = vmatprep.subr.bf16.mxu0 0
    %2903 = vmatpush1.bf16.xpose.msra.mxu0 0
    %2904 = vmatprep.subr.bf16.mxu0 0
    %2905 = vmatpush1.bf16.xpose.msra.mxu0 0
    %2906 = vmatprep.subr.bf16.mxu0 0
    %2907 = vmatpush1.bf16.xpose.msra.mxu0 0
    %2908 = vmatprep.subr.bf16.mxu0 0
    %2909 = vmatpush1.bf16.xpose.msra.mxu0 0
    %2910 = vmatprep.subr.bf16.mxu0 0
    %2911 = vmatpush1.bf16.xpose.msra.mxu0 0
    %2912 = vmatprep.subr.bf16.mxu0 0
    %2913 = vmatpush1.bf16.xpose.msra.mxu0 0
    %2914 = vmatprep.subr.bf16.mxu0 0
    %2915 = vmatpush1.bf16.xpose.msra.mxu0 0
    %2916 = vmatprep.subr.bf16.mxu0 0
    %2917 = vmatpush1.bf16.xpose.msra.mxu0 0
    %2918 = vmatprep.mubr.bf16.mxu0 0
    %2919 = vmatmul.mubr.bf16.gmra.mrb[0].mxu0 %v2881
    %v2920 = vpop.f32.mrb[0].mxu0
    %v2921 = vadd.f32 %v2645, %v2920
    %v2922 = vpop.f32.mrb[0].mxu0
    %v2923 = vpop.f32.mrb[0].mxu0
    %v2924 = vpop.f32.mrb[0].mxu0
    %2925 = vdwg.mxu0
    %v2926 = vsel %vm705, %v2921, -inf
    %2927 = vmax.xlane.f32.xlu0 %v2926
    %v2928 = vpop.xlane.xlu0 %2927
    %v2929 = vsub.f32 %v2921, %v2928
    %v2930 = vmul.f32 %v2929, 1.442695
    %v2931 = vpow.pop %v2930
    %v2932 = vsel %vm705, %v2931, 0.0
    %2933 = vadd.xlane.f32.xlu0 %v2932
    %v2934 = vpop.xlane.xlu0 %2933
    %v2935 = vrcp.pop %v2934
    %v2936 = vmul.f32 %v2931, %v2935
    %v2937 = vpack.c.bf16 %v2936, %v2936
    %v2938 = vpack.c.bf16 %v2873, %v2873
    %v2940 = vsel %vm705, %v2937, 0
    %v2943 = vsel %vm2627, %v2938, 0
    %2945 = vmatprep.subr.bf16.mxu0 0
    %2946 = vmatpush1.bf16.msra.mxu0 %v2943
    %2947 = vmatprep.subr.bf16.mxu0 0
    %2948 = vmatpush1.bf16.msra.mxu0 0
    %2949 = vmatprep.subr.bf16.mxu0 0
    %2950 = vmatpush1.bf16.msra.mxu0 0
    %2951 = vmatprep.subr.bf16.mxu0 0
    %2952 = vmatpush1.bf16.msra.mxu0 0
    %2953 = vmatprep.subr.bf16.mxu0 0
    %2954 = vmatpush1.bf16.msra.mxu0 0
    %2955 = vmatprep.subr.bf16.mxu0 0
    %2956 = vmatpush1.bf16.msra.mxu0 0
    %2957 = vmatprep.subr.bf16.mxu0 0
    %2958 = vmatpush1.bf16.msra.mxu0 0
    %2959 = vmatprep.subr.bf16.mxu0 0
    %2960 = vmatpush1.bf16.msra.mxu0 0
    %2961 = vmatprep.subr.bf16.mxu0 0
    %2962 = vmatpush1.bf16.msra.mxu0 0
    %2963 = vmatprep.subr.bf16.mxu0 0
    %2964 = vmatpush1.bf16.msra.mxu0 0
    %2965 = vmatprep.subr.bf16.mxu0 0
    %2966 = vmatpush1.bf16.msra.mxu0 0
    %2967 = vmatprep.subr.bf16.mxu0 0
    %2968 = vmatpush1.bf16.msra.mxu0 0
    %2969 = vmatprep.subr.bf16.mxu0 0
    %2970 = vmatpush1.bf16.msra.mxu0 0
    %2971 = vmatprep.subr.bf16.mxu0 0
    %2972 = vmatpush1.bf16.msra.mxu0 0
    %2973 = vmatprep.subr.bf16.mxu0 0
    %2974 = vmatpush1.bf16.msra.mxu0 0
    %2975 = vmatprep.subr.bf16.mxu0 0
    %2976 = vmatpush1.bf16.msra.mxu0 0
    %2977 = vmatprep.mubr.bf16.mxu0 0
    %2978 = vmatmul.mubr.bf16.gmra.mrb[0].mxu0 %v2940
    %v2979 = vpop.f32.mrb[0].mxu0
    %v2980 = vadd.f32 0.0, %v2979
    %v2981 = vpop.f32.mrb[0].mxu0
    %v2982 = vpop.f32.mrb[0].mxu0
    %v2983 = vpop.f32.mrb[0].mxu0
    %2984 = vdwg.mxu0
    %2986 = vrot.lane.b32.xlu0 %v2878, 120
    %v2987 = vpop.permute.xlu0 %2986
    %2989 = vrot.lane.b32.xlu0 %v2879, 120
    %v2990 = vpop.permute.xlu0 %2989
    %v2992 = vsel %vm705, %v2987, 0
    %v2995 = vsel %vm705, %v2990, 0
    %2997 = vmatprep.subr.bf16.mxu0 0
    %2998 = vmatpush1.bf16.xpose.msra.mxu0 %v2995
    %2999 = vmatprep.subr.bf16.mxu0 0
    %3000 = vmatpush1.bf16.xpose.msra.mxu0 0
    %3001 = vmatprep.subr.bf16.mxu0 0
    %3002 = vmatpush1.bf16.xpose.msra.mxu0 0
    %3003 = vmatprep.subr.bf16.mxu0 0
    %3004 = vmatpush1.bf16.xpose.msra.mxu0 0
    %3005 = vmatprep.subr.bf16.mxu0 0
    %3006 = vmatpush1.bf16.xpose.msra.mxu0 0
    %3007 = vmatprep.subr.bf16.mxu0 0
    %3008 = vmatpush1.bf16.xpose.msra.mxu0 0
    %3009 = vmatprep.subr.bf16.mxu0 0
    %3010 = vmatpush1.bf16.xpose.msra.mxu0 0
    %3011 = vmatprep.subr.bf16.mxu0 0
    %3012 = vmatpush1.bf16.xpose.msra.mxu0 0
    %3013 = vmatprep.subr.bf16.mxu0 0
    %3014 = vmatpush1.bf16.xpose.msra.mxu0 0
    %3015 = vmatprep.subr.bf16.mxu0 0
    %3016 = vmatpush1.bf16.xpose.msra.mxu0 0
    %3017 = vmatprep.subr.bf16.mxu0 0
    %3018 = vmatpush1.bf16.xpose.msra.mxu0 0
    %3019 = vmatprep.subr.bf16.mxu0 0
    %3020 = vmatpush1.bf16.xpose.msra.mxu0 0
    %3021 = vmatprep.subr.bf16.mxu0 0
    %3022 = vmatpush1.bf16.xpose.msra.mxu0 0
    %3023 = vmatprep.subr.bf16.mxu0 0
    %3024 = vmatpush1.bf16.xpose.msra.mxu0 0
    %3025 = vmatprep.subr.bf16.mxu0 0
    %3026 = vmatpush1.bf16.xpose.msra.mxu0 0
    %3027 = vmatprep.subr.bf16.mxu0 0
    %3028 = vmatpush1.bf16.xpose.msra.mxu0 0
    %3029 = vmatprep.mubr.bf16.mxu0 0
    %3030 = vmatmul.mubr.bf16.gmra.mrb[0].mxu0 %v2992
    %v3031 = vpop.f32.mrb[0].mxu0
    %v3032 = vadd.f32 %v2645, %v3031
    %v3033 = vpop.f32.mrb[0].mxu0
    %v3034 = vpop.f32.mrb[0].mxu0
    %v3035 = vpop.f32.mrb[0].mxu0
    %3036 = vdwg.mxu0
    %v3037 = vsel %vm705, %v3032, -inf
    %3038 = vmax.xlane.f32.xlu0 %v3037
    %v3039 = vpop.xlane.xlu0 %3038
    %v3040 = vsub.f32 %v3032, %v3039
    %v3041 = vmul.f32 %v3040, 1.442695
    %v3042 = vpow.pop %v3041
    %v3043 = vsel %vm705, %v3042, 0.0
    %3044 = vadd.xlane.f32.xlu0 %v3043
    %v3045 = vpop.xlane.xlu0 %3044
    %v3046 = vrcp.pop %v3045
    %v3047 = vmul.f32 %v3042, %v3046
    %v3048 = vpack.c.bf16 %v3047, %v3047
    %3050 = vrot.lane.b32.xlu0 %v2938, 120
    %v3051 = vpop.permute.xlu0 %3050
    %v3053 = vsel %vm705, %v3048, 0
    %v3056 = vsel %vm2627, %v3051, 0
    %3058 = vmatprep.subr.bf16.mxu0 0
    %3059 = vmatpush1.bf16.msra.mxu0 %v3056
    %3060 = vmatprep.subr.bf16.mxu0 0
    %3061 = vmatpush1.bf16.msra.mxu0 0
    %3062 = vmatprep.subr.bf16.mxu0 0
    %3063 = vmatpush1.bf16.msra.mxu0 0
    %3064 = vmatprep.subr.bf16.mxu0 0
    %3065 = vmatpush1.bf16.msra.mxu0 0
    %3066 = vmatprep.subr.bf16.mxu0 0
    %3067 = vmatpush1.bf16.msra.mxu0 0
    %3068 = vmatprep.subr.bf16.mxu0 0
    %3069 = vmatpush1.bf16.msra.mxu0 0
    %3070 = vmatprep.subr.bf16.mxu0 0
    %3071 = vmatpush1.bf16.msra.mxu0 0
    %3072 = vmatprep.subr.bf16.mxu0 0
    %3073 = vmatpush1.bf16.msra.mxu0 0
    %3074 = vmatprep.subr.bf16.mxu0 0
    %3075 = vmatpush1.bf16.msra.mxu0 0
    %3076 = vmatprep.subr.bf16.mxu0 0
    %3077 = vmatpush1.bf16.msra.mxu0 0
    %3078 = vmatprep.subr.bf16.mxu0 0
    %3079 = vmatpush1.bf16.msra.mxu0 0
    %3080 = vmatprep.subr.bf16.mxu0 0
    %3081 = vmatpush1.bf16.msra.mxu0 0
    %3082 = vmatprep.subr.bf16.mxu0 0
    %3083 = vmatpush1.bf16.msra.mxu0 0
    %3084 = vmatprep.subr.bf16.mxu0 0
    %3085 = vmatpush1.bf16.msra.mxu0 0
    %3086 = vmatprep.subr.bf16.mxu0 0
    %3087 = vmatpush1.bf16.msra.mxu0 0
    %3088 = vmatprep.subr.bf16.mxu0 0
    %3089 = vmatpush1.bf16.msra.mxu0 0
    %3090 = vmatprep.mubr.bf16.mxu0 0
    %3091 = vmatmul.mubr.bf16.gmra.mrb[0].mxu0 %v3053
    %v3092 = vpop.f32.mrb[0].mxu0
    %v3093 = vadd.f32 0.0, %v3092
    %v3094 = vpop.f32.mrb[0].mxu0
    %v3095 = vpop.f32.mrb[0].mxu0
    %v3096 = vpop.f32.mrb[0].mxu0
    %3097 = vdwg.mxu0
    %3098 = vrot.lane.b32.xlu0 %v2878, 112
    %v3099 = vpop.permute.xlu0 %3098
    %3100 = vrot.lane.b32.xlu0 %v2879, 112
    %v3101 = vpop.permute.xlu0 %3100
    %v3103 = vsel %vm705, %v3099, 0
    %v3106 = vsel %vm705, %v3101, 0
    %3108 = vmatprep.subr.bf16.mxu0 0
    %3109 = vmatpush1.bf16.xpose.msra.mxu0 %v3106
    %3110 = vmatprep.subr.bf16.mxu0 0
    %3111 = vmatpush1.bf16.xpose.msra.mxu0 0
    %3112 = vmatprep.subr.bf16.mxu0 0
    %3113 = vmatpush1.bf16.xpose.msra.mxu0 0
    %3114 = vmatprep.subr.bf16.mxu0 0
    %3115 = vmatpush1.bf16.xpose.msra.mxu0 0
    %3116 = vmatprep.subr.bf16.mxu0 0
    %3117 = vmatpush1.bf16.xpose.msra.mxu0 0
    %3118 = vmatprep.subr.bf16.mxu0 0
    %3119 = vmatpush1.bf16.xpose.msra.mxu0 0
    %3120 = vmatprep.subr.bf16.mxu0 0
    %3121 = vmatpush1.bf16.xpose.msra.mxu0 0
    %3122 = vmatprep.subr.bf16.mxu0 0
    %3123 = vmatpush1.bf16.xpose.msra.mxu0 0
    %3124 = vmatprep.subr.bf16.mxu0 0
    %3125 = vmatpush1.bf16.xpose.msra.mxu0 0
    %3126 = vmatprep.subr.bf16.mxu0 0
    %3127 = vmatpush1.bf16.xpose.msra.mxu0 0
    %3128 = vmatprep.subr.bf16.mxu0 0
    %3129 = vmatpush1.bf16.xpose.msra.mxu0 0
    %3130 = vmatprep.subr.bf16.mxu0 0
    %3131 = vmatpush1.bf16.xpose.msra.mxu0 0
    %3132 = vmatprep.subr.bf16.mxu0 0
    %3133 = vmatpush1.bf16.xpose.msra.mxu0 0
    %3134 = vmatprep.subr.bf16.mxu0 0
    %3135 = vmatpush1.bf16.xpose.msra.mxu0 0
    %3136 = vmatprep.subr.bf16.mxu0 0
    %3137 = vmatpush1.bf16.xpose.msra.mxu0 0
    %3138 = vmatprep.subr.bf16.mxu0 0
    %3139 = vmatpush1.bf16.xpose.msra.mxu0 0
    %3140 = vmatprep.mubr.bf16.mxu0 0
    %3141 = vmatmul.mubr.bf16.gmra.mrb[0].mxu0 %v3103
    %v3142 = vpop.f32.mrb[0].mxu0
    %v3143 = vadd.f32 %v2645, %v3142
    %v3144 = vpop.f32.mrb[0].mxu0
    %v3145 = vpop.f32.mrb[0].mxu0
    %v3146 = vpop.f32.mrb[0].mxu0
    %3147 = vdwg.mxu0
    %v3148 = vsel %vm705, %v3143, -inf
    %3149 = vmax.xlane.f32.xlu0 %v3148
    %v3150 = vpop.xlane.xlu0 %3149
    %v3151 = vsub.f32 %v3143, %v3150
    %v3152 = vmul.f32 %v3151, 1.442695
    %v3153 = vpow.pop %v3152
    %v3154 = vsel %vm705, %v3153, 0.0
    %3155 = vadd.xlane.f32.xlu0 %v3154
    %v3156 = vpop.xlane.xlu0 %3155
    %v3157 = vrcp.pop %v3156
    %v3158 = vmul.f32 %v3153, %v3157
    %v3159 = vpack.c.bf16 %v3158, %v3158
    %3160 = vrot.lane.b32.xlu0 %v2938, 112
    %v3161 = vpop.permute.xlu0 %3160
    %v3163 = vsel %vm705, %v3159, 0
    %v3166 = vsel %vm2627, %v3161, 0
    %3168 = vmatprep.subr.bf16.mxu0 0
    %3169 = vmatpush1.bf16.msra.mxu0 %v3166
    %3170 = vmatprep.subr.bf16.mxu0 0
    %3171 = vmatpush1.bf16.msra.mxu0 0
    %3172 = vmatprep.subr.bf16.mxu0 0
    %3173 = vmatpush1.bf16.msra.mxu0 0
    %3174 = vmatprep.subr.bf16.mxu0 0
    %3175 = vmatpush1.bf16.msra.mxu0 0
    %3176 = vmatprep.subr.bf16.mxu0 0
    %3177 = vmatpush1.bf16.msra.mxu0 0
    %3178 = vmatprep.subr.bf16.mxu0 0
    %3179 = vmatpush1.bf16.msra.mxu0 0
    %3180 = vmatprep.subr.bf16.mxu0 0
    %3181 = vmatpush1.bf16.msra.mxu0 0
    %3182 = vmatprep.subr.bf16.mxu0 0
    %3183 = vmatpush1.bf16.msra.mxu0 0
    %3184 = vmatprep.subr.bf16.mxu0 0
    %3185 = vmatpush1.bf16.msra.mxu0 0
    %3186 = vmatprep.subr.bf16.mxu0 0
    %3187 = vmatpush1.bf16.msra.mxu0 0
    %3188 = vmatprep.subr.bf16.mxu0 0
    %3189 = vmatpush1.bf16.msra.mxu0 0
    %3190 = vmatprep.subr.bf16.mxu0 0
    %3191 = vmatpush1.bf16.msra.mxu0 0
    %3192 = vmatprep.subr.bf16.mxu0 0
    %3193 = vmatpush1.bf16.msra.mxu0 0
    %3194 = vmatprep.subr.bf16.mxu0 0
    %3195 = vmatpush1.bf16.msra.mxu0 0
    %3196 = vmatprep.subr.bf16.mxu0 0
    %3197 = vmatpush1.bf16.msra.mxu0 0
    %3198 = vmatprep.subr.bf16.mxu0 0
    %3199 = vmatpush1.bf16.msra.mxu0 0
    %3200 = vmatprep.mubr.bf16.mxu0 0
    %3201 = vmatmul.mubr.bf16.gmra.mrb[0].mxu0 %v3163
    %v3202 = vpop.f32.mrb[0].mxu0
    %v3203 = vadd.f32 0.0, %v3202
    %v3204 = vpop.f32.mrb[0].mxu0
    %v3205 = vpop.f32.mrb[0].mxu0
    %v3206 = vpop.f32.mrb[0].mxu0
    %3207 = vdwg.mxu0
    %3208 = vrot.lane.b32.xlu0 %v2878, 104
    %v3209 = vpop.permute.xlu0 %3208
    %3210 = vrot.lane.b32.xlu0 %v2879, 104
    %v3211 = vpop.permute.xlu0 %3210
    %v3213 = vsel %vm705, %v3209, 0
    %v3216 = vsel %vm705, %v3211, 0
    %3218 = vmatprep.subr.bf16.mxu0 0
    %3219 = vmatpush1.bf16.xpose.msra.mxu0 %v3216
    %3220 = vmatprep.subr.bf16.mxu0 0
    %3221 = vmatpush1.bf16.xpose.msra.mxu0 0
    %3222 = vmatprep.subr.bf16.mxu0 0
    %3223 = vmatpush1.bf16.xpose.msra.mxu0 0
    %3224 = vmatprep.subr.bf16.mxu0 0
    %3225 = vmatpush1.bf16.xpose.msra.mxu0 0
    %3226 = vmatprep.subr.bf16.mxu0 0
    %3227 = vmatpush1.bf16.xpose.msra.mxu0 0
    %3228 = vmatprep.subr.bf16.mxu0 0
    %3229 = vmatpush1.bf16.xpose.msra.mxu0 0
    %3230 = vmatprep.subr.bf16.mxu0 0
    %3231 = vmatpush1.bf16.xpose.msra.mxu0 0
    %3232 = vmatprep.subr.bf16.mxu0 0
    %3233 = vmatpush1.bf16.xpose.msra.mxu0 0
    %3234 = vmatprep.subr.bf16.mxu0 0
    %3235 = vmatpush1.bf16.xpose.msra.mxu0 0
    %3236 = vmatprep.subr.bf16.mxu0 0
    %3237 = vmatpush1.bf16.xpose.msra.mxu0 0
    %3238 = vmatprep.subr.bf16.mxu0 0
    %3239 = vmatpush1.bf16.xpose.msra.mxu0 0
    %3240 = vmatprep.subr.bf16.mxu0 0
    %3241 = vmatpush1.bf16.xpose.msra.mxu0 0
    %3242 = vmatprep.subr.bf16.mxu0 0
    %3243 = vmatpush1.bf16.xpose.msra.mxu0 0
    %3244 = vmatprep.subr.bf16.mxu0 0
    %3245 = vmatpush1.bf16.xpose.msra.mxu0 0
    %3246 = vmatprep.subr.bf16.mxu0 0
    %3247 = vmatpush1.bf16.xpose.msra.mxu0 0
    %3248 = vmatprep.subr.bf16.mxu0 0
    %3249 = vmatpush1.bf16.xpose.msra.mxu0 0
    %3250 = vmatprep.mubr.bf16.mxu0 0
    %3251 = vmatmul.mubr.bf16.gmra.mrb[0].mxu0 %v3213
    %v3252 = vpop.f32.mrb[0].mxu0
    %v3253 = vadd.f32 %v2645, %v3252
    %v3254 = vpop.f32.mrb[0].mxu0
    %v3255 = vpop.f32.mrb[0].mxu0
    %v3256 = vpop.f32.mrb[0].mxu0
    %3257 = vdwg.mxu0
    %v3258 = vsel %vm705, %v3253, -inf
    %3259 = vmax.xlane.f32.xlu0 %v3258
    %v3260 = vpop.xlane.xlu0 %3259
    %v3261 = vsub.f32 %v3253, %v3260
    %v3262 = vmul.f32 %v3261, 1.442695
    %v3263 = vpow.pop %v3262
    %v3264 = vsel %vm705, %v3263, 0.0
    %3265 = vadd.xlane.f32.xlu0 %v3264
    %v3266 = vpop.xlane.xlu0 %3265
    %v3267 = vrcp.pop %v3266
    %v3268 = vmul.f32 %v3263, %v3267
    %v3269 = vpack.c.bf16 %v3268, %v3268
    %3270 = vrot.lane.b32.xlu0 %v2938, 104
    %v3271 = vpop.permute.xlu0 %3270
    %v3273 = vsel %vm705, %v3269, 0
    %v3276 = vsel %vm2627, %v3271, 0
    %3278 = vmatprep.subr.bf16.mxu0 0
    %3279 = vmatpush1.bf16.msra.mxu0 %v3276
    %3280 = vmatprep.subr.bf16.mxu0 0
    %3281 = vmatpush1.bf16.msra.mxu0 0
    %3282 = vmatprep.subr.bf16.mxu0 0
    %3283 = vmatpush1.bf16.msra.mxu0 0
    %3284 = vmatprep.subr.bf16.mxu0 0
    %3285 = vmatpush1.bf16.msra.mxu0 0
    %3286 = vmatprep.subr.bf16.mxu0 0
    %3287 = vmatpush1.bf16.msra.mxu0 0
    %3288 = vmatprep.subr.bf16.mxu0 0
    %3289 = vmatpush1.bf16.msra.mxu0 0
    %3290 = vmatprep.subr.bf16.mxu0 0
    %3291 = vmatpush1.bf16.msra.mxu0 0
    %3292 = vmatprep.subr.bf16.mxu0 0
    %3293 = vmatpush1.bf16.msra.mxu0 0
    %3294 = vmatprep.subr.bf16.mxu0 0
    %3295 = vmatpush1.bf16.msra.mxu0 0
    %3296 = vmatprep.subr.bf16.mxu0 0
    %3297 = vmatpush1.bf16.msra.mxu0 0
    %3298 = vmatprep.subr.bf16.mxu0 0
    %3299 = vmatpush1.bf16.msra.mxu0 0
    %3300 = vmatprep.subr.bf16.mxu0 0
    %3301 = vmatpush1.bf16.msra.mxu0 0
    %3302 = vmatprep.subr.bf16.mxu0 0
    %3303 = vmatpush1.bf16.msra.mxu0 0
    %3304 = vmatprep.subr.bf16.mxu0 0
    %3305 = vmatpush1.bf16.msra.mxu0 0
    %3306 = vmatprep.subr.bf16.mxu0 0
    %3307 = vmatpush1.bf16.msra.mxu0 0
    %3308 = vmatprep.subr.bf16.mxu0 0
    %3309 = vmatpush1.bf16.msra.mxu0 0
    %3310 = vmatprep.mubr.bf16.mxu0 0
    %3311 = vmatmul.mubr.bf16.gmra.mrb[0].mxu0 %v3273
    %v3312 = vpop.f32.mrb[0].mxu0
    %v3313 = vadd.f32 0.0, %v3312
    %v3314 = vpop.f32.mrb[0].mxu0
    %v3315 = vpop.f32.mrb[0].mxu0
    %v3316 = vpop.f32.mrb[0].mxu0
    %3317 = vdwg.mxu0
    %3319 = vrot.lane.b32.xlu0 %v3093, 8
    %v3320 = vpop.permute.xlu0 %3319
    %3323 = vrot.lane.b32.xlu0 %v3203, 16
    %v3324 = vpop.permute.xlu0 %3323
    %3327 = vrot.lane.b32.xlu0 %v3313, 24
    %v3328 = vpop.permute.xlu0 %3327
    %v3330 = vsel %vm705, %v2980, %v3320
    %v3331 = vsel %vm1224, %v3330, %v3324
    %v3332 = vsel %vm1227, %v3331, %v3328
    %v3333 = vpack.c.bf16 %v3332, %v3332
    %v3335 = vlaneseq
    %v3336 = vshrl.u32 %v3335, 7
    %v3337 = vsub.s32 0, %v3336
    %v3338 = vrot.slane %v2699, %v3337
    %v3344 = vunpack.c.l.b16 %v2692
    %v3345 = vunpack.c.l.b16 %v2693
    %v3346 = vunpack.c.l.b16 %v2694
    %v3347 = vunpack.c.l.b16 %v2695
    %v3348 = vpack.c.b16 %v3345, %v3344
    %v3349 = vpack.c.b16 %v3347, %v3346
    %v3353 = vsel %vm457, %v3333, 0
    %3355 = vmatprep.subr.bf16.mxu0 0
    %3356 = vmatpush1.bf16.msra.mxu0 %v3348
    %3357 = vmatprep.subr.bf16.mxu0 0
    %3358 = vmatpush1.bf16.msra.mxu0 %v3349
    %3359 = vmatprep.subr.bf16.mxu0 0
    %3360 = vmatpush1.bf16.msra.mxu0 0
    %3361 = vmatprep.subr.bf16.mxu0 0
    %3362 = vmatpush1.bf16.msra.mxu0 0
    %3363 = vmatprep.subr.bf16.mxu0 0
    %3364 = vmatpush1.bf16.msra.mxu0 0
    %3365 = vmatprep.subr.bf16.mxu0 0
    %3366 = vmatpush1.bf16.msra.mxu0 0
    %3367 = vmatprep.subr.bf16.mxu0 0
    %3368 = vmatpush1.bf16.msra.mxu0 0
    %3369 = vmatprep.subr.bf16.mxu0 0
    %3370 = vmatpush1.bf16.msra.mxu0 0
    %3371 = vmatprep.subr.bf16.mxu0 0
    %3372 = vmatpush1.bf16.msra.mxu0 0
    %3373 = vmatprep.subr.bf16.mxu0 0
    %3374 = vmatpush1.bf16.msra.mxu0 0
    %3375 = vmatprep.subr.bf16.mxu0 0
    %3376 = vmatpush1.bf16.msra.mxu0 0
    %3377 = vmatprep.subr.bf16.mxu0 0
    %3378 = vmatpush1.bf16.msra.mxu0 0
    %3379 = vmatprep.subr.bf16.mxu0 0
    %3380 = vmatpush1.bf16.msra.mxu0 0
    %3381 = vmatprep.subr.bf16.mxu0 0
    %3382 = vmatpush1.bf16.msra.mxu0 0
    %3383 = vmatprep.subr.bf16.mxu0 0
    %3384 = vmatpush1.bf16.msra.mxu0 0
    %3385 = vmatprep.subr.bf16.mxu0 0
    %3386 = vmatpush1.bf16.msra.mxu0 0
    %3387 = vmatprep.mubr.bf16.mxu0 0
    %3388 = vmatmul.mubr.bf16.gmra.mrb[0].mxu0 %v3353
    %v3389 = vpop.f32.mrb[0].mxu0
    %v3390 = vadd.f32 %v3338, %v3389
    %v3391 = vpop.f32.mrb[0].mxu0
    %v3392 = vpop.f32.mrb[0].mxu0
    %v3393 = vpop.f32.mrb[0].mxu0
    %3394 = vdwg.mxu0
    %v3395 = vadd.f32 %v2628, %v3390
    %s3396 = scalar_lea.vmem %s53, 2
    %v3397 = vld [vmem:[%s3396] sm:$0x1]
    %s3398 = scalar_lea.vmem %s55, 2
    %v3399 = vld [vmem:[%s3398] sm:$0x1]
    %v3400 = vsel %vm457, %v3395, 0.0
    %3401 = vadd.xlane.f32.xlu0 %v3400
    %v3402 = vpop.xlane.xlu0 %3401
    %v3403 = vmul.f32 %v3402, %v465
    %v3404 = vsub.f32 %v3395, %v3403
    %v3405 = vmul.f32 %v3404, %v3404
    %v3406 = vsel %vm457, %v3405, 0.0
    %3407 = vadd.xlane.f32.xlu0 %v3406
    %v3408 = vpop.xlane.xlu0 %3407
    %v3409 = vmul.f32 %v3408, %v465
    %v3410 = vadd.f32 %v3409, 1e-05
    %v3411 = vrsqrt.pop %v3410
    %v3412 = vmul.f32 %v3404, %v3411
    %v3414 = vlaneseq
    %v3415 = vshrl.u32 %v3414, 7
    %v3416 = vsub.s32 0, %v3415
    %v3417 = vrot.slane %v3397, %v3416
    %v3419 = vmul.f32 %v3412, %v3417
    %v3421 = vlaneseq
    %v3422 = vshrl.u32 %v3421, 7
    %v3423 = vsub.s32 0, %v3422
    %v3424 = vrot.slane %v3399, %v3423
    %v3426 = vadd.f32 %v3419, %v3424
    %s3427 = scalar_lea.vmem %s57, 16
    %v3428 = vld [vmem:[%s3427] sm:$0xf]
    %v3429 = vld [vmem:[%s3427 + $0x4] sm:$0xf]
    %v3430 = vld [vmem:[%s3427 + $0x8] sm:$0xf]
    %v3431 = vld [vmem:[%s3427 + $0xc] sm:$0xf]
    %s3432 = scalar_lea.vmem %s59, 16
    %v3433 = vld [vmem:[%s3432] sm:$0xf]
    %v3434 = vld [vmem:[%s3432 + $0x4] sm:$0xf]
    %v3435 = vld [vmem:[%s3432 + $0x8] sm:$0xf]
    %v3436 = vld [vmem:[%s3432 + $0xc] sm:$0xf]
    %s3437 = scalar_lea.vmem %s61, 16
    %v3438 = vld [vmem:[%s3437] sm:$0xf]
    %v3439 = vld [vmem:[%s3437 + $0x4] sm:$0xf]
    %v3440 = vld [vmem:[%s3437 + $0x8] sm:$0xf]
    %v3441 = vld [vmem:[%s3437 + $0xc] sm:$0xf]
    %s3442 = scalar_lea.vmem %s63, 16
    %v3443 = vld [vmem:[%s3442] sm:$0xf]
    %v3444 = vld [vmem:[%s3442 + $0x4] sm:$0xf]
    %v3445 = vld [vmem:[%s3442 + $0x8] sm:$0xf]
    %v3446 = vld [vmem:[%s3442 + $0xc] sm:$0xf]
    %s3447 = scalar_lea.vmem %s65, 1
    %v3448 = vld [vmem:[%s3447] sm:$0x1]
    %s3449 = scalar_lea.vmem %s67, 1
    %v3450 = vld [vmem:[%s3449] sm:$0x1]
    %s3451 = scalar_lea.vmem %s69, 1
    %v3452 = vld [vmem:[%s3451] sm:$0x1]
    %s3453 = scalar_lea.vmem [#allocation5], 1
    %v3454 = vld [vmem:[%s3453] sm:$0x1]
    %v3455 = vpack.c.bf16 %v3426, %v3426
    %v3456 = vpack.c.bf16 %v2622, %v2621
    %v3458 = vlaneseq
    %v3459 = vshrl.u32 %v3458, 7
    %v3460 = vsub.s32 0, %v3459
    %v3461 = vrot.slane %v3448, %v3460
    %v3467 = vunpack.c.l.b16 %v3428
    %v3468 = vunpack.c.l.b16 %v3429
    %v3469 = vunpack.c.l.b16 %v3430
    %v3470 = vunpack.c.l.b16 %v3431
    %v3471 = vpack.c.b16 %v3468, %v3467
    %v3472 = vpack.c.b16 %v3470, %v3469
    %v3476 = vsel %vm457, %v3455, 0
    %3478 = vmatprep.subr.bf16.mxu0 0
    %3479 = vmatpush1.bf16.msra.mxu0 %v3471
    %3480 = vmatprep.subr.bf16.mxu0 0
    %3481 = vmatpush1.bf16.msra.mxu0 %v3472
    %3482 = vmatprep.subr.bf16.mxu0 0
    %3483 = vmatpush1.bf16.msra.mxu0 0
    %3484 = vmatprep.subr.bf16.mxu0 0
    %3485 = vmatpush1.bf16.msra.mxu0 0
    %3486 = vmatprep.subr.bf16.mxu0 0
    %3487 = vmatpush1.bf16.msra.mxu0 0
    %3488 = vmatprep.subr.bf16.mxu0 0
    %3489 = vmatpush1.bf16.msra.mxu0 0
    %3490 = vmatprep.subr.bf16.mxu0 0
    %3491 = vmatpush1.bf16.msra.mxu0 0
    %3492 = vmatprep.subr.bf16.mxu0 0
    %3493 = vmatpush1.bf16.msra.mxu0 0
    %3494 = vmatprep.subr.bf16.mxu0 0
    %3495 = vmatpush1.bf16.msra.mxu0 0
    %3496 = vmatprep.subr.bf16.mxu0 0
    %3497 = vmatpush1.bf16.msra.mxu0 0
    %3498 = vmatprep.subr.bf16.mxu0 0
    %3499 = vmatpush1.bf16.msra.mxu0 0
    %3500 = vmatprep.subr.bf16.mxu0 0
    %3501 = vmatpush1.bf16.msra.mxu0 0
    %3502 = vmatprep.subr.bf16.mxu0 0
    %3503 = vmatpush1.bf16.msra.mxu0 0
    %3504 = vmatprep.subr.bf16.mxu0 0
    %3505 = vmatpush1.bf16.msra.mxu0 0
    %3506 = vmatprep.subr.bf16.mxu0 0
    %3507 = vmatpush1.bf16.msra.mxu0 0
    %3508 = vmatprep.subr.bf16.mxu0 0
    %3509 = vmatpush1.bf16.msra.mxu0 0
    %3510 = vmatprep.mubr.bf16.mxu0 0
    %3511 = vmatmul.mubr.bf16.gmra.mrb[0].mxu0 %v3476
    %v3512 = vpop.f32.mrb[0].mxu0
    %v3513 = vadd.f32 %v3461, %v3512
    %v3514 = vpop.f32.mrb[0].mxu0
    %v3515 = vpop.f32.mrb[0].mxu0
    %v3516 = vpop.f32.mrb[0].mxu0
    %3517 = vdwg.mxu0
    %v3519 = vlaneseq
    %v3520 = vshrl.u32 %v3519, 7
    %v3521 = vsub.s32 0, %v3520
    %v3522 = vrot.slane %v3450, %v3521
    %v3528 = vunpack.c.l.b16 %v3433
    %v3529 = vunpack.c.l.b16 %v3434
    %v3530 = vunpack.c.l.b16 %v3435
    %v3531 = vunpack.c.l.b16 %v3436
    %v3532 = vpack.c.b16 %v3529, %v3528
    %v3533 = vpack.c.b16 %v3531, %v3530
    %v3537 = vsel %vm457, %v3456, 0
    %3539 = vmatprep.subr.bf16.mxu0 0
    %3540 = vmatpush1.bf16.msra.mxu0 %v3532
    %3541 = vmatprep.subr.bf16.mxu0 0
    %3542 = vmatpush1.bf16.msra.mxu0 %v3533
    %3543 = vmatprep.subr.bf16.mxu0 0
    %3544 = vmatpush1.bf16.msra.mxu0 0
    %3545 = vmatprep.subr.bf16.mxu0 0
    %3546 = vmatpush1.bf16.msra.mxu0 0
    %3547 = vmatprep.subr.bf16.mxu0 0
    %3548 = vmatpush1.bf16.msra.mxu0 0
    %3549 = vmatprep.subr.bf16.mxu0 0
    %3550 = vmatpush1.bf16.msra.mxu0 0
    %3551 = vmatprep.subr.bf16.mxu0 0
    %3552 = vmatpush1.bf16.msra.mxu0 0
    %3553 = vmatprep.subr.bf16.mxu0 0
    %3554 = vmatpush1.bf16.msra.mxu0 0
    %3555 = vmatprep.subr.bf16.mxu0 0
    %3556 = vmatpush1.bf16.msra.mxu0 0
    %3557 = vmatprep.subr.bf16.mxu0 0
    %3558 = vmatpush1.bf16.msra.mxu0 0
    %3559 = vmatprep.subr.bf16.mxu0 0
    %3560 = vmatpush1.bf16.msra.mxu0 0
    %3561 = vmatprep.subr.bf16.mxu0 0
    %3562 = vmatpush1.bf16.msra.mxu0 0
    %3563 = vmatprep.subr.bf16.mxu0 0
    %3564 = vmatpush1.bf16.msra.mxu0 0
    %3565 = vmatprep.subr.bf16.mxu0 0
    %3566 = vmatpush1.bf16.msra.mxu0 0
    %3567 = vmatprep.subr.bf16.mxu0 0
    %3568 = vmatpush1.bf16.msra.mxu0 0
    %3569 = vmatprep.subr.bf16.mxu0 0
    %3570 = vmatpush1.bf16.msra.mxu0 0
    %3571 = vmatprep.mubr.bf16.mxu0 0
    %3572 = vmatmul.mubr.bf16.gmra.mrb[0].mxu0 %v3537
    %v3573 = vpop.f32.mrb[0].mxu0
    %v3574 = vadd.f32 %v3522, %v3573
    %v3575 = vpop.f32.mrb[0].mxu0
    %v3576 = vpop.f32.mrb[0].mxu0
    %v3577 = vadd.f32 %v3522, %v3576
    %v3578 = vpop.f32.mrb[0].mxu0
    %3579 = vdwg.mxu0
    %v3581 = vlaneseq
    %v3582 = vshrl.u32 %v3581, 7
    %v3583 = vsub.s32 0, %v3582
    %v3584 = vrot.slane %v3452, %v3583
    %v3590 = vunpack.c.l.b16 %v3438
    %v3591 = vunpack.c.l.b16 %v3439
    %v3592 = vunpack.c.l.b16 %v3440
    %v3593 = vunpack.c.l.b16 %v3441
    %v3594 = vpack.c.b16 %v3591, %v3590
    %v3595 = vpack.c.b16 %v3593, %v3592
    %3598 = vmatprep.subr.bf16.mxu0 0
    %3599 = vmatpush1.bf16.msra.mxu0 %v3594
    %3600 = vmatprep.subr.bf16.mxu0 0
    %3601 = vmatpush1.bf16.msra.mxu0 %v3595
    %3602 = vmatprep.subr.bf16.mxu0 0
    %3603 = vmatpush1.bf16.msra.mxu0 0
    %3604 = vmatprep.subr.bf16.mxu0 0
    %3605 = vmatpush1.bf16.msra.mxu0 0
    %3606 = vmatprep.subr.bf16.mxu0 0
    %3607 = vmatpush1.bf16.msra.mxu0 0
    %3608 = vmatprep.subr.bf16.mxu0 0
    %3609 = vmatpush1.bf16.msra.mxu0 0
    %3610 = vmatprep.subr.bf16.mxu0 0
    %3611 = vmatpush1.bf16.msra.mxu0 0
    %3612 = vmatprep.subr.bf16.mxu0 0
    %3613 = vmatpush1.bf16.msra.mxu0 0
    %3614 = vmatprep.subr.bf16.mxu0 0
    %3615 = vmatpush1.bf16.msra.mxu0 0
    %3616 = vmatprep.subr.bf16.mxu0 0
    %3617 = vmatpush1.bf16.msra.mxu0 0
    %3618 = vmatprep.subr.bf16.mxu0 0
    %3619 = vmatpush1.bf16.msra.mxu0 0
    %3620 = vmatprep.subr.bf16.mxu0 0
    %3621 = vmatpush1.bf16.msra.mxu0 0
    %3622 = vmatprep.subr.bf16.mxu0 0
    %3623 = vmatpush1.bf16.msra.mxu0 0
    %3624 = vmatprep.subr.bf16.mxu0 0
    %3625 = vmatpush1.bf16.msra.mxu0 0
    %3626 = vmatprep.subr.bf16.mxu0 0
    %3627 = vmatpush1.bf16.msra.mxu0 0
    %3628 = vmatprep.subr.bf16.mxu0 0
    %3629 = vmatpush1.bf16.msra.mxu0 0
    %3630 = vmatprep.mubr.bf16.mxu0 0
    %3631 = vmatmul.mubr.bf16.gmra.mrb[0].mxu0 %v3537
    %v3632 = vpop.f32.mrb[0].mxu0
    %v3633 = vadd.f32 %v3584, %v3632
    %v3634 = vpop.f32.mrb[0].mxu0
    %v3635 = vpop.f32.mrb[0].mxu0
    %v3636 = vadd.f32 %v3584, %v3635
    %v3637 = vpop.f32.mrb[0].mxu0
    %3638 = vdwg.mxu0
    %v3639 = vpack.c.bf16 %v3513, %v3513
    %v3640 = vpack.c.bf16 %v3577, %v3574
    %v3642 = vsel %vm705, %v3639, 0
    %v3645 = vsel %vm705, %v3640, 0
    %3647 = vmatprep.subr.bf16.mxu0 0
    %3648 = vmatpush1.bf16.xpose.msra.mxu0 %v3645
    %3649 = vmatprep.subr.bf16.mxu0 0
    %3650 = vmatpush1.bf16.xpose.msra.mxu0 0
    %3651 = vmatprep.subr.bf16.mxu0 0
    %3652 = vmatpush1.bf16.xpose.msra.mxu0 0
    %3653 = vmatprep.subr.bf16.mxu0 0
    %3654 = vmatpush1.bf16.xpose.msra.mxu0 0
    %3655 = vmatprep.subr.bf16.mxu0 0
    %3656 = vmatpush1.bf16.xpose.msra.mxu0 0
    %3657 = vmatprep.subr.bf16.mxu0 0
    %3658 = vmatpush1.bf16.xpose.msra.mxu0 0
    %3659 = vmatprep.subr.bf16.mxu0 0
    %3660 = vmatpush1.bf16.xpose.msra.mxu0 0
    %3661 = vmatprep.subr.bf16.mxu0 0
    %3662 = vmatpush1.bf16.xpose.msra.mxu0 0
    %3663 = vmatprep.subr.bf16.mxu0 0
    %3664 = vmatpush1.bf16.xpose.msra.mxu0 0
    %3665 = vmatprep.subr.bf16.mxu0 0
    %3666 = vmatpush1.bf16.xpose.msra.mxu0 0
    %3667 = vmatprep.subr.bf16.mxu0 0
    %3668 = vmatpush1.bf16.xpose.msra.mxu0 0
    %3669 = vmatprep.subr.bf16.mxu0 0
    %3670 = vmatpush1.bf16.xpose.msra.mxu0 0
    %3671 = vmatprep.subr.bf16.mxu0 0
    %3672 = vmatpush1.bf16.xpose.msra.mxu0 0
    %3673 = vmatprep.subr.bf16.mxu0 0
    %3674 = vmatpush1.bf16.xpose.msra.mxu0 0
    %3675 = vmatprep.subr.bf16.mxu0 0
    %3676 = vmatpush1.bf16.xpose.msra.mxu0 0
    %3677 = vmatprep.subr.bf16.mxu0 0
    %3678 = vmatpush1.bf16.xpose.msra.mxu0 0
    %3679 = vmatprep.mubr.bf16.mxu0 0
    %3680 = vmatmul.mubr.bf16.gmra.mrb[0].mxu0 %v3642
    %v3681 = vpop.f32.mrb[0].mxu0
    %v3682 = vadd.f32 %v2648, %v3681
    %v3683 = vpop.f32.mrb[0].mxu0
    %v3684 = vpop.f32.mrb[0].mxu0
    %v3685 = vpop.f32.mrb[0].mxu0
    %3686 = vdwg.mxu0
    %v3687 = vsel %vm753, %v3682, -inf
    %3688 = vmax.xlane.f32.xlu0 %v3687
    %v3689 = vpop.xlane.xlu0 %3688
    %v3690 = vsub.f32 %v3682, %v3689
    %v3691 = vmul.f32 %v3690, 1.442695
    %v3692 = vpow.pop %v3691
    %v3693 = vsel %vm753, %v3692, 0.0
    %3694 = vadd.xlane.f32.xlu0 %v3693
    %v3695 = vpop.xlane.xlu0 %3694
    %v3696 = vrcp.pop %v3695
    %v3697 = vmul.f32 %v3692, %v3696
    %v3698 = vpack.c.bf16 %v3697, %v3697
    %v3699 = vpack.c.bf16 %v3636, %v3633
    %v3701 = vsel %vm753, %v3698, 0
    %v3704 = vsel %vm437, %v3699, 0
    %3706 = vmatprep.subr.bf16.mxu0 0
    %3707 = vmatpush1.bf16.msra.mxu0 %v3704
    %3708 = vmatprep.subr.bf16.mxu0 0
    %3709 = vmatpush1.bf16.msra.mxu0 0
    %3710 = vmatprep.subr.bf16.mxu0 0
    %3711 = vmatpush1.bf16.msra.mxu0 0
    %3712 = vmatprep.subr.bf16.mxu0 0
    %3713 = vmatpush1.bf16.msra.mxu0 0
    %3714 = vmatprep.subr.bf16.mxu0 0
    %3715 = vmatpush1.bf16.msra.mxu0 0
    %3716 = vmatprep.subr.bf16.mxu0 0
    %3717 = vmatpush1.bf16.msra.mxu0 0
    %3718 = vmatprep.subr.bf16.mxu0 0
    %3719 = vmatpush1.bf16.msra.mxu0 0
    %3720 = vmatprep.subr.bf16.mxu0 0
    %3721 = vmatpush1.bf16.msra.mxu0 0
    %3722 = vmatprep.subr.bf16.mxu0 0
    %3723 = vmatpush1.bf16.msra.mxu0 0
    %3724 = vmatprep.subr.bf16.mxu0 0
    %3725 = vmatpush1.bf16.msra.mxu0 0
    %3726 = vmatprep.subr.bf16.mxu0 0
    %3727 = vmatpush1.bf16.msra.mxu0 0
    %3728 = vmatprep.subr.bf16.mxu0 0
    %3729 = vmatpush1.bf16.msra.mxu0 0
    %3730 = vmatprep.subr.bf16.mxu0 0
    %3731 = vmatpush1.bf16.msra.mxu0 0
    %3732 = vmatprep.subr.bf16.mxu0 0
    %3733 = vmatpush1.bf16.msra.mxu0 0
    %3734 = vmatprep.subr.bf16.mxu0 0
    %3735 = vmatpush1.bf16.msra.mxu0 0
    %3736 = vmatprep.subr.bf16.mxu0 0
    %3737 = vmatpush1.bf16.msra.mxu0 0
    %3738 = vmatprep.mubr.bf16.mxu0 0
    %3739 = vmatmul.mubr.bf16.gmra.mrb[0].mxu0 %v3701
    %v3740 = vpop.f32.mrb[0].mxu0
    %v3741 = vadd.f32 0.0, %v3740
    %v3742 = vpop.f32.mrb[0].mxu0
    %v3743 = vpop.f32.mrb[0].mxu0
    %v3744 = vpop.f32.mrb[0].mxu0
    %3745 = vdwg.mxu0
    %3747 = vrot.lane.b32.xlu0 %v3639, 120
    %v3748 = vpop.permute.xlu0 %3747
    %3750 = vrot.lane.b32.xlu0 %v3640, 120
    %v3751 = vpop.permute.xlu0 %3750
    %v3753 = vsel %vm705, %v3748, 0
    %v3756 = vsel %vm705, %v3751, 0
    %3758 = vmatprep.subr.bf16.mxu0 0
    %3759 = vmatpush1.bf16.xpose.msra.mxu0 %v3756
    %3760 = vmatprep.subr.bf16.mxu0 0
    %3761 = vmatpush1.bf16.xpose.msra.mxu0 0
    %3762 = vmatprep.subr.bf16.mxu0 0
    %3763 = vmatpush1.bf16.xpose.msra.mxu0 0
    %3764 = vmatprep.subr.bf16.mxu0 0
    %3765 = vmatpush1.bf16.xpose.msra.mxu0 0
    %3766 = vmatprep.subr.bf16.mxu0 0
    %3767 = vmatpush1.bf16.xpose.msra.mxu0 0
    %3768 = vmatprep.subr.bf16.mxu0 0
    %3769 = vmatpush1.bf16.xpose.msra.mxu0 0
    %3770 = vmatprep.subr.bf16.mxu0 0
    %3771 = vmatpush1.bf16.xpose.msra.mxu0 0
    %3772 = vmatprep.subr.bf16.mxu0 0
    %3773 = vmatpush1.bf16.xpose.msra.mxu0 0
    %3774 = vmatprep.subr.bf16.mxu0 0
    %3775 = vmatpush1.bf16.xpose.msra.mxu0 0
    %3776 = vmatprep.subr.bf16.mxu0 0
    %3777 = vmatpush1.bf16.xpose.msra.mxu0 0
    %3778 = vmatprep.subr.bf16.mxu0 0
    %3779 = vmatpush1.bf16.xpose.msra.mxu0 0
    %3780 = vmatprep.subr.bf16.mxu0 0
    %3781 = vmatpush1.bf16.xpose.msra.mxu0 0
    %3782 = vmatprep.subr.bf16.mxu0 0
    %3783 = vmatpush1.bf16.xpose.msra.mxu0 0
    %3784 = vmatprep.subr.bf16.mxu0 0
    %3785 = vmatpush1.bf16.xpose.msra.mxu0 0
    %3786 = vmatprep.subr.bf16.mxu0 0
    %3787 = vmatpush1.bf16.xpose.msra.mxu0 0
    %3788 = vmatprep.subr.bf16.mxu0 0
    %3789 = vmatpush1.bf16.xpose.msra.mxu0 0
    %3790 = vmatprep.mubr.bf16.mxu0 0
    %3791 = vmatmul.mubr.bf16.gmra.mrb[0].mxu0 %v3753
    %v3792 = vpop.f32.mrb[0].mxu0
    %v3793 = vadd.f32 %v2648, %v3792
    %v3794 = vpop.f32.mrb[0].mxu0
    %v3795 = vpop.f32.mrb[0].mxu0
    %v3796 = vpop.f32.mrb[0].mxu0
    %3797 = vdwg.mxu0
    %v3798 = vsel %vm753, %v3793, -inf
    %3799 = vmax.xlane.f32.xlu0 %v3798
    %v3800 = vpop.xlane.xlu0 %3799
    %v3801 = vsub.f32 %v3793, %v3800
    %v3802 = vmul.f32 %v3801, 1.442695
    %v3803 = vpow.pop %v3802
    %v3804 = vsel %vm753, %v3803, 0.0
    %3805 = vadd.xlane.f32.xlu0 %v3804
    %v3806 = vpop.xlane.xlu0 %3805
    %v3807 = vrcp.pop %v3806
    %v3808 = vmul.f32 %v3803, %v3807
    %v3809 = vpack.c.bf16 %v3808, %v3808
    %3811 = vrot.lane.b32.xlu0 %v3699, 120
    %v3812 = vpop.permute.xlu0 %3811
    %v3814 = vsel %vm753, %v3809, 0
    %v3817 = vsel %vm437, %v3812, 0
    %3819 = vmatprep.subr.bf16.mxu0 0
    %3820 = vmatpush1.bf16.msra.mxu0 %v3817
    %3821 = vmatprep.subr.bf16.mxu0 0
    %3822 = vmatpush1.bf16.msra.mxu0 0
    %3823 = vmatprep.subr.bf16.mxu0 0
    %3824 = vmatpush1.bf16.msra.mxu0 0
    %3825 = vmatprep.subr.bf16.mxu0 0
    %3826 = vmatpush1.bf16.msra.mxu0 0
    %3827 = vmatprep.subr.bf16.mxu0 0
    %3828 = vmatpush1.bf16.msra.mxu0 0
    %3829 = vmatprep.subr.bf16.mxu0 0
    %3830 = vmatpush1.bf16.msra.mxu0 0
    %3831 = vmatprep.subr.bf16.mxu0 0
    %3832 = vmatpush1.bf16.msra.mxu0 0
    %3833 = vmatprep.subr.bf16.mxu0 0
    %3834 = vmatpush1.bf16.msra.mxu0 0
    %3835 = vmatprep.subr.bf16.mxu0 0
    %3836 = vmatpush1.bf16.msra.mxu0 0
    %3837 = vmatprep.subr.bf16.mxu0 0
    %3838 = vmatpush1.bf16.msra.mxu0 0
    %3839 = vmatprep.subr.bf16.mxu0 0
    %3840 = vmatpush1.bf16.msra.mxu0 0
    %3841 = vmatprep.subr.bf16.mxu0 0
    %3842 = vmatpush1.bf16.msra.mxu0 0
    %3843 = vmatprep.subr.bf16.mxu0 0
    %3844 = vmatpush1.bf16.msra.mxu0 0
    %3845 = vmatprep.subr.bf16.mxu0 0
    %3846 = vmatpush1.bf16.msra.mxu0 0
    %3847 = vmatprep.subr.bf16.mxu0 0
    %3848 = vmatpush1.bf16.msra.mxu0 0
    %3849 = vmatprep.subr.bf16.mxu0 0
    %3850 = vmatpush1.bf16.msra.mxu0 0
    %3851 = vmatprep.mubr.bf16.mxu0 0
    %3852 = vmatmul.mubr.bf16.gmra.mrb[0].mxu0 %v3814
    %v3853 = vpop.f32.mrb[0].mxu0
    %v3854 = vadd.f32 0.0, %v3853
    %v3855 = vpop.f32.mrb[0].mxu0
    %v3856 = vpop.f32.mrb[0].mxu0
    %v3857 = vpop.f32.mrb[0].mxu0
    %3858 = vdwg.mxu0
    %3859 = vrot.lane.b32.xlu0 %v3639, 112
    %v3860 = vpop.permute.xlu0 %3859
    %3861 = vrot.lane.b32.xlu0 %v3640, 112
    %v3862 = vpop.permute.xlu0 %3861
    %v3864 = vsel %vm705, %v3860, 0
    %v3867 = vsel %vm705, %v3862, 0
    %3869 = vmatprep.subr.bf16.mxu0 0
    %3870 = vmatpush1.bf16.xpose.msra.mxu0 %v3867
    %3871 = vmatprep.subr.bf16.mxu0 0
    %3872 = vmatpush1.bf16.xpose.msra.mxu0 0
    %3873 = vmatprep.subr.bf16.mxu0 0
    %3874 = vmatpush1.bf16.xpose.msra.mxu0 0
    %3875 = vmatprep.subr.bf16.mxu0 0
    %3876 = vmatpush1.bf16.xpose.msra.mxu0 0
    %3877 = vmatprep.subr.bf16.mxu0 0
    %3878 = vmatpush1.bf16.xpose.msra.mxu0 0
    %3879 = vmatprep.subr.bf16.mxu0 0
    %3880 = vmatpush1.bf16.xpose.msra.mxu0 0
    %3881 = vmatprep.subr.bf16.mxu0 0
    %3882 = vmatpush1.bf16.xpose.msra.mxu0 0
    %3883 = vmatprep.subr.bf16.mxu0 0
    %3884 = vmatpush1.bf16.xpose.msra.mxu0 0
    %3885 = vmatprep.subr.bf16.mxu0 0
    %3886 = vmatpush1.bf16.xpose.msra.mxu0 0
    %3887 = vmatprep.subr.bf16.mxu0 0
    %3888 = vmatpush1.bf16.xpose.msra.mxu0 0
    %3889 = vmatprep.subr.bf16.mxu0 0
    %3890 = vmatpush1.bf16.xpose.msra.mxu0 0
    %3891 = vmatprep.subr.bf16.mxu0 0
    %3892 = vmatpush1.bf16.xpose.msra.mxu0 0
    %3893 = vmatprep.subr.bf16.mxu0 0
    %3894 = vmatpush1.bf16.xpose.msra.mxu0 0
    %3895 = vmatprep.subr.bf16.mxu0 0
    %3896 = vmatpush1.bf16.xpose.msra.mxu0 0
    %3897 = vmatprep.subr.bf16.mxu0 0
    %3898 = vmatpush1.bf16.xpose.msra.mxu0 0
    %3899 = vmatprep.subr.bf16.mxu0 0
    %3900 = vmatpush1.bf16.xpose.msra.mxu0 0
    %3901 = vmatprep.mubr.bf16.mxu0 0
    %3902 = vmatmul.mubr.bf16.gmra.mrb[0].mxu0 %v3864
    %v3903 = vpop.f32.mrb[0].mxu0
    %v3904 = vadd.f32 %v2648, %v3903
    %v3905 = vpop.f32.mrb[0].mxu0
    %v3906 = vpop.f32.mrb[0].mxu0
    %v3907 = vpop.f32.mrb[0].mxu0
    %3908 = vdwg.mxu0
    %v3909 = vsel %vm753, %v3904, -inf
    %3910 = vmax.xlane.f32.xlu0 %v3909
    %v3911 = vpop.xlane.xlu0 %3910
    %v3912 = vsub.f32 %v3904, %v3911
    %v3913 = vmul.f32 %v3912, 1.442695
    %v3914 = vpow.pop %v3913
    %v3915 = vsel %vm753, %v3914, 0.0
    %3916 = vadd.xlane.f32.xlu0 %v3915
    %v3917 = vpop.xlane.xlu0 %3916
    %v3918 = vrcp.pop %v3917
    %v3919 = vmul.f32 %v3914, %v3918
    %v3920 = vpack.c.bf16 %v3919, %v3919
    %3921 = vrot.lane.b32.xlu0 %v3699, 112
    %v3922 = vpop.permute.xlu0 %3921
    %v3924 = vsel %vm753, %v3920, 0
    %v3927 = vsel %vm437, %v3922, 0
    %3929 = vmatprep.subr.bf16.mxu0 0
    %3930 = vmatpush1.bf16.msra.mxu0 %v3927
    %3931 = vmatprep.subr.bf16.mxu0 0
    %3932 = vmatpush1.bf16.msra.mxu0 0
    %3933 = vmatprep.subr.bf16.mxu0 0
    %3934 = vmatpush1.bf16.msra.mxu0 0
    %3935 = vmatprep.subr.bf16.mxu0 0
    %3936 = vmatpush1.bf16.msra.mxu0 0
    %3937 = vmatprep.subr.bf16.mxu0 0
    %3938 = vmatpush1.bf16.msra.mxu0 0
    %3939 = vmatprep.subr.bf16.mxu0 0
    %3940 = vmatpush1.bf16.msra.mxu0 0
    %3941 = vmatprep.subr.bf16.mxu0 0
    %3942 = vmatpush1.bf16.msra.mxu0 0
    %3943 = vmatprep.subr.bf16.mxu0 0
    %3944 = vmatpush1.bf16.msra.mxu0 0
    %3945 = vmatprep.subr.bf16.mxu0 0
    %3946 = vmatpush1.bf16.msra.mxu0 0
    %3947 = vmatprep.subr.bf16.mxu0 0
    %3948 = vmatpush1.bf16.msra.mxu0 0
    %3949 = vmatprep.subr.bf16.mxu0 0
    %3950 = vmatpush1.bf16.msra.mxu0 0
    %3951 = vmatprep.subr.bf16.mxu0 0
    %3952 = vmatpush1.bf16.msra.mxu0 0
    %3953 = vmatprep.subr.bf16.mxu0 0
    %3954 = vmatpush1.bf16.msra.mxu0 0
    %3955 = vmatprep.subr.bf16.mxu0 0
    %3956 = vmatpush1.bf16.msra.mxu0 0
    %3957 = vmatprep.subr.bf16.mxu0 0
    %3958 = vmatpush1.bf16.msra.mxu0 0
    %3959 = vmatprep.subr.bf16.mxu0 0
    %3960 = vmatpush1.bf16.msra.mxu0 0
    %3961 = vmatprep.mubr.bf16.mxu0 0
    %3962 = vmatmul.mubr.bf16.gmra.mrb[0].mxu0 %v3924
    %v3963 = vpop.f32.mrb[0].mxu0
    %v3964 = vadd.f32 0.0, %v3963
    %v3965 = vpop.f32.mrb[0].mxu0
    %v3966 = vpop.f32.mrb[0].mxu0
    %v3967 = vpop.f32.mrb[0].mxu0
    %3968 = vdwg.mxu0
    %3969 = vrot.lane.b32.xlu0 %v3639, 104
    %v3970 = vpop.permute.xlu0 %3969
    %3971 = vrot.lane.b32.xlu0 %v3640, 104
    %v3972 = vpop.permute.xlu0 %3971
    %v3974 = vsel %vm705, %v3970, 0
    %v3977 = vsel %vm705, %v3972, 0
    %3979 = vmatprep.subr.bf16.mxu0 0
    %3980 = vmatpush1.bf16.xpose.msra.mxu0 %v3977
    %3981 = vmatprep.subr.bf16.mxu0 0
    %3982 = vmatpush1.bf16.xpose.msra.mxu0 0
    %3983 = vmatprep.subr.bf16.mxu0 0
    %3984 = vmatpush1.bf16.xpose.msra.mxu0 0
    %3985 = vmatprep.subr.bf16.mxu0 0
    %3986 = vmatpush1.bf16.xpose.msra.mxu0 0
    %3987 = vmatprep.subr.bf16.mxu0 0
    %3988 = vmatpush1.bf16.xpose.msra.mxu0 0
    %3989 = vmatprep.subr.bf16.mxu0 0
    %3990 = vmatpush1.bf16.xpose.msra.mxu0 0
    %3991 = vmatprep.subr.bf16.mxu0 0
    %3992 = vmatpush1.bf16.xpose.msra.mxu0 0
    %3993 = vmatprep.subr.bf16.mxu0 0
    %3994 = vmatpush1.bf16.xpose.msra.mxu0 0
    %3995 = vmatprep.subr.bf16.mxu0 0
    %3996 = vmatpush1.bf16.xpose.msra.mxu0 0
    %3997 = vmatprep.subr.bf16.mxu0 0
    %3998 = vmatpush1.bf16.xpose.msra.mxu0 0
    %3999 = vmatprep.subr.bf16.mxu0 0
    %4000 = vmatpush1.bf16.xpose.msra.mxu0 0
    %4001 = vmatprep.subr.bf16.mxu0 0
    %4002 = vmatpush1.bf16.xpose.msra.mxu0 0
    %4003 = vmatprep.subr.bf16.mxu0 0
    %4004 = vmatpush1.bf16.xpose.msra.mxu0 0
    %4005 = vmatprep.subr.bf16.mxu0 0
    %4006 = vmatpush1.bf16.xpose.msra.mxu0 0
    %4007 = vmatprep.subr.bf16.mxu0 0
    %4008 = vmatpush1.bf16.xpose.msra.mxu0 0
    %4009 = vmatprep.subr.bf16.mxu0 0
    %4010 = vmatpush1.bf16.xpose.msra.mxu0 0
    %4011 = vmatprep.mubr.bf16.mxu0 0
    %4012 = vmatmul.mubr.bf16.gmra.mrb[0].mxu0 %v3974
    %v4013 = vpop.f32.mrb[0].mxu0
    %v4014 = vadd.f32 %v2648, %v4013
    %v4015 = vpop.f32.mrb[0].mxu0
    %v4016 = vpop.f32.mrb[0].mxu0
    %v4017 = vpop.f32.mrb[0].mxu0
    %4018 = vdwg.mxu0
    %v4019 = vsel %vm753, %v4014, -inf
    %4020 = vmax.xlane.f32.xlu0 %v4019
    %v4021 = vpop.xlane.xlu0 %4020
    %v4022 = vsub.f32 %v4014, %v4021
    %v4023 = vmul.f32 %v4022, 1.442695
    %v4024 = vpow.pop %v4023
    %v4025 = vsel %vm753, %v4024, 0.0
    %4026 = vadd.xlane.f32.xlu0 %v4025
    %v4027 = vpop.xlane.xlu0 %4026
    %v4028 = vrcp.pop %v4027
    %v4029 = vmul.f32 %v4024, %v4028
    %v4030 = vpack.c.bf16 %v4029, %v4029
    %4031 = vrot.lane.b32.xlu0 %v3699, 104
    %v4032 = vpop.permute.xlu0 %4031
    %v4034 = vsel %vm753, %v4030, 0
    %v4037 = vsel %vm437, %v4032, 0
    %4039 = vmatprep.subr.bf16.mxu0 0
    %4040 = vmatpush1.bf16.msra.mxu0 %v4037
    %4041 = vmatprep.subr.bf16.mxu0 0
    %4042 = vmatpush1.bf16.msra.mxu0 0
    %4043 = vmatprep.subr.bf16.mxu0 0
    %4044 = vmatpush1.bf16.msra.mxu0 0
    %4045 = vmatprep.subr.bf16.mxu0 0
    %4046 = vmatpush1.bf16.msra.mxu0 0
    %4047 = vmatprep.subr.bf16.mxu0 0
    %4048 = vmatpush1.bf16.msra.mxu0 0
    %4049 = vmatprep.subr.bf16.mxu0 0
    %4050 = vmatpush1.bf16.msra.mxu0 0
    %4051 = vmatprep.subr.bf16.mxu0 0
    %4052 = vmatpush1.bf16.msra.mxu0 0
    %4053 = vmatprep.subr.bf16.mxu0 0
    %4054 = vmatpush1.bf16.msra.mxu0 0
    %4055 = vmatprep.subr.bf16.mxu0 0
    %4056 = vmatpush1.bf16.msra.mxu0 0
    %4057 = vmatprep.subr.bf16.mxu0 0
    %4058 = vmatpush1.bf16.msra.mxu0 0
    %4059 = vmatprep.subr.bf16.mxu0 0
    %4060 = vmatpush1.bf16.msra.mxu0 0
    %4061 = vmatprep.subr.bf16.mxu0 0
    %4062 = vmatpush1.bf16.msra.mxu0 0
    %4063 = vmatprep.subr.bf16.mxu0 0
    %4064 = vmatpush1.bf16.msra.mxu0 0
    %4065 = vmatprep.subr.bf16.mxu0 0
    %4066 = vmatpush1.bf16.msra.mxu0 0
    %4067 = vmatprep.subr.bf16.mxu0 0
    %4068 = vmatpush1.bf16.msra.mxu0 0
    %4069 = vmatprep.subr.bf16.mxu0 0
    %4070 = vmatpush1.bf16.msra.mxu0 0
    %4071 = vmatprep.mubr.bf16.mxu0 0
    %4072 = vmatmul.mubr.bf16.gmra.mrb[0].mxu0 %v4034
    %v4073 = vpop.f32.mrb[0].mxu0
    %v4074 = vadd.f32 0.0, %v4073
    %v4075 = vpop.f32.mrb[0].mxu0
    %v4076 = vpop.f32.mrb[0].mxu0
    %v4077 = vpop.f32.mrb[0].mxu0
    %4078 = vdwg.mxu0
    %4080 = vrot.lane.b32.xlu0 %v3854, 8
    %v4081 = vpop.permute.xlu0 %4080
    %4084 = vrot.lane.b32.xlu0 %v3964, 16
    %v4085 = vpop.permute.xlu0 %4084
    %4088 = vrot.lane.b32.xlu0 %v4074, 24
    %v4089 = vpop.permute.xlu0 %4088
    %v4091 = vsel %vm705, %v3741, %v4081
    %v4092 = vsel %vm1224, %v4091, %v4085
    %v4093 = vsel %vm1227, %v4092, %v4089
    %v4094 = vpack.c.bf16 %v4093, %v4093
    %v4096 = vlaneseq
    %v4097 = vshrl.u32 %v4096, 7
    %v4098 = vsub.s32 0, %v4097
    %v4099 = vrot.slane %v3454, %v4098
    %v4105 = vunpack.c.l.b16 %v3443
    %v4106 = vunpack.c.l.b16 %v3444
    %v4107 = vunpack.c.l.b16 %v3445
    %v4108 = vunpack.c.l.b16 %v3446
    %v4109 = vpack.c.b16 %v4106, %v4105
    %v4110 = vpack.c.b16 %v4108, %v4107
    %v4114 = vsel %vm457, %v4094, 0
    %4116 = vmatprep.subr.bf16.mxu0 0
    %4117 = vmatpush1.bf16.msra.mxu0 %v4109
    %4118 = vmatprep.subr.bf16.mxu0 0
    %4119 = vmatpush1.bf16.msra.mxu0 %v4110
    %4120 = vmatprep.subr.bf16.mxu0 0
    %4121 = vmatpush1.bf16.msra.mxu0 0
    %4122 = vmatprep.subr.bf16.mxu0 0
    %4123 = vmatpush1.bf16.msra.mxu0 0
    %4124 = vmatprep.subr.bf16.mxu0 0
    %4125 = vmatpush1.bf16.msra.mxu0 0
    %4126 = vmatprep.subr.bf16.mxu0 0
    %4127 = vmatpush1.bf16.msra.mxu0 0
    %4128 = vmatprep.subr.bf16.mxu0 0
    %4129 = vmatpush1.bf16.msra.mxu0 0
    %4130 = vmatprep.subr.bf16.mxu0 0
    %4131 = vmatpush1.bf16.msra.mxu0 0
    %4132 = vmatprep.subr.bf16.mxu0 0
    %4133 = vmatpush1.bf16.msra.mxu0 0
    %4134 = vmatprep.subr.bf16.mxu0 0
    %4135 = vmatpush1.bf16.msra.mxu0 0
    %4136 = vmatprep.subr.bf16.mxu0 0
    %4137 = vmatpush1.bf16.msra.mxu0 0
    %4138 = vmatprep.subr.bf16.mxu0 0
    %4139 = vmatpush1.bf16.msra.mxu0 0
    %4140 = vmatprep.subr.bf16.mxu0 0
    %4141 = vmatpush1.bf16.msra.mxu0 0
    %4142 = vmatprep.subr.bf16.mxu0 0
    %4143 = vmatpush1.bf16.msra.mxu0 0
    %4144 = vmatprep.subr.bf16.mxu0 0
    %4145 = vmatpush1.bf16.msra.mxu0 0
    %4146 = vmatprep.subr.bf16.mxu0 0
    %4147 = vmatpush1.bf16.msra.mxu0 0
    %4148 = vmatprep.mubr.bf16.mxu0 0
    %4149 = vmatmul.mubr.bf16.gmra.mrb[0].mxu0 %v4114
    %v4150 = vpop.f32.mrb[0].mxu0
    %v4151 = vadd.f32 %v4099, %v4150
    %v4152 = vpop.f32.mrb[0].mxu0
    %v4153 = vpop.f32.mrb[0].mxu0
    %v4154 = vpop.f32.mrb[0].mxu0
    %4155 = vdwg.mxu0
    %v4156 = vadd.f32 %v3395, %v4151
    %s4157 = scalar_lea.vmem %s53, 3
    %v4158 = vld [vmem:[%s4157] sm:$0x1]
    %s4159 = scalar_lea.vmem %s55, 3
    %v4160 = vld [vmem:[%s4159] sm:$0x1]
    %v4161 = vsel %vm457, %v4156, 0.0
    %4162 = vadd.xlane.f32.xlu0 %v4161
    %v4163 = vpop.xlane.xlu0 %4162
    %v4164 = vmul.f32 %v4163, %v465
    %v4165 = vsub.f32 %v4156, %v4164
    %v4166 = vmul.f32 %v4165, %v4165
    %v4167 = vsel %vm457, %v4166, 0.0
    %4168 = vadd.xlane.f32.xlu0 %v4167
    %v4169 = vpop.xlane.xlu0 %4168
    %v4170 = vmul.f32 %v4169, %v465
    %v4171 = vadd.f32 %v4170, 1e-05
    %v4172 = vrsqrt.pop %v4171
    %v4173 = vmul.f32 %v4165, %v4172
    %v4175 = vlaneseq
    %v4176 = vshrl.u32 %v4175, 7
    %v4177 = vsub.s32 0, %v4176
    %v4178 = vrot.slane %v4158, %v4177
    %v4180 = vmul.f32 %v4173, %v4178
    %v4182 = vlaneseq
    %v4183 = vshrl.u32 %v4182, 7
    %v4184 = vsub.s32 0, %v4183
    %v4185 = vrot.slane %v4160, %v4184
    %v4187 = vadd.f32 %v4180, %v4185
    %v4188 = vld [vmem:[%s73] sm:$0xf]
    %v4189 = vld [vmem:[%s73 + $0x4] sm:$0xf]
    %v4190 = vld [vmem:[%s73 + $0x8] sm:$0xf]
    %v4191 = vld [vmem:[%s73 + $0xc] sm:$0xf]
    %v4192 = vpack.c.bf16 %v4187, %v4187
    %v4193 = vld [vmem:[#allocation7] sm:$0x1]
    %v4195 = vlaneseq
    %v4196 = vshrl.u32 %v4195, 7
    %v4197 = vsub.s32 0, %v4196
    %v4198 = vrot.slane %v4193, %v4197
    %v4204 = vunpack.c.l.b16 %v4188
    %v4205 = vunpack.c.l.b16 %v4189
    %v4206 = vunpack.c.l.b16 %v4190
    %v4207 = vunpack.c.l.b16 %v4191
    %v4208 = vpack.c.b16 %v4205, %v4204
    %v4209 = vpack.c.b16 %v4207, %v4206
    %v4213 = vsel %vm457, %v4192, 0
    %4215 = vmatprep.subr.bf16.mxu0 0
    %4216 = vmatpush1.bf16.msra.mxu0 %v4208
    %4217 = vmatprep.subr.bf16.mxu0 0
    %4218 = vmatpush1.bf16.msra.mxu0 %v4209
    %4219 = vmatprep.subr.bf16.mxu0 0
    %4220 = vmatpush1.bf16.msra.mxu0 0
    %4221 = vmatprep.subr.bf16.mxu0 0
    %4222 = vmatpush1.bf16.msra.mxu0 0
    %4223 = vmatprep.subr.bf16.mxu0 0
    %4224 = vmatpush1.bf16.msra.mxu0 0
    %4225 = vmatprep.subr.bf16.mxu0 0
    %4226 = vmatpush1.bf16.msra.mxu0 0
    %4227 = vmatprep.subr.bf16.mxu0 0
    %4228 = vmatpush1.bf16.msra.mxu0 0
    %4229 = vmatprep.subr.bf16.mxu0 0
    %4230 = vmatpush1.bf16.msra.mxu0 0
    %4231 = vmatprep.subr.bf16.mxu0 0
    %4232 = vmatpush1.bf16.msra.mxu0 0
    %4233 = vmatprep.subr.bf16.mxu0 0
    %4234 = vmatpush1.bf16.msra.mxu0 0
    %4235 = vmatprep.subr.bf16.mxu0 0
    %4236 = vmatpush1.bf16.msra.mxu0 0
    %4237 = vmatprep.subr.bf16.mxu0 0
    %4238 = vmatpush1.bf16.msra.mxu0 0
    %4239 = vmatprep.subr.bf16.mxu0 0
    %4240 = vmatpush1.bf16.msra.mxu0 0
    %4241 = vmatprep.subr.bf16.mxu0 0
    %4242 = vmatpush1.bf16.msra.mxu0 0
    %4243 = vmatprep.subr.bf16.mxu0 0
    %4244 = vmatpush1.bf16.msra.mxu0 0
    %4245 = vmatprep.subr.bf16.mxu0 0
    %4246 = vmatpush1.bf16.msra.mxu0 0
    %4247 = vmatprep.mubr.bf16.mxu0 0
    %4248 = vmatmul.mubr.bf16.gmra.mrb[0].mxu0 %v4213
    %v4249 = vpop.f32.mrb[0].mxu0
    %v4250 = vadd.f32 %v4198, %v4249
    %v4251 = vpop.f32.mrb[0].mxu0
    %v4252 = vpop.f32.mrb[0].mxu0
    %v4253 = vpop.f32.mrb[0].mxu0
    %4254 = vdwg.mxu0
    %v4255 = vmul.f32 %v4250, %v4250
    %v4256 = vmul.f32 %v4250, %v4255
    %v4257 = vmul.f32 %v4256, 0.044715
    %v4258 = vadd.f32 %v4250, %v4257
    %v4259 = vmul.f32 %v4258, 0.7978846
    %v4260 = vtanh.pop %v4259
    %v4261 = vadd.f32 %v4260, 1.0
    %v4262 = vmul.f32 %v4261, 0.5
    %v4263 = vmul.f32 %v4250, %v4262
    %v4264 = vld [vmem:[%s77] sm:$0xf]
    %v4265 = vld [vmem:[%s77 + $0x4] sm:$0xf]
    %v4266 = vld [vmem:[%s77 + $0x8] sm:$0xf]
    %v4267 = vld [vmem:[%s77 + $0xc] sm:$0xf]
    %v4268 = vld [vmem:[%s77 + $0x10] sm:$0xf]
    %v4269 = vld [vmem:[%s77 + $0x14] sm:$0xf]
    %v4270 = vld [vmem:[%s77 + $0x18] sm:$0xf]
    %v4271 = vld [vmem:[%s77 + $0x1c] sm:$0xf]
    %v4272 = vpack.c.bf16 %v4263, %v4263
    %v4281 = vunpack.c.l.b16 %v4264
    %v4282 = vunpack.c.l.b16 %v4265
    %v4283 = vunpack.c.l.b16 %v4266
    %v4284 = vunpack.c.l.b16 %v4267
    %v4285 = vunpack.c.l.b16 %v4268
    %v4286 = vunpack.c.l.b16 %v4269
    %v4287 = vunpack.c.l.b16 %v4270
    %v4288 = vunpack.c.l.b16 %v4271
    %v4289 = vpack.c.b16 %v4282, %v4281
    %v4290 = vpack.c.b16 %v4284, %v4283
    %v4291 = vpack.c.b16 %v4286, %v4285
    %v4292 = vpack.c.b16 %v4288, %v4287
    %v4298 = vsel %vm379, %v4272, 0
    %4300 = vmatprep.subr.bf16.mxu0 0
    %4301 = vmatpush1.bf16.msra.mxu0 %v4289
    %4302 = vmatprep.subr.bf16.mxu0 0
    %4303 = vmatpush1.bf16.msra.mxu0 %v4290
    %4304 = vmatprep.subr.bf16.mxu0 0
    %4305 = vmatpush1.bf16.msra.mxu0 %v4291
    %4306 = vmatprep.subr.bf16.mxu0 0
    %4307 = vmatpush1.bf16.msra.mxu0 %v4292
    %4308 = vmatprep.subr.bf16.mxu0 0
    %4309 = vmatpush1.bf16.msra.mxu0 0
    %4310 = vmatprep.subr.bf16.mxu0 0
    %4311 = vmatpush1.bf16.msra.mxu0 0
    %4312 = vmatprep.subr.bf16.mxu0 0
    %4313 = vmatpush1.bf16.msra.mxu0 0
    %4314 = vmatprep.subr.bf16.mxu0 0
    %4315 = vmatpush1.bf16.msra.mxu0 0
    %4316 = vmatprep.subr.bf16.mxu0 0
    %4317 = vmatpush1.bf16.msra.mxu0 0
    %4318 = vmatprep.subr.bf16.mxu0 0
    %4319 = vmatpush1.bf16.msra.mxu0 0
    %4320 = vmatprep.subr.bf16.mxu0 0
    %4321 = vmatpush1.bf16.msra.mxu0 0
    %4322 = vmatprep.subr.bf16.mxu0 0
    %4323 = vmatpush1.bf16.msra.mxu0 0
    %4324 = vmatprep.subr.bf16.mxu0 0
    %4325 = vmatpush1.bf16.msra.mxu0 0
    %4326 = vmatprep.subr.bf16.mxu0 0
    %4327 = vmatpush1.bf16.msra.mxu0 0
    %4328 = vmatprep.subr.bf16.mxu0 0
    %4329 = vmatpush1.bf16.msra.mxu0 0
    %4330 = vmatprep.subr.bf16.mxu0 0
    %4331 = vmatpush1.bf16.msra.mxu0 0
    %4332 = vmatprep.mubr.bf16.mxu0 0
    %4333 = vmatmul.mubr.bf16.gmra.mrb[0].mxu0 %v4298
    %v4334 = vpop.f32.mrb[0].mxu0
    %v4335 = vadd.f32 0.0, %v4334
    %v4336 = vpop.f32.mrb[0].mxu0
    %v4337 = vpop.f32.mrb[0].mxu0
    %v4338 = vpop.f32.mrb[0].mxu0
    %4339 = vdwg.mxu0
    %v4340 = vadd.f32 %v4156, %v4335
    %v4341 = vld [vmem:[#allocation8] sm:$0x1]
    %v4343 = vlaneseq
    %v4344 = vshrl.u32 %v4343, 7
    %v4345 = vsub.s32 0, %v4344
    %v4346 = vrot.slane %v4341, %v4345
    %v4348 = vadd.f32 %v4340, %v4346
    %s4349 = scalar_lea.vmem %s53, 4
    %v4350 = vld [vmem:[%s4349] sm:$0x1]
    %s4351 = scalar_lea.vmem %s55, 4
    %v4352 = vld [vmem:[%s4351] sm:$0x1]
    %v4353 = vsel %vm457, %v4348, 0.0
    %4354 = vadd.xlane.f32.xlu0 %v4353
    %v4355 = vpop.xlane.xlu0 %4354
    %v4356 = vmul.f32 %v4355, %v465
    %v4357 = vsub.f32 %v4348, %v4356
    %v4358 = vmul.f32 %v4357, %v4357
    %v4359 = vsel %vm457, %v4358, 0.0
    %4360 = vadd.xlane.f32.xlu0 %v4359
    %v4361 = vpop.xlane.xlu0 %4360
    %v4362 = vmul.f32 %v4361, %v465
    %v4363 = vadd.f32 %v4362, 1e-05
    %v4364 = vrsqrt.pop %v4363
    %v4365 = vmul.f32 %v4357, %v4364
    %v4367 = vlaneseq
    %v4368 = vshrl.u32 %v4367, 7
    %v4369 = vsub.s32 0, %v4368
    %v4370 = vrot.slane %v4350, %v4369
    %v4372 = vmul.f32 %v4365, %v4370
    %v4374 = vlaneseq
    %v4375 = vshrl.u32 %v4374, 7
    %v4376 = vsub.s32 0, %v4375
    %v4377 = vrot.slane %v4352, %v4376
    %v4379 = vadd.f32 %v4372, %v4377
    %v4380 = vld [vmem:[%s81] sm:$0xf]
    %v4381 = vld [vmem:[%s81 + $0x4] sm:$0xf]
    %v4382 = vld [vmem:[%s81 + $0x8] sm:$0xf]
    %v4383 = vld [vmem:[%s81 + $0xc] sm:$0xf]
    %v4384 = vpack.c.bf16 %v4379, %v4379
    %v4385 = vld [vmem:[#allocation10] sm:$0x1]
    %v4387 = vlaneseq
    %v4388 = vshrl.u32 %v4387, 7
    %v4389 = vsub.s32 0, %v4388
    %v4390 = vrot.slane %v4385, %v4389
    %v4396 = vunpack.c.l.b16 %v4380
    %v4397 = vunpack.c.l.b16 %v4381
    %v4398 = vunpack.c.l.b16 %v4382
    %v4399 = vunpack.c.l.b16 %v4383
    %v4400 = vpack.c.b16 %v4397, %v4396
    %v4401 = vpack.c.b16 %v4399, %v4398
    %v4405 = vsel %vm457, %v4384, 0
    %4407 = vmatprep.subr.bf16.mxu0 0
    %4408 = vmatpush1.bf16.msra.mxu0 %v4400
    %4409 = vmatprep.subr.bf16.mxu0 0
    %4410 = vmatpush1.bf16.msra.mxu0 %v4401
    %4411 = vmatprep.subr.bf16.mxu0 0
    %4412 = vmatpush1.bf16.msra.mxu0 0
    %4413 = vmatprep.subr.bf16.mxu0 0
    %4414 = vmatpush1.bf16.msra.mxu0 0
    %4415 = vmatprep.subr.bf16.mxu0 0
    %4416 = vmatpush1.bf16.msra.mxu0 0
    %4417 = vmatprep.subr.bf16.mxu0 0
    %4418 = vmatpush1.bf16.msra.mxu0 0
    %4419 = vmatprep.subr.bf16.mxu0 0
    %4420 = vmatpush1.bf16.msra.mxu0 0
    %4421 = vmatprep.subr.bf16.mxu0 0
    %4422 = vmatpush1.bf16.msra.mxu0 0
    %4423 = vmatprep.subr.bf16.mxu0 0
    %4424 = vmatpush1.bf16.msra.mxu0 0
    %4425 = vmatprep.subr.bf16.mxu0 0
    %4426 = vmatpush1.bf16.msra.mxu0 0
    %4427 = vmatprep.subr.bf16.mxu0 0
    %4428 = vmatpush1.bf16.msra.mxu0 0
    %4429 = vmatprep.subr.bf16.mxu0 0
    %4430 = vmatpush1.bf16.msra.mxu0 0
    %4431 = vmatprep.subr.bf16.mxu0 0
    %4432 = vmatpush1.bf16.msra.mxu0 0
    %4433 = vmatprep.subr.bf16.mxu0 0
    %4434 = vmatpush1.bf16.msra.mxu0 0
    %4435 = vmatprep.subr.bf16.mxu0 0
    %4436 = vmatpush1.bf16.msra.mxu0 0
    %4437 = vmatprep.subr.bf16.mxu0 0
    %4438 = vmatpush1.bf16.msra.mxu0 0
    %4439 = vmatprep.mubr.bf16.mxu0 0
    %4440 = vmatmul.mubr.bf16.gmra.mrb[0].mxu0 %v4405
    %v4441 = vpop.f32.mrb[0].mxu0
    %v4442 = vadd.f32 %v4390, %v4441
    %v4443 = vpop.f32.mrb[0].mxu0
    %v4444 = vpop.f32.mrb[0].mxu0
    %v4445 = vpop.f32.mrb[0].mxu0
    %4446 = vdwg.mxu0
    %v4447 = vld [vmem:[%s5] sm:$0xff]
    %v4448 = vld [vmem:[%s5 + $0x8] sm:$0xff]
    %4449 = vset.pattern.permute.xlu0 0
    %4450 = vperm.xlu0 %4449, %v4447
    %v4451 = vpop.permute.xlu0 %4450
    %4452 = vset.pattern.permute.xlu0 0
    %4453 = vperm.xlu0 %4452, %v4448
    %v4454 = vpop.permute.xlu0 %4453
    %vm4455 = vcmp.eq.s32.totalorder %v2632, %v4451
    %vm4456 = vcmp.eq.s32.totalorder %v2632, %v4454
    %v4457 = vsel %vm4455, 1, 0
    %v4458 = vsel %vm4456, 1, 0
    %v4459 = vcvt.s32.f32 %v4457
    %v4460 = vcvt.s32.f32 %v4458
    %v4461 = vpack.c.bf16 %v4460, %v4459
    %v4462 = vld [vmem:[%s85] sm:$0xf]
    %v4463 = vld [vmem:[%s85 + $0x4] sm:$0xf]
    %v4464 = vld [vmem:[%s85 + $0x8] sm:$0xf]
    %v4465 = vld [vmem:[%s85 + $0xc] sm:$0xf]
    %v4466 = vld [vmem:[%s85 + $0x10] sm:$0xf]
    %v4467 = vld [vmem:[%s85 + $0x14] sm:$0xf]
    %v4468 = vld [vmem:[%s85 + $0x18] sm:$0xf]
    %v4469 = vld [vmem:[%s85 + $0x1c] sm:$0xf]
    %v4478 = vunpack.c.l.b16 %v4462
    %v4479 = vunpack.c.l.b16 %v4463
    %v4480 = vunpack.c.l.b16 %v4464
    %v4481 = vunpack.c.l.b16 %v4465
    %v4482 = vunpack.c.l.b16 %v4466
    %v4483 = vunpack.c.l.b16 %v4467
    %v4484 = vunpack.c.l.b16 %v4468
    %v4485 = vunpack.c.l.b16 %v4469
    %v4486 = vpack.c.b16 %v4479, %v4478
    %v4487 = vpack.c.b16 %v4481, %v4480
    %v4488 = vpack.c.b16 %v4483, %v4482
    %v4489 = vpack.c.b16 %v4485, %v4484
    %v4495 = vsel %vm379, %v4461, 0
    %4497 = vmatprep.subr.bf16.mxu0 0
    %4498 = vmatpush1.bf16.msra.mxu0 %v4486
    %4499 = vmatprep.subr.bf16.mxu0 0
    %4500 = vmatpush1.bf16.msra.mxu0 %v4487
    %4501 = vmatprep.subr.bf16.mxu0 0
    %4502 = vmatpush1.bf16.msra.mxu0 %v4488
    %4503 = vmatprep.subr.bf16.mxu0 0
    %4504 = vmatpush1.bf16.msra.mxu0 %v4489
    %4505 = vmatprep.subr.bf16.mxu0 0
    %4506 = vmatpush1.bf16.msra.mxu0 0
    %4507 = vmatprep.subr.bf16.mxu0 0
    %4508 = vmatpush1.bf16.msra.mxu0 0
    %4509 = vmatprep.subr.bf16.mxu0 0
    %4510 = vmatpush1.bf16.msra.mxu0 0
    %4511 = vmatprep.subr.bf16.mxu0 0
    %4512 = vmatpush1.bf16.msra.mxu0 0
    %4513 = vmatprep.subr.bf16.mxu0 0
    %4514 = vmatpush1.bf16.msra.mxu0 0
    %4515 = vmatprep.subr.bf16.mxu0 0
    %4516 = vmatpush1.bf16.msra.mxu0 0
    %4517 = vmatprep.subr.bf16.mxu0 0
    %4518 = vmatpush1.bf16.msra.mxu0 0
    %4519 = vmatprep.subr.bf16.mxu0 0
    %4520 = vmatpush1.bf16.msra.mxu0 0
    %4521 = vmatprep.subr.bf16.mxu0 0
    %4522 = vmatpush1.bf16.msra.mxu0 0
    %4523 = vmatprep.subr.bf16.mxu0 0
    %4524 = vmatpush1.bf16.msra.mxu0 0
    %4525 = vmatprep.subr.bf16.mxu0 0
    %4526 = vmatpush1.bf16.msra.mxu0 0
    %4527 = vmatprep.subr.bf16.mxu0 0
    %4528 = vmatpush1.bf16.msra.mxu0 0
    %4529 = vmatprep.mubr.bf16.mxu0 0
    %4530 = vmatmul.mubr.bf16.gmra.mrb[0].mxu0 %v4495
    %v4531 = vpop.f32.mrb[0].mxu0
    %v4532 = vadd.f32 0.0, %v4531
    %v4533 = vpop.f32.mrb[0].mxu0
    %v4534 = vpop.f32.mrb[0].mxu0
    %v4535 = vadd.f32 0.0, %v4534
    %v4536 = vpop.f32.mrb[0].mxu0
    %4537 = vdwg.mxu0
    %v4539 = vrot.slane %v4532, 4
    %v4541 = vsel %vm2627, %v4442, %v4539
    %v4542 = vsel %vm2627, %v4539, %v4442
    %v4543 = vld [vmem:[%s3] sm:$0x1]
    %v4544 = vadd.s32 %v2630, 8
    %vm4545 = vcmp.le.s32.totalorder %v2632, %v4544
    %v4546 = vsel %vm4545, 0.0, -1e+09
    %vm4547 = vcmask 97280
    %v4548 = vsel %vm4547, %v2634, -1e+09
    %v4549 = vsel %vm4547, %v4546, -1e+09
    %4551 = vrot.lane.b32.xlu0 %v2634, 12
    %v4552 = vpop.permute.xlu0 %4551
    %4553 = vrot.lane.b32.xlu0 %v4546, 12
    %v4554 = vpop.permute.xlu0 %4553
    %v4557 = vsel %vm4547, -1e+09, %v4552
    %v4558 = vsel %vm4547, -1e+09, %v4554
    %v4561 = vrot.slane %v4557, 4
    %v4562 = vrot.slane %v4558, 4
    %v4563 = vsel %vm2627, %v4561, %v4562
    %v4566 = vsel %vm2627, %v4549, %v4561
    %vm4567 = vcmp.gt.f32.partialorder %v4543, 0.5
    %v4568 = vsel %vm4567, 0.0, -1e+09
    %v4570 = vlaneseq
    %v4571 = vshrl.u32 %v4570, 7
    %v4572 = vsub.s32 0, %v4571
    %v4573 = vrot.slane %v4568, %v4572
    %v4575 = vadd.f32 %v4548, %v4573
    %v4576 = vadd.f32 %v4566, %v4573
    %v4577 = vadd.f32 %v4563, %v4573
    %v4578 = vld [vmem:[%s87] sm:$0x1]
    %v4579 = vmul.f32 %v4541, %v4541
    %v4580 = vmul.f32 %v4542, %v4542
    %v4581 = vmul.f32 %v4535, %v4535
    %v4582 = vsel %vm457, %v4579, 0.0
    %4583 = vadd.xlane.f32.xlu0 %v4582
    %v4584 = vpop.xlane.xlu0 %4583
    %v4585 = vsel %vm457, %v4580, 0.0
    %4586 = vadd.xlane.f32.xlu0 %v4585
    %v4587 = vpop.xlane.xlu0 %4586
    %v4588 = vsel %vm457, %v4581, 0.0
    %4589 = vadd.xlane.f32.xlu0 %v4588
    %v4590 = vpop.xlane.xlu0 %4589
    %v4591 = vmul.f32 %v4584, %v465
    %v4592 = vmul.f32 %v4587, %v465
    %v4593 = vmul.f32 %v4590, %v465
    %v4594 = vadd.f32 %v4591, 1e-06
    %v4595 = vadd.f32 %v4592, 1e-06
    %v4596 = vadd.f32 %v4593, 1e-06
    %v4597 = vrsqrt.pop %v4594
    %v4598 = vrsqrt.pop %v4595
    %v4599 = vrsqrt.pop %v4596
    %v4600 = vmul.f32 %v4541, %v4597
    %v4601 = vmul.f32 %v4542, %v4598
    %v4602 = vmul.f32 %v4535, %v4599
    %v4604 = vlaneseq
    %v4605 = vshrl.u32 %v4604, 7
    %v4606 = vsub.s32 0, %v4605
    %v4607 = vrot.slane %v4578, %v4606
    %v4609 = vmul.f32 %v4600, %v4607
    %v4610 = vmul.f32 %v4601, %v4607
    %v4611 = vmul.f32 %v4602, %v4607
    %v4612 = vld [vmem:[%s89] sm:$0xf]
    %v4613 = vld [vmem:[%s89 + $0x4] sm:$0xf]
    %v4614 = vld [vmem:[%s89 + $0x8] sm:$0xf]
    %v4615 = vld [vmem:[%s89 + $0xc] sm:$0xf]
    %v4616 = vld [vmem:[%s91] sm:$0xf]
    %v4617 = vld [vmem:[%s91 + $0x4] sm:$0xf]
    %v4618 = vld [vmem:[%s91 + $0x8] sm:$0xf]
    %v4619 = vld [vmem:[%s91 + $0xc] sm:$0xf]
    %v4620 = vld [vmem:[%s93] sm:$0xf]
    %v4621 = vld [vmem:[%s93 + $0x4] sm:$0xf]
    %v4622 = vld [vmem:[%s93 + $0x8] sm:$0xf]
    %v4623 = vld [vmem:[%s93 + $0xc] sm:$0xf]
    %v4624 = vld [vmem:[%s95] sm:$0xf]
    %v4625 = vld [vmem:[%s95 + $0x4] sm:$0xf]
    %v4626 = vld [vmem:[%s95 + $0x8] sm:$0xf]
    %v4627 = vld [vmem:[%s95 + $0xc] sm:$0xf]
    %v4628 = vpack.c.bf16 %v4610, %v4609
    %v4629 = vpack.c.bf16 %v4611, %v4611
    %v4634 = vunpack.c.l.b16 %v4612
    %v4635 = vunpack.c.l.b16 %v4613
    %v4636 = vunpack.c.l.b16 %v4614
    %v4637 = vunpack.c.l.b16 %v4615
    %v4638 = vpack.c.b16 %v4635, %v4634
    %v4639 = vpack.c.b16 %v4637, %v4636
    %v4643 = vsel %vm457, %v4628, 0
    %v4646 = vsel %vm457, %v4629, 0
    %4648 = vmatprep.subr.bf16.mxu0 0
    %4649 = vmatpush1.bf16.msra.mxu0 %v4638
    %4650 = vmatprep.subr.bf16.mxu0 0
    %4651 = vmatpush1.bf16.msra.mxu0 %v4639
    %4652 = vmatprep.subr.bf16.mxu0 0
    %4653 = vmatpush1.bf16.msra.mxu0 0
    %4654 = vmatprep.subr.bf16.mxu0 0
    %4655 = vmatpush1.bf16.msra.mxu0 0
    %4656 = vmatprep.subr.bf16.mxu0 0
    %4657 = vmatpush1.bf16.msra.mxu0 0
    %4658 = vmatprep.subr.bf16.mxu0 0
    %4659 = vmatpush1.bf16.msra.mxu0 0
    %4660 = vmatprep.subr.bf16.mxu0 0
    %4661 = vmatpush1.bf16.msra.mxu0 0
    %4662 = vmatprep.subr.bf16.mxu0 0
    %4663 = vmatpush1.bf16.msra.mxu0 0
    %4664 = vmatprep.subr.bf16.mxu0 0
    %4665 = vmatpush1.bf16.msra.mxu0 0
    %4666 = vmatprep.subr.bf16.mxu0 0
    %4667 = vmatpush1.bf16.msra.mxu0 0
    %4668 = vmatprep.subr.bf16.mxu0 0
    %4669 = vmatpush1.bf16.msra.mxu0 0
    %4670 = vmatprep.subr.bf16.mxu0 0
    %4671 = vmatpush1.bf16.msra.mxu0 0
    %4672 = vmatprep.subr.bf16.mxu0 0
    %4673 = vmatpush1.bf16.msra.mxu0 0
    %4674 = vmatprep.subr.bf16.mxu0 0
    %4675 = vmatpush1.bf16.msra.mxu0 0
    %4676 = vmatprep.subr.bf16.mxu0 0
    %4677 = vmatpush1.bf16.msra.mxu0 0
    %4678 = vmatprep.subr.bf16.mxu0 0
    %4679 = vmatpush1.bf16.msra.mxu0 0
    %4680 = vmatprep.mubr.bf16.mxu0 0
    %4681 = vmatmul.mubr.bf16.gmra.mrb[0].mxu0 %v4643
    %v4682 = vpop.f32.mrb[0].mxu0
    %v4683 = vadd.f32 0.0, %v4682
    %v4684 = vpop.f32.mrb[0].mxu0
    %v4685 = vpop.f32.mrb[0].mxu0
    %v4686 = vadd.f32 0.0, %v4685
    %v4687 = vpop.f32.mrb[0].mxu0
    %4688 = vmatprep.mubr.bf16.mxu0 0
    %4689 = vmatmul.mubr.bf16.gmra.mrb[0].mxu0 %v4646
    %v4690 = vpop.f32.mrb[0].mxu0
    %v4691 = vadd.f32 0.0, %v4690
    %v4692 = vpop.f32.mrb[0].mxu0
    %v4693 = vpop.f32.mrb[0].mxu0
    %v4694 = vpop.f32.mrb[0].mxu0
    %4695 = vdwg.mxu0
    %v4700 = vunpack.c.l.b16 %v4616
    %v4701 = vunpack.c.l.b16 %v4617
    %v4702 = vunpack.c.l.b16 %v4618
    %v4703 = vunpack.c.l.b16 %v4619
    %v4704 = vpack.c.b16 %v4701, %v4700
    %v4705 = vpack.c.b16 %v4703, %v4702
    %4708 = vmatprep.subr.bf16.mxu0 0
    %4709 = vmatpush1.bf16.msra.mxu0 %v4704
    %4710 = vmatprep.subr.bf16.mxu0 0
    %4711 = vmatpush1.bf16.msra.mxu0 %v4705
    %4712 = vmatprep.subr.bf16.mxu0 0
    %4713 = vmatpush1.bf16.msra.mxu0 0
    %4714 = vmatprep.subr.bf16.mxu0 0
    %4715 = vmatpush1.bf16.msra.mxu0 0
    %4716 = vmatprep.subr.bf16.mxu0 0
    %4717 = vmatpush1.bf16.msra.mxu0 0
    %4718 = vmatprep.subr.bf16.mxu0 0
    %4719 = vmatpush1.bf16.msra.mxu0 0
    %4720 = vmatprep.subr.bf16.mxu0 0
    %4721 = vmatpush1.bf16.msra.mxu0 0
    %4722 = vmatprep.subr.bf16.mxu0 0
    %4723 = vmatpush1.bf16.msra.mxu0 0
    %4724 = vmatprep.subr.bf16.mxu0 0
    %4725 = vmatpush1.bf16.msra.mxu0 0
    %4726 = vmatprep.subr.bf16.mxu0 0
    %4727 = vmatpush1.bf16.msra.mxu0 0
    %4728 = vmatprep.subr.bf16.mxu0 0
    %4729 = vmatpush1.bf16.msra.mxu0 0
    %4730 = vmatprep.subr.bf16.mxu0 0
    %4731 = vmatpush1.bf16.msra.mxu0 0
    %4732 = vmatprep.subr.bf16.mxu0 0
    %4733 = vmatpush1.bf16.msra.mxu0 0
    %4734 = vmatprep.subr.bf16.mxu0 0
    %4735 = vmatpush1.bf16.msra.mxu0 0
    %4736 = vmatprep.subr.bf16.mxu0 0
    %4737 = vmatpush1.bf16.msra.mxu0 0
    %4738 = vmatprep.subr.bf16.mxu0 0
    %4739 = vmatpush1.bf16.msra.mxu0 0
    %4740 = vmatprep.mubr.bf16.mxu0 0
    %4741 = vmatmul.mubr.bf16.gmra.mrb[0].mxu0 %v4643
    %v4742 = vpop.f32.mrb[0].mxu0
    %v4743 = vadd.f32 0.0, %v4742
    %v4744 = vpop.f32.mrb[0].mxu0
    %v4745 = vpop.f32.mrb[0].mxu0
    %v4746 = vadd.f32 0.0, %v4745
    %v4747 = vpop.f32.mrb[0].mxu0
    %4748 = vmatprep.mubr.bf16.mxu0 0
    %4749 = vmatmul.mubr.bf16.gmra.mrb[0].mxu0 %v4646
    %v4750 = vpop.f32.mrb[0].mxu0
    %v4751 = vadd.f32 0.0, %v4750
    %v4752 = vpop.f32.mrb[0].mxu0
    %v4753 = vpop.f32.mrb[0].mxu0
    %v4754 = vpop.f32.mrb[0].mxu0
    %4755 = vdwg.mxu0
    %v4760 = vunpack.c.l.b16 %v4620
    %v4761 = vunpack.c.l.b16 %v4621
    %v4762 = vunpack.c.l.b16 %v4622
    %v4763 = vunpack.c.l.b16 %v4623
    %v4764 = vpack.c.b16 %v4761, %v4760
    %v4765 = vpack.c.b16 %v4763, %v4762
    %4768 = vmatprep.subr.bf16.mxu0 0
    %4769 = vmatpush1.bf16.msra.mxu0 %v4764
    %4770 = vmatprep.subr.bf16.mxu0 0
    %4771 = vmatpush1.bf16.msra.mxu0 %v4765
    %4772 = vmatprep.subr.bf16.mxu0 0
    %4773 = vmatpush1.bf16.msra.mxu0 0
    %4774 = vmatprep.subr.bf16.mxu0 0
    %4775 = vmatpush1.bf16.msra.mxu0 0
    %4776 = vmatprep.subr.bf16.mxu0 0
    %4777 = vmatpush1.bf16.msra.mxu0 0
    %4778 = vmatprep.subr.bf16.mxu0 0
    %4779 = vmatpush1.bf16.msra.mxu0 0
    %4780 = vmatprep.subr.bf16.mxu0 0
    %4781 = vmatpush1.bf16.msra.mxu0 0
    %4782 = vmatprep.subr.bf16.mxu0 0
    %4783 = vmatpush1.bf16.msra.mxu0 0
    %4784 = vmatprep.subr.bf16.mxu0 0
    %4785 = vmatpush1.bf16.msra.mxu0 0
    %4786 = vmatprep.subr.bf16.mxu0 0
    %4787 = vmatpush1.bf16.msra.mxu0 0
    %4788 = vmatprep.subr.bf16.mxu0 0
    %4789 = vmatpush1.bf16.msra.mxu0 0
    %4790 = vmatprep.subr.bf16.mxu0 0
    %4791 = vmatpush1.bf16.msra.mxu0 0
    %4792 = vmatprep.subr.bf16.mxu0 0
    %4793 = vmatpush1.bf16.msra.mxu0 0
    %4794 = vmatprep.subr.bf16.mxu0 0
    %4795 = vmatpush1.bf16.msra.mxu0 0
    %4796 = vmatprep.subr.bf16.mxu0 0
    %4797 = vmatpush1.bf16.msra.mxu0 0
    %4798 = vmatprep.subr.bf16.mxu0 0
    %4799 = vmatpush1.bf16.msra.mxu0 0
    %4800 = vmatprep.mubr.bf16.mxu0 0
    %4801 = vmatmul.mubr.bf16.gmra.mrb[0].mxu0 %v4643
    %v4802 = vpop.f32.mrb[0].mxu0
    %v4803 = vadd.f32 0.0, %v4802
    %v4804 = vpop.f32.mrb[0].mxu0
    %v4805 = vpop.f32.mrb[0].mxu0
    %v4806 = vadd.f32 0.0, %v4805
    %v4807 = vpop.f32.mrb[0].mxu0
    %4808 = vmatprep.mubr.bf16.mxu0 0
    %4809 = vmatmul.mubr.bf16.gmra.mrb[0].mxu0 %v4646
    %v4810 = vpop.f32.mrb[0].mxu0
    %v4811 = vadd.f32 0.0, %v4810
    %v4812 = vpop.f32.mrb[0].mxu0
    %v4813 = vpop.f32.mrb[0].mxu0
    %v4814 = vpop.f32.mrb[0].mxu0
    %4815 = vdwg.mxu0
    %v4816 = vpack.c.bf16 %v4686, %v4683
    %v4817 = vpack.c.bf16 %v4691, %v4691
    %v4818 = vpack.c.bf16 %v4746, %v4743
    %v4819 = vpack.c.bf16 %v4751, %v4751
    %v4821 = vsel %vm705, %v4816, 0
    %v4824 = vsel %vm705, %v4817, 0
    %v4827 = vsel %vm705, %v4818, 0
    %v4830 = vsel %vm705, %v4819, 0
    %4832 = vmatprep.subr.bf16.mxu0 0
    %4833 = vmatpush1.bf16.xpose.msra.mxu0 %v4827
    %4834 = vmatprep.subr.bf16.mxu0 0
    %4835 = vmatpush1.bf16.xpose.msra.mxu0 %v4830
    %4836 = vmatprep.subr.bf16.mxu0 0
    %4837 = vmatpush1.bf16.xpose.msra.mxu0 0
    %4838 = vmatprep.subr.bf16.mxu0 0
    %4839 = vmatpush1.bf16.xpose.msra.mxu0 0
    %4840 = vmatprep.subr.bf16.mxu0 0
    %4841 = vmatpush1.bf16.xpose.msra.mxu0 0
    %4842 = vmatprep.subr.bf16.mxu0 0
    %4843 = vmatpush1.bf16.xpose.msra.mxu0 0
    %4844 = vmatprep.subr.bf16.mxu0 0
    %4845 = vmatpush1.bf16.xpose.msra.mxu0 0
    %4846 = vmatprep.subr.bf16.mxu0 0
    %4847 = vmatpush1.bf16.xpose.msra.mxu0 0
    %4848 = vmatprep.subr.bf16.mxu0 0
    %4849 = vmatpush1.bf16.xpose.msra.mxu0 0
    %4850 = vmatprep.subr.bf16.mxu0 0
    %4851 = vmatpush1.bf16.xpose.msra.mxu0 0
    %4852 = vmatprep.subr.bf16.mxu0 0
    %4853 = vmatpush1.bf16.xpose.msra.mxu0 0
    %4854 = vmatprep.subr.bf16.mxu0 0
    %4855 = vmatpush1.bf16.xpose.msra.mxu0 0
    %4856 = vmatprep.subr.bf16.mxu0 0
    %4857 = vmatpush1.bf16.xpose.msra.mxu0 0
    %4858 = vmatprep.subr.bf16.mxu0 0
    %4859 = vmatpush1.bf16.xpose.msra.mxu0 0
    %4860 = vmatprep.subr.bf16.mxu0 0
    %4861 = vmatpush1.bf16.xpose.msra.mxu0 0
    %4862 = vmatprep.subr.bf16.mxu0 0
    %4863 = vmatpush1.bf16.xpose.msra.mxu0 0
    %4864 = vmatprep.mubr.bf16.mxu0 0
    %4865 = vmatmul.mubr.bf16.gmra.mrb[0].mxu0 %v4821
    %v4866 = vpop.f32.mrb[0].mxu0
    %v4867 = vadd.f32 %v4575, %v4866
    %v4868 = vpop.f32.mrb[0].mxu0
    %v4869 = vpop.f32.mrb[0].mxu0
    %v4870 = vadd.f32 %v4576, %v4869
    %v4871 = vpop.f32.mrb[0].mxu0
    %4872 = vmatprep.mubr.bf16.mxu0 0
    %4873 = vmatmul.mubr.bf16.gmra.mrb[0].mxu0 %v4824
    %v4874 = vpop.f32.mrb[0].mxu0
    %v4875 = vadd.f32 %v4577, %v4874
    %v4876 = vpop.f32.mrb[0].mxu0
    %v4877 = vpop.f32.mrb[0].mxu0
    %v4878 = vpop.f32.mrb[0].mxu0
    %4879 = vdwg.mxu0
    %v4880 = vsel %vm1227, %v4867, -inf
    %4881 = vmax.xlane.f32.xlu0 %v4880
    %v4882 = vpop.xlane.xlu0 %4881
    %v4883 = vsel %vm1227, %v4870, -inf
    %4884 = vmax.xlane.f32.xlu0 %v4883
    %v4885 = vpop.xlane.xlu0 %4884
    %v4886 = vsel %vm1227, %v4875, -inf
    %4887 = vmax.xlane.f32.xlu0 %v4886
    %v4888 = vpop.xlane.xlu0 %4887
    %v4889 = vsub.f32 %v4867, %v4882
    %v4890 = vsub.f32 %v4870, %v4885
    %v4891 = vsub.f32 %v4875, %v4888
    %v4892 = vmul.f32 %v4889, 1.442695
    %v4893 = vpow.pop %v4892
    %v4894 = vmul.f32 %v4890, 1.442695
    %v4895 = vpow.pop %v4894
    %v4896 = vmul.f32 %v4891, 1.442695
    %v4897 = vpow.pop %v4896
    %v4898 = vsel %vm1227, %v4893, 0.0
    %4899 = vadd.xlane.f32.xlu0 %v4898
    %v4900 = vpop.xlane.xlu0 %4899
    %v4901 = vsel %vm1227, %v4895, 0.0
    %4902 = vadd.xlane.f32.xlu0 %v4901
    %v4903 = vpop.xlane.xlu0 %4902
    %v4904 = vsel %vm1227, %v4897, 0.0
    %4905 = vadd.xlane.f32.xlu0 %v4904
    %v4906 = vpop.xlane.xlu0 %4905
    %v4907 = vrcp.pop %v4900
    %v4908 = vrcp.pop %v4903
    %v4909 = vrcp.pop %v4906
    %v4910 = vmul.f32 %v4893, %v4907
    %v4911 = vmul.f32 %v4895, %v4908
    %v4912 = vmul.f32 %v4897, %v4909
    %v4913 = vpack.c.bf16 %v4911, %v4910
    %v4914 = vpack.c.bf16 %v4912, %v4912
    %v4915 = vpack.c.bf16 %v4806, %v4803
    %v4916 = vpack.c.bf16 %v4811, %v4811
    %v4918 = vsel %vm1227, %v4913, 0
    %v4921 = vsel %vm1227, %v4914, 0
    %v4924 = vsel %vm2627, %v4916, 0
    %4926 = vmatprep.subr.bf16.mxu0 0
    %4927 = vmatpush1.bf16.msra.mxu0 %v4915
    %4928 = vmatprep.subr.bf16.mxu0 0
    %4929 = vmatpush1.bf16.msra.mxu0 %v4924
    %4930 = vmatprep.subr.bf16.mxu0 0
    %4931 = vmatpush1.bf16.msra.mxu0 0
    %4932 = vmatprep.subr.bf16.mxu0 0
    %4933 = vmatpush1.bf16.msra.mxu0 0
    %4934 = vmatprep.subr.bf16.mxu0 0
    %4935 = vmatpush1.bf16.msra.mxu0 0
    %4936 = vmatprep.subr.bf16.mxu0 0
    %4937 = vmatpush1.bf16.msra.mxu0 0
    %4938 = vmatprep.subr.bf16.mxu0 0
    %4939 = vmatpush1.bf16.msra.mxu0 0
    %4940 = vmatprep.subr.bf16.mxu0 0
    %4941 = vmatpush1.bf16.msra.mxu0 0
    %4942 = vmatprep.subr.bf16.mxu0 0
    %4943 = vmatpush1.bf16.msra.mxu0 0
    %4944 = vmatprep.subr.bf16.mxu0 0
    %4945 = vmatpush1.bf16.msra.mxu0 0
    %4946 = vmatprep.subr.bf16.mxu0 0
    %4947 = vmatpush1.bf16.msra.mxu0 0
    %4948 = vmatprep.subr.bf16.mxu0 0
    %4949 = vmatpush1.bf16.msra.mxu0 0
    %4950 = vmatprep.subr.bf16.mxu0 0
    %4951 = vmatpush1.bf16.msra.mxu0 0
    %4952 = vmatprep.subr.bf16.mxu0 0
    %4953 = vmatpush1.bf16.msra.mxu0 0
    %4954 = vmatprep.subr.bf16.mxu0 0
    %4955 = vmatpush1.bf16.msra.mxu0 0
    %4956 = vmatprep.subr.bf16.mxu0 0
    %4957 = vmatpush1.bf16.msra.mxu0 0
    %4958 = vmatprep.mubr.bf16.mxu0 0
    %4959 = vmatmul.mubr.bf16.gmra.mrb[0].mxu0 %v4918
    %v4960 = vpop.f32.mrb[0].mxu0
    %v4961 = vadd.f32 0.0, %v4960
    %v4962 = vpop.f32.mrb[0].mxu0
    %v4963 = vpop.f32.mrb[0].mxu0
    %v4964 = vadd.f32 0.0, %v4963
    %v4965 = vpop.f32.mrb[0].mxu0
    %4966 = vmatprep.mubr.bf16.mxu0 0
    %4967 = vmatmul.mubr.bf16.gmra.mrb[0].mxu0 %v4921
    %v4968 = vpop.f32.mrb[0].mxu0
    %v4969 = vadd.f32 0.0, %v4968
    %v4970 = vpop.f32.mrb[0].mxu0
    %v4971 = vpop.f32.mrb[0].mxu0
    %v4972 = vpop.f32.mrb[0].mxu0
    %4973 = vdwg.mxu0
    %4976 = vrot.lane.b32.xlu0 %v4816, 120
    %v4977 = vpop.permute.xlu0 %4976
    %4978 = vrot.lane.b32.xlu0 %v4817, 120
    %v4979 = vpop.permute.xlu0 %4978
    %4982 = vrot.lane.b32.xlu0 %v4818, 120
    %v4983 = vpop.permute.xlu0 %4982
    %4984 = vrot.lane.b32.xlu0 %v4819, 120
    %v4985 = vpop.permute.xlu0 %4984
    %v4987 = vsel %vm705, %v4977, 0
    %v4990 = vsel %vm705, %v4979, 0
    %v4993 = vsel %vm705, %v4983, 0
    %v4996 = vsel %vm705, %v4985, 0
    %4998 = vmatprep.subr.bf16.mxu0 0
    %4999 = vmatpush1.bf16.xpose.msra.mxu0 %v4993
    %5000 = vmatprep.subr.bf16.mxu0 0
    %5001 = vmatpush1.bf16.xpose.msra.mxu0 %v4996
    %5002 = vmatprep.subr.bf16.mxu0 0
    %5003 = vmatpush1.bf16.xpose.msra.mxu0 0
    %5004 = vmatprep.subr.bf16.mxu0 0
    %5005 = vmatpush1.bf16.xpose.msra.mxu0 0
    %5006 = vmatprep.subr.bf16.mxu0 0
    %5007 = vmatpush1.bf16.xpose.msra.mxu0 0
    %5008 = vmatprep.subr.bf16.mxu0 0
    %5009 = vmatpush1.bf16.xpose.msra.mxu0 0
    %5010 = vmatprep.subr.bf16.mxu0 0
    %5011 = vmatpush1.bf16.xpose.msra.mxu0 0
    %5012 = vmatprep.subr.bf16.mxu0 0
    %5013 = vmatpush1.bf16.xpose.msra.mxu0 0
    %5014 = vmatprep.subr.bf16.mxu0 0
    %5015 = vmatpush1.bf16.xpose.msra.mxu0 0
    %5016 = vmatprep.subr.bf16.mxu0 0
    %5017 = vmatpush1.bf16.xpose.msra.mxu0 0
    %5018 = vmatprep.subr.bf16.mxu0 0
    %5019 = vmatpush1.bf16.xpose.msra.mxu0 0
    %5020 = vmatprep.subr.bf16.mxu0 0
    %5021 = vmatpush1.bf16.xpose.msra.mxu0 0
    %5022 = vmatprep.subr.bf16.mxu0 0
    %5023 = vmatpush1.bf16.xpose.msra.mxu0 0
    %5024 = vmatprep.subr.bf16.mxu0 0
    %5025 = vmatpush1.bf16.xpose.msra.mxu0 0
    %5026 = vmatprep.subr.bf16.mxu0 0
    %5027 = vmatpush1.bf16.xpose.msra.mxu0 0
    %5028 = vmatprep.subr.bf16.mxu0 0
    %5029 = vmatpush1.bf16.xpose.msra.mxu0 0
    %5030 = vmatprep.mubr.bf16.mxu0 0
    %5031 = vmatmul.mubr.bf16.gmra.mrb[0].mxu0 %v4987
    %v5032 = vpop.f32.mrb[0].mxu0
    %v5033 = vadd.f32 %v4575, %v5032
    %v5034 = vpop.f32.mrb[0].mxu0
    %v5035 = vpop.f32.mrb[0].mxu0
    %v5036 = vadd.f32 %v4576, %v5035
    %v5037 = vpop.f32.mrb[0].mxu0
    %5038 = vmatprep.mubr.bf16.mxu0 0
    %5039 = vmatmul.mubr.bf16.gmra.mrb[0].mxu0 %v4990
    %v5040 = vpop.f32.mrb[0].mxu0
    %v5041 = vadd.f32 %v4577, %v5040
    %v5042 = vpop.f32.mrb[0].mxu0
    %v5043 = vpop.f32.mrb[0].mxu0
    %v5044 = vpop.f32.mrb[0].mxu0
    %5045 = vdwg.mxu0
    %v5046 = vsel %vm1227, %v5033, -inf
    %5047 = vmax.xlane.f32.xlu0 %v5046
    %v5048 = vpop.xlane.xlu0 %5047
    %v5049 = vsel %vm1227, %v5036, -inf
    %5050 = vmax.xlane.f32.xlu0 %v5049
    %v5051 = vpop.xlane.xlu0 %5050
    %v5052 = vsel %vm1227, %v5041, -inf
    %5053 = vmax.xlane.f32.xlu0 %v5052
    %v5054 = vpop.xlane.xlu0 %5053
    %v5055 = vsub.f32 %v5033, %v5048
    %v5056 = vsub.f32 %v5036, %v5051
    %v5057 = vsub.f32 %v5041, %v5054
    %v5058 = vmul.f32 %v5055, 1.442695
    %v5059 = vpow.pop %v5058
    %v5060 = vmul.f32 %v5056, 1.442695
    %v5061 = vpow.pop %v5060
    %v5062 = vmul.f32 %v5057, 1.442695
    %v5063 = vpow.pop %v5062
    %v5064 = vsel %vm1227, %v5059, 0.0
    %5065 = vadd.xlane.f32.xlu0 %v5064
    %v5066 = vpop.xlane.xlu0 %5065
    %v5067 = vsel %vm1227, %v5061, 0.0
    %5068 = vadd.xlane.f32.xlu0 %v5067
    %v5069 = vpop.xlane.xlu0 %5068
    %v5070 = vsel %vm1227, %v5063, 0.0
    %5071 = vadd.xlane.f32.xlu0 %v5070
    %v5072 = vpop.xlane.xlu0 %5071
    %v5073 = vrcp.pop %v5066
    %v5074 = vrcp.pop %v5069
    %v5075 = vrcp.pop %v5072
    %v5076 = vmul.f32 %v5059, %v5073
    %v5077 = vmul.f32 %v5061, %v5074
    %v5078 = vmul.f32 %v5063, %v5075
    %v5079 = vpack.c.bf16 %v5077, %v5076
    %v5080 = vpack.c.bf16 %v5078, %v5078
    %5083 = vrot.lane.b32.xlu0 %v4915, 120
    %v5084 = vpop.permute.xlu0 %5083
    %5085 = vrot.lane.b32.xlu0 %v4916, 120
    %v5086 = vpop.permute.xlu0 %5085
    %v5089 = vsel %vm1227, %v5079, 0
    %v5092 = vsel %vm1227, %v5080, 0
    %v5095 = vsel %vm2627, %v5086, 0
    %5097 = vmatprep.subr.bf16.mxu0 0
    %5098 = vmatpush1.bf16.msra.mxu0 %v5084
    %5099 = vmatprep.subr.bf16.mxu0 0
    %5100 = vmatpush1.bf16.msra.mxu0 %v5095
    %5101 = vmatprep.subr.bf16.mxu0 0
    %5102 = vmatpush1.bf16.msra.mxu0 0
    %5103 = vmatprep.subr.bf16.mxu0 0
    %5104 = vmatpush1.bf16.msra.mxu0 0
    %5105 = vmatprep.subr.bf16.mxu0 0
    %5106 = vmatpush1.bf16.msra.mxu0 0
    %5107 = vmatprep.subr.bf16.mxu0 0
    %5108 = vmatpush1.bf16.msra.mxu0 0
    %5109 = vmatprep.subr.bf16.mxu0 0
    %5110 = vmatpush1.bf16.msra.mxu0 0
    %5111 = vmatprep.subr.bf16.mxu0 0
    %5112 = vmatpush1.bf16.msra.mxu0 0
    %5113 = vmatprep.subr.bf16.mxu0 0
    %5114 = vmatpush1.bf16.msra.mxu0 0
    %5115 = vmatprep.subr.bf16.mxu0 0
    %5116 = vmatpush1.bf16.msra.mxu0 0
    %5117 = vmatprep.subr.bf16.mxu0 0
    %5118 = vmatpush1.bf16.msra.mxu0 0
    %5119 = vmatprep.subr.bf16.mxu0 0
    %5120 = vmatpush1.bf16.msra.mxu0 0
    %5121 = vmatprep.subr.bf16.mxu0 0
    %5122 = vmatpush1.bf16.msra.mxu0 0
    %5123 = vmatprep.subr.bf16.mxu0 0
    %5124 = vmatpush1.bf16.msra.mxu0 0
    %5125 = vmatprep.subr.bf16.mxu0 0
    %5126 = vmatpush1.bf16.msra.mxu0 0
    %5127 = vmatprep.subr.bf16.mxu0 0
    %5128 = vmatpush1.bf16.msra.mxu0 0
    %5129 = vmatprep.mubr.bf16.mxu0 0
    %5130 = vmatmul.mubr.bf16.gmra.mrb[0].mxu0 %v5089
    %v5131 = vpop.f32.mrb[0].mxu0
    %v5132 = vadd.f32 0.0, %v5131
    %v5133 = vpop.f32.mrb[0].mxu0
    %v5134 = vpop.f32.mrb[0].mxu0
    %v5135 = vadd.f32 0.0, %v5134
    %v5136 = vpop.f32.mrb[0].mxu0
    %5137 = vmatprep.mubr.bf16.mxu0 0
    %5138 = vmatmul.mubr.bf16.gmra.mrb[0].mxu0 %v5092
    %v5139 = vpop.f32.mrb[0].mxu0
    %v5140 = vadd.f32 0.0, %v5139
    %v5141 = vpop.f32.mrb[0].mxu0
    %v5142 = vpop.f32.mrb[0].mxu0
    %v5143 = vpop.f32.mrb[0].mxu0
    %5144 = vdwg.mxu0
    %5145 = vrot.lane.b32.xlu0 %v4816, 112
    %v5146 = vpop.permute.xlu0 %5145
    %5147 = vrot.lane.b32.xlu0 %v4817, 112
    %v5148 = vpop.permute.xlu0 %5147
    %5149 = vrot.lane.b32.xlu0 %v4818, 112
    %v5150 = vpop.permute.xlu0 %5149
    %5151 = vrot.lane.b32.xlu0 %v4819, 112
    %v5152 = vpop.permute.xlu0 %5151
    %v5154 = vsel %vm705, %v5146, 0
    %v5157 = vsel %vm705, %v5148, 0
    %v5160 = vsel %vm705, %v5150, 0
    %v5163 = vsel %vm705, %v5152, 0
    %5165 = vmatprep.subr.bf16.mxu0 0
    %5166 = vmatpush1.bf16.xpose.msra.mxu0 %v5160
    %5167 = vmatprep.subr.bf16.mxu0 0
    %5168 = vmatpush1.bf16.xpose.msra.mxu0 %v5163
    %5169 = vmatprep.subr.bf16.mxu0 0
    %5170 = vmatpush1.bf16.xpose.msra.mxu0 0
    %5171 = vmatprep.subr.bf16.mxu0 0
    %5172 = vmatpush1.bf16.xpose.msra.mxu0 0
    %5173 = vmatprep.subr.bf16.mxu0 0
    %5174 = vmatpush1.bf16.xpose.msra.mxu0 0
    %5175 = vmatprep.subr.bf16.mxu0 0
    %5176 = vmatpush1.bf16.xpose.msra.mxu0 0
    %5177 = vmatprep.subr.bf16.mxu0 0
    %5178 = vmatpush1.bf16.xpose.msra.mxu0 0
    %5179 = vmatprep.subr.bf16.mxu0 0
    %5180 = vmatpush1.bf16.xpose.msra.mxu0 0
    %5181 = vmatprep.subr.bf16.mxu0 0
    %5182 = vmatpush1.bf16.xpose.msra.mxu0 0
    %5183 = vmatprep.subr.bf16.mxu0 0
    %5184 = vmatpush1.bf16.xpose.msra.mxu0 0
    %5185 = vmatprep.subr.bf16.mxu0 0
    %5186 = vmatpush1.bf16.xpose.msra.mxu0 0
    %5187 = vmatprep.subr.bf16.mxu0 0
    %5188 = vmatpush1.bf16.xpose.msra.mxu0 0
    %5189 = vmatprep.subr.bf16.mxu0 0
    %5190 = vmatpush1.bf16.xpose.msra.mxu0 0
    %5191 = vmatprep.subr.bf16.mxu0 0
    %5192 = vmatpush1.bf16.xpose.msra.mxu0 0
    %5193 = vmatprep.subr.bf16.mxu0 0
    %5194 = vmatpush1.bf16.xpose.msra.mxu0 0
    %5195 = vmatprep.subr.bf16.mxu0 0
    %5196 = vmatpush1.bf16.xpose.msra.mxu0 0
    %5197 = vmatprep.mubr.bf16.mxu0 0
    %5198 = vmatmul.mubr.bf16.gmra.mrb[0].mxu0 %v5154
    %v5199 = vpop.f32.mrb[0].mxu0
    %v5200 = vadd.f32 %v4575, %v5199
    %v5201 = vpop.f32.mrb[0].mxu0
    %v5202 = vpop.f32.mrb[0].mxu0
    %v5203 = vadd.f32 %v4576, %v5202
    %v5204 = vpop.f32.mrb[0].mxu0
    %5205 = vmatprep.mubr.bf16.mxu0 0
    %5206 = vmatmul.mubr.bf16.gmra.mrb[0].mxu0 %v5157
    %v5207 = vpop.f32.mrb[0].mxu0
    %v5208 = vadd.f32 %v4577, %v5207
    %v5209 = vpop.f32.mrb[0].mxu0
    %v5210 = vpop.f32.mrb[0].mxu0
    %v5211 = vpop.f32.mrb[0].mxu0
    %5212 = vdwg.mxu0
    %v5213 = vsel %vm1227, %v5200, -inf
    %5214 = vmax.xlane.f32.xlu0 %v5213
    %v5215 = vpop.xlane.xlu0 %5214
    %v5216 = vsel %vm1227, %v5203, -inf
    %5217 = vmax.xlane.f32.xlu0 %v5216
    %v5218 = vpop.xlane.xlu0 %5217
    %v5219 = vsel %vm1227, %v5208, -inf
    %5220 = vmax.xlane.f32.xlu0 %v5219
    %v5221 = vpop.xlane.xlu0 %5220
    %v5222 = vsub.f32 %v5200, %v5215
    %v5223 = vsub.f32 %v5203, %v5218
    %v5224 = vsub.f32 %v5208, %v5221
    %v5225 = vmul.f32 %v5222, 1.442695
    %v5226 = vpow.pop %v5225
    %v5227 = vmul.f32 %v5223, 1.442695
    %v5228 = vpow.pop %v5227
    %v5229 = vmul.f32 %v5224, 1.442695
    %v5230 = vpow.pop %v5229
    %v5231 = vsel %vm1227, %v5226, 0.0
    %5232 = vadd.xlane.f32.xlu0 %v5231
    %v5233 = vpop.xlane.xlu0 %5232
    %v5234 = vsel %vm1227, %v5228, 0.0
    %5235 = vadd.xlane.f32.xlu0 %v5234
    %v5236 = vpop.xlane.xlu0 %5235
    %v5237 = vsel %vm1227, %v5230, 0.0
    %5238 = vadd.xlane.f32.xlu0 %v5237
    %v5239 = vpop.xlane.xlu0 %5238
    %v5240 = vrcp.pop %v5233
    %v5241 = vrcp.pop %v5236
    %v5242 = vrcp.pop %v5239
    %v5243 = vmul.f32 %v5226, %v5240
    %v5244 = vmul.f32 %v5228, %v5241
    %v5245 = vmul.f32 %v5230, %v5242
    %v5246 = vpack.c.bf16 %v5244, %v5243
    %v5247 = vpack.c.bf16 %v5245, %v5245
    %5248 = vrot.lane.b32.xlu0 %v4915, 112
    %v5249 = vpop.permute.xlu0 %5248
    %5250 = vrot.lane.b32.xlu0 %v4916, 112
    %v5251 = vpop.permute.xlu0 %5250
    %v5254 = vsel %vm1227, %v5246, 0
    %v5257 = vsel %vm1227, %v5247, 0
    %v5260 = vsel %vm2627, %v5251, 0
    %5262 = vmatprep.subr.bf16.mxu0 0
    %5263 = vmatpush1.bf16.msra.mxu0 %v5249
    %5264 = vmatprep.subr.bf16.mxu0 0
    %5265 = vmatpush1.bf16.msra.mxu0 %v5260
    %5266 = vmatprep.subr.bf16.mxu0 0
    %5267 = vmatpush1.bf16.msra.mxu0 0
    %5268 = vmatprep.subr.bf16.mxu0 0
    %5269 = vmatpush1.bf16.msra.mxu0 0
    %5270 = vmatprep.subr.bf16.mxu0 0
    %5271 = vmatpush1.bf16.msra.mxu0 0
    %5272 = vmatprep.subr.bf16.mxu0 0
    %5273 = vmatpush1.bf16.msra.mxu0 0
    %5274 = vmatprep.subr.bf16.mxu0 0
    %5275 = vmatpush1.bf16.msra.mxu0 0
    %5276 = vmatprep.subr.bf16.mxu0 0
    %5277 = vmatpush1.bf16.msra.mxu0 0
    %5278 = vmatprep.subr.bf16.mxu0 0
    %5279 = vmatpush1.bf16.msra.mxu0 0
    %5280 = vmatprep.subr.bf16.mxu0 0
    %5281 = vmatpush1.bf16.msra.mxu0 0
    %5282 = vmatprep.subr.bf16.mxu0 0
    %5283 = vmatpush1.bf16.msra.mxu0 0
    %5284 = vmatprep.subr.bf16.mxu0 0
    %5285 = vmatpush1.bf16.msra.mxu0 0
    %5286 = vmatprep.subr.bf16.mxu0 0
    %5287 = vmatpush1.bf16.msra.mxu0 0
    %5288 = vmatprep.subr.bf16.mxu0 0
    %5289 = vmatpush1.bf16.msra.mxu0 0
    %5290 = vmatprep.subr.bf16.mxu0 0
    %5291 = vmatpush1.bf16.msra.mxu0 0
    %5292 = vmatprep.subr.bf16.mxu0 0
    %5293 = vmatpush1.bf16.msra.mxu0 0
    %5294 = vmatprep.mubr.bf16.mxu0 0
    %5295 = vmatmul.mubr.bf16.gmra.mrb[0].mxu0 %v5254
    %v5296 = vpop.f32.mrb[0].mxu0
    %v5297 = vadd.f32 0.0, %v5296
    %v5298 = vpop.f32.mrb[0].mxu0
    %v5299 = vpop.f32.mrb[0].mxu0
    %v5300 = vadd.f32 0.0, %v5299
    %v5301 = vpop.f32.mrb[0].mxu0
    %5302 = vmatprep.mubr.bf16.mxu0 0
    %5303 = vmatmul.mubr.bf16.gmra.mrb[0].mxu0 %v5257
    %v5304 = vpop.f32.mrb[0].mxu0
    %v5305 = vadd.f32 0.0, %v5304
    %v5306 = vpop.f32.mrb[0].mxu0
    %v5307 = vpop.f32.mrb[0].mxu0
    %v5308 = vpop.f32.mrb[0].mxu0
    %5309 = vdwg.mxu0
    %5310 = vrot.lane.b32.xlu0 %v4816, 104
    %v5311 = vpop.permute.xlu0 %5310
    %5312 = vrot.lane.b32.xlu0 %v4817, 104
    %v5313 = vpop.permute.xlu0 %5312
    %5314 = vrot.lane.b32.xlu0 %v4818, 104
    %v5315 = vpop.permute.xlu0 %5314
    %5316 = vrot.lane.b32.xlu0 %v4819, 104
    %v5317 = vpop.permute.xlu0 %5316
    %v5319 = vsel %vm705, %v5311, 0
    %v5322 = vsel %vm705, %v5313, 0
    %v5325 = vsel %vm705, %v5315, 0
    %v5328 = vsel %vm705, %v5317, 0
    %5330 = vmatprep.subr.bf16.mxu0 0
    %5331 = vmatpush1.bf16.xpose.msra.mxu0 %v5325
    %5332 = vmatprep.subr.bf16.mxu0 0
    %5333 = vmatpush1.bf16.xpose.msra.mxu0 %v5328
    %5334 = vmatprep.subr.bf16.mxu0 0
    %5335 = vmatpush1.bf16.xpose.msra.mxu0 0
    %5336 = vmatprep.subr.bf16.mxu0 0
    %5337 = vmatpush1.bf16.xpose.msra.mxu0 0
    %5338 = vmatprep.subr.bf16.mxu0 0
    %5339 = vmatpush1.bf16.xpose.msra.mxu0 0
    %5340 = vmatprep.subr.bf16.mxu0 0
    %5341 = vmatpush1.bf16.xpose.msra.mxu0 0
    %5342 = vmatprep.subr.bf16.mxu0 0
    %5343 = vmatpush1.bf16.xpose.msra.mxu0 0
    %5344 = vmatprep.subr.bf16.mxu0 0
    %5345 = vmatpush1.bf16.xpose.msra.mxu0 0
    %5346 = vmatprep.subr.bf16.mxu0 0
    %5347 = vmatpush1.bf16.xpose.msra.mxu0 0
    %5348 = vmatprep.subr.bf16.mxu0 0
    %5349 = vmatpush1.bf16.xpose.msra.mxu0 0
    %5350 = vmatprep.subr.bf16.mxu0 0
    %5351 = vmatpush1.bf16.xpose.msra.mxu0 0
    %5352 = vmatprep.subr.bf16.mxu0 0
    %5353 = vmatpush1.bf16.xpose.msra.mxu0 0
    %5354 = vmatprep.subr.bf16.mxu0 0
    %5355 = vmatpush1.bf16.xpose.msra.mxu0 0
    %5356 = vmatprep.subr.bf16.mxu0 0
    %5357 = vmatpush1.bf16.xpose.msra.mxu0 0
    %5358 = vmatprep.subr.bf16.mxu0 0
    %5359 = vmatpush1.bf16.xpose.msra.mxu0 0
    %5360 = vmatprep.subr.bf16.mxu0 0
    %5361 = vmatpush1.bf16.xpose.msra.mxu0 0
    %5362 = vmatprep.mubr.bf16.mxu0 0
    %5363 = vmatmul.mubr.bf16.gmra.mrb[0].mxu0 %v5319
    %v5364 = vpop.f32.mrb[0].mxu0
    %v5365 = vadd.f32 %v4575, %v5364
    %v5366 = vpop.f32.mrb[0].mxu0
    %v5367 = vpop.f32.mrb[0].mxu0
    %v5368 = vadd.f32 %v4576, %v5367
    %v5369 = vpop.f32.mrb[0].mxu0
    %5370 = vmatprep.mubr.bf16.mxu0 0
    %5371 = vmatmul.mubr.bf16.gmra.mrb[0].mxu0 %v5322
    %v5372 = vpop.f32.mrb[0].mxu0
    %v5373 = vadd.f32 %v4577, %v5372
    %v5374 = vpop.f32.mrb[0].mxu0
    %v5375 = vpop.f32.mrb[0].mxu0
    %v5376 = vpop.f32.mrb[0].mxu0
    %5377 = vdwg.mxu0
    %v5378 = vsel %vm1227, %v5365, -inf
    %5379 = vmax.xlane.f32.xlu0 %v5378
    %v5380 = vpop.xlane.xlu0 %5379
    %v5381 = vsel %vm1227, %v5368, -inf
    %5382 = vmax.xlane.f32.xlu0 %v5381
    %v5383 = vpop.xlane.xlu0 %5382
    %v5384 = vsel %vm1227, %v5373, -inf
    %5385 = vmax.xlane.f32.xlu0 %v5384
    %v5386 = vpop.xlane.xlu0 %5385
    %v5387 = vsub.f32 %v5365, %v5380
    %v5388 = vsub.f32 %v5368, %v5383
    %v5389 = vsub.f32 %v5373, %v5386
    %v5390 = vmul.f32 %v5387, 1.442695
    %v5391 = vpow.pop %v5390
    %v5392 = vmul.f32 %v5388, 1.442695
    %v5393 = vpow.pop %v5392
    %v5394 = vmul.f32 %v5389, 1.442695
    %v5395 = vpow.pop %v5394
    %v5396 = vsel %vm1227, %v5391, 0.0
    %5397 = vadd.xlane.f32.xlu0 %v5396
    %v5398 = vpop.xlane.xlu0 %5397
    %v5399 = vsel %vm1227, %v5393, 0.0
    %5400 = vadd.xlane.f32.xlu0 %v5399
    %v5401 = vpop.xlane.xlu0 %5400
    %v5402 = vsel %vm1227, %v5395, 0.0
    %5403 = vadd.xlane.f32.xlu0 %v5402
    %v5404 = vpop.xlane.xlu0 %5403
    %v5405 = vrcp.pop %v5398
    %v5406 = vrcp.pop %v5401
    %v5407 = vrcp.pop %v5404
    %v5408 = vmul.f32 %v5391, %v5405
    %v5409 = vmul.f32 %v5393, %v5406
    %v5410 = vmul.f32 %v5395, %v5407
    %v5411 = vpack.c.bf16 %v5409, %v5408
    %v5412 = vpack.c.bf16 %v5410, %v5410
    %5413 = vrot.lane.b32.xlu0 %v4915, 104
    %v5414 = vpop.permute.xlu0 %5413
    %5415 = vrot.lane.b32.xlu0 %v4916, 104
    %v5416 = vpop.permute.xlu0 %5415
    %v5419 = vsel %vm1227, %v5411, 0
    %v5422 = vsel %vm1227, %v5412, 0
    %v5425 = vsel %vm2627, %v5416, 0
    %5427 = vmatprep.subr.bf16.mxu0 0
    %5428 = vmatpush1.bf16.msra.mxu0 %v5414
    %5429 = vmatprep.subr.bf16.mxu0 0
    %5430 = vmatpush1.bf16.msra.mxu0 %v5425
    %5431 = vmatprep.subr.bf16.mxu0 0
    %5432 = vmatpush1.bf16.msra.mxu0 0
    %5433 = vmatprep.subr.bf16.mxu0 0
    %5434 = vmatpush1.bf16.msra.mxu0 0
    %5435 = vmatprep.subr.bf16.mxu0 0
    %5436 = vmatpush1.bf16.msra.mxu0 0
    %5437 = vmatprep.subr.bf16.mxu0 0
    %5438 = vmatpush1.bf16.msra.mxu0 0
    %5439 = vmatprep.subr.bf16.mxu0 0
    %5440 = vmatpush1.bf16.msra.mxu0 0
    %5441 = vmatprep.subr.bf16.mxu0 0
    %5442 = vmatpush1.bf16.msra.mxu0 0
    %5443 = vmatprep.subr.bf16.mxu0 0
    %5444 = vmatpush1.bf16.msra.mxu0 0
    %5445 = vmatprep.subr.bf16.mxu0 0
    %5446 = vmatpush1.bf16.msra.mxu0 0
    %5447 = vmatprep.subr.bf16.mxu0 0
    %5448 = vmatpush1.bf16.msra.mxu0 0
    %5449 = vmatprep.subr.bf16.mxu0 0
    %5450 = vmatpush1.bf16.msra.mxu0 0
    %5451 = vmatprep.subr.bf16.mxu0 0
    %5452 = vmatpush1.bf16.msra.mxu0 0
    %5453 = vmatprep.subr.bf16.mxu0 0
    %5454 = vmatpush1.bf16.msra.mxu0 0
    %5455 = vmatprep.subr.bf16.mxu0 0
    %5456 = vmatpush1.bf16.msra.mxu0 0
    %5457 = vmatprep.subr.bf16.mxu0 0
    %5458 = vmatpush1.bf16.msra.mxu0 0
    %5459 = vmatprep.mubr.bf16.mxu0 0
    %5460 = vmatmul.mubr.bf16.gmra.mrb[0].mxu0 %v5419
    %v5461 = vpop.f32.mrb[0].mxu0
    %v5462 = vadd.f32 0.0, %v5461
    %v5463 = vpop.f32.mrb[0].mxu0
    %v5464 = vpop.f32.mrb[0].mxu0
    %v5465 = vadd.f32 0.0, %v5464
    %v5466 = vpop.f32.mrb[0].mxu0
    %5467 = vmatprep.mubr.bf16.mxu0 0
    %5468 = vmatmul.mubr.bf16.gmra.mrb[0].mxu0 %v5422
    %v5469 = vpop.f32.mrb[0].mxu0
    %v5470 = vadd.f32 0.0, %v5469
    %v5471 = vpop.f32.mrb[0].mxu0
    %v5472 = vpop.f32.mrb[0].mxu0
    %v5473 = vpop.f32.mrb[0].mxu0
    %5474 = vdwg.mxu0
    %5478 = vrot.lane.b32.xlu0 %v5132, 8
    %v5479 = vpop.permute.xlu0 %5478
    %5480 = vrot.lane.b32.xlu0 %v5135, 8
    %v5481 = vpop.permute.xlu0 %5480
    %5482 = vrot.lane.b32.xlu0 %v5140, 8
    %v5483 = vpop.permute.xlu0 %5482
    %5490 = vrot.lane.b32.xlu0 %v5297, 16
    %v5491 = vpop.permute.xlu0 %5490
    %5492 = vrot.lane.b32.xlu0 %v5300, 16
    %v5493 = vpop.permute.xlu0 %5492
    %5494 = vrot.lane.b32.xlu0 %v5305, 16
    %v5495 = vpop.permute.xlu0 %5494
    %5502 = vrot.lane.b32.xlu0 %v5462, 24
    %v5503 = vpop.permute.xlu0 %5502
    %5504 = vrot.lane.b32.xlu0 %v5465, 24
    %v5505 = vpop.permute.xlu0 %5504
    %5506 = vrot.lane.b32.xlu0 %v5470, 24
    %v5507 = vpop.permute.xlu0 %5506
    %v5511 = vsel %vm705, %v4961, %v5479
    %v5512 = vsel %vm705, %v4964, %v5481
    %v5513 = vsel %vm705, %v4969, %v5483
    %v5514 = vsel %vm1224, %v5511, %v5491
    %v5515 = vsel %vm1224, %v5512, %v5493
    %v5516 = vsel %vm1224, %v5513, %v5495
    %v5517 = vsel %vm1227, %v5514, %v5503
    %v5518 = vsel %vm1227, %v5515, %v5505
    %v5519 = vsel %vm1227, %v5516, %v5507
    %v5520 = vpack.c.bf16 %v5518, %v5517
    %v5521 = vpack.c.bf16 %v5519, %v5519
    %v5526 = vunpack.c.l.b16 %v4624
    %v5527 = vunpack.c.l.b16 %v4625
    %v5528 = vunpack.c.l.b16 %v4626
    %v5529 = vunpack.c.l.b16 %v4627
    %v5530 = vpack.c.b16 %v5527, %v5526
    %v5531 = vpack.c.b16 %v5529, %v5528
    %v5535 = vsel %vm457, %v5520, 0
    %v5538 = vsel %vm457, %v5521, 0
    %5540 = vmatprep.subr.bf16.mxu0 0
    %5541 = vmatpush1.bf16.msra.mxu0 %v5530
    %5542 = vmatprep.subr.bf16.mxu0 0
    %5543 = vmatpush1.bf16.msra.mxu0 %v5531
    %5544 = vmatprep.subr.bf16.mxu0 0
    %5545 = vmatpush1.bf16.msra.mxu0 0
    %5546 = vmatprep.subr.bf16.mxu0 0
    %5547 = vmatpush1.bf16.msra.mxu0 0
    %5548 = vmatprep.subr.bf16.mxu0 0
    %5549 = vmatpush1.bf16.msra.mxu0 0
    %5550 = vmatprep.subr.bf16.mxu0 0
    %5551 = vmatpush1.bf16.msra.mxu0 0
    %5552 = vmatprep.subr.bf16.mxu0 0
    %5553 = vmatpush1.bf16.msra.mxu0 0
    %5554 = vmatprep.subr.bf16.mxu0 0
    %5555 = vmatpush1.bf16.msra.mxu0 0
    %5556 = vmatprep.subr.bf16.mxu0 0
    %5557 = vmatpush1.bf16.msra.mxu0 0
    %5558 = vmatprep.subr.bf16.mxu0 0
    %5559 = vmatpush1.bf16.msra.mxu0 0
    %5560 = vmatprep.subr.bf16.mxu0 0
    %5561 = vmatpush1.bf16.msra.mxu0 0
    %5562 = vmatprep.subr.bf16.mxu0 0
    %5563 = vmatpush1.bf16.msra.mxu0 0
    %5564 = vmatprep.subr.bf16.mxu0 0
    %5565 = vmatpush1.bf16.msra.mxu0 0
    %5566 = vmatprep.subr.bf16.mxu0 0
    %5567 = vmatpush1.bf16.msra.mxu0 0
    %5568 = vmatprep.subr.bf16.mxu0 0
    %5569 = vmatpush1.bf16.msra.mxu0 0
    %5570 = vmatprep.subr.bf16.mxu0 0
    %5571 = vmatpush1.bf16.msra.mxu0 0
    %5572 = vmatprep.mubr.bf16.mxu0 0
    %5573 = vmatmul.mubr.bf16.gmra.mrb[0].mxu0 %v5535
    %v5574 = vpop.f32.mrb[0].mxu0
    %v5575 = vadd.f32 0.0, %v5574
    %v5576 = vpop.f32.mrb[0].mxu0
    %v5577 = vpop.f32.mrb[0].mxu0
    %v5578 = vadd.f32 0.0, %v5577
    %v5579 = vpop.f32.mrb[0].mxu0
    %5580 = vmatprep.mubr.bf16.mxu0 0
    %5581 = vmatmul.mubr.bf16.gmra.mrb[0].mxu0 %v5538
    %v5582 = vpop.f32.mrb[0].mxu0
    %v5583 = vadd.f32 0.0, %v5582
    %v5584 = vpop.f32.mrb[0].mxu0
    %v5585 = vpop.f32.mrb[0].mxu0
    %v5586 = vpop.f32.mrb[0].mxu0
    %5587 = vdwg.mxu0
    %v5588 = vadd.f32 %v4541, %v5575
    %v5589 = vadd.f32 %v4542, %v5578
    %v5590 = vadd.f32 %v4535, %v5583
    %s5591 = scalar_lea.vmem %s87, 1
    %v5592 = vld [vmem:[%s5591] sm:$0x1]
    %v5593 = vmul.f32 %v5588, %v5588
    %v5594 = vmul.f32 %v5589, %v5589
    %v5595 = vmul.f32 %v5590, %v5590
    %v5596 = vsel %vm457, %v5593, 0.0
    %5597 = vadd.xlane.f32.xlu0 %v5596
    %v5598 = vpop.xlane.xlu0 %5597
    %v5599 = vsel %vm457, %v5594, 0.0
    %5600 = vadd.xlane.f32.xlu0 %v5599
    %v5601 = vpop.xlane.xlu0 %5600
    %v5602 = vsel %vm457, %v5595, 0.0
    %5603 = vadd.xlane.f32.xlu0 %v5602
    %v5604 = vpop.xlane.xlu0 %5603
    %v5605 = vmul.f32 %v5598, %v465
    %v5606 = vmul.f32 %v5601, %v465
    %v5607 = vmul.f32 %v5604, %v465
    %v5608 = vadd.f32 %v5605, 1e-06
    %v5609 = vadd.f32 %v5606, 1e-06
    %v5610 = vadd.f32 %v5607, 1e-06
    %v5611 = vrsqrt.pop %v5608
    %v5612 = vrsqrt.pop %v5609
    %v5613 = vrsqrt.pop %v5610
    %v5614 = vmul.f32 %v5588, %v5611
    %v5615 = vmul.f32 %v5589, %v5612
    %v5616 = vmul.f32 %v5590, %v5613
    %v5618 = vlaneseq
    %v5619 = vshrl.u32 %v5618, 7
    %v5620 = vsub.s32 0, %v5619
    %v5621 = vrot.slane %v5592, %v5620
    %v5623 = vmul.f32 %v5614, %v5621
    %v5624 = vmul.f32 %v5615, %v5621
    %v5625 = vmul.f32 %v5616, %v5621
    %v5626 = vld [vmem:[%s97] sm:$0xf]
    %v5627 = vld [vmem:[%s97 + $0x4] sm:$0xf]
    %v5628 = vld [vmem:[%s97 + $0x8] sm:$0xf]
    %v5629 = vld [vmem:[%s97 + $0xc] sm:$0xf]
    %v5630 = vpack.c.bf16 %v5624, %v5623
    %v5631 = vpack.c.bf16 %v5625, %v5625
    %v5636 = vunpack.c.l.b16 %v5626
    %v5637 = vunpack.c.l.b16 %v5627
    %v5638 = vunpack.c.l.b16 %v5628
    %v5639 = vunpack.c.l.b16 %v5629
    %v5640 = vpack.c.b16 %v5637, %v5636
    %v5641 = vpack.c.b16 %v5639, %v5638
    %v5645 = vsel %vm457, %v5630, 0
    %v5648 = vsel %vm457, %v5631, 0
    %5650 = vmatprep.subr.bf16.mxu0 0
    %5651 = vmatpush1.bf16.msra.mxu0 %v5640
    %5652 = vmatprep.subr.bf16.mxu0 0
    %5653 = vmatpush1.bf16.msra.mxu0 %v5641
    %5654 = vmatprep.subr.bf16.mxu0 0
    %5655 = vmatpush1.bf16.msra.mxu0 0
    %5656 = vmatprep.subr.bf16.mxu0 0
    %5657 = vmatpush1.bf16.msra.mxu0 0
    %5658 = vmatprep.subr.bf16.mxu0 0
    %5659 = vmatpush1.bf16.msra.mxu0 0
    %5660 = vmatprep.subr.bf16.mxu0 0
    %5661 = vmatpush1.bf16.msra.mxu0 0
    %5662 = vmatprep.subr.bf16.mxu0 0
    %5663 = vmatpush1.bf16.msra.mxu0 0
    %5664 = vmatprep.subr.bf16.mxu0 0
    %5665 = vmatpush1.bf16.msra.mxu0 0
    %5666 = vmatprep.subr.bf16.mxu0 0
    %5667 = vmatpush1.bf16.msra.mxu0 0
    %5668 = vmatprep.subr.bf16.mxu0 0
    %5669 = vmatpush1.bf16.msra.mxu0 0
    %5670 = vmatprep.subr.bf16.mxu0 0
    %5671 = vmatpush1.bf16.msra.mxu0 0
    %5672 = vmatprep.subr.bf16.mxu0 0
    %5673 = vmatpush1.bf16.msra.mxu0 0
    %5674 = vmatprep.subr.bf16.mxu0 0
    %5675 = vmatpush1.bf16.msra.mxu0 0
    %5676 = vmatprep.subr.bf16.mxu0 0
    %5677 = vmatpush1.bf16.msra.mxu0 0
    %5678 = vmatprep.subr.bf16.mxu0 0
    %5679 = vmatpush1.bf16.msra.mxu0 0
    %5680 = vmatprep.subr.bf16.mxu0 0
    %5681 = vmatpush1.bf16.msra.mxu0 0
    %5682 = vmatprep.mubr.bf16.mxu0 0
    %5683 = vmatmul.mubr.bf16.gmra.mrb[0].mxu0 %v5645
    %v5684 = vpop.f32.mrb[0].mxu0
    %v5685 = vadd.f32 0.0, %v5684
    %v5686 = vpop.f32.mrb[0].mxu0
    %v5687 = vpop.f32.mrb[0].mxu0
    %v5688 = vadd.f32 0.0, %v5687
    %v5689 = vpop.f32.mrb[0].mxu0
    %5690 = vmatprep.mubr.bf16.mxu0 0
    %5691 = vmatmul.mubr.bf16.gmra.mrb[0].mxu0 %v5648
    %v5692 = vpop.f32.mrb[0].mxu0
    %v5693 = vadd.f32 0.0, %v5692
    %v5694 = vpop.f32.mrb[0].mxu0
    %v5695 = vpop.f32.mrb[0].mxu0
    %v5696 = vpop.f32.mrb[0].mxu0
    %5697 = vdwg.mxu0
    %v5698 = vxor.u32 %v5685, 2147483648
    %v5699 = vxor.u32 %v5688, 2147483648
    %v5700 = vxor.u32 %v5693, 2147483648
    %v5701 = vmul.f32 %v5698, 1.442695
    %v5702 = vpow.pop %v5701
    %v5703 = vmul.f32 %v5699, 1.442695
    %v5704 = vpow.pop %v5703
    %v5705 = vmul.f32 %v5700, 1.442695
    %v5706 = vpow.pop %v5705
    %v5707 = vadd.f32 %v5702, 1.0
    %v5708 = vadd.f32 %v5704, 1.0
    %v5709 = vadd.f32 %v5706, 1.0
    %v5710 = vrcp.pop %v5707
    %v5711 = vmul.f32 1.0, %v5710
    %v5712 = vrcp.pop %v5708
    %v5713 = vmul.f32 1.0, %v5712
    %v5714 = vrcp.pop %v5709
    %v5715 = vmul.f32 1.0, %v5714
    %v5716 = vmul.f32 %v5685, %v5711
    %v5717 = vmul.f32 %v5688, %v5713
    %v5718 = vmul.f32 %v5693, %v5715
    %5722 = vrot.lane.b32.xlu0 %v5685, 64
    %v5723 = vpop.permute.xlu0 %5722
    %5724 = vrot.lane.b32.xlu0 %v5688, 64
    %v5725 = vpop.permute.xlu0 %5724
    %5726 = vrot.lane.b32.xlu0 %v5693, 64
    %v5727 = vpop.permute.xlu0 %5726
    %v5731 = vmul.f32 %v5716, %v5723
    %v5732 = vmul.f32 %v5717, %v5725
    %v5733 = vmul.f32 %v5718, %v5727
    %v5734 = vld [vmem:[%s99] sm:$0xf]
    %v5735 = vld [vmem:[%s99 + $0x4] sm:$0xf]
    %v5736 = vld [vmem:[%s99 + $0x8] sm:$0xf]
    %v5737 = vld [vmem:[%s99 + $0xc] sm:$0xf]
    %v5738 = vld [vmem:[%s99 + $0x10] sm:$0xf]
    %v5739 = vld [vmem:[%s99 + $0x14] sm:$0xf]
    %v5740 = vld [vmem:[%s99 + $0x18] sm:$0xf]
    %v5741 = vld [vmem:[%s99 + $0x1c] sm:$0xf]
    %v5742 = vpack.c.bf16 %v5732, %v5731
    %v5743 = vpack.c.bf16 %v5733, %v5733
    %v5752 = vunpack.c.l.b16 %v5734
    %v5753 = vunpack.c.l.b16 %v5735
    %v5754 = vunpack.c.l.b16 %v5736
    %v5755 = vunpack.c.l.b16 %v5737
    %v5756 = vunpack.c.l.b16 %v5738
    %v5757 = vunpack.c.l.b16 %v5739
    %v5758 = vunpack.c.l.b16 %v5740
    %v5759 = vunpack.c.l.b16 %v5741
    %v5760 = vpack.c.b16 %v5753, %v5752
    %v5761 = vpack.c.b16 %v5755, %v5754
    %v5762 = vpack.c.b16 %v5757, %v5756
    %v5763 = vpack.c.b16 %v5759, %v5758
    %v5769 = vsel %vm379, %v5742, 0
    %v5772 = vsel %vm379, %v5743, 0
    %5774 = vmatprep.subr.bf16.mxu0 0
    %5775 = vmatpush1.bf16.msra.mxu0 %v5760
    %5776 = vmatprep.subr.bf16.mxu0 0
    %5777 = vmatpush1.bf16.msra.mxu0 %v5761
    %5778 = vmatprep.subr.bf16.mxu0 0
    %5779 = vmatpush1.bf16.msra.mxu0 %v5762
    %5780 = vmatprep.subr.bf16.mxu0 0
    %5781 = vmatpush1.bf16.msra.mxu0 %v5763
    %5782 = vmatprep.subr.bf16.mxu0 0
    %5783 = vmatpush1.bf16.msra.mxu0 0
    %5784 = vmatprep.subr.bf16.mxu0 0
    %5785 = vmatpush1.bf16.msra.mxu0 0
    %5786 = vmatprep.subr.bf16.mxu0 0
    %5787 = vmatpush1.bf16.msra.mxu0 0
    %5788 = vmatprep.subr.bf16.mxu0 0
    %5789 = vmatpush1.bf16.msra.mxu0 0
    %5790 = vmatprep.subr.bf16.mxu0 0
    %5791 = vmatpush1.bf16.msra.mxu0 0
    %5792 = vmatprep.subr.bf16.mxu0 0
    %5793 = vmatpush1.bf16.msra.mxu0 0
    %5794 = vmatprep.subr.bf16.mxu0 0
    %5795 = vmatpush1.bf16.msra.mxu0 0
    %5796 = vmatprep.subr.bf16.mxu0 0
    %5797 = vmatpush1.bf16.msra.mxu0 0
    %5798 = vmatprep.subr.bf16.mxu0 0
    %5799 = vmatpush1.bf16.msra.mxu0 0
    %5800 = vmatprep.subr.bf16.mxu0 0
    %5801 = vmatpush1.bf16.msra.mxu0 0
    %5802 = vmatprep.subr.bf16.mxu0 0
    %5803 = vmatpush1.bf16.msra.mxu0 0
    %5804 = vmatprep.subr.bf16.mxu0 0
    %5805 = vmatpush1.bf16.msra.mxu0 0
    %5806 = vmatprep.mubr.bf16.mxu0 0
    %5807 = vmatmul.mubr.bf16.gmra.mrb[0].mxu0 %v5769
    %v5808 = vpop.f32.mrb[0].mxu0
    %v5809 = vadd.f32 0.0, %v5808
    %v5810 = vpop.f32.mrb[0].mxu0
    %v5811 = vpop.f32.mrb[0].mxu0
    %v5812 = vadd.f32 0.0, %v5811
    %v5813 = vpop.f32.mrb[0].mxu0
    %5814 = vmatprep.mubr.bf16.mxu0 0
    %5815 = vmatmul.mubr.bf16.gmra.mrb[0].mxu0 %v5772
    %v5816 = vpop.f32.mrb[0].mxu0
    %v5817 = vadd.f32 0.0, %v5816
    %v5818 = vpop.f32.mrb[0].mxu0
    %v5819 = vpop.f32.mrb[0].mxu0
    %v5820 = vpop.f32.mrb[0].mxu0
    %5821 = vdwg.mxu0
    %v5822 = vadd.f32 %v5588, %v5809
    %v5823 = vadd.f32 %v5589, %v5812
    %v5824 = vadd.f32 %v5590, %v5817
    %v5827 = vrot.slane %v5822, 4
    %v5828 = vrot.slane %v5823, 4
    %v5829 = vsel %vm2627, %v5827, %v5828
    %s5831 = scalar_lea.vmem %s87, 2
    %v5832 = vld [vmem:[%s5831] sm:$0x1]
    %v5833 = vmul.f32 %v5829, %v5829
    %v5834 = vmul.f32 %v5824, %v5824
    %v5835 = vsel %vm457, %v5833, 0.0
    %5836 = vadd.xlane.f32.xlu0 %v5835
    %v5837 = vpop.xlane.xlu0 %5836
    %v5838 = vsel %vm457, %v5834, 0.0
    %5839 = vadd.xlane.f32.xlu0 %v5838
    %v5840 = vpop.xlane.xlu0 %5839
    %v5841 = vmul.f32 %v5837, %v465
    %v5842 = vmul.f32 %v5840, %v465
    %v5843 = vadd.f32 %v5841, 1e-06
    %v5844 = vadd.f32 %v5842, 1e-06
    %v5845 = vrsqrt.pop %v5843
    %v5846 = vrsqrt.pop %v5844
    %v5847 = vmul.f32 %v5829, %v5845
    %v5848 = vmul.f32 %v5824, %v5846
    %v5850 = vlaneseq
    %v5851 = vshrl.u32 %v5850, 7
    %v5852 = vsub.s32 0, %v5851
    %v5853 = vrot.slane %v5832, %v5852
    %v5855 = vmul.f32 %v5847, %v5853
    %v5856 = vmul.f32 %v5848, %v5853
    %v5857 = vld [vmem:[%s101] sm:$0xf]
    %v5858 = vld [vmem:[%s101 + $0x4] sm:$0xf]
    %v5859 = vld [vmem:[%s101 + $0x8] sm:$0xf]
    %v5860 = vld [vmem:[%s101 + $0xc] sm:$0xf]
    %v5861 = vpack.c.bf16 %v5856, %v5855
    %v5866 = vunpack.c.l.b16 %v5857
    %v5867 = vunpack.c.l.b16 %v5858
    %v5868 = vunpack.c.l.b16 %v5859
    %v5869 = vunpack.c.l.b16 %v5860
    %v5870 = vpack.c.b16 %v5867, %v5866
    %v5871 = vpack.c.b16 %v5869, %v5868
    %v5875 = vsel %vm457, %v5861, 0
    %5877 = vmatprep.subr.bf16.mxu0 0
    %5878 = vmatpush1.bf16.msra.mxu0 %v5870
    %5879 = vmatprep.subr.bf16.mxu0 0
    %5880 = vmatpush1.bf16.msra.mxu0 %v5871
    %5881 = vmatprep.subr.bf16.mxu0 0
    %5882 = vmatpush1.bf16.msra.mxu0 0
    %5883 = vmatprep.subr.bf16.mxu0 0
    %5884 = vmatpush1.bf16.msra.mxu0 0
    %5885 = vmatprep.subr.bf16.mxu0 0
    %5886 = vmatpush1.bf16.msra.mxu0 0
    %5887 = vmatprep.subr.bf16.mxu0 0
    %5888 = vmatpush1.bf16.msra.mxu0 0
    %5889 = vmatprep.subr.bf16.mxu0 0
    %5890 = vmatpush1.bf16.msra.mxu0 0
    %5891 = vmatprep.subr.bf16.mxu0 0
    %5892 = vmatpush1.bf16.msra.mxu0 0
    %5893 = vmatprep.subr.bf16.mxu0 0
    %5894 = vmatpush1.bf16.msra.mxu0 0
    %5895 = vmatprep.subr.bf16.mxu0 0
    %5896 = vmatpush1.bf16.msra.mxu0 0
    %5897 = vmatprep.subr.bf16.mxu0 0
    %5898 = vmatpush1.bf16.msra.mxu0 0
    %5899 = vmatprep.subr.bf16.mxu0 0
    %5900 = vmatpush1.bf16.msra.mxu0 0
    %5901 = vmatprep.subr.bf16.mxu0 0
    %5902 = vmatpush1.bf16.msra.mxu0 0
    %5903 = vmatprep.subr.bf16.mxu0 0
    %5904 = vmatpush1.bf16.msra.mxu0 0
    %5905 = vmatprep.subr.bf16.mxu0 0
    %5906 = vmatpush1.bf16.msra.mxu0 0
    %5907 = vmatprep.subr.bf16.mxu0 0
    %5908 = vmatpush1.bf16.msra.mxu0 0
    %5909 = vmatprep.mubr.bf16.mxu0 0
    %5910 = vmatmul.mubr.bf16.gmra.mrb[0].mxu0 %v5875
    %v5911 = vpop.f32.mrb[0].mxu0
    %v5912 = vadd.f32 0.0, %v5911
    %v5913 = vpop.f32.mrb[0].mxu0
    %v5914 = vpop.f32.mrb[0].mxu0
    %v5915 = vadd.f32 0.0, %v5914
    %v5916 = vpop.f32.mrb[0].mxu0
    %5917 = vdwg.mxu0
    %v5918 = vsel %vm379, %v5912, -inf
    %5919 = vmax.xlane.f32.xlu0 %v5918
    %v5920 = vpop.xlane.xlu0 %5919
    %v5921 = vsel %vm379, %v5915, -inf
    %5922 = vmax.xlane.f32.xlu0 %v5921
    %v5923 = vpop.xlane.xlu0 %5922
    %v5924 = vsub.f32 %v5912, %v5920
    %v5925 = vsub.f32 %v5915, %v5923
    %v5926 = vmul.f32 %v5924, 1.442695
    %v5927 = vpow.pop %v5926
    %v5928 = vmul.f32 %v5925, 1.442695
    %v5929 = vpow.pop %v5928
    %v5930 = vsel %vm379, %v5927, 0.0
    %5931 = vadd.xlane.f32.xlu0 %v5930
    %v5932 = vpop.xlane.xlu0 %5931
    %v5933 = vsel %vm379, %v5929, 0.0
    %5934 = vadd.xlane.f32.xlu0 %v5933
    %v5935 = vpop.xlane.xlu0 %5934
    %v5936 = vlog2.pop %v5932
    %v5937 = vmul.f32 %v5936, 0.6931472
    %v5938 = vlog2.pop %v5935
    %v5939 = vmul.f32 %v5938, 0.6931472
    %v5940 = vadd.f32 %v5937, %v5920
    %v5941 = vadd.f32 %v5939, %v5923
    %v5942 = vld [vmem:[%s7] sm:$0xff]
    %v5943 = vld [vmem:[%s7 + $0x8] sm:$0xff]
    %5944 = vset.pattern.permute.xlu0 0
    %5945 = vperm.xlu0 %5944, %v5942
    %v5946 = vpop.permute.xlu0 %5945
    %5947 = vset.pattern.permute.xlu0 0
    %5948 = vperm.xlu0 %5947, %v5943
    %v5949 = vpop.permute.xlu0 %5948
    %vm5950 = vcmp.eq.s32.totalorder %v2632, %v5946
    %vm5951 = vcmp.eq.s32.totalorder %v2632, %v5949
    %v5952 = vsel %vm5950, 1, 0
    %v5953 = vsel %vm5951, 1, 0
    %v5954 = vcvt.s32.f32 %v5952
    %v5955 = vcvt.s32.f32 %v5953
    %v5956 = vmul.f32 %v5912, %v5954
    %v5957 = vmul.f32 %v5915, %v5955
    %v5958 = vsel %vm379, %v5956, 0.0
    %5959 = vadd.xlane.f32.xlu0 %v5958
    %v5960 = vpop.xlane.xlu0 %5959
    %v5961 = vsel %vm379, %v5957, 0.0
    %5962 = vadd.xlane.f32.xlu0 %v5961
    %v5963 = vpop.xlane.xlu0 %5962
    %v5964 = vsub.f32 %v5940, %v5960
    %v5965 = vsub.f32 %v5941, %v5963
    %v5966 = vld [vmem:[%s9] sm:$0xff]
    %v5967 = vld [vmem:[%s9 + $0x8] sm:$0xff]
    %v5968 = vmul.f32 %v5964, %v5966
    %v5969 = vmul.f32 %v5965, %v5967
    %vm5970 = vcmask 7168
    %v5971 = vsel %vm5970, %v5968, 0.0
    %v5972 = vsel %vm5970, %v5969, 0.0
    %v5973 = vadd.f32 %v5971, %v5972
    %5974 = vadd.xlane.f32.xlu0 %v5973
    %v5975 = vpop.xlane.xlu0 %5974
    %v5976 = vrot.slane %v5975, 4
    %v5977 = vadd.f32 %v5975, %v5976
    %v5978 = vrot.slane %v5977, 2
    %v5979 = vadd.f32 %v5977, %v5978
    %v5980 = vrot.slane %v5979, 1
    %v5981 = vadd.f32 %v5979, %v5980
    %s5982 = vtos %v5981
    %v5983 = vsel %vm5970, %v5966, 0.0
    %v5984 = vsel %vm5970, %v5967, 0.0
    %v5985 = vadd.f32 %v5983, %v5984
    %5986 = vadd.xlane.f32.xlu0 %v5985
    %v5987 = vpop.xlane.xlu0 %5986
    %v5988 = vrot.slane %v5987, 4
    %v5989 = vadd.f32 %v5987, %v5988
    %v5990 = vrot.slane %v5989, 2
    %v5991 = vadd.f32 %v5989, %v5990
    %v5992 = vrot.slane %v5991, 1
    %v5993 = vadd.f32 %v5991, %v5992
    %s5994 = vtos %v5993
    %s5995 = smax.f32 %s5994, 1.0
    %v5996 = vstv %s5995
    %v5997 = vrcp.pop %v5996
    %s5998 = vtos %v5997
    %s5999 = smul.f32 %s5982, %s5998
    %s6000 = scalar_lea.smem [#allocation11], 0
    %6001 = sst [smem:[%s6000]] %s5999
    // Predicated region
    $region226: #{emu_forward.1} parent=1 // pred_check
      _
    $region227: #{emu_forward.1} parent=1 // pred_check_branch
      %6003 = sbr.rel (0) target = $region229
    $region228: #{emu_forward.1} parent=1 // pred_region
      %s6005 = ssub.s32 16, 16
      %6006 = vsyncadd [#allocation4], %s6005
      %6009 = dma.smem_to_hbm [#allocation11], 16, %s103, [#allocation4]
    $region229: #{emu_forward.1} parent=1 // pred_fallthru
      _
    // Predicated region
    $region230: #{emu_forward.1} parent=1 // pred_check
      _
    $region231: #{emu_forward.1} parent=1 // pred_check_branch
      %6011 = sbr.rel (0) target = $region233
    $region232: #{emu_forward.1} parent=1 // pred_region
      %6012 = dma.done [#allocation4], 16
    $region233: #{emu_forward.1} parent=1 // pred_fallthru
      _
    %6013 = sfence
    %6014 = vsyncpa [#allocation3], 1
    %6015 = vsyncpa [#allocation6], 1
    %6016 = vsyncpa [#allocation9], 1
    %6017 = vsyncpa [#allocation4], 1

</llo_original>
